<compile_context>
chip_gen: v7x
topology: tpu7x:2x2x1
jax: 0.10.0
libtpu: 0.0.40
codegen_flags: <defaults>
</compile_context>

<pallas_src>
import functools

import jax
import jax.numpy as jnp
from jax.experimental import pallas as pl
from jax.experimental.pallas import tpu as pltpu

EPS = 1e-5
DEPTH = 4


def _dense_block_kernel(x_ref, w_ref, aff_ref, out_ref, skip_ref, xs_ref,
                        *, T, F, C, depth):
    """Fused DenseBlock forward for one batch element.

    x_ref    : (1, T, F, C)          input block
    w_ref    : (depth, 6*CS, C)      per-layer conv weights, zero-padded to the
                                     full skip width CS = depth*C, im2col order
    aff_ref  : (depth, 3, C)         packed [gamma, beta, prelu_alpha] per layer
    out_ref  : (1, T, F, C)          last layer output
    skip_ref : (T+MAXDIL, F+2, CS)   VMEM skip buffer; zero borders provide the
                                     causal-T / symmetric-F ConstantPad2d
    xs_ref   : (T*F, 6*CS)           VMEM im2col staging buffer
    """
    MAXDIL = 2 ** (depth - 1)
    CS = depth * C
    TF = T * F

    # Zero the padded skip buffer: gives the ConstantPad2d borders and keeps
    # not-yet-written channel slots finite (their weight rows are zero anyway).
    skip_ref[...] = jnp.zeros_like(skip_ref)
    # The block input occupies the last channel slot ("oldest" in concat order).
    skip_ref[MAXDIL:MAXDIL + T, 1:F + 1, (depth - 1) * C:] = (
        x_ref[0].astype(skip_ref.dtype))

    for i in range(depth):
        dil = 2 ** i
        # --- im2col: six taps of the dilated 2x3 conv laid side by side along
        # the contraction axis -> a single MXU matmul per layer.
        for kh in range(2):
            r0 = MAXDIL - dil + kh * dil        # rows above MAXDIL are the causal zeros
            for kw in range(3):
                tap = skip_ref[r0:r0 + T, kw:kw + F, :]       # (T, F, CS)
                col = (kh * 3 + kw) * CS
                xs_ref[:, col:col + CS] = tap.reshape(TF, CS)

        acc = jnp.dot(xs_ref[...], w_ref[i],
                      preferred_element_type=jnp.float32)      # (T*F, C)

        # --- InstanceNorm2d (biased var, eps=1e-5, affine), single-pass stats.
        # Conv bias is omitted: a per-channel constant added before the norm is
        # exactly cancelled by the mean subtraction below.
        inv_n = 1.0 / TF
        mean = jnp.sum(acc, axis=0, keepdims=True) * inv_n     # (1, C)
        ex2 = jnp.sum(acc * acc, axis=0, keepdims=True) * inv_n
        var = jnp.maximum(ex2 - mean * mean, 0.0)
        aff = aff_ref[i]                                       # (3, C)
        y = (acc - mean) * jax.lax.rsqrt(var + EPS)
        y = y * aff[0:1, :] + aff[1:2, :]
        # --- PReLU with per-channel slope.
        y = jnp.where(y >= 0.0, y, aff[2:3, :] * y)

        y3 = y.reshape(T, F, C)
        if i + 1 < depth:
            # skip = concat([out_i, skip]): the new output takes the next slot.
            s0 = (depth - 2 - i) * C
            skip_ref[MAXDIL:MAXDIL + T, 1:F + 1, s0:s0 + C] = y3
        else:
            out_ref[0] = y3.astype(out_ref.dtype)


def _pack_params(params, C, depth):
    """Zero-pad each layer's weight to the full skip width and pack the affine
    parameters of all layers into single arrays (one DMA each, not 4 per layer)."""
    CS = depth * C
    w_list, aff_list = [], []
    for i, (w, b, gamma, beta, alpha) in enumerate(params):
        cin = C * (i + 1)
        off = (depth - 1 - i) * C       # layer i reads skip channels [off : CS)
        wp = jnp.zeros((2, 3, CS, C), jnp.float32)
        wp = wp.at[:, :, off:off + cin, :].set(w.astype(jnp.float32))
        w_list.append(wp.reshape(6 * CS, C))
        # conv bias b intentionally dropped (cancelled by InstanceNorm mean).
        aff_list.append(jnp.concatenate([gamma, beta, alpha], axis=0))  # (3, C)
    return jnp.stack(w_list), jnp.stack(aff_list)


def dense_block_forward(x, params, depth=DEPTH):
    """x: (B, T, F, C) channels-last. Returns (B, T, F, C) (last layer output)."""
    B, T, F, C = x.shape
    CS = depth * C
    MAXDIL = 2 ** (depth - 1)
    W, aff = _pack_params(params, C, depth)
    kernel = functools.partial(_dense_block_kernel, T=T, F=F, C=C, depth=depth)
    grid_spec = pltpu.PrefetchScalarGridSpec(
        num_scalar_prefetch=0,
        grid=(B,),
        in_specs=[
            pl.BlockSpec((1, T, F, C), lambda b: (b, 0, 0, 0)),
            pl.BlockSpec((depth, 6 * CS, C), lambda b: (0, 0, 0)),
            pl.BlockSpec((depth, 3, C), lambda b: (0, 0, 0)),
        ],
        out_specs=pl.BlockSpec((1, T, F, C), lambda b: (b, 0, 0, 0)),
        scratch_shapes=[
            pltpu.VMEM((T + MAXDIL, F + 2, CS), jnp.float32),   # resident skip buffer
            pltpu.VMEM((T * F, 6 * CS), jnp.float32),           # im2col staging
        ],
    )
    # TODO(synk): at real MPSENet sizes (T~400, F~100, C=64) tile T in the grid
    # with two-pass InstanceNorm accumulation and present a lane-dense
    # (multiple-of-128 last dim) output slab; at these toy shapes the whole
    # skip buffer is <100 KB and the final store is 4 KB, so neither is needed.
    return pl.pallas_call(
        kernel,
        out_shape=jax.ShapeDtypeStruct((B, T, F, C), x.dtype),
        grid_spec=grid_spec,
        compiler_params=pltpu.CompilerParams(
            dimension_semantics=("parallel",)),
    )(x, W, aff)


# ---------------- pure-JAX reference (for verification only) ----------------
def _ref_layer(skip, w, b, gamma, beta, alpha, dil):
    xpad = jnp.pad(skip, ((0, 0), (dil, 0), (1, 1), (0, 0)))
    y = jax.lax.conv_general_dilated(
        xpad, w, window_strides=(1, 1), padding='VALID',
        rhs_dilation=(dil, 1),
        dimension_numbers=('NHWC', 'HWIO', 'NHWC'))
    y = y + b.reshape(1, 1, 1, -1)
    mean = y.mean(axis=(1, 2), keepdims=True)
    var = ((y - mean) ** 2).mean(axis=(1, 2), keepdims=True)
    y = (y - mean) / jnp.sqrt(var + EPS)
    y = y * gamma.reshape(1, 1, 1, -1) + beta.reshape(1, 1, 1, -1)
    return jnp.where(y >= 0.0, y, alpha.reshape(1, 1, 1, -1) * y)


def dense_block_ref(x, params, depth=DEPTH):
    skip = x
    out = x
    for i in range(depth):
        out = _ref_layer(skip, *params[i], dil=2 ** i)
        skip = jnp.concatenate([out, skip], axis=-1)
    return out


# ---------------- deterministic synthetic parameters ----------------
def init_params(key, C, depth=DEPTH):
    params = []
    for i in range(depth):
        Cin = C * (i + 1)
        k = jax.random.fold_in(key, i)
        kw_, kb, kg, kbe = jax.random.split(k, 4)
        scale = 1.0 / jnp.sqrt(jnp.float32(Cin * 2 * 3))
        w = jax.random.uniform(kw_, (2, 3, Cin, C), jnp.float32, -scale, scale)
        b = jax.random.uniform(kb, (1, C), jnp.float32, -scale, scale)
        gamma = jnp.ones((1, C), jnp.float32) + 0.1 * jax.random.normal(kg, (1, C))
        beta = 0.1 * jax.random.normal(kbe, (1, C)).astype(jnp.float32)
        alpha = jnp.full((1, C), 0.25, jnp.float32)   # PReLU default init
        params.append((w, b, gamma, beta, alpha))
    return params


if __name__ == "__main__":
    key = jax.random.PRNGKey(0)
    B, C, T, F = 2, 4, 16, 16          # h.dense_channel = 4
    x = jax.random.normal(jax.random.fold_in(key, 100), (B, T, F, C), jnp.float32)
    params = init_params(jax.random.fold_in(key, 200), C, depth=DEPTH)

    out = dense_block_forward(x, params)
    out = jax.block_until_ready(out)
    assert out.shape == (B, T, F, C)

    ref = dense_block_ref(x, params)
    err = float(jnp.max(jnp.abs(out - ref)))
    assert err < 1e-3, f"kernel/reference mismatch: {err}"

    print("KERNEL_OK")
</pallas_src>

<mosaic_0001>
module attributes {stable_mosaic.version = 11 : i64} {
  func.func @_dense_block_kernel(%arg0: i32, %arg1: memref<1x16x16x4xf32, #tpu.memory_space<vmem>>, %arg2: memref<4x96x4xf32, #tpu.memory_space<vmem>>, %arg3: memref<4x3x4xf32, #tpu.memory_space<vmem>>, %arg4: memref<1x16x16x4xf32, #tpu.memory_space<vmem>>, %arg5: memref<24x18x16xf32, #tpu.memory_space<vmem>>, %arg6: memref<256x96xf32, #tpu.memory_space<vmem>>) attributes {dimension_semantics = [#tpu.dimension_semantics<parallel>], iteration_bounds = array<i64: 2>, scalar_prefetch = 0 : i64, scratch_operands = 2 : i64, tpu.core_type = #tpu.core_type<tc>, window_params = [{transform_indices = @transform_0, window_bounds = array<i64: 1, 16, 16, 4>}, {pipeline_mode = #tpu.pipeline_mode<synchronous>, transform_indices = @transform_1, window_bounds = array<i64: 4, 96, 4>}, {pipeline_mode = #tpu.pipeline_mode<synchronous>, transform_indices = @transform_2, window_bounds = array<i64: 4, 3, 4>}, {transform_indices = @transform_3, window_bounds = array<i64: 1, 16, 16, 4>}]} {
    %cst = arith.constant 0.000000e+00 : f32
    %0 = vector.broadcast %cst : f32 to vector<24x18x16xf32>
    %c0 = arith.constant 0 : index
    %c0_0 = arith.constant 0 : index
    %c0_1 = arith.constant 0 : index
    %1 = vector.load %arg5[%c0, %c0_0, %c0_1] : memref<24x18x16xf32, #tpu.memory_space<vmem>>, vector<24x18x16xf32>
    tpu.vector_store %arg5[%c0, %c0_0, %c0_1], %0 {strides = array<i32>} : memref<24x18x16xf32, #tpu.memory_space<vmem>>, vector<24x18x16xf32>,
    %c0_2 = arith.constant 0 : index
    %c0_3 = arith.constant 0 : index
    %c0_4 = arith.constant 0 : index
    %c0_5 = arith.constant 0 : index
    %2 = vector.load %arg1[%c0_2, %c0_3, %c0_4, %c0_5] : memref<1x16x16x4xf32, #tpu.memory_space<vmem>>, vector<1x16x16x4xf32>
    %3 = vector.shape_cast %2 : vector<1x16x16x4xf32> to vector<16x16x4xf32>
    %c8 = arith.constant 8 : index
    %c1 = arith.constant 1 : index
    %c12 = arith.constant 12 : index
    %4 = vector.load %arg5[%c8, %c1, %c12] : memref<24x18x16xf32, #tpu.memory_space<vmem>>, vector<16x16x4xf32>
    tpu.vector_store %arg5[%c8, %c1, %c12], %3 {strides = array<i32>} : memref<24x18x16xf32, #tpu.memory_space<vmem>>, vector<16x16x4xf32>,
    %c7 = arith.constant 7 : index
    %c0_6 = arith.constant 0 : index
    %c0_7 = arith.constant 0 : index
    %5 = vector.load %arg5[%c7, %c0_6, %c0_7] : memref<24x18x16xf32, #tpu.memory_space<vmem>>, vector<16x16x16xf32>
    %6 = vector.shape_cast %5 : vector<16x16x16xf32> to vector<256x16xf32>
    %c0_8 = arith.constant 0 : index
    %c0_9 = arith.constant 0 : index
    %7 = vector.load %arg6[%c0_8, %c0_9] : memref<256x96xf32, #tpu.memory_space<vmem>>, vector<256x16xf32>
    tpu.vector_store %arg6[%c0_8, %c0_9], %6 {strides = array<i32>} : memref<256x96xf32, #tpu.memory_space<vmem>>, vector<256x16xf32>,
    %c7_10 = arith.constant 7 : index
    %c1_11 = arith.constant 1 : index
    %c0_12 = arith.constant 0 : index
    %8 = vector.load %arg5[%c7_10, %c1_11, %c0_12] : memref<24x18x16xf32, #tpu.memory_space<vmem>>, vector<16x16x16xf32>
    %9 = vector.shape_cast %8 : vector<16x16x16xf32> to vector<256x16xf32>
    %c0_13 = arith.constant 0 : index
    %c16 = arith.constant 16 : index
    %10 = vector.load %arg6[%c0_13, %c16] : memref<256x96xf32, #tpu.memory_space<vmem>>, vector<256x16xf32>
    tpu.vector_store %arg6[%c0_13, %c16], %9 {strides = array<i32>} : memref<256x96xf32, #tpu.memory_space<vmem>>, vector<256x16xf32>,
    %c7_14 = arith.constant 7 : index
    %c2 = arith.constant 2 : index
    %c0_15 = arith.constant 0 : index
    %11 = vector.load %arg5[%c7_14, %c2, %c0_15] : memref<24x18x16xf32, #tpu.memory_space<vmem>>, vector<16x16x16xf32>
    %12 = vector.shape_cast %11 : vector<16x16x16xf32> to vector<256x16xf32>
    %c0_16 = arith.constant 0 : index
    %c32 = arith.constant 32 : index
    %13 = vector.load %arg6[%c0_16, %c32] : memref<256x96xf32, #tpu.memory_space<vmem>>, vector<256x16xf32>
    tpu.vector_store %arg6[%c0_16, %c32], %12 {strides = array<i32>} : memref<256x96xf32, #tpu.memory_space<vmem>>, vector<256x16xf32>,
    %c8_17 = arith.constant 8 : index
    %c0_18 = arith.constant 0 : index
    %c0_19 = arith.constant 0 : index
    %14 = vector.load %arg5[%c8_17, %c0_18, %c0_19] : memref<24x18x16xf32, #tpu.memory_space<vmem>>, vector<16x16x16xf32>
    %15 = vector.shape_cast %14 : vector<16x16x16xf32> to vector<256x16xf32>
    %c0_20 = arith.constant 0 : index
    %c48 = arith.constant 48 : index
    %16 = vector.load %arg6[%c0_20, %c48] : memref<256x96xf32, #tpu.memory_space<vmem>>, vector<256x16xf32>
    tpu.vector_store %arg6[%c0_20, %c48], %15 {strides = array<i32>} : memref<256x96xf32, #tpu.memory_space<vmem>>, vector<256x16xf32>,
    %c8_21 = arith.constant 8 : index
    %c1_22 = arith.constant 1 : index
    %c0_23 = arith.constant 0 : index
    %17 = vector.load %arg5[%c8_21, %c1_22, %c0_23] : memref<24x18x16xf32, #tpu.memory_space<vmem>>, vector<16x16x16xf32>
    %18 = vector.shape_cast %17 : vector<16x16x16xf32> to vector<256x16xf32>
    %c0_24 = arith.constant 0 : index
    %c64 = arith.constant 64 : index
    %19 = vector.load %arg6[%c0_24, %c64] : memref<256x96xf32, #tpu.memory_space<vmem>>, vector<256x16xf32>
    tpu.vector_store %arg6[%c0_24, %c64], %18 {strides = array<i32>} : memref<256x96xf32, #tpu.memory_space<vmem>>, vector<256x16xf32>,
    %c8_25 = arith.constant 8 : index
    %c2_26 = arith.constant 2 : index
    %c0_27 = arith.constant 0 : index
    %20 = vector.load %arg5[%c8_25, %c2_26, %c0_27] : memref<24x18x16xf32, #tpu.memory_space<vmem>>, vector<16x16x16xf32>
    %21 = vector.shape_cast %20 : vector<16x16x16xf32> to vector<256x16xf32>
    %c0_28 = arith.constant 0 : index
    %c80 = arith.constant 80 : index
    %22 = vector.load %arg6[%c0_28, %c80] : memref<256x96xf32, #tpu.memory_space<vmem>>, vector<256x16xf32>
    tpu.vector_store %arg6[%c0_28, %c80], %21 {strides = array<i32>} : memref<256x96xf32, #tpu.memory_space<vmem>>, vector<256x16xf32>,
    %c0_29 = arith.constant 0 : index
    %c0_30 = arith.constant 0 : index
    %23 = vector.load %arg6[%c0_29, %c0_30] : memref<256x96xf32, #tpu.memory_space<vmem>>, vector<256x96xf32>
    %c0_31 = arith.constant 0 : index
    %c0_32 = arith.constant 0 : index
    %c0_33 = arith.constant 0 : index
    %24 = vector.load %arg2[%c0_31, %c0_32, %c0_33] : memref<4x96x4xf32, #tpu.memory_space<vmem>>, vector<1x96x4xf32>
    %25 = vector.shape_cast %24 : vector<1x96x4xf32> to vector<96x4xf32>
    %cst_34 = arith.constant dense<0.000000e+00> : vector<256x4xf32>
    %26 = tpu.matmul %23, %25, %cst_34 {dimension_numbers = #tpu.dot_dimension_numbers<[1], [0], [0], [1], [0, 0, 1, 1], [], []>} : vector<256x96xf32>, vector<96x4xf32>, vector<256x4xf32> -> vector<256x4xf32>
    %cst_35 = arith.constant dense<0.000000e+00> : vector<4xf32>
    %27 = vector.multi_reduction <add>, %26, %cst_35 [0] : vector<256x4xf32> to vector<4xf32>
    %28 = vector.shape_cast %27 : vector<4xf32> to vector<1x4xf32>
    %cst_36 = arith.constant 3.906250e-03 : f32
    %29 = vector.broadcast %cst_36 : f32 to vector<1x4xf32>
    %30 = arith.mulf %28, %29 : vector<1x4xf32>
    %31 = arith.mulf %26, %26 : vector<256x4xf32>
    %cst_37 = arith.constant dense<0.000000e+00> : vector<4xf32>
    %32 = vector.multi_reduction <add>, %31, %cst_37 [0] : vector<256x4xf32> to vector<4xf32>
    %33 = vector.shape_cast %32 : vector<4xf32> to vector<1x4xf32>
    %cst_38 = arith.constant 3.906250e-03 : f32
    %34 = vector.broadcast %cst_38 : f32 to vector<1x4xf32>
    %35 = arith.mulf %33, %34 : vector<1x4xf32>
    %36 = arith.mulf %30, %30 : vector<1x4xf32>
    %37 = arith.subf %35, %36 : vector<1x4xf32>
    %cst_39 = arith.constant 0.000000e+00 : f32
    %38 = vector.broadcast %cst_39 : f32 to vector<1x4xf32>
    %39 = arith.maximumf %37, %38 : vector<1x4xf32>
    %c0_40 = arith.constant 0 : index
    %c0_41 = arith.constant 0 : index
    %c0_42 = arith.constant 0 : index
    %40 = vector.load %arg3[%c0_40, %c0_41, %c0_42] : memref<4x3x4xf32, #tpu.memory_space<vmem>>, vector<1x3x4xf32>
    %41 = vector.shape_cast %40 : vector<1x3x4xf32> to vector<3x4xf32>
    %42 = vector.broadcast %30 : vector<1x4xf32> to vector<256x4xf32>
    %43 = arith.subf %26, %42 : vector<256x4xf32>
    %cst_43 = arith.constant 9.99999974E-6 : f32
    %44 = vector.broadcast %cst_43 : f32 to vector<1x4xf32>
    %45 = arith.addf %39, %44 : vector<1x4xf32>
    %46 = math.rsqrt %45 : vector<1x4xf32>
    %47 = vector.broadcast %46 : vector<1x4xf32> to vector<256x4xf32>
    %48 = arith.mulf %43, %47 : vector<256x4xf32>
    %49 = vector.extract_strided_slice %41 {offsets = [0, 0], sizes = [1, 4], strides = [1, 1]} : vector<3x4xf32> to vector<1x4xf32>
    %50 = vector.broadcast %49 : vector<1x4xf32> to vector<256x4xf32>
    %51 = arith.mulf %48, %50 : vector<256x4xf32>
    %52 = vector.extract_strided_slice %41 {offsets = [1, 0], sizes = [1, 4], strides = [1, 1]} : vector<3x4xf32> to vector<1x4xf32>
    %53 = vector.broadcast %52 : vector<1x4xf32> to vector<256x4xf32>
    %54 = arith.addf %51, %53 : vector<256x4xf32>
    %cst_44 = arith.constant 0.000000e+00 : f32
    %55 = vector.broadcast %cst_44 : f32 to vector<256x4xf32>
    %56 = arith.cmpf oge, %54, %55 : vector<256x4xf32>
    %57 = vector.extract_strided_slice %41 {offsets = [2, 0], sizes = [1, 4], strides = [1, 1]} : vector<3x4xf32> to vector<1x4xf32>
    %58 = vector.broadcast %57 : vector<1x4xf32> to vector<256x4xf32>
    %59 = arith.mulf %58, %54 : vector<256x4xf32>
    %60 = arith.select %56, %54, %59 : vector<256x4xi1>, vector<256x4xf32>
    %61 = vector.shape_cast %60 : vector<256x4xf32> to vector<16x16x4xf32>
    %c8_45 = arith.constant 8 : index
    %c1_46 = arith.constant 1 : index
    %c8_47 = arith.constant 8 : index
    %62 = vector.load %arg5[%c8_45, %c1_46, %c8_47] : memref<24x18x16xf32, #tpu.memory_space<vmem>>, vector<16x16x4xf32>
    tpu.vector_store %arg5[%c8_45, %c1_46, %c8_47], %61 {strides = array<i32>} : memref<24x18x16xf32, #tpu.memory_space<vmem>>, vector<16x16x4xf32>,
    %c6 = arith.constant 6 : index
    %c0_48 = arith.constant 0 : index
    %c0_49 = arith.constant 0 : index
    %63 = vector.load %arg5[%c6, %c0_48, %c0_49] : memref<24x18x16xf32, #tpu.memory_space<vmem>>, vector<16x16x16xf32>
    %64 = vector.shape_cast %63 : vector<16x16x16xf32> to vector<256x16xf32>
    %c0_50 = arith.constant 0 : index
    %c0_51 = arith.constant 0 : index
    %65 = vector.load %arg6[%c0_50, %c0_51] : memref<256x96xf32, #tpu.memory_space<vmem>>, vector<256x16xf32>
    tpu.vector_store %arg6[%c0_50, %c0_51], %64 {strides = array<i32>} : memref<256x96xf32, #tpu.memory_space<vmem>>, vector<256x16xf32>,
    %c6_52 = arith.constant 6 : index
    %c1_53 = arith.constant 1 : index
    %c0_54 = arith.constant 0 : index
    %66 = vector.load %arg5[%c6_52, %c1_53, %c0_54] : memref<24x18x16xf32, #tpu.memory_space<vmem>>, vector<16x16x16xf32>
    %67 = vector.shape_cast %66 : vector<16x16x16xf32> to vector<256x16xf32>
    %c0_55 = arith.constant 0 : index
    %c16_56 = arith.constant 16 : index
    %68 = vector.load %arg6[%c0_55, %c16_56] : memref<256x96xf32, #tpu.memory_space<vmem>>, vector<256x16xf32>
    tpu.vector_store %arg6[%c0_55, %c16_56], %67 {strides = array<i32>} : memref<256x96xf32, #tpu.memory_space<vmem>>, vector<256x16xf32>,
    %c6_57 = arith.constant 6 : index
    %c2_58 = arith.constant 2 : index
    %c0_59 = arith.constant 0 : index
    %69 = vector.load %arg5[%c6_57, %c2_58, %c0_59] : memref<24x18x16xf32, #tpu.memory_space<vmem>>, vector<16x16x16xf32>
    %70 = vector.shape_cast %69 : vector<16x16x16xf32> to vector<256x16xf32>
    %c0_60 = arith.constant 0 : index
    %c32_61 = arith.constant 32 : index
    %71 = vector.load %arg6[%c0_60, %c32_61] : memref<256x96xf32, #tpu.memory_space<vmem>>, vector<256x16xf32>
    tpu.vector_store %arg6[%c0_60, %c32_61], %70 {strides = array<i32>} : memref<256x96xf32, #tpu.memory_space<vmem>>, vector<256x16xf32>,
    %c8_62 = arith.constant 8 : index
    %c0_63 = arith.constant 0 : index
    %c0_64 = arith.constant 0 : index
    %72 = vector.load %arg5[%c8_62, %c0_63, %c0_64] : memref<24x18x16xf32, #tpu.memory_space<vmem>>, vector<16x16x16xf32>
    %73 = vector.shape_cast %72 : vector<16x16x16xf32> to vector<256x16xf32>
    %c0_65 = arith.constant 0 : index
    %c48_66 = arith.constant 48 : index
    %74 = vector.load %arg6[%c0_65, %c48_66] : memref<256x96xf32, #tpu.memory_space<vmem>>, vector<256x16xf32>
    tpu.vector_store %arg6[%c0_65, %c48_66], %73 {strides = array<i32>} : memref<256x96xf32, #tpu.memory_space<vmem>>, vector<256x16xf32>,
    %c8_67 = arith.constant 8 : index
    %c1_68 = arith.constant 1 : index
    %c0_69 = arith.constant 0 : index
    %75 = vector.load %arg5[%c8_67, %c1_68, %c0_69] : memref<24x18x16xf32, #tpu.memory_space<vmem>>, vector<16x16x16xf32>
    %76 = vector.shape_cast %75 : vector<16x16x16xf32> to vector<256x16xf32>
    %c0_70 = arith.constant 0 : index
    %c64_71 = arith.constant 64 : index
    %77 = vector.load %arg6[%c0_70, %c64_71] : memref<256x96xf32, #tpu.memory_space<vmem>>, vector<256x16xf32>
    tpu.vector_store %arg6[%c0_70, %c64_71], %76 {strides = array<i32>} : memref<256x96xf32, #tpu.memory_space<vmem>>, vector<256x16xf32>,
    %c8_72 = arith.constant 8 : index
    %c2_73 = arith.constant 2 : index
    %c0_74 = arith.constant 0 : index
    %78 = vector.load %arg5[%c8_72, %c2_73, %c0_74] : memref<24x18x16xf32, #tpu.memory_space<vmem>>, vector<16x16x16xf32>
    %79 = vector.shape_cast %78 : vector<16x16x16xf32> to vector<256x16xf32>
    %c0_75 = arith.constant 0 : index
    %c80_76 = arith.constant 80 : index
    %80 = vector.load %arg6[%c0_75, %c80_76] : memref<256x96xf32, #tpu.memory_space<vmem>>, vector<256x16xf32>
    tpu.vector_store %arg6[%c0_75, %c80_76], %79 {strides = array<i32>} : memref<256x96xf32, #tpu.memory_space<vmem>>, vector<256x16xf32>,
    %c0_77 = arith.constant 0 : index
    %c0_78 = arith.constant 0 : index
    %81 = vector.load %arg6[%c0_77, %c0_78] : memref<256x96xf32, #tpu.memory_space<vmem>>, vector<256x96xf32>
    %c1_79 = arith.constant 1 : index
    %c0_80 = arith.constant 0 : index
    %c0_81 = arith.constant 0 : index
    %82 = vector.load %arg2[%c1_79, %c0_80, %c0_81] : memref<4x96x4xf32, #tpu.memory_space<vmem>>, vector<1x96x4xf32>
    %83 = vector.shape_cast %82 : vector<1x96x4xf32> to vector<96x4xf32>
    %cst_82 = arith.constant dense<0.000000e+00> : vector<256x4xf32>
    %84 = tpu.matmul %81, %83, %cst_82 {dimension_numbers = #tpu.dot_dimension_numbers<[1], [0], [0], [1], [0, 0, 1, 1], [], []>} : vector<256x96xf32>, vector<96x4xf32>, vector<256x4xf32> -> vector<256x4xf32>
    %cst_83 = arith.constant dense<0.000000e+00> : vector<4xf32>
    %85 = vector.multi_reduction <add>, %84, %cst_83 [0] : vector<256x4xf32> to vector<4xf32>
    %86 = vector.shape_cast %85 : vector<4xf32> to vector<1x4xf32>
    %cst_84 = arith.constant 3.906250e-03 : f32
    %87 = vector.broadcast %cst_84 : f32 to vector<1x4xf32>
    %88 = arith.mulf %86, %87 : vector<1x4xf32>
    %89 = arith.mulf %84, %84 : vector<256x4xf32>
    %cst_85 = arith.constant dense<0.000000e+00> : vector<4xf32>
    %90 = vector.multi_reduction <add>, %89, %cst_85 [0] : vector<256x4xf32> to vector<4xf32>
    %91 = vector.shape_cast %90 : vector<4xf32> to vector<1x4xf32>
    %cst_86 = arith.constant 3.906250e-03 : f32
    %92 = vector.broadcast %cst_86 : f32 to vector<1x4xf32>
    %93 = arith.mulf %91, %92 : vector<1x4xf32>
    %94 = arith.mulf %88, %88 : vector<1x4xf32>
    %95 = arith.subf %93, %94 : vector<1x4xf32>
    %cst_87 = arith.constant 0.000000e+00 : f32
    %96 = vector.broadcast %cst_87 : f32 to vector<1x4xf32>
    %97 = arith.maximumf %95, %96 : vector<1x4xf32>
    %c1_88 = arith.constant 1 : index
    %c0_89 = arith.constant 0 : index
    %c0_90 = arith.constant 0 : index
    %98 = vector.load %arg3[%c1_88, %c0_89, %c0_90] : memref<4x3x4xf32, #tpu.memory_space<vmem>>, vector<1x3x4xf32>
    %99 = vector.shape_cast %98 : vector<1x3x4xf32> to vector<3x4xf32>
    %100 = vector.broadcast %88 : vector<1x4xf32> to vector<256x4xf32>
    %101 = arith.subf %84, %100 : vector<256x4xf32>
    %cst_91 = arith.constant 9.99999974E-6 : f32
    %102 = vector.broadcast %cst_91 : f32 to vector<1x4xf32>
    %103 = arith.addf %97, %102 : vector<1x4xf32>
    %104 = math.rsqrt %103 : vector<1x4xf32>
    %105 = vector.broadcast %104 : vector<1x4xf32> to vector<256x4xf32>
    %106 = arith.mulf %101, %105 : vector<256x4xf32>
    %107 = vector.extract_strided_slice %99 {offsets = [0, 0], sizes = [1, 4], strides = [1, 1]} : vector<3x4xf32> to vector<1x4xf32>
    %108 = vector.broadcast %107 : vector<1x4xf32> to vector<256x4xf32>
    %109 = arith.mulf %106, %108 : vector<256x4xf32>
    %110 = vector.extract_strided_slice %99 {offsets = [1, 0], sizes = [1, 4], strides = [1, 1]} : vector<3x4xf32> to vector<1x4xf32>
    %111 = vector.broadcast %110 : vector<1x4xf32> to vector<256x4xf32>
    %112 = arith.addf %109, %111 : vector<256x4xf32>
    %cst_92 = arith.constant 0.000000e+00 : f32
    %113 = vector.broadcast %cst_92 : f32 to vector<256x4xf32>
    %114 = arith.cmpf oge, %112, %113 : vector<256x4xf32>
    %115 = vector.extract_strided_slice %99 {offsets = [2, 0], sizes = [1, 4], strides = [1, 1]} : vector<3x4xf32> to vector<1x4xf32>
    %116 = vector.broadcast %115 : vector<1x4xf32> to vector<256x4xf32>
    %117 = arith.mulf %116, %112 : vector<256x4xf32>
    %118 = arith.select %114, %112, %117 : vector<256x4xi1>, vector<256x4xf32>
    %119 = vector.shape_cast %118 : vector<256x4xf32> to vector<16x16x4xf32>
    %c8_93 = arith.constant 8 : index
    %c1_94 = arith.constant 1 : index
    %c4 = arith.constant 4 : index
    %120 = vector.load %arg5[%c8_93, %c1_94, %c4] : memref<24x18x16xf32, #tpu.memory_space<vmem>>, vector<16x16x4xf32>
    tpu.vector_store %arg5[%c8_93, %c1_94, %c4], %119 {strides = array<i32>} : memref<24x18x16xf32, #tpu.memory_space<vmem>>, vector<16x16x4xf32>,
    %c4_95 = arith.constant 4 : index
    %c0_96 = arith.constant 0 : index
    %c0_97 = arith.constant 0 : index
    %121 = vector.load %arg5[%c4_95, %c0_96, %c0_97] : memref<24x18x16xf32, #tpu.memory_space<vmem>>, vector<16x16x16xf32>
    %122 = vector.shape_cast %121 : vector<16x16x16xf32> to vector<256x16xf32>
    %c0_98 = arith.constant 0 : index
    %c0_99 = arith.constant 0 : index
    %123 = vector.load %arg6[%c0_98, %c0_99] : memref<256x96xf32, #tpu.memory_space<vmem>>, vector<256x16xf32>
    tpu.vector_store %arg6[%c0_98, %c0_99], %122 {strides = array<i32>} : memref<256x96xf32, #tpu.memory_space<vmem>>, vector<256x16xf32>,
    %c4_100 = arith.constant 4 : index
    %c1_101 = arith.constant 1 : index
    %c0_102 = arith.constant 0 : index
    %124 = vector.load %arg5[%c4_100, %c1_101, %c0_102] : memref<24x18x16xf32, #tpu.memory_space<vmem>>, vector<16x16x16xf32>
    %125 = vector.shape_cast %124 : vector<16x16x16xf32> to vector<256x16xf32>
    %c0_103 = arith.constant 0 : index
    %c16_104 = arith.constant 16 : index
    %126 = vector.load %arg6[%c0_103, %c16_104] : memref<256x96xf32, #tpu.memory_space<vmem>>, vector<256x16xf32>
    tpu.vector_store %arg6[%c0_103, %c16_104], %125 {strides = array<i32>} : memref<256x96xf32, #tpu.memory_space<vmem>>, vector<256x16xf32>,
    %c4_105 = arith.constant 4 : index
    %c2_106 = arith.constant 2 : index
    %c0_107 = arith.constant 0 : index
    %127 = vector.load %arg5[%c4_105, %c2_106, %c0_107] : memref<24x18x16xf32, #tpu.memory_space<vmem>>, vector<16x16x16xf32>
    %128 = vector.shape_cast %127 : vector<16x16x16xf32> to vector<256x16xf32>
    %c0_108 = arith.constant 0 : index
    %c32_109 = arith.constant 32 : index
    %129 = vector.load %arg6[%c0_108, %c32_109] : memref<256x96xf32, #tpu.memory_space<vmem>>, vector<256x16xf32>
    tpu.vector_store %arg6[%c0_108, %c32_109], %128 {strides = array<i32>} : memref<256x96xf32, #tpu.memory_space<vmem>>, vector<256x16xf32>,
    %c8_110 = arith.constant 8 : index
    %c0_111 = arith.constant 0 : index
    %c0_112 = arith.constant 0 : index
    %130 = vector.load %arg5[%c8_110, %c0_111, %c0_112] : memref<24x18x16xf32, #tpu.memory_space<vmem>>, vector<16x16x16xf32>
    %131 = vector.shape_cast %130 : vector<16x16x16xf32> to vector<256x16xf32>
    %c0_113 = arith.constant 0 : index
    %c48_114 = arith.constant 48 : index
    %132 = vector.load %arg6[%c0_113, %c48_114] : memref<256x96xf32, #tpu.memory_space<vmem>>, vector<256x16xf32>
    tpu.vector_store %arg6[%c0_113, %c48_114], %131 {strides = array<i32>} : memref<256x96xf32, #tpu.memory_space<vmem>>, vector<256x16xf32>,
    %c8_115 = arith.constant 8 : index
    %c1_116 = arith.constant 1 : index
    %c0_117 = arith.constant 0 : index
    %133 = vector.load %arg5[%c8_115, %c1_116, %c0_117] : memref<24x18x16xf32, #tpu.memory_space<vmem>>, vector<16x16x16xf32>
    %134 = vector.shape_cast %133 : vector<16x16x16xf32> to vector<256x16xf32>
    %c0_118 = arith.constant 0 : index
    %c64_119 = arith.constant 64 : index
    %135 = vector.load %arg6[%c0_118, %c64_119] : memref<256x96xf32, #tpu.memory_space<vmem>>, vector<256x16xf32>
    tpu.vector_store %arg6[%c0_118, %c64_119], %134 {strides = array<i32>} : memref<256x96xf32, #tpu.memory_space<vmem>>, vector<256x16xf32>,
    %c8_120 = arith.constant 8 : index
    %c2_121 = arith.constant 2 : index
    %c0_122 = arith.constant 0 : index
    %136 = vector.load %arg5[%c8_120, %c2_121, %c0_122] : memref<24x18x16xf32, #tpu.memory_space<vmem>>, vector<16x16x16xf32>
    %137 = vector.shape_cast %136 : vector<16x16x16xf32> to vector<256x16xf32>
    %c0_123 = arith.constant 0 : index
    %c80_124 = arith.constant 80 : index
    %138 = vector.load %arg6[%c0_123, %c80_124] : memref<256x96xf32, #tpu.memory_space<vmem>>, vector<256x16xf32>
    tpu.vector_store %arg6[%c0_123, %c80_124], %137 {strides = array<i32>} : memref<256x96xf32, #tpu.memory_space<vmem>>, vector<256x16xf32>,
    %c0_125 = arith.constant 0 : index
    %c0_126 = arith.constant 0 : index
    %139 = vector.load %arg6[%c0_125, %c0_126] : memref<256x96xf32, #tpu.memory_space<vmem>>, vector<256x96xf32>
    %c2_127 = arith.constant 2 : index
    %c0_128 = arith.constant 0 : index
    %c0_129 = arith.constant 0 : index
    %140 = vector.load %arg2[%c2_127, %c0_128, %c0_129] : memref<4x96x4xf32, #tpu.memory_space<vmem>>, vector<1x96x4xf32>
    %141 = vector.shape_cast %140 : vector<1x96x4xf32> to vector<96x4xf32>
    %cst_130 = arith.constant dense<0.000000e+00> : vector<256x4xf32>
    %142 = tpu.matmul %139, %141, %cst_130 {dimension_numbers = #tpu.dot_dimension_numbers<[1], [0], [0], [1], [0, 0, 1, 1], [], []>} : vector<256x96xf32>, vector<96x4xf32>, vector<256x4xf32> -> vector<256x4xf32>
    %cst_131 = arith.constant dense<0.000000e+00> : vector<4xf32>
    %143 = vector.multi_reduction <add>, %142, %cst_131 [0] : vector<256x4xf32> to vector<4xf32>
    %144 = vector.shape_cast %143 : vector<4xf32> to vector<1x4xf32>
    %cst_132 = arith.constant 3.906250e-03 : f32
    %145 = vector.broadcast %cst_132 : f32 to vector<1x4xf32>
    %146 = arith.mulf %144, %145 : vector<1x4xf32>
    %147 = arith.mulf %142, %142 : vector<256x4xf32>
    %cst_133 = arith.constant dense<0.000000e+00> : vector<4xf32>
    %148 = vector.multi_reduction <add>, %147, %cst_133 [0] : vector<256x4xf32> to vector<4xf32>
    %149 = vector.shape_cast %148 : vector<4xf32> to vector<1x4xf32>
    %cst_134 = arith.constant 3.906250e-03 : f32
    %150 = vector.broadcast %cst_134 : f32 to vector<1x4xf32>
    %151 = arith.mulf %149, %150 : vector<1x4xf32>
    %152 = arith.mulf %146, %146 : vector<1x4xf32>
    %153 = arith.subf %151, %152 : vector<1x4xf32>
    %cst_135 = arith.constant 0.000000e+00 : f32
    %154 = vector.broadcast %cst_135 : f32 to vector<1x4xf32>
    %155 = arith.maximumf %153, %154 : vector<1x4xf32>
    %c2_136 = arith.constant 2 : index
    %c0_137 = arith.constant 0 : index
    %c0_138 = arith.constant 0 : index
    %156 = vector.load %arg3[%c2_136, %c0_137, %c0_138] : memref<4x3x4xf32, #tpu.memory_space<vmem>>, vector<1x3x4xf32>
    %157 = vector.shape_cast %156 : vector<1x3x4xf32> to vector<3x4xf32>
    %158 = vector.broadcast %146 : vector<1x4xf32> to vector<256x4xf32>
    %159 = arith.subf %142, %158 : vector<256x4xf32>
    %cst_139 = arith.constant 9.99999974E-6 : f32
    %160 = vector.broadcast %cst_139 : f32 to vector<1x4xf32>
    %161 = arith.addf %155, %160 : vector<1x4xf32>
    %162 = math.rsqrt %161 : vector<1x4xf32>
    %163 = vector.broadcast %162 : vector<1x4xf32> to vector<256x4xf32>
    %164 = arith.mulf %159, %163 : vector<256x4xf32>
    %165 = vector.extract_strided_slice %157 {offsets = [0, 0], sizes = [1, 4], strides = [1, 1]} : vector<3x4xf32> to vector<1x4xf32>
    %166 = vector.broadcast %165 : vector<1x4xf32> to vector<256x4xf32>
    %167 = arith.mulf %164, %166 : vector<256x4xf32>
    %168 = vector.extract_strided_slice %157 {offsets = [1, 0], sizes = [1, 4], strides = [1, 1]} : vector<3x4xf32> to vector<1x4xf32>
    %169 = vector.broadcast %168 : vector<1x4xf32> to vector<256x4xf32>
    %170 = arith.addf %167, %169 : vector<256x4xf32>
    %cst_140 = arith.constant 0.000000e+00 : f32
    %171 = vector.broadcast %cst_140 : f32 to vector<256x4xf32>
    %172 = arith.cmpf oge, %170, %171 : vector<256x4xf32>
    %173 = vector.extract_strided_slice %157 {offsets = [2, 0], sizes = [1, 4], strides = [1, 1]} : vector<3x4xf32> to vector<1x4xf32>
    %174 = vector.broadcast %173 : vector<1x4xf32> to vector<256x4xf32>
    %175 = arith.mulf %174, %170 : vector<256x4xf32>
    %176 = arith.select %172, %170, %175 : vector<256x4xi1>, vector<256x4xf32>
    %177 = vector.shape_cast %176 : vector<256x4xf32> to vector<16x16x4xf32>
    %c8_141 = arith.constant 8 : index
    %c1_142 = arith.constant 1 : index
    %c0_143 = arith.constant 0 : index
    %178 = vector.load %arg5[%c8_141, %c1_142, %c0_143] : memref<24x18x16xf32, #tpu.memory_space<vmem>>, vector<16x16x4xf32>
    tpu.vector_store %arg5[%c8_141, %c1_142, %c0_143], %177 {strides = array<i32>} : memref<24x18x16xf32, #tpu.memory_space<vmem>>, vector<16x16x4xf32>,
    %c0_144 = arith.constant 0 : index
    %c0_145 = arith.constant 0 : index
    %c0_146 = arith.constant 0 : index
    %179 = vector.load %arg5[%c0_144, %c0_145, %c0_146] : memref<24x18x16xf32, #tpu.memory_space<vmem>>, vector<16x16x16xf32>
    %180 = vector.shape_cast %179 : vector<16x16x16xf32> to vector<256x16xf32>
    %c0_147 = arith.constant 0 : index
    %c0_148 = arith.constant 0 : index
    %181 = vector.load %arg6[%c0_147, %c0_148] : memref<256x96xf32, #tpu.memory_space<vmem>>, vector<256x16xf32>
    tpu.vector_store %arg6[%c0_147, %c0_148], %180 {strides = array<i32>} : memref<256x96xf32, #tpu.memory_space<vmem>>, vector<256x16xf32>,
    %c0_149 = arith.constant 0 : index
    %c1_150 = arith.constant 1 : index
    %c0_151 = arith.constant 0 : index
    %182 = vector.load %arg5[%c0_149, %c1_150, %c0_151] : memref<24x18x16xf32, #tpu.memory_space<vmem>>, vector<16x16x16xf32>
    %183 = vector.shape_cast %182 : vector<16x16x16xf32> to vector<256x16xf32>
    %c0_152 = arith.constant 0 : index
    %c16_153 = arith.constant 16 : index
    %184 = vector.load %arg6[%c0_152, %c16_153] : memref<256x96xf32, #tpu.memory_space<vmem>>, vector<256x16xf32>
    tpu.vector_store %arg6[%c0_152, %c16_153], %183 {strides = array<i32>} : memref<256x96xf32, #tpu.memory_space<vmem>>, vector<256x16xf32>,
    %c0_154 = arith.constant 0 : index
    %c2_155 = arith.constant 2 : index
    %c0_156 = arith.constant 0 : index
    %185 = vector.load %arg5[%c0_154, %c2_155, %c0_156] : memref<24x18x16xf32, #tpu.memory_space<vmem>>, vector<16x16x16xf32>
    %186 = vector.shape_cast %185 : vector<16x16x16xf32> to vector<256x16xf32>
    %c0_157 = arith.constant 0 : index
    %c32_158 = arith.constant 32 : index
    %187 = vector.load %arg6[%c0_157, %c32_158] : memref<256x96xf32, #tpu.memory_space<vmem>>, vector<256x16xf32>
    tpu.vector_store %arg6[%c0_157, %c32_158], %186 {strides = array<i32>} : memref<256x96xf32, #tpu.memory_space<vmem>>, vector<256x16xf32>,
    %c8_159 = arith.constant 8 : index
    %c0_160 = arith.constant 0 : index
    %c0_161 = arith.constant 0 : index
    %188 = vector.load %arg5[%c8_159, %c0_160, %c0_161] : memref<24x18x16xf32, #tpu.memory_space<vmem>>, vector<16x16x16xf32>
    %189 = vector.shape_cast %188 : vector<16x16x16xf32> to vector<256x16xf32>
    %c0_162 = arith.constant 0 : index
    %c48_163 = arith.constant 48 : index
    %190 = vector.load %arg6[%c0_162, %c48_163] : memref<256x96xf32, #tpu.memory_space<vmem>>, vector<256x16xf32>
    tpu.vector_store %arg6[%c0_162, %c48_163], %189 {strides = array<i32>} : memref<256x96xf32, #tpu.memory_space<vmem>>, vector<256x16xf32>,
    %c8_164 = arith.constant 8 : index
    %c1_165 = arith.constant 1 : index
    %c0_166 = arith.constant 0 : index
    %191 = vector.load %arg5[%c8_164, %c1_165, %c0_166] : memref<24x18x16xf32, #tpu.memory_space<vmem>>, vector<16x16x16xf32>
    %192 = vector.shape_cast %191 : vector<16x16x16xf32> to vector<256x16xf32>
    %c0_167 = arith.constant 0 : index
    %c64_168 = arith.constant 64 : index
    %193 = vector.load %arg6[%c0_167, %c64_168] : memref<256x96xf32, #tpu.memory_space<vmem>>, vector<256x16xf32>
    tpu.vector_store %arg6[%c0_167, %c64_168], %192 {strides = array<i32>} : memref<256x96xf32, #tpu.memory_space<vmem>>, vector<256x16xf32>,
    %c8_169 = arith.constant 8 : index
    %c2_170 = arith.constant 2 : index
    %c0_171 = arith.constant 0 : index
    %194 = vector.load %arg5[%c8_169, %c2_170, %c0_171] : memref<24x18x16xf32, #tpu.memory_space<vmem>>, vector<16x16x16xf32>
    %195 = vector.shape_cast %194 : vector<16x16x16xf32> to vector<256x16xf32>
    %c0_172 = arith.constant 0 : index
    %c80_173 = arith.constant 80 : index
    %196 = vector.load %arg6[%c0_172, %c80_173] : memref<256x96xf32, #tpu.memory_space<vmem>>, vector<256x16xf32>
    tpu.vector_store %arg6[%c0_172, %c80_173], %195 {strides = array<i32>} : memref<256x96xf32, #tpu.memory_space<vmem>>, vector<256x16xf32>,
    %c0_174 = arith.constant 0 : index
    %c0_175 = arith.constant 0 : index
    %197 = vector.load %arg6[%c0_174, %c0_175] : memref<256x96xf32, #tpu.memory_space<vmem>>, vector<256x96xf32>
    %c3 = arith.constant 3 : index
    %c0_176 = arith.constant 0 : index
    %c0_177 = arith.constant 0 : index
    %198 = vector.load %arg2[%c3, %c0_176, %c0_177] : memref<4x96x4xf32, #tpu.memory_space<vmem>>, vector<1x96x4xf32>
    %199 = vector.shape_cast %198 : vector<1x96x4xf32> to vector<96x4xf32>
    %cst_178 = arith.constant dense<0.000000e+00> : vector<256x4xf32>
    %200 = tpu.matmul %197, %199, %cst_178 {dimension_numbers = #tpu.dot_dimension_numbers<[1], [0], [0], [1], [0, 0, 1, 1], [], []>} : vector<256x96xf32>, vector<96x4xf32>, vector<256x4xf32> -> vector<256x4xf32>
    %cst_179 = arith.constant dense<0.000000e+00> : vector<4xf32>
    %201 = vector.multi_reduction <add>, %200, %cst_179 [0] : vector<256x4xf32> to vector<4xf32>
    %202 = vector.shape_cast %201 : vector<4xf32> to vector<1x4xf32>
    %cst_180 = arith.constant 3.906250e-03 : f32
    %203 = vector.broadcast %cst_180 : f32 to vector<1x4xf32>
    %204 = arith.mulf %202, %203 : vector<1x4xf32>
    %205 = arith.mulf %200, %200 : vector<256x4xf32>
    %cst_181 = arith.constant dense<0.000000e+00> : vector<4xf32>
    %206 = vector.multi_reduction <add>, %205, %cst_181 [0] : vector<256x4xf32> to vector<4xf32>
    %207 = vector.shape_cast %206 : vector<4xf32> to vector<1x4xf32>
    %cst_182 = arith.constant 3.906250e-03 : f32
    %208 = vector.broadcast %cst_182 : f32 to vector<1x4xf32>
    %209 = arith.mulf %207, %208 : vector<1x4xf32>
    %210 = arith.mulf %204, %204 : vector<1x4xf32>
    %211 = arith.subf %209, %210 : vector<1x4xf32>
    %cst_183 = arith.constant 0.000000e+00 : f32
    %212 = vector.broadcast %cst_183 : f32 to vector<1x4xf32>
    %213 = arith.maximumf %211, %212 : vector<1x4xf32>
    %c3_184 = arith.constant 3 : index
    %c0_185 = arith.constant 0 : index
    %c0_186 = arith.constant 0 : index
    %214 = vector.load %arg3[%c3_184, %c0_185, %c0_186] : memref<4x3x4xf32, #tpu.memory_space<vmem>>, vector<1x3x4xf32>
    %215 = vector.shape_cast %214 : vector<1x3x4xf32> to vector<3x4xf32>
    %216 = vector.broadcast %204 : vector<1x4xf32> to vector<256x4xf32>
    %217 = arith.subf %200, %216 : vector<256x4xf32>
    %cst_187 = arith.constant 9.99999974E-6 : f32
    %218 = vector.broadcast %cst_187 : f32 to vector<1x4xf32>
    %219 = arith.addf %213, %218 : vector<1x4xf32>
    %220 = math.rsqrt %219 : vector<1x4xf32>
    %221 = vector.broadcast %220 : vector<1x4xf32> to vector<256x4xf32>
    %222 = arith.mulf %217, %221 : vector<256x4xf32>
    %223 = vector.extract_strided_slice %215 {offsets = [0, 0], sizes = [1, 4], strides = [1, 1]} : vector<3x4xf32> to vector<1x4xf32>
    %224 = vector.broadcast %223 : vector<1x4xf32> to vector<256x4xf32>
    %225 = arith.mulf %222, %224 : vector<256x4xf32>
    %226 = vector.extract_strided_slice %215 {offsets = [1, 0], sizes = [1, 4], strides = [1, 1]} : vector<3x4xf32> to vector<1x4xf32>
    %227 = vector.broadcast %226 : vector<1x4xf32> to vector<256x4xf32>
    %228 = arith.addf %225, %227 : vector<256x4xf32>
    %cst_188 = arith.constant 0.000000e+00 : f32
    %229 = vector.broadcast %cst_188 : f32 to vector<256x4xf32>
    %230 = arith.cmpf oge, %228, %229 : vector<256x4xf32>
    %231 = vector.extract_strided_slice %215 {offsets = [2, 0], sizes = [1, 4], strides = [1, 1]} : vector<3x4xf32> to vector<1x4xf32>
    %232 = vector.broadcast %231 : vector<1x4xf32> to vector<256x4xf32>
    %233 = arith.mulf %232, %228 : vector<256x4xf32>
    %234 = arith.select %230, %228, %233 : vector<256x4xi1>, vector<256x4xf32>
    %235 = vector.shape_cast %234 : vector<256x4xf32> to vector<16x16x4xf32>
    %c0_189 = arith.constant 0 : index
    %c0_190 = arith.constant 0 : index
    %c0_191 = arith.constant 0 : index
    %c0_192 = arith.constant 0 : index
    %236 = vector.load %arg4[%c0_189, %c0_190, %c0_191, %c0_192] : memref<1x16x16x4xf32, #tpu.memory_space<vmem>>, vector<1x16x16x4xf32>
    %237 = vector.shape_cast %236 : vector<1x16x16x4xf32> to vector<16x16x4xf32>
    %238 = vector.shape_cast %235 : vector<16x16x4xf32> to vector<1x16x16x4xf32>
    tpu.vector_store %arg4[%c0_189, %c0_190, %c0_191, %c0_192], %238 {strides = array<i32>} : memref<1x16x16x4xf32, #tpu.memory_space<vmem>>, vector<1x16x16x4xf32>,
    return
  }
  func.func @transform_0(%arg0: i32) -> (i32, i32, i32, i32) {
    %c0_i32 = arith.constant 0 : i32
    %c0_i32_0 = arith.constant 0 : i32
    %c0_i32_1 = arith.constant 0 : i32
    %c0_i32_2 = arith.constant 0 : i32
    return %arg0, %c0_i32, %c0_i32_0, %c0_i32_1 : i32, i32, i32, i32
  }
  func.func @transform_1(%arg0: i32) -> (i32, i32, i32) {
    %c0_i32 = arith.constant 0 : i32
    %c0_i32_0 = arith.constant 0 : i32
    %c0_i32_1 = arith.constant 0 : i32
    %c0_i32_2 = arith.constant 0 : i32
    return %c0_i32, %c0_i32_0, %c0_i32_1 : i32, i32, i32
  }
  func.func @transform_2(%arg0: i32) -> (i32, i32, i32) {
    %c0_i32 = arith.constant 0 : i32
    %c0_i32_0 = arith.constant 0 : i32
    %c0_i32_1 = arith.constant 0 : i32
    %c0_i32_2 = arith.constant 0 : i32
    return %c0_i32, %c0_i32_0, %c0_i32_1 : i32, i32, i32
  }
  func.func @transform_3(%arg0: i32) -> (i32, i32, i32, i32) {
    %c0_i32 = arith.constant 0 : i32
    %c0_i32_0 = arith.constant 0 : i32
    %c0_i32_1 = arith.constant 0 : i32
    %c0_i32_2 = arith.constant 0 : i32
    return %arg0, %c0_i32, %c0_i32_0, %c0_i32_1 : i32, i32, i32, i32
  }
}

</mosaic_0001>

<llo_original>
// kernel: tpu_custom_call.1
$region0: #{tpu_custom_call.1}
  #allocation0 [shape = 'u32[]', space=smem, size = 0x4, offset = 0x4, fixed_abs, tag = 'smem constant byte address 0x4 - core index']
  #allocation1 [shape = 'u32[144,128]{1,0:T(1,128)}', space=vmem, size = 0x12000, scoped, tag = 'internal scratch']
  #allocation2 [shape = 'f32[24,18,16]{2,1,0:T(8,128)}', space=vmem, size = 0x48000, scoped, tag = 'scratch operand']
  #allocation3 [shape = 'f32[256,96]{1,0:T(8,128)}', space=vmem, size = 0x20000, scoped, tag = 'scratch operand']
  %s0 = inlined_call_operand.vmem [shape: f32[2,16,16,4], index: 0, kind: input, shape index: {}]
  %s1 = inlined_call_operand.vmem [shape: f32[4,96,4], index: 1, kind: input, shape index: {}]
  %s2 = inlined_call_operand.vmem [shape: f32[4,3,4], index: 2, kind: input, shape index: {}]
  %s3 = inlined_call_operand.vmem [shape: f32[2,16,16,4], index: 3, kind: output, shape index: {}]
  %s4 = sld [smem:[#allocation0]]
  $region45: #{tpu_custom_call.1} parent=0
    _
  %s6 = ssub.s32 1, %s4
  %s7 = scalar_select 0, %s6, %s4
  loop: start=0, step=1, limit=4
  $region2: #{tpu_custom_call.1} parent=0 // loop_pre_header
    _
  $region3: #{tpu_custom_call.1} parent=0 // loop_header
    %s9 = sphi 0, %s13
    %p10 = scmp.ge.s32.totalorder %s9, 4
    %s19 = sphi 0, %s21
    %s22 = sphi 0, %s19
    %s23 = sphi 0, %s22
    %s39 = sphi 0, %s23
    %s43 = sphi 0, %s43
    %s45 = sphi 0, %s43
    %s46 = sphi 0, %s45
    %s60 = sphi 0, %s46
    %s64 = sphi 0, %s64
    %s66 = sphi 0, %s64
    %s67 = sphi 0, %s66
    %s81 = sphi 0, %s67
    %s87 = sphi 0, %s89
    %s90 = sphi 0, %s87
    %s91 = sphi 0, %s90
    %s107 = sphi 0, %s91
  $region4: #{tpu_custom_call.1} parent=0 // loop_header_branch
    %12 = sbr.rel (%p10) target = $region8
  $region5: #{tpu_custom_call.1} parent=0 // loop_body
    %s14 = ssub.s32 %s9, 1
    %s15 = ssub.s32 %s9, 2
    %s16 = sadd.s32 %s9, 1
    %s17 = ssub.s32 %s9, %s16
    %p18 = scmp.eq.s32.totalorder %s17, 0
    %s20 = sadd.s32 %s19, 1
    %s21 = scalar_select %p18, %s19, %s20
    %p24 = pneg %p18
    %p25 = scmp.eq.s32.totalorder %s9, 1
    %p26 = por %p24, %p25
    %p27 = scmp.ne.s32.totalorder %s19, %s22
    %p28 = scmp.eq.s32.totalorder %s9, 0
    %p29 = por %p27, %p28
    %p30 = scmp.ne.s32.totalorder %s19, %s22
    %p31 = scmp.eq.s32.totalorder %s14, 1
    %p32 = por %p30, %p31
    %p33 = scmp.ne.s32.totalorder %s22, %s23
    %p34 = scmp.eq.s32.totalorder %s14, 0
    %p35 = por %p33, %p34
    %p36 = scmp.ne.s32.totalorder %s22, %s23
    %p37 = scmp.eq.s32.totalorder %s15, 1
    %p38 = por %p36, %p37
    %p40 = scmp.ne.s32.totalorder %s23, %s39
    %p41 = scmp.eq.s32.totalorder %s15, 0
    %p42 = por %p40, %p41
    %s44 = sadd.s32 %s43, 1
    %p47 = scmp.eq.s32.totalorder %s9, 1
    %p48 = scmp.ne.s32.totalorder %s43, %s45
    %p49 = scmp.eq.s32.totalorder %s9, 0
    %p50 = por %p48, %p49
    %p51 = scmp.ne.s32.totalorder %s43, %s45
    %p52 = scmp.eq.s32.totalorder %s14, 1
    %p53 = por %p51, %p52
    %p54 = scmp.ne.s32.totalorder %s45, %s46
    %p55 = scmp.eq.s32.totalorder %s14, 0
    %p56 = por %p54, %p55
    %p57 = scmp.ne.s32.totalorder %s45, %s46
    %p58 = scmp.eq.s32.totalorder %s15, 1
    %p59 = por %p57, %p58
    %p61 = scmp.ne.s32.totalorder %s46, %s60
    %p62 = scmp.eq.s32.totalorder %s15, 0
    %p63 = por %p61, %p62
    %s65 = sadd.s32 %s64, 1
    %p68 = scmp.eq.s32.totalorder %s9, 1
    %p69 = scmp.ne.s32.totalorder %s64, %s66
    %p70 = scmp.eq.s32.totalorder %s9, 0
    %p71 = por %p69, %p70
    %p72 = scmp.ne.s32.totalorder %s64, %s66
    %p73 = scmp.eq.s32.totalorder %s14, 1
    %p74 = por %p72, %p73
    %p75 = scmp.ne.s32.totalorder %s66, %s67
    %p76 = scmp.eq.s32.totalorder %s14, 0
    %p77 = por %p75, %p76
    %p78 = scmp.ne.s32.totalorder %s66, %s67
    %p79 = scmp.eq.s32.totalorder %s15, 1
    %p80 = por %p78, %p79
    %p82 = scmp.ne.s32.totalorder %s67, %s81
    %p83 = scmp.eq.s32.totalorder %s15, 0
    %p84 = por %p82, %p83
    %s85 = ssub.s32 %s9, %s16
    %p86 = scmp.eq.s32.totalorder %s85, 0
    %s88 = sadd.s32 %s87, 1
    %s89 = scalar_select %p86, %s87, %s88
    %p92 = pneg %p86
    %p93 = scmp.eq.s32.totalorder %s9, 1
    %p94 = por %p92, %p93
    %p95 = scmp.ne.s32.totalorder %s87, %s90
    %p96 = scmp.eq.s32.totalorder %s9, 0
    %p97 = por %p95, %p96
    %p98 = scmp.ne.s32.totalorder %s87, %s90
    %p99 = scmp.eq.s32.totalorder %s14, 1
    %p100 = por %p98, %p99
    %p101 = scmp.ne.s32.totalorder %s90, %s91
    %p102 = scmp.eq.s32.totalorder %s14, 0
    %p103 = por %p101, %p102
    %p104 = scmp.ne.s32.totalorder %s90, %s91
    %p105 = scmp.eq.s32.totalorder %s15, 1
    %p106 = por %p104, %p105
    %p108 = scmp.ne.s32.totalorder %s91, %s107
    %p109 = scmp.eq.s32.totalorder %s15, 0
    %p110 = por %p108, %p109
    %p111 = scmp.le.s32.totalorder 1, %s9
    %p112 = scmp.lt.s32.totalorder %s9, 3
    %p113 = pnand %p111, %p112
    %p114 = pneg %p113
    // Predicated region
    $region9: #{tpu_custom_call.1} parent=5 // pred_check
      _
    $region10: #{tpu_custom_call.1} parent=5 // pred_check_branch
      %116 = sbr.rel (%p113) target = $region12
    $region11: #{tpu_custom_call.1} parent=5 // pred_region
      %s117 = ssub.s32 %s9, 1
      // Predicated region
      $region13: #{tpu_custom_call.1} parent=11 // pred_check
        %p118 = pneg %p56
      $region14: #{tpu_custom_call.1} parent=11 // pred_check_branch
        %120 = sbr.rel (%p118) target = $region16
      $region15: #{tpu_custom_call.1} parent=11 // pred_region
        _
      $region16: #{tpu_custom_call.1} parent=11 // pred_fallthru
        _
      // Predicated region
      $region17: #{tpu_custom_call.1} parent=11 // pred_check
        %p121 = pneg %p77
      $region18: #{tpu_custom_call.1} parent=11 // pred_check_branch
        %123 = sbr.rel (%p121) target = $region20
      $region19: #{tpu_custom_call.1} parent=11 // pred_region
        _
      $region20: #{tpu_custom_call.1} parent=11 // pred_fallthru
        _
    $region12: #{tpu_custom_call.1} parent=5 // pred_fallthru
      _
    %p124 = scmp.lt.s32.totalorder %s9, 2
    // Predicated region
    $region21: #{tpu_custom_call.1} parent=5 // pred_check
      %p125 = pneg %p124
    $region22: #{tpu_custom_call.1} parent=5 // pred_check_branch
      %127 = sbr.rel (%p125) target = $region24
    $region23: #{tpu_custom_call.1} parent=5 // pred_region
      // Predicated region
      $region25: #{tpu_custom_call.1} parent=23 // pred_check
        %p128 = pneg %p29
      $region26: #{tpu_custom_call.1} parent=23 // pred_check_branch
        %130 = sbr.rel (%p128) target = $region28
      $region27: #{tpu_custom_call.1} parent=23 // pred_region
        %p131 = scmp.lt.s32.totalorder %s9, 1
        %s132 = scalar_select %p131, %s9, 1
        %s133 = smul.addr %s132, 32
        %s134 = smul.addr %s133, 8
        %s135 = scalar_lea.vmem %s0, %s134
      $region28: #{tpu_custom_call.1} parent=23 // pred_fallthru
        _
    $region24: #{tpu_custom_call.1} parent=5 // pred_fallthru
      _
    %p136 = scmp.le.s32.totalorder 1, %s9
    %p137 = scmp.lt.s32.totalorder %s9, 3
    %p138 = pnand %p136, %p137
    %p139 = pneg %p138
    // Predicated region
    $region29: #{tpu_custom_call.1} parent=5 // pred_check
      _
    $region30: #{tpu_custom_call.1} parent=5 // pred_check_branch
      %141 = sbr.rel (%p138) target = $region32
    $region31: #{tpu_custom_call.1} parent=5 // pred_region
      %s142 = ssub.s32 %s9, 1
      %p143 = scmp.lt.s32.totalorder %s14, 1
      %s144 = scalar_select %p143, %s14, 1
      %s145 = smul.addr %s144, 32
      %s146 = smul.addr %s145, 8
      %s147 = scalar_lea.vmem %s0, %s146
      %p148 = pneg %p35
      %p149 = pneg %p32
      %p150 = pneg %p56
      %p151 = pneg %p53
      %p152 = pneg %p77
      %p153 = pneg %p74
      %p154 = pneg %p103
      %p155 = pneg %p100
      %p156 = scmp.lt.s32.totalorder %s14, 1
      %s157 = scalar_select %p156, %s14, 1
      %s158 = smul.addr %s157, 32
      %s159 = smul.addr %s158, 8
      %s160 = scalar_lea.vmem %s3, %s159
      %p161 = scmp.lt.s32.totalorder %s14, 1
      %s162 = scalar_select %p161, %s14, 1
      %s163 = smul.addr %s162, 32
      %s164 = smul.addr %s163, 8
      %s165 = scalar_lea.vmem %s0, %s164
      %p166 = scmp.lt.s32.totalorder %s14, 1
      %s167 = scalar_select %p166, %s14, 1
      %s168 = smul.addr %s167, 32
      %s169 = smul.addr %s168, 8
      %s170 = scalar_lea.vmem %s3, %s169
      %vm171 = vcmask 130048
      %172 = vst.msk [vmem:[#allocation2] sm:$0xff] %vm171, 0.0
      %173 = vst.msk [vmem:[#allocation2 + $0x8] sm:$0xff] %vm171, 0.0
      %vm174 = vcmask 123904
      %175 = vst.msk [vmem:[#allocation2 + $0x10] sm:$0x3] %vm174, 0.0
      %176 = vst.msk [vmem:[#allocation2 + $0x18] sm:$0xff] %vm171, 0.0
      %177 = vst.msk [vmem:[#allocation2 + $0x20] sm:$0xff] %vm171, 0.0
      %178 = vst.msk [vmem:[#allocation2 + $0x28] sm:$0x3] %vm174, 0.0
      %179 = vst.msk [vmem:[#allocation2 + $0x30] sm:$0xff] %vm171, 0.0
      %180 = vst.msk [vmem:[#allocation2 + $0x38] sm:$0xff] %vm171, 0.0
      %181 = vst.msk [vmem:[#allocation2 + $0x40] sm:$0x3] %vm174, 0.0
      %182 = vst.msk [vmem:[#allocation2 + $0x48] sm:$0xff] %vm171, 0.0
      %183 = vst.msk [vmem:[#allocation2 + $0x50] sm:$0xff] %vm171, 0.0
      %184 = vst.msk [vmem:[#allocation2 + $0x58] sm:$0x3] %vm174, 0.0
      %185 = vst.msk [vmem:[#allocation2 + $0x60] sm:$0xff] %vm171, 0.0
      %186 = vst.msk [vmem:[#allocation2 + $0x68] sm:$0xff] %vm171, 0.0
      %187 = vst.msk [vmem:[#allocation2 + $0x70] sm:$0x3] %vm174, 0.0
      %188 = vst.msk [vmem:[#allocation2 + $0x78] sm:$0xff] %vm171, 0.0
      %189 = vst.msk [vmem:[#allocation2 + $0x80] sm:$0xff] %vm171, 0.0
      %190 = vst.msk [vmem:[#allocation2 + $0x88] sm:$0x3] %vm174, 0.0
      %191 = vst.msk [vmem:[#allocation2 + $0x90] sm:$0xff] %vm171, 0.0
      %192 = vst.msk [vmem:[#allocation2 + $0x98] sm:$0xff] %vm171, 0.0
      %193 = vst.msk [vmem:[#allocation2 + $0xa0] sm:$0x3] %vm174, 0.0
      %194 = vst.msk [vmem:[#allocation2 + $0xa8] sm:$0xff] %vm171, 0.0
      %195 = vst.msk [vmem:[#allocation2 + $0xb0] sm:$0xff] %vm171, 0.0
      %196 = vst.msk [vmem:[#allocation2 + $0xb8] sm:$0x3] %vm174, 0.0
      %197 = vst.msk [vmem:[#allocation2 + $0xc0] sm:$0xff] %vm171, 0.0
      %198 = vst.msk [vmem:[#allocation2 + $0xc8] sm:$0xff] %vm171, 0.0
      %199 = vst.msk [vmem:[#allocation2 + $0xd0] sm:$0x3] %vm174, 0.0
      %200 = vst.msk [vmem:[#allocation2 + $0xd8] sm:$0xff] %vm171, 0.0
      %201 = vst.msk [vmem:[#allocation2 + $0xe0] sm:$0xff] %vm171, 0.0
      %202 = vst.msk [vmem:[#allocation2 + $0xe8] sm:$0x3] %vm174, 0.0
      %203 = vst.msk [vmem:[#allocation2 + $0xf0] sm:$0xff] %vm171, 0.0
      %204 = vst.msk [vmem:[#allocation2 + $0xf8] sm:$0xff] %vm171, 0.0
      %205 = vst.msk [vmem:[#allocation2 + $0x100] sm:$0x3] %vm174, 0.0
      %206 = vst.msk [vmem:[#allocation2 + $0x108] sm:$0xff] %vm171, 0.0
      %207 = vst.msk [vmem:[#allocation2 + $0x110] sm:$0xff] %vm171, 0.0
      %208 = vst.msk [vmem:[#allocation2 + $0x118] sm:$0x3] %vm174, 0.0
      %209 = vst.msk [vmem:[#allocation2 + $0x120] sm:$0xff] %vm171, 0.0
      %210 = vst.msk [vmem:[#allocation2 + $0x128] sm:$0xff] %vm171, 0.0
      %211 = vst.msk [vmem:[#allocation2 + $0x130] sm:$0x3] %vm174, 0.0
      %212 = vst.msk [vmem:[#allocation2 + $0x138] sm:$0xff] %vm171, 0.0
      %213 = vst.msk [vmem:[#allocation2 + $0x140] sm:$0xff] %vm171, 0.0
      %214 = vst.msk [vmem:[#allocation2 + $0x148] sm:$0x3] %vm174, 0.0
      %215 = vst.msk [vmem:[#allocation2 + $0x150] sm:$0xff] %vm171, 0.0
      %216 = vst.msk [vmem:[#allocation2 + $0x158] sm:$0xff] %vm171, 0.0
      %217 = vst.msk [vmem:[#allocation2 + $0x160] sm:$0x3] %vm174, 0.0
      %218 = vst.msk [vmem:[#allocation2 + $0x168] sm:$0xff] %vm171, 0.0
      %219 = vst.msk [vmem:[#allocation2 + $0x170] sm:$0xff] %vm171, 0.0
      %220 = vst.msk [vmem:[#allocation2 + $0x178] sm:$0x3] %vm174, 0.0
      %221 = vst.msk [vmem:[#allocation2 + $0x180] sm:$0xff] %vm171, 0.0
      %222 = vst.msk [vmem:[#allocation2 + $0x188] sm:$0xff] %vm171, 0.0
      %223 = vst.msk [vmem:[#allocation2 + $0x190] sm:$0x3] %vm174, 0.0
      %224 = vst.msk [vmem:[#allocation2 + $0x198] sm:$0xff] %vm171, 0.0
      %225 = vst.msk [vmem:[#allocation2 + $0x1a0] sm:$0xff] %vm171, 0.0
      %226 = vst.msk [vmem:[#allocation2 + $0x1a8] sm:$0x3] %vm174, 0.0
      %227 = vst.msk [vmem:[#allocation2 + $0x1b0] sm:$0xff] %vm171, 0.0
      %228 = vst.msk [vmem:[#allocation2 + $0x1b8] sm:$0xff] %vm171, 0.0
      %229 = vst.msk [vmem:[#allocation2 + $0x1c0] sm:$0x3] %vm174, 0.0
      %230 = vst.msk [vmem:[#allocation2 + $0x1c8] sm:$0xff] %vm171, 0.0
      %231 = vst.msk [vmem:[#allocation2 + $0x1d0] sm:$0xff] %vm171, 0.0
      %232 = vst.msk [vmem:[#allocation2 + $0x1d8] sm:$0x3] %vm174, 0.0
      %233 = vst.msk [vmem:[#allocation2 + $0x1e0] sm:$0xff] %vm171, 0.0
      %234 = vst.msk [vmem:[#allocation2 + $0x1e8] sm:$0xff] %vm171, 0.0
      %235 = vst.msk [vmem:[#allocation2 + $0x1f0] sm:$0x3] %vm174, 0.0
      %236 = vst.msk [vmem:[#allocation2 + $0x1f8] sm:$0xff] %vm171, 0.0
      %237 = vst.msk [vmem:[#allocation2 + $0x200] sm:$0xff] %vm171, 0.0
      %238 = vst.msk [vmem:[#allocation2 + $0x208] sm:$0x3] %vm174, 0.0
      %239 = vst.msk [vmem:[#allocation2 + $0x210] sm:$0xff] %vm171, 0.0
      %240 = vst.msk [vmem:[#allocation2 + $0x218] sm:$0xff] %vm171, 0.0
      %241 = vst.msk [vmem:[#allocation2 + $0x220] sm:$0x3] %vm174, 0.0
      %242 = vst.msk [vmem:[#allocation2 + $0x228] sm:$0xff] %vm171, 0.0
      %243 = vst.msk [vmem:[#allocation2 + $0x230] sm:$0xff] %vm171, 0.0
      %244 = vst.msk [vmem:[#allocation2 + $0x238] sm:$0x3] %vm174, 0.0
      %v245 = vld [vmem:[%s165] sm:$0xff]
      %v246 = vld [vmem:[%s165 + $0x8] sm:$0xff]
      %v247 = vld [vmem:[%s165 + $0x10] sm:$0xff]
      %v248 = vld [vmem:[%s165 + $0x18] sm:$0xff]
      %v249 = vld [vmem:[%s165 + $0x20] sm:$0xff]
      %v250 = vld [vmem:[%s165 + $0x28] sm:$0xff]
      %v251 = vld [vmem:[%s165 + $0x30] sm:$0xff]
      %v252 = vld [vmem:[%s165 + $0x38] sm:$0xff]
      %v253 = vld [vmem:[%s165 + $0x40] sm:$0xff]
      %v254 = vld [vmem:[%s165 + $0x48] sm:$0xff]
      %v255 = vld [vmem:[%s165 + $0x50] sm:$0xff]
      %v256 = vld [vmem:[%s165 + $0x58] sm:$0xff]
      %v257 = vld [vmem:[%s165 + $0x60] sm:$0xff]
      %v258 = vld [vmem:[%s165 + $0x68] sm:$0xff]
      %v259 = vld [vmem:[%s165 + $0x70] sm:$0xff]
      %v260 = vld [vmem:[%s165 + $0x78] sm:$0xff]
      %v261 = vld [vmem:[%s165 + $0x80] sm:$0xff]
      %v262 = vld [vmem:[%s165 + $0x88] sm:$0xff]
      %v263 = vld [vmem:[%s165 + $0x90] sm:$0xff]
      %v264 = vld [vmem:[%s165 + $0x98] sm:$0xff]
      %v265 = vld [vmem:[%s165 + $0xa0] sm:$0xff]
      %v266 = vld [vmem:[%s165 + $0xa8] sm:$0xff]
      %v267 = vld [vmem:[%s165 + $0xb0] sm:$0xff]
      %v268 = vld [vmem:[%s165 + $0xb8] sm:$0xff]
      %v269 = vld [vmem:[%s165 + $0xc0] sm:$0xff]
      %v270 = vld [vmem:[%s165 + $0xc8] sm:$0xff]
      %v271 = vld [vmem:[%s165 + $0xd0] sm:$0xff]
      %v272 = vld [vmem:[%s165 + $0xd8] sm:$0xff]
      %v273 = vld [vmem:[%s165 + $0xe0] sm:$0xff]
      %v274 = vld [vmem:[%s165 + $0xe8] sm:$0xff]
      %v275 = vld [vmem:[%s165 + $0xf0] sm:$0xff]
      %v276 = vld [vmem:[%s165 + $0xf8] sm:$0xff]
      %309 = vrot.lane.b32.xlu0 %v245, 12
      %v310 = vpop.permute.xlu0 %309
      %311 = vrot.lane.b32.xlu0 %v246, 12
      %v312 = vpop.permute.xlu0 %311
      %313 = vrot.lane.b32.xlu0 %v247, 12
      %v314 = vpop.permute.xlu0 %313
      %315 = vrot.lane.b32.xlu0 %v248, 12
      %v316 = vpop.permute.xlu0 %315
      %317 = vrot.lane.b32.xlu0 %v249, 12
      %v318 = vpop.permute.xlu0 %317
      %319 = vrot.lane.b32.xlu0 %v250, 12
      %v320 = vpop.permute.xlu0 %319
      %321 = vrot.lane.b32.xlu0 %v251, 12
      %v322 = vpop.permute.xlu0 %321
      %323 = vrot.lane.b32.xlu0 %v252, 12
      %v324 = vpop.permute.xlu0 %323
      %325 = vrot.lane.b32.xlu0 %v253, 12
      %v326 = vpop.permute.xlu0 %325
      %327 = vrot.lane.b32.xlu0 %v254, 12
      %v328 = vpop.permute.xlu0 %327
      %329 = vrot.lane.b32.xlu0 %v255, 12
      %v330 = vpop.permute.xlu0 %329
      %331 = vrot.lane.b32.xlu0 %v256, 12
      %v332 = vpop.permute.xlu0 %331
      %333 = vrot.lane.b32.xlu0 %v257, 12
      %v334 = vpop.permute.xlu0 %333
      %335 = vrot.lane.b32.xlu0 %v258, 12
      %v336 = vpop.permute.xlu0 %335
      %337 = vrot.lane.b32.xlu0 %v259, 12
      %v338 = vpop.permute.xlu0 %337
      %339 = vrot.lane.b32.xlu0 %v260, 12
      %v340 = vpop.permute.xlu0 %339
      %341 = vrot.lane.b32.xlu0 %v261, 12
      %v342 = vpop.permute.xlu0 %341
      %343 = vrot.lane.b32.xlu0 %v262, 12
      %v344 = vpop.permute.xlu0 %343
      %345 = vrot.lane.b32.xlu0 %v263, 12
      %v346 = vpop.permute.xlu0 %345
      %347 = vrot.lane.b32.xlu0 %v264, 12
      %v348 = vpop.permute.xlu0 %347
      %349 = vrot.lane.b32.xlu0 %v265, 12
      %v350 = vpop.permute.xlu0 %349
      %351 = vrot.lane.b32.xlu0 %v266, 12
      %v352 = vpop.permute.xlu0 %351
      %353 = vrot.lane.b32.xlu0 %v267, 12
      %v354 = vpop.permute.xlu0 %353
      %355 = vrot.lane.b32.xlu0 %v268, 12
      %v356 = vpop.permute.xlu0 %355
      %357 = vrot.lane.b32.xlu0 %v269, 12
      %v358 = vpop.permute.xlu0 %357
      %359 = vrot.lane.b32.xlu0 %v270, 12
      %v360 = vpop.permute.xlu0 %359
      %361 = vrot.lane.b32.xlu0 %v271, 12
      %v362 = vpop.permute.xlu0 %361
      %363 = vrot.lane.b32.xlu0 %v272, 12
      %v364 = vpop.permute.xlu0 %363
      %365 = vrot.lane.b32.xlu0 %v273, 12
      %v366 = vpop.permute.xlu0 %365
      %367 = vrot.lane.b32.xlu0 %v274, 12
      %v368 = vpop.permute.xlu0 %367
      %369 = vrot.lane.b32.xlu0 %v275, 12
      %v370 = vpop.permute.xlu0 %369
      %371 = vrot.lane.b32.xlu0 %v276, 12
      %v372 = vpop.permute.xlu0 %371
      %s405 = scalar_lea.vmem [#allocation2], 192
      %vm406 = vcmask 130144
      %407 = vst.msk [vmem:[%s405 + $0x1] sm:$0xff] %vm406, %v310
      %408 = vst.msk [vmem:[%s405 + $0x9] sm:$0xff] %vm406, %v312
      %409 = vst.msk [vmem:[%s405 + $0x19] sm:$0xff] %vm406, %v314
      %410 = vst.msk [vmem:[%s405 + $0x21] sm:$0xff] %vm406, %v316
      %411 = vst.msk [vmem:[%s405 + $0x31] sm:$0xff] %vm406, %v318
      %412 = vst.msk [vmem:[%s405 + $0x39] sm:$0xff] %vm406, %v320
      %413 = vst.msk [vmem:[%s405 + $0x49] sm:$0xff] %vm406, %v322
      %414 = vst.msk [vmem:[%s405 + $0x51] sm:$0xff] %vm406, %v324
      %415 = vst.msk [vmem:[%s405 + $0x61] sm:$0xff] %vm406, %v326
      %416 = vst.msk [vmem:[%s405 + $0x69] sm:$0xff] %vm406, %v328
      %417 = vst.msk [vmem:[%s405 + $0x79] sm:$0xff] %vm406, %v330
      %418 = vst.msk [vmem:[%s405 + $0x81] sm:$0xff] %vm406, %v332
      %419 = vst.msk [vmem:[%s405 + $0x91] sm:$0xff] %vm406, %v334
      %420 = vst.msk [vmem:[%s405 + $0x99] sm:$0xff] %vm406, %v336
      %421 = vst.msk [vmem:[%s405 + $0xa9] sm:$0xff] %vm406, %v338
      %422 = vst.msk [vmem:[%s405 + $0xb1] sm:$0xff] %vm406, %v340
      %423 = vst.msk [vmem:[%s405 + $0xc1] sm:$0xff] %vm406, %v342
      %424 = vst.msk [vmem:[%s405 + $0xc9] sm:$0xff] %vm406, %v344
      %425 = vst.msk [vmem:[%s405 + $0xd9] sm:$0xff] %vm406, %v346
      %426 = vst.msk [vmem:[%s405 + $0xe1] sm:$0xff] %vm406, %v348
      %427 = vst.msk [vmem:[%s405 + $0xf1] sm:$0xff] %vm406, %v350
      %428 = vst.msk [vmem:[%s405 + $0xf9] sm:$0xff] %vm406, %v352
      %429 = vst.msk [vmem:[%s405 + $0x109] sm:$0xff] %vm406, %v354
      %430 = vst.msk [vmem:[%s405 + $0x111] sm:$0xff] %vm406, %v356
      %431 = vst.msk [vmem:[%s405 + $0x121] sm:$0xff] %vm406, %v358
      %432 = vst.msk [vmem:[%s405 + $0x129] sm:$0xff] %vm406, %v360
      %433 = vst.msk [vmem:[%s405 + $0x139] sm:$0xff] %vm406, %v362
      %434 = vst.msk [vmem:[%s405 + $0x141] sm:$0xff] %vm406, %v364
      %435 = vst.msk [vmem:[%s405 + $0x151] sm:$0xff] %vm406, %v366
      %436 = vst.msk [vmem:[%s405 + $0x159] sm:$0xff] %vm406, %v368
      %437 = vst.msk [vmem:[%s405 + $0x169] sm:$0xff] %vm406, %v370
      %438 = vst.msk [vmem:[%s405 + $0x171] sm:$0xff] %vm406, %v372
      %s439 = scalar_lea.vmem [#allocation2], 168
      %v440 = vld [vmem:[%s439] sm:$0xff]
      %v441 = vld [vmem:[%s439 + $0x8] sm:$0xff]
      %v442 = vld [vmem:[%s439 + $0x18] sm:$0xff]
      %v443 = vld [vmem:[%s439 + $0x20] sm:$0xff]
      %v444 = vld [vmem:[%s439 + $0x30] sm:$0xff]
      %v445 = vld [vmem:[%s439 + $0x38] sm:$0xff]
      %v446 = vld [vmem:[%s439 + $0x48] sm:$0xff]
      %v447 = vld [vmem:[%s439 + $0x50] sm:$0xff]
      %v448 = vld [vmem:[%s439 + $0x60] sm:$0xff]
      %v449 = vld [vmem:[%s439 + $0x68] sm:$0xff]
      %v450 = vld [vmem:[%s439 + $0x78] sm:$0xff]
      %v451 = vld [vmem:[%s439 + $0x80] sm:$0xff]
      %v452 = vld [vmem:[%s439 + $0x90] sm:$0xff]
      %v453 = vld [vmem:[%s439 + $0x98] sm:$0xff]
      %v454 = vld [vmem:[%s439 + $0xa8] sm:$0xff]
      %v455 = vld [vmem:[%s439 + $0xb0] sm:$0xff]
      %v456 = vld [vmem:[%s439 + $0xc0] sm:$0xff]
      %v457 = vld [vmem:[%s439 + $0xc8] sm:$0xff]
      %v458 = vld [vmem:[%s439 + $0xd8] sm:$0xff]
      %v459 = vld [vmem:[%s439 + $0xe0] sm:$0xff]
      %v460 = vld [vmem:[%s439 + $0xf0] sm:$0xff]
      %v461 = vld [vmem:[%s439 + $0xf8] sm:$0xff]
      %v462 = vld [vmem:[%s439 + $0x108] sm:$0xff]
      %v463 = vld [vmem:[%s439 + $0x110] sm:$0xff]
      %v464 = vld [vmem:[%s439 + $0x120] sm:$0xff]
      %v465 = vld [vmem:[%s439 + $0x128] sm:$0xff]
      %v466 = vld [vmem:[%s439 + $0x138] sm:$0xff]
      %v467 = vld [vmem:[%s439 + $0x140] sm:$0xff]
      %v468 = vld [vmem:[%s439 + $0x150] sm:$0xff]
      %v469 = vld [vmem:[%s439 + $0x158] sm:$0xff]
      %v470 = vld [vmem:[%s439 + $0x168] sm:$0xff]
      %v471 = vld [vmem:[%s439 + $0x170] sm:$0xff]
      %472 = vst.msk [vmem:[#allocation3] sm:$0xff] %vm171, %v440
      %473 = vst.msk [vmem:[#allocation3 + $0x8] sm:$0xff] %vm171, %v441
      %474 = vst.msk [vmem:[#allocation3 + $0x10] sm:$0xff] %vm171, %v442
      %475 = vst.msk [vmem:[#allocation3 + $0x18] sm:$0xff] %vm171, %v443
      %476 = vst.msk [vmem:[#allocation3 + $0x20] sm:$0xff] %vm171, %v444
      %477 = vst.msk [vmem:[#allocation3 + $0x28] sm:$0xff] %vm171, %v445
      %478 = vst.msk [vmem:[#allocation3 + $0x30] sm:$0xff] %vm171, %v446
      %479 = vst.msk [vmem:[#allocation3 + $0x38] sm:$0xff] %vm171, %v447
      %480 = vst.msk [vmem:[#allocation3 + $0x40] sm:$0xff] %vm171, %v448
      %481 = vst.msk [vmem:[#allocation3 + $0x48] sm:$0xff] %vm171, %v449
      %482 = vst.msk [vmem:[#allocation3 + $0x50] sm:$0xff] %vm171, %v450
      %483 = vst.msk [vmem:[#allocation3 + $0x58] sm:$0xff] %vm171, %v451
      %484 = vst.msk [vmem:[#allocation3 + $0x60] sm:$0xff] %vm171, %v452
      %485 = vst.msk [vmem:[#allocation3 + $0x68] sm:$0xff] %vm171, %v453
      %486 = vst.msk [vmem:[#allocation3 + $0x70] sm:$0xff] %vm171, %v454
      %487 = vst.msk [vmem:[#allocation3 + $0x78] sm:$0xff] %vm171, %v455
      %488 = vst.msk [vmem:[#allocation3 + $0x80] sm:$0xff] %vm171, %v456
      %489 = vst.msk [vmem:[#allocation3 + $0x88] sm:$0xff] %vm171, %v457
      %490 = vst.msk [vmem:[#allocation3 + $0x90] sm:$0xff] %vm171, %v458
      %491 = vst.msk [vmem:[#allocation3 + $0x98] sm:$0xff] %vm171, %v459
      %492 = vst.msk [vmem:[#allocation3 + $0xa0] sm:$0xff] %vm171, %v460
      %493 = vst.msk [vmem:[#allocation3 + $0xa8] sm:$0xff] %vm171, %v461
      %494 = vst.msk [vmem:[#allocation3 + $0xb0] sm:$0xff] %vm171, %v462
      %495 = vst.msk [vmem:[#allocation3 + $0xb8] sm:$0xff] %vm171, %v463
      %496 = vst.msk [vmem:[#allocation3 + $0xc0] sm:$0xff] %vm171, %v464
      %497 = vst.msk [vmem:[#allocation3 + $0xc8] sm:$0xff] %vm171, %v465
      %498 = vst.msk [vmem:[#allocation3 + $0xd0] sm:$0xff] %vm171, %v466
      %499 = vst.msk [vmem:[#allocation3 + $0xd8] sm:$0xff] %vm171, %v467
      %500 = vst.msk [vmem:[#allocation3 + $0xe0] sm:$0xff] %vm171, %v468
      %501 = vst.msk [vmem:[#allocation3 + $0xe8] sm:$0xff] %vm171, %v469
      %502 = vst.msk [vmem:[#allocation3 + $0xf0] sm:$0xff] %vm171, %v470
      %503 = vst.msk [vmem:[#allocation3 + $0xf8] sm:$0xff] %vm171, %v471
      %v504 = vld [vmem:[%s439 + $0x1] sm:$0xff]
      %v505 = vld [vmem:[%s439 + $0x9] sm:$0xff]
      %v506 = vld [vmem:[%s439 + $0x19] sm:$0xff]
      %v507 = vld [vmem:[%s439 + $0x21] sm:$0xff]
      %v508 = vld [vmem:[%s439 + $0x31] sm:$0xff]
      %v509 = vld [vmem:[%s439 + $0x39] sm:$0xff]
      %v510 = vld [vmem:[%s439 + $0x49] sm:$0xff]
      %v511 = vld [vmem:[%s439 + $0x51] sm:$0xff]
      %v512 = vld [vmem:[%s439 + $0x61] sm:$0xff]
      %v513 = vld [vmem:[%s439 + $0x69] sm:$0xff]
      %v514 = vld [vmem:[%s439 + $0x79] sm:$0xff]
      %v515 = vld [vmem:[%s439 + $0x81] sm:$0xff]
      %v516 = vld [vmem:[%s439 + $0x91] sm:$0xff]
      %v517 = vld [vmem:[%s439 + $0x99] sm:$0xff]
      %v518 = vld [vmem:[%s439 + $0xa9] sm:$0xff]
      %v519 = vld [vmem:[%s439 + $0xb1] sm:$0xff]
      %v520 = vld [vmem:[%s439 + $0xc1] sm:$0xff]
      %v521 = vld [vmem:[%s439 + $0xc9] sm:$0xff]
      %v522 = vld [vmem:[%s439 + $0xd9] sm:$0xff]
      %v523 = vld [vmem:[%s439 + $0xe1] sm:$0xff]
      %v524 = vld [vmem:[%s439 + $0xf1] sm:$0xff]
      %v525 = vld [vmem:[%s439 + $0xf9] sm:$0xff]
      %v526 = vld [vmem:[%s439 + $0x109] sm:$0xff]
      %v527 = vld [vmem:[%s439 + $0x111] sm:$0xff]
      %v528 = vld [vmem:[%s439 + $0x121] sm:$0xff]
      %v529 = vld [vmem:[%s439 + $0x129] sm:$0xff]
      %v530 = vld [vmem:[%s439 + $0x139] sm:$0xff]
      %v531 = vld [vmem:[%s439 + $0x141] sm:$0xff]
      %v532 = vld [vmem:[%s439 + $0x151] sm:$0xff]
      %v533 = vld [vmem:[%s439 + $0x159] sm:$0xff]
      %v534 = vld [vmem:[%s439 + $0x169] sm:$0xff]
      %v535 = vld [vmem:[%s439 + $0x171] sm:$0xff]
      %568 = vrot.lane.b32.xlu0 %v504, 16
      %v569 = vpop.permute.xlu0 %568
      %570 = vrot.lane.b32.xlu0 %v505, 16
      %v571 = vpop.permute.xlu0 %570
      %572 = vrot.lane.b32.xlu0 %v506, 16
      %v573 = vpop.permute.xlu0 %572
      %574 = vrot.lane.b32.xlu0 %v507, 16
      %v575 = vpop.permute.xlu0 %574
      %576 = vrot.lane.b32.xlu0 %v508, 16
      %v577 = vpop.permute.xlu0 %576
      %578 = vrot.lane.b32.xlu0 %v509, 16
      %v579 = vpop.permute.xlu0 %578
      %580 = vrot.lane.b32.xlu0 %v510, 16
      %v581 = vpop.permute.xlu0 %580
      %582 = vrot.lane.b32.xlu0 %v511, 16
      %v583 = vpop.permute.xlu0 %582
      %584 = vrot.lane.b32.xlu0 %v512, 16
      %v585 = vpop.permute.xlu0 %584
      %586 = vrot.lane.b32.xlu0 %v513, 16
      %v587 = vpop.permute.xlu0 %586
      %588 = vrot.lane.b32.xlu0 %v514, 16
      %v589 = vpop.permute.xlu0 %588
      %590 = vrot.lane.b32.xlu0 %v515, 16
      %v591 = vpop.permute.xlu0 %590
      %592 = vrot.lane.b32.xlu0 %v516, 16
      %v593 = vpop.permute.xlu0 %592
      %594 = vrot.lane.b32.xlu0 %v517, 16
      %v595 = vpop.permute.xlu0 %594
      %596 = vrot.lane.b32.xlu0 %v518, 16
      %v597 = vpop.permute.xlu0 %596
      %598 = vrot.lane.b32.xlu0 %v519, 16
      %v599 = vpop.permute.xlu0 %598
      %600 = vrot.lane.b32.xlu0 %v520, 16
      %v601 = vpop.permute.xlu0 %600
      %602 = vrot.lane.b32.xlu0 %v521, 16
      %v603 = vpop.permute.xlu0 %602
      %604 = vrot.lane.b32.xlu0 %v522, 16
      %v605 = vpop.permute.xlu0 %604
      %606 = vrot.lane.b32.xlu0 %v523, 16
      %v607 = vpop.permute.xlu0 %606
      %608 = vrot.lane.b32.xlu0 %v524, 16
      %v609 = vpop.permute.xlu0 %608
      %610 = vrot.lane.b32.xlu0 %v525, 16
      %v611 = vpop.permute.xlu0 %610
      %612 = vrot.lane.b32.xlu0 %v526, 16
      %v613 = vpop.permute.xlu0 %612
      %614 = vrot.lane.b32.xlu0 %v527, 16
      %v615 = vpop.permute.xlu0 %614
      %616 = vrot.lane.b32.xlu0 %v528, 16
      %v617 = vpop.permute.xlu0 %616
      %618 = vrot.lane.b32.xlu0 %v529, 16
      %v619 = vpop.permute.xlu0 %618
      %620 = vrot.lane.b32.xlu0 %v530, 16
      %v621 = vpop.permute.xlu0 %620
      %622 = vrot.lane.b32.xlu0 %v531, 16
      %v623 = vpop.permute.xlu0 %622
      %624 = vrot.lane.b32.xlu0 %v532, 16
      %v625 = vpop.permute.xlu0 %624
      %626 = vrot.lane.b32.xlu0 %v533, 16
      %v627 = vpop.permute.xlu0 %626
      %628 = vrot.lane.b32.xlu0 %v534, 16
      %v629 = vpop.permute.xlu0 %628
      %630 = vrot.lane.b32.xlu0 %v535, 16
      %v631 = vpop.permute.xlu0 %630
      %vm664 = vcmask 261248
      %665 = vst.msk [vmem:[#allocation3] sm:$0xff] %vm664, %v569
      %666 = vst.msk [vmem:[#allocation3 + $0x8] sm:$0xff] %vm664, %v571
      %667 = vst.msk [vmem:[#allocation3 + $0x10] sm:$0xff] %vm664, %v573
      %668 = vst.msk [vmem:[#allocation3 + $0x18] sm:$0xff] %vm664, %v575
      %669 = vst.msk [vmem:[#allocation3 + $0x20] sm:$0xff] %vm664, %v577
      %670 = vst.msk [vmem:[#allocation3 + $0x28] sm:$0xff] %vm664, %v579
      %671 = vst.msk [vmem:[#allocation3 + $0x30] sm:$0xff] %vm664, %v581
      %672 = vst.msk [vmem:[#allocation3 + $0x38] sm:$0xff] %vm664, %v583
      %673 = vst.msk [vmem:[#allocation3 + $0x40] sm:$0xff] %vm664, %v585
      %674 = vst.msk [vmem:[#allocation3 + $0x48] sm:$0xff] %vm664, %v587
      %675 = vst.msk [vmem:[#allocation3 + $0x50] sm:$0xff] %vm664, %v589
      %676 = vst.msk [vmem:[#allocation3 + $0x58] sm:$0xff] %vm664, %v591
      %677 = vst.msk [vmem:[#allocation3 + $0x60] sm:$0xff] %vm664, %v593
      %678 = vst.msk [vmem:[#allocation3 + $0x68] sm:$0xff] %vm664, %v595
      %679 = vst.msk [vmem:[#allocation3 + $0x70] sm:$0xff] %vm664, %v597
      %680 = vst.msk [vmem:[#allocation3 + $0x78] sm:$0xff] %vm664, %v599
      %681 = vst.msk [vmem:[#allocation3 + $0x80] sm:$0xff] %vm664, %v601
      %682 = vst.msk [vmem:[#allocation3 + $0x88] sm:$0xff] %vm664, %v603
      %683 = vst.msk [vmem:[#allocation3 + $0x90] sm:$0xff] %vm664, %v605
      %684 = vst.msk [vmem:[#allocation3 + $0x98] sm:$0xff] %vm664, %v607
      %685 = vst.msk [vmem:[#allocation3 + $0xa0] sm:$0xff] %vm664, %v609
      %686 = vst.msk [vmem:[#allocation3 + $0xa8] sm:$0xff] %vm664, %v611
      %687 = vst.msk [vmem:[#allocation3 + $0xb0] sm:$0xff] %vm664, %v613
      %688 = vst.msk [vmem:[#allocation3 + $0xb8] sm:$0xff] %vm664, %v615
      %689 = vst.msk [vmem:[#allocation3 + $0xc0] sm:$0xff] %vm664, %v617
      %690 = vst.msk [vmem:[#allocation3 + $0xc8] sm:$0xff] %vm664, %v619
      %691 = vst.msk [vmem:[#allocation3 + $0xd0] sm:$0xff] %vm664, %v621
      %692 = vst.msk [vmem:[#allocation3 + $0xd8] sm:$0xff] %vm664, %v623
      %693 = vst.msk [vmem:[#allocation3 + $0xe0] sm:$0xff] %vm664, %v625
      %694 = vst.msk [vmem:[#allocation3 + $0xe8] sm:$0xff] %vm664, %v627
      %695 = vst.msk [vmem:[#allocation3 + $0xf0] sm:$0xff] %vm664, %v629
      %696 = vst.msk [vmem:[#allocation3 + $0xf8] sm:$0xff] %vm664, %v631
      %v697 = vld [vmem:[%s439 + $0x2] sm:$0xff]
      %v698 = vld [vmem:[%s439 + $0xa] sm:$0xff]
      %v699 = vld [vmem:[%s439 + $0x1a] sm:$0xff]
      %v700 = vld [vmem:[%s439 + $0x22] sm:$0xff]
      %v701 = vld [vmem:[%s439 + $0x32] sm:$0xff]
      %v702 = vld [vmem:[%s439 + $0x3a] sm:$0xff]
      %v703 = vld [vmem:[%s439 + $0x4a] sm:$0xff]
      %v704 = vld [vmem:[%s439 + $0x52] sm:$0xff]
      %v705 = vld [vmem:[%s439 + $0x62] sm:$0xff]
      %v706 = vld [vmem:[%s439 + $0x6a] sm:$0xff]
      %v707 = vld [vmem:[%s439 + $0x7a] sm:$0xff]
      %v708 = vld [vmem:[%s439 + $0x82] sm:$0xff]
      %v709 = vld [vmem:[%s439 + $0x92] sm:$0xff]
      %v710 = vld [vmem:[%s439 + $0x9a] sm:$0xff]
      %v711 = vld [vmem:[%s439 + $0xaa] sm:$0xff]
      %v712 = vld [vmem:[%s439 + $0xb2] sm:$0xff]
      %v713 = vld [vmem:[%s439 + $0xc2] sm:$0xff]
      %v714 = vld [vmem:[%s439 + $0xca] sm:$0xff]
      %v715 = vld [vmem:[%s439 + $0xda] sm:$0xff]
      %v716 = vld [vmem:[%s439 + $0xe2] sm:$0xff]
      %v717 = vld [vmem:[%s439 + $0xf2] sm:$0xff]
      %v718 = vld [vmem:[%s439 + $0xfa] sm:$0xff]
      %v719 = vld [vmem:[%s439 + $0x10a] sm:$0xff]
      %v720 = vld [vmem:[%s439 + $0x112] sm:$0xff]
      %v721 = vld [vmem:[%s439 + $0x122] sm:$0xff]
      %v722 = vld [vmem:[%s439 + $0x12a] sm:$0xff]
      %v723 = vld [vmem:[%s439 + $0x13a] sm:$0xff]
      %v724 = vld [vmem:[%s439 + $0x142] sm:$0xff]
      %v725 = vld [vmem:[%s439 + $0x152] sm:$0xff]
      %v726 = vld [vmem:[%s439 + $0x15a] sm:$0xff]
      %v727 = vld [vmem:[%s439 + $0x16a] sm:$0xff]
      %v728 = vld [vmem:[%s439 + $0x172] sm:$0xff]
      %761 = vrot.lane.b32.xlu0 %v697, 32
      %v762 = vpop.permute.xlu0 %761
      %763 = vrot.lane.b32.xlu0 %v698, 32
      %v764 = vpop.permute.xlu0 %763
      %765 = vrot.lane.b32.xlu0 %v699, 32
      %v766 = vpop.permute.xlu0 %765
      %767 = vrot.lane.b32.xlu0 %v700, 32
      %v768 = vpop.permute.xlu0 %767
      %769 = vrot.lane.b32.xlu0 %v701, 32
      %v770 = vpop.permute.xlu0 %769
      %771 = vrot.lane.b32.xlu0 %v702, 32
      %v772 = vpop.permute.xlu0 %771
      %773 = vrot.lane.b32.xlu0 %v703, 32
      %v774 = vpop.permute.xlu0 %773
      %775 = vrot.lane.b32.xlu0 %v704, 32
      %v776 = vpop.permute.xlu0 %775
      %777 = vrot.lane.b32.xlu0 %v705, 32
      %v778 = vpop.permute.xlu0 %777
      %779 = vrot.lane.b32.xlu0 %v706, 32
      %v780 = vpop.permute.xlu0 %779
      %781 = vrot.lane.b32.xlu0 %v707, 32
      %v782 = vpop.permute.xlu0 %781
      %783 = vrot.lane.b32.xlu0 %v708, 32
      %v784 = vpop.permute.xlu0 %783
      %785 = vrot.lane.b32.xlu0 %v709, 32
      %v786 = vpop.permute.xlu0 %785
      %787 = vrot.lane.b32.xlu0 %v710, 32
      %v788 = vpop.permute.xlu0 %787
      %789 = vrot.lane.b32.xlu0 %v711, 32
      %v790 = vpop.permute.xlu0 %789
      %791 = vrot.lane.b32.xlu0 %v712, 32
      %v792 = vpop.permute.xlu0 %791
      %793 = vrot.lane.b32.xlu0 %v713, 32
      %v794 = vpop.permute.xlu0 %793
      %795 = vrot.lane.b32.xlu0 %v714, 32
      %v796 = vpop.permute.xlu0 %795
      %797 = vrot.lane.b32.xlu0 %v715, 32
      %v798 = vpop.permute.xlu0 %797
      %799 = vrot.lane.b32.xlu0 %v716, 32
      %v800 = vpop.permute.xlu0 %799
      %801 = vrot.lane.b32.xlu0 %v717, 32
      %v802 = vpop.permute.xlu0 %801
      %803 = vrot.lane.b32.xlu0 %v718, 32
      %v804 = vpop.permute.xlu0 %803
      %805 = vrot.lane.b32.xlu0 %v719, 32
      %v806 = vpop.permute.xlu0 %805
      %807 = vrot.lane.b32.xlu0 %v720, 32
      %v808 = vpop.permute.xlu0 %807
      %809 = vrot.lane.b32.xlu0 %v721, 32
      %v810 = vpop.permute.xlu0 %809
      %811 = vrot.lane.b32.xlu0 %v722, 32
      %v812 = vpop.permute.xlu0 %811
      %813 = vrot.lane.b32.xlu0 %v723, 32
      %v814 = vpop.permute.xlu0 %813
      %815 = vrot.lane.b32.xlu0 %v724, 32
      %v816 = vpop.permute.xlu0 %815
      %817 = vrot.lane.b32.xlu0 %v725, 32
      %v818 = vpop.permute.xlu0 %817
      %819 = vrot.lane.b32.xlu0 %v726, 32
      %v820 = vpop.permute.xlu0 %819
      %821 = vrot.lane.b32.xlu0 %v727, 32
      %v822 = vpop.permute.xlu0 %821
      %823 = vrot.lane.b32.xlu0 %v728, 32
      %v824 = vpop.permute.xlu0 %823
      %vm857 = vcmask 392448
      %858 = vst.msk [vmem:[#allocation3] sm:$0xff] %vm857, %v762
      %859 = vst.msk [vmem:[#allocation3 + $0x8] sm:$0xff] %vm857, %v764
      %860 = vst.msk [vmem:[#allocation3 + $0x10] sm:$0xff] %vm857, %v766
      %861 = vst.msk [vmem:[#allocation3 + $0x18] sm:$0xff] %vm857, %v768
      %862 = vst.msk [vmem:[#allocation3 + $0x20] sm:$0xff] %vm857, %v770
      %863 = vst.msk [vmem:[#allocation3 + $0x28] sm:$0xff] %vm857, %v772
      %864 = vst.msk [vmem:[#allocation3 + $0x30] sm:$0xff] %vm857, %v774
      %865 = vst.msk [vmem:[#allocation3 + $0x38] sm:$0xff] %vm857, %v776
      %866 = vst.msk [vmem:[#allocation3 + $0x40] sm:$0xff] %vm857, %v778
      %867 = vst.msk [vmem:[#allocation3 + $0x48] sm:$0xff] %vm857, %v780
      %868 = vst.msk [vmem:[#allocation3 + $0x50] sm:$0xff] %vm857, %v782
      %869 = vst.msk [vmem:[#allocation3 + $0x58] sm:$0xff] %vm857, %v784
      %870 = vst.msk [vmem:[#allocation3 + $0x60] sm:$0xff] %vm857, %v786
      %871 = vst.msk [vmem:[#allocation3 + $0x68] sm:$0xff] %vm857, %v788
      %872 = vst.msk [vmem:[#allocation3 + $0x70] sm:$0xff] %vm857, %v790
      %873 = vst.msk [vmem:[#allocation3 + $0x78] sm:$0xff] %vm857, %v792
      %874 = vst.msk [vmem:[#allocation3 + $0x80] sm:$0xff] %vm857, %v794
      %875 = vst.msk [vmem:[#allocation3 + $0x88] sm:$0xff] %vm857, %v796
      %876 = vst.msk [vmem:[#allocation3 + $0x90] sm:$0xff] %vm857, %v798
      %877 = vst.msk [vmem:[#allocation3 + $0x98] sm:$0xff] %vm857, %v800
      %878 = vst.msk [vmem:[#allocation3 + $0xa0] sm:$0xff] %vm857, %v802
      %879 = vst.msk [vmem:[#allocation3 + $0xa8] sm:$0xff] %vm857, %v804
      %880 = vst.msk [vmem:[#allocation3 + $0xb0] sm:$0xff] %vm857, %v806
      %881 = vst.msk [vmem:[#allocation3 + $0xb8] sm:$0xff] %vm857, %v808
      %882 = vst.msk [vmem:[#allocation3 + $0xc0] sm:$0xff] %vm857, %v810
      %883 = vst.msk [vmem:[#allocation3 + $0xc8] sm:$0xff] %vm857, %v812
      %884 = vst.msk [vmem:[#allocation3 + $0xd0] sm:$0xff] %vm857, %v814
      %885 = vst.msk [vmem:[#allocation3 + $0xd8] sm:$0xff] %vm857, %v816
      %886 = vst.msk [vmem:[#allocation3 + $0xe0] sm:$0xff] %vm857, %v818
      %887 = vst.msk [vmem:[#allocation3 + $0xe8] sm:$0xff] %vm857, %v820
      %888 = vst.msk [vmem:[#allocation3 + $0xf0] sm:$0xff] %vm857, %v822
      %889 = vst.msk [vmem:[#allocation3 + $0xf8] sm:$0xff] %vm857, %v824
      %v890 = vld [vmem:[%s405] sm:$0xff]
      %v891 = vld [vmem:[%s405 + $0x8] sm:$0xff]
      %v892 = vld [vmem:[%s405 + $0x18] sm:$0xff]
      %v893 = vld [vmem:[%s405 + $0x20] sm:$0xff]
      %v894 = vld [vmem:[%s405 + $0x30] sm:$0xff]
      %v895 = vld [vmem:[%s405 + $0x38] sm:$0xff]
      %v896 = vld [vmem:[%s405 + $0x48] sm:$0xff]
      %v897 = vld [vmem:[%s405 + $0x50] sm:$0xff]
      %v898 = vld [vmem:[%s405 + $0x60] sm:$0xff]
      %v899 = vld [vmem:[%s405 + $0x68] sm:$0xff]
      %v900 = vld [vmem:[%s405 + $0x78] sm:$0xff]
      %v901 = vld [vmem:[%s405 + $0x80] sm:$0xff]
      %v902 = vld [vmem:[%s405 + $0x90] sm:$0xff]
      %v903 = vld [vmem:[%s405 + $0x98] sm:$0xff]
      %v904 = vld [vmem:[%s405 + $0xa8] sm:$0xff]
      %v905 = vld [vmem:[%s405 + $0xb0] sm:$0xff]
      %v906 = vld [vmem:[%s405 + $0xc0] sm:$0xff]
      %v907 = vld [vmem:[%s405 + $0xc8] sm:$0xff]
      %v908 = vld [vmem:[%s405 + $0xd8] sm:$0xff]
      %v909 = vld [vmem:[%s405 + $0xe0] sm:$0xff]
      %v910 = vld [vmem:[%s405 + $0xf0] sm:$0xff]
      %v911 = vld [vmem:[%s405 + $0xf8] sm:$0xff]
      %v912 = vld [vmem:[%s405 + $0x108] sm:$0xff]
      %v913 = vld [vmem:[%s405 + $0x110] sm:$0xff]
      %v914 = vld [vmem:[%s405 + $0x120] sm:$0xff]
      %v915 = vld [vmem:[%s405 + $0x128] sm:$0xff]
      %v916 = vld [vmem:[%s405 + $0x138] sm:$0xff]
      %v917 = vld [vmem:[%s405 + $0x140] sm:$0xff]
      %v918 = vld [vmem:[%s405 + $0x150] sm:$0xff]
      %v919 = vld [vmem:[%s405 + $0x158] sm:$0xff]
      %v920 = vld [vmem:[%s405 + $0x168] sm:$0xff]
      %v921 = vld [vmem:[%s405 + $0x170] sm:$0xff]
      %954 = vrot.lane.b32.xlu0 %v890, 48
      %v955 = vpop.permute.xlu0 %954
      %956 = vrot.lane.b32.xlu0 %v891, 48
      %v957 = vpop.permute.xlu0 %956
      %958 = vrot.lane.b32.xlu0 %v892, 48
      %v959 = vpop.permute.xlu0 %958
      %960 = vrot.lane.b32.xlu0 %v893, 48
      %v961 = vpop.permute.xlu0 %960
      %962 = vrot.lane.b32.xlu0 %v894, 48
      %v963 = vpop.permute.xlu0 %962
      %964 = vrot.lane.b32.xlu0 %v895, 48
      %v965 = vpop.permute.xlu0 %964
      %966 = vrot.lane.b32.xlu0 %v896, 48
      %v967 = vpop.permute.xlu0 %966
      %968 = vrot.lane.b32.xlu0 %v897, 48
      %v969 = vpop.permute.xlu0 %968
      %970 = vrot.lane.b32.xlu0 %v898, 48
      %v971 = vpop.permute.xlu0 %970
      %972 = vrot.lane.b32.xlu0 %v899, 48
      %v973 = vpop.permute.xlu0 %972
      %974 = vrot.lane.b32.xlu0 %v900, 48
      %v975 = vpop.permute.xlu0 %974
      %976 = vrot.lane.b32.xlu0 %v901, 48
      %v977 = vpop.permute.xlu0 %976
      %978 = vrot.lane.b32.xlu0 %v902, 48
      %v979 = vpop.permute.xlu0 %978
      %980 = vrot.lane.b32.xlu0 %v903, 48
      %v981 = vpop.permute.xlu0 %980
      %982 = vrot.lane.b32.xlu0 %v904, 48
      %v983 = vpop.permute.xlu0 %982
      %984 = vrot.lane.b32.xlu0 %v905, 48
      %v985 = vpop.permute.xlu0 %984
      %986 = vrot.lane.b32.xlu0 %v906, 48
      %v987 = vpop.permute.xlu0 %986
      %988 = vrot.lane.b32.xlu0 %v907, 48
      %v989 = vpop.permute.xlu0 %988
      %990 = vrot.lane.b32.xlu0 %v908, 48
      %v991 = vpop.permute.xlu0 %990
      %992 = vrot.lane.b32.xlu0 %v909, 48
      %v993 = vpop.permute.xlu0 %992
      %994 = vrot.lane.b32.xlu0 %v910, 48
      %v995 = vpop.permute.xlu0 %994
      %996 = vrot.lane.b32.xlu0 %v911, 48
      %v997 = vpop.permute.xlu0 %996
      %998 = vrot.lane.b32.xlu0 %v912, 48
      %v999 = vpop.permute.xlu0 %998
      %1000 = vrot.lane.b32.xlu0 %v913, 48
      %v1001 = vpop.permute.xlu0 %1000
      %1002 = vrot.lane.b32.xlu0 %v914, 48
      %v1003 = vpop.permute.xlu0 %1002
      %1004 = vrot.lane.b32.xlu0 %v915, 48
      %v1005 = vpop.permute.xlu0 %1004
      %1006 = vrot.lane.b32.xlu0 %v916, 48
      %v1007 = vpop.permute.xlu0 %1006
      %1008 = vrot.lane.b32.xlu0 %v917, 48
      %v1009 = vpop.permute.xlu0 %1008
      %1010 = vrot.lane.b32.xlu0 %v918, 48
      %v1011 = vpop.permute.xlu0 %1010
      %1012 = vrot.lane.b32.xlu0 %v919, 48
      %v1013 = vpop.permute.xlu0 %1012
      %1014 = vrot.lane.b32.xlu0 %v920, 48
      %v1015 = vpop.permute.xlu0 %1014
      %1016 = vrot.lane.b32.xlu0 %v921, 48
      %v1017 = vpop.permute.xlu0 %1016
      %vm1050 = vcmask 523648
      %1051 = vst.msk [vmem:[#allocation3] sm:$0xff] %vm1050, %v955
      %1052 = vst.msk [vmem:[#allocation3 + $0x8] sm:$0xff] %vm1050, %v957
      %1053 = vst.msk [vmem:[#allocation3 + $0x10] sm:$0xff] %vm1050, %v959
      %1054 = vst.msk [vmem:[#allocation3 + $0x18] sm:$0xff] %vm1050, %v961
      %1055 = vst.msk [vmem:[#allocation3 + $0x20] sm:$0xff] %vm1050, %v963
      %1056 = vst.msk [vmem:[#allocation3 + $0x28] sm:$0xff] %vm1050, %v965
      %1057 = vst.msk [vmem:[#allocation3 + $0x30] sm:$0xff] %vm1050, %v967
      %1058 = vst.msk [vmem:[#allocation3 + $0x38] sm:$0xff] %vm1050, %v969
      %1059 = vst.msk [vmem:[#allocation3 + $0x40] sm:$0xff] %vm1050, %v971
      %1060 = vst.msk [vmem:[#allocation3 + $0x48] sm:$0xff] %vm1050, %v973
      %1061 = vst.msk [vmem:[#allocation3 + $0x50] sm:$0xff] %vm1050, %v975
      %1062 = vst.msk [vmem:[#allocation3 + $0x58] sm:$0xff] %vm1050, %v977
      %1063 = vst.msk [vmem:[#allocation3 + $0x60] sm:$0xff] %vm1050, %v979
      %1064 = vst.msk [vmem:[#allocation3 + $0x68] sm:$0xff] %vm1050, %v981
      %1065 = vst.msk [vmem:[#allocation3 + $0x70] sm:$0xff] %vm1050, %v983
      %1066 = vst.msk [vmem:[#allocation3 + $0x78] sm:$0xff] %vm1050, %v985
      %1067 = vst.msk [vmem:[#allocation3 + $0x80] sm:$0xff] %vm1050, %v987
      %1068 = vst.msk [vmem:[#allocation3 + $0x88] sm:$0xff] %vm1050, %v989
      %1069 = vst.msk [vmem:[#allocation3 + $0x90] sm:$0xff] %vm1050, %v991
      %1070 = vst.msk [vmem:[#allocation3 + $0x98] sm:$0xff] %vm1050, %v993
      %1071 = vst.msk [vmem:[#allocation3 + $0xa0] sm:$0xff] %vm1050, %v995
      %1072 = vst.msk [vmem:[#allocation3 + $0xa8] sm:$0xff] %vm1050, %v997
      %1073 = vst.msk [vmem:[#allocation3 + $0xb0] sm:$0xff] %vm1050, %v999
      %1074 = vst.msk [vmem:[#allocation3 + $0xb8] sm:$0xff] %vm1050, %v1001
      %1075 = vst.msk [vmem:[#allocation3 + $0xc0] sm:$0xff] %vm1050, %v1003
      %1076 = vst.msk [vmem:[#allocation3 + $0xc8] sm:$0xff] %vm1050, %v1005
      %1077 = vst.msk [vmem:[#allocation3 + $0xd0] sm:$0xff] %vm1050, %v1007
      %1078 = vst.msk [vmem:[#allocation3 + $0xd8] sm:$0xff] %vm1050, %v1009
      %1079 = vst.msk [vmem:[#allocation3 + $0xe0] sm:$0xff] %vm1050, %v1011
      %1080 = vst.msk [vmem:[#allocation3 + $0xe8] sm:$0xff] %vm1050, %v1013
      %1081 = vst.msk [vmem:[#allocation3 + $0xf0] sm:$0xff] %vm1050, %v1015
      %1082 = vst.msk [vmem:[#allocation3 + $0xf8] sm:$0xff] %vm1050, %v1017
      %v1083 = vld [vmem:[%s405 + $0x1] sm:$0xff]
      %v1084 = vld [vmem:[%s405 + $0x9] sm:$0xff]
      %v1085 = vld [vmem:[%s405 + $0x19] sm:$0xff]
      %v1086 = vld [vmem:[%s405 + $0x21] sm:$0xff]
      %v1087 = vld [vmem:[%s405 + $0x31] sm:$0xff]
      %v1088 = vld [vmem:[%s405 + $0x39] sm:$0xff]
      %v1089 = vld [vmem:[%s405 + $0x49] sm:$0xff]
      %v1090 = vld [vmem:[%s405 + $0x51] sm:$0xff]
      %v1091 = vld [vmem:[%s405 + $0x61] sm:$0xff]
      %v1092 = vld [vmem:[%s405 + $0x69] sm:$0xff]
      %v1093 = vld [vmem:[%s405 + $0x79] sm:$0xff]
      %v1094 = vld [vmem:[%s405 + $0x81] sm:$0xff]
      %v1095 = vld [vmem:[%s405 + $0x91] sm:$0xff]
      %v1096 = vld [vmem:[%s405 + $0x99] sm:$0xff]
      %v1097 = vld [vmem:[%s405 + $0xa9] sm:$0xff]
      %v1098 = vld [vmem:[%s405 + $0xb1] sm:$0xff]
      %v1099 = vld [vmem:[%s405 + $0xc1] sm:$0xff]
      %v1100 = vld [vmem:[%s405 + $0xc9] sm:$0xff]
      %v1101 = vld [vmem:[%s405 + $0xd9] sm:$0xff]
      %v1102 = vld [vmem:[%s405 + $0xe1] sm:$0xff]
      %v1103 = vld [vmem:[%s405 + $0xf1] sm:$0xff]
      %v1104 = vld [vmem:[%s405 + $0xf9] sm:$0xff]
      %v1105 = vld [vmem:[%s405 + $0x109] sm:$0xff]
      %v1106 = vld [vmem:[%s405 + $0x111] sm:$0xff]
      %v1107 = vld [vmem:[%s405 + $0x121] sm:$0xff]
      %v1108 = vld [vmem:[%s405 + $0x129] sm:$0xff]
      %v1109 = vld [vmem:[%s405 + $0x139] sm:$0xff]
      %v1110 = vld [vmem:[%s405 + $0x141] sm:$0xff]
      %v1111 = vld [vmem:[%s405 + $0x151] sm:$0xff]
      %v1112 = vld [vmem:[%s405 + $0x159] sm:$0xff]
      %v1113 = vld [vmem:[%s405 + $0x169] sm:$0xff]
      %v1114 = vld [vmem:[%s405 + $0x171] sm:$0xff]
      %1147 = vrot.lane.b32.xlu0 %v1083, 64
      %v1148 = vpop.permute.xlu0 %1147
      %1149 = vrot.lane.b32.xlu0 %v1084, 64
      %v1150 = vpop.permute.xlu0 %1149
      %1151 = vrot.lane.b32.xlu0 %v1085, 64
      %v1152 = vpop.permute.xlu0 %1151
      %1153 = vrot.lane.b32.xlu0 %v1086, 64
      %v1154 = vpop.permute.xlu0 %1153
      %1155 = vrot.lane.b32.xlu0 %v1087, 64
      %v1156 = vpop.permute.xlu0 %1155
      %1157 = vrot.lane.b32.xlu0 %v1088, 64
      %v1158 = vpop.permute.xlu0 %1157
      %1159 = vrot.lane.b32.xlu0 %v1089, 64
      %v1160 = vpop.permute.xlu0 %1159
      %1161 = vrot.lane.b32.xlu0 %v1090, 64
      %v1162 = vpop.permute.xlu0 %1161
      %1163 = vrot.lane.b32.xlu0 %v1091, 64
      %v1164 = vpop.permute.xlu0 %1163
      %1165 = vrot.lane.b32.xlu0 %v1092, 64
      %v1166 = vpop.permute.xlu0 %1165
      %1167 = vrot.lane.b32.xlu0 %v1093, 64
      %v1168 = vpop.permute.xlu0 %1167
      %1169 = vrot.lane.b32.xlu0 %v1094, 64
      %v1170 = vpop.permute.xlu0 %1169
      %1171 = vrot.lane.b32.xlu0 %v1095, 64
      %v1172 = vpop.permute.xlu0 %1171
      %1173 = vrot.lane.b32.xlu0 %v1096, 64
      %v1174 = vpop.permute.xlu0 %1173
      %1175 = vrot.lane.b32.xlu0 %v1097, 64
      %v1176 = vpop.permute.xlu0 %1175
      %1177 = vrot.lane.b32.xlu0 %v1098, 64
      %v1178 = vpop.permute.xlu0 %1177
      %1179 = vrot.lane.b32.xlu0 %v1099, 64
      %v1180 = vpop.permute.xlu0 %1179
      %1181 = vrot.lane.b32.xlu0 %v1100, 64
      %v1182 = vpop.permute.xlu0 %1181
      %1183 = vrot.lane.b32.xlu0 %v1101, 64
      %v1184 = vpop.permute.xlu0 %1183
      %1185 = vrot.lane.b32.xlu0 %v1102, 64
      %v1186 = vpop.permute.xlu0 %1185
      %1187 = vrot.lane.b32.xlu0 %v1103, 64
      %v1188 = vpop.permute.xlu0 %1187
      %1189 = vrot.lane.b32.xlu0 %v1104, 64
      %v1190 = vpop.permute.xlu0 %1189
      %1191 = vrot.lane.b32.xlu0 %v1105, 64
      %v1192 = vpop.permute.xlu0 %1191
      %1193 = vrot.lane.b32.xlu0 %v1106, 64
      %v1194 = vpop.permute.xlu0 %1193
      %1195 = vrot.lane.b32.xlu0 %v1107, 64
      %v1196 = vpop.permute.xlu0 %1195
      %1197 = vrot.lane.b32.xlu0 %v1108, 64
      %v1198 = vpop.permute.xlu0 %1197
      %1199 = vrot.lane.b32.xlu0 %v1109, 64
      %v1200 = vpop.permute.xlu0 %1199
      %1201 = vrot.lane.b32.xlu0 %v1110, 64
      %v1202 = vpop.permute.xlu0 %1201
      %1203 = vrot.lane.b32.xlu0 %v1111, 64
      %v1204 = vpop.permute.xlu0 %1203
      %1205 = vrot.lane.b32.xlu0 %v1112, 64
      %v1206 = vpop.permute.xlu0 %1205
      %1207 = vrot.lane.b32.xlu0 %v1113, 64
      %v1208 = vpop.permute.xlu0 %1207
      %1209 = vrot.lane.b32.xlu0 %v1114, 64
      %v1210 = vpop.permute.xlu0 %1209
      %vm1243 = vcmask 654848
      %1244 = vst.msk [vmem:[#allocation3] sm:$0xff] %vm1243, %v1148
      %1245 = vst.msk [vmem:[#allocation3 + $0x8] sm:$0xff] %vm1243, %v1150
      %1246 = vst.msk [vmem:[#allocation3 + $0x10] sm:$0xff] %vm1243, %v1152
      %1247 = vst.msk [vmem:[#allocation3 + $0x18] sm:$0xff] %vm1243, %v1154
      %1248 = vst.msk [vmem:[#allocation3 + $0x20] sm:$0xff] %vm1243, %v1156
      %1249 = vst.msk [vmem:[#allocation3 + $0x28] sm:$0xff] %vm1243, %v1158
      %1250 = vst.msk [vmem:[#allocation3 + $0x30] sm:$0xff] %vm1243, %v1160
      %1251 = vst.msk [vmem:[#allocation3 + $0x38] sm:$0xff] %vm1243, %v1162
      %1252 = vst.msk [vmem:[#allocation3 + $0x40] sm:$0xff] %vm1243, %v1164
      %1253 = vst.msk [vmem:[#allocation3 + $0x48] sm:$0xff] %vm1243, %v1166
      %1254 = vst.msk [vmem:[#allocation3 + $0x50] sm:$0xff] %vm1243, %v1168
      %1255 = vst.msk [vmem:[#allocation3 + $0x58] sm:$0xff] %vm1243, %v1170
      %1256 = vst.msk [vmem:[#allocation3 + $0x60] sm:$0xff] %vm1243, %v1172
      %1257 = vst.msk [vmem:[#allocation3 + $0x68] sm:$0xff] %vm1243, %v1174
      %1258 = vst.msk [vmem:[#allocation3 + $0x70] sm:$0xff] %vm1243, %v1176
      %1259 = vst.msk [vmem:[#allocation3 + $0x78] sm:$0xff] %vm1243, %v1178
      %1260 = vst.msk [vmem:[#allocation3 + $0x80] sm:$0xff] %vm1243, %v1180
      %1261 = vst.msk [vmem:[#allocation3 + $0x88] sm:$0xff] %vm1243, %v1182
      %1262 = vst.msk [vmem:[#allocation3 + $0x90] sm:$0xff] %vm1243, %v1184
      %1263 = vst.msk [vmem:[#allocation3 + $0x98] sm:$0xff] %vm1243, %v1186
      %1264 = vst.msk [vmem:[#allocation3 + $0xa0] sm:$0xff] %vm1243, %v1188
      %1265 = vst.msk [vmem:[#allocation3 + $0xa8] sm:$0xff] %vm1243, %v1190
      %1266 = vst.msk [vmem:[#allocation3 + $0xb0] sm:$0xff] %vm1243, %v1192
      %1267 = vst.msk [vmem:[#allocation3 + $0xb8] sm:$0xff] %vm1243, %v1194
      %1268 = vst.msk [vmem:[#allocation3 + $0xc0] sm:$0xff] %vm1243, %v1196
      %1269 = vst.msk [vmem:[#allocation3 + $0xc8] sm:$0xff] %vm1243, %v1198
      %1270 = vst.msk [vmem:[#allocation3 + $0xd0] sm:$0xff] %vm1243, %v1200
      %1271 = vst.msk [vmem:[#allocation3 + $0xd8] sm:$0xff] %vm1243, %v1202
      %1272 = vst.msk [vmem:[#allocation3 + $0xe0] sm:$0xff] %vm1243, %v1204
      %1273 = vst.msk [vmem:[#allocation3 + $0xe8] sm:$0xff] %vm1243, %v1206
      %1274 = vst.msk [vmem:[#allocation3 + $0xf0] sm:$0xff] %vm1243, %v1208
      %1275 = vst.msk [vmem:[#allocation3 + $0xf8] sm:$0xff] %vm1243, %v1210
      %v1276 = vld [vmem:[%s405 + $0x2] sm:$0xff]
      %v1277 = vld [vmem:[%s405 + $0xa] sm:$0xff]
      %v1278 = vld [vmem:[%s405 + $0x1a] sm:$0xff]
      %v1279 = vld [vmem:[%s405 + $0x22] sm:$0xff]
      %v1280 = vld [vmem:[%s405 + $0x32] sm:$0xff]
      %v1281 = vld [vmem:[%s405 + $0x3a] sm:$0xff]
      %v1282 = vld [vmem:[%s405 + $0x4a] sm:$0xff]
      %v1283 = vld [vmem:[%s405 + $0x52] sm:$0xff]
      %v1284 = vld [vmem:[%s405 + $0x62] sm:$0xff]
      %v1285 = vld [vmem:[%s405 + $0x6a] sm:$0xff]
      %v1286 = vld [vmem:[%s405 + $0x7a] sm:$0xff]
      %v1287 = vld [vmem:[%s405 + $0x82] sm:$0xff]
      %v1288 = vld [vmem:[%s405 + $0x92] sm:$0xff]
      %v1289 = vld [vmem:[%s405 + $0x9a] sm:$0xff]
      %v1290 = vld [vmem:[%s405 + $0xaa] sm:$0xff]
      %v1291 = vld [vmem:[%s405 + $0xb2] sm:$0xff]
      %v1292 = vld [vmem:[%s405 + $0xc2] sm:$0xff]
      %v1293 = vld [vmem:[%s405 + $0xca] sm:$0xff]
      %v1294 = vld [vmem:[%s405 + $0xda] sm:$0xff]
      %v1295 = vld [vmem:[%s405 + $0xe2] sm:$0xff]
      %v1296 = vld [vmem:[%s405 + $0xf2] sm:$0xff]
      %v1297 = vld [vmem:[%s405 + $0xfa] sm:$0xff]
      %v1298 = vld [vmem:[%s405 + $0x10a] sm:$0xff]
      %v1299 = vld [vmem:[%s405 + $0x112] sm:$0xff]
      %v1300 = vld [vmem:[%s405 + $0x122] sm:$0xff]
      %v1301 = vld [vmem:[%s405 + $0x12a] sm:$0xff]
      %v1302 = vld [vmem:[%s405 + $0x13a] sm:$0xff]
      %v1303 = vld [vmem:[%s405 + $0x142] sm:$0xff]
      %v1304 = vld [vmem:[%s405 + $0x152] sm:$0xff]
      %v1305 = vld [vmem:[%s405 + $0x15a] sm:$0xff]
      %v1306 = vld [vmem:[%s405 + $0x16a] sm:$0xff]
      %v1307 = vld [vmem:[%s405 + $0x172] sm:$0xff]
      %1340 = vrot.lane.b32.xlu0 %v1276, 80
      %v1341 = vpop.permute.xlu0 %1340
      %1342 = vrot.lane.b32.xlu0 %v1277, 80
      %v1343 = vpop.permute.xlu0 %1342
      %1344 = vrot.lane.b32.xlu0 %v1278, 80
      %v1345 = vpop.permute.xlu0 %1344
      %1346 = vrot.lane.b32.xlu0 %v1279, 80
      %v1347 = vpop.permute.xlu0 %1346
      %1348 = vrot.lane.b32.xlu0 %v1280, 80
      %v1349 = vpop.permute.xlu0 %1348
      %1350 = vrot.lane.b32.xlu0 %v1281, 80
      %v1351 = vpop.permute.xlu0 %1350
      %1352 = vrot.lane.b32.xlu0 %v1282, 80
      %v1353 = vpop.permute.xlu0 %1352
      %1354 = vrot.lane.b32.xlu0 %v1283, 80
      %v1355 = vpop.permute.xlu0 %1354
      %1356 = vrot.lane.b32.xlu0 %v1284, 80
      %v1357 = vpop.permute.xlu0 %1356
      %1358 = vrot.lane.b32.xlu0 %v1285, 80
      %v1359 = vpop.permute.xlu0 %1358
      %1360 = vrot.lane.b32.xlu0 %v1286, 80
      %v1361 = vpop.permute.xlu0 %1360
      %1362 = vrot.lane.b32.xlu0 %v1287, 80
      %v1363 = vpop.permute.xlu0 %1362
      %1364 = vrot.lane.b32.xlu0 %v1288, 80
      %v1365 = vpop.permute.xlu0 %1364
      %1366 = vrot.lane.b32.xlu0 %v1289, 80
      %v1367 = vpop.permute.xlu0 %1366
      %1368 = vrot.lane.b32.xlu0 %v1290, 80
      %v1369 = vpop.permute.xlu0 %1368
      %1370 = vrot.lane.b32.xlu0 %v1291, 80
      %v1371 = vpop.permute.xlu0 %1370
      %1372 = vrot.lane.b32.xlu0 %v1292, 80
      %v1373 = vpop.permute.xlu0 %1372
      %1374 = vrot.lane.b32.xlu0 %v1293, 80
      %v1375 = vpop.permute.xlu0 %1374
      %1376 = vrot.lane.b32.xlu0 %v1294, 80
      %v1377 = vpop.permute.xlu0 %1376
      %1378 = vrot.lane.b32.xlu0 %v1295, 80
      %v1379 = vpop.permute.xlu0 %1378
      %1380 = vrot.lane.b32.xlu0 %v1296, 80
      %v1381 = vpop.permute.xlu0 %1380
      %1382 = vrot.lane.b32.xlu0 %v1297, 80
      %v1383 = vpop.permute.xlu0 %1382
      %1384 = vrot.lane.b32.xlu0 %v1298, 80
      %v1385 = vpop.permute.xlu0 %1384
      %1386 = vrot.lane.b32.xlu0 %v1299, 80
      %v1387 = vpop.permute.xlu0 %1386
      %1388 = vrot.lane.b32.xlu0 %v1300, 80
      %v1389 = vpop.permute.xlu0 %1388
      %1390 = vrot.lane.b32.xlu0 %v1301, 80
      %v1391 = vpop.permute.xlu0 %1390
      %1392 = vrot.lane.b32.xlu0 %v1302, 80
      %v1393 = vpop.permute.xlu0 %1392
      %1394 = vrot.lane.b32.xlu0 %v1303, 80
      %v1395 = vpop.permute.xlu0 %1394
      %1396 = vrot.lane.b32.xlu0 %v1304, 80
      %v1397 = vpop.permute.xlu0 %1396
      %1398 = vrot.lane.b32.xlu0 %v1305, 80
      %v1399 = vpop.permute.xlu0 %1398
      %1400 = vrot.lane.b32.xlu0 %v1306, 80
      %v1401 = vpop.permute.xlu0 %1400
      %1402 = vrot.lane.b32.xlu0 %v1307, 80
      %v1403 = vpop.permute.xlu0 %1402
      %vm1436 = vcmask 786048
      %1437 = vst.msk [vmem:[#allocation3] sm:$0xff] %vm1436, %v1341
      %1438 = vst.msk [vmem:[#allocation3 + $0x8] sm:$0xff] %vm1436, %v1343
      %1439 = vst.msk [vmem:[#allocation3 + $0x10] sm:$0xff] %vm1436, %v1345
      %1440 = vst.msk [vmem:[#allocation3 + $0x18] sm:$0xff] %vm1436, %v1347
      %1441 = vst.msk [vmem:[#allocation3 + $0x20] sm:$0xff] %vm1436, %v1349
      %1442 = vst.msk [vmem:[#allocation3 + $0x28] sm:$0xff] %vm1436, %v1351
      %1443 = vst.msk [vmem:[#allocation3 + $0x30] sm:$0xff] %vm1436, %v1353
      %1444 = vst.msk [vmem:[#allocation3 + $0x38] sm:$0xff] %vm1436, %v1355
      %1445 = vst.msk [vmem:[#allocation3 + $0x40] sm:$0xff] %vm1436, %v1357
      %1446 = vst.msk [vmem:[#allocation3 + $0x48] sm:$0xff] %vm1436, %v1359
      %1447 = vst.msk [vmem:[#allocation3 + $0x50] sm:$0xff] %vm1436, %v1361
      %1448 = vst.msk [vmem:[#allocation3 + $0x58] sm:$0xff] %vm1436, %v1363
      %1449 = vst.msk [vmem:[#allocation3 + $0x60] sm:$0xff] %vm1436, %v1365
      %1450 = vst.msk [vmem:[#allocation3 + $0x68] sm:$0xff] %vm1436, %v1367
      %1451 = vst.msk [vmem:[#allocation3 + $0x70] sm:$0xff] %vm1436, %v1369
      %1452 = vst.msk [vmem:[#allocation3 + $0x78] sm:$0xff] %vm1436, %v1371
      %1453 = vst.msk [vmem:[#allocation3 + $0x80] sm:$0xff] %vm1436, %v1373
      %1454 = vst.msk [vmem:[#allocation3 + $0x88] sm:$0xff] %vm1436, %v1375
      %1455 = vst.msk [vmem:[#allocation3 + $0x90] sm:$0xff] %vm1436, %v1377
      %1456 = vst.msk [vmem:[#allocation3 + $0x98] sm:$0xff] %vm1436, %v1379
      %1457 = vst.msk [vmem:[#allocation3 + $0xa0] sm:$0xff] %vm1436, %v1381
      %1458 = vst.msk [vmem:[#allocation3 + $0xa8] sm:$0xff] %vm1436, %v1383
      %1459 = vst.msk [vmem:[#allocation3 + $0xb0] sm:$0xff] %vm1436, %v1385
      %1460 = vst.msk [vmem:[#allocation3 + $0xb8] sm:$0xff] %vm1436, %v1387
      %1461 = vst.msk [vmem:[#allocation3 + $0xc0] sm:$0xff] %vm1436, %v1389
      %1462 = vst.msk [vmem:[#allocation3 + $0xc8] sm:$0xff] %vm1436, %v1391
      %1463 = vst.msk [vmem:[#allocation3 + $0xd0] sm:$0xff] %vm1436, %v1393
      %1464 = vst.msk [vmem:[#allocation3 + $0xd8] sm:$0xff] %vm1436, %v1395
      %1465 = vst.msk [vmem:[#allocation3 + $0xe0] sm:$0xff] %vm1436, %v1397
      %1466 = vst.msk [vmem:[#allocation3 + $0xe8] sm:$0xff] %vm1436, %v1399
      %1467 = vst.msk [vmem:[#allocation3 + $0xf0] sm:$0xff] %vm1436, %v1401
      %1468 = vst.msk [vmem:[#allocation3 + $0xf8] sm:$0xff] %vm1436, %v1403
      %v1469 = vld [vmem:[#allocation3] sm:$0xff]
      %v1470 = vld [vmem:[#allocation3 + $0x8] sm:$0xff]
      %v1471 = vld [vmem:[#allocation3 + $0x10] sm:$0xff]
      %v1472 = vld [vmem:[#allocation3 + $0x18] sm:$0xff]
      %v1473 = vld [vmem:[#allocation3 + $0x20] sm:$0xff]
      %v1474 = vld [vmem:[#allocation3 + $0x28] sm:$0xff]
      %v1475 = vld [vmem:[#allocation3 + $0x30] sm:$0xff]
      %v1476 = vld [vmem:[#allocation3 + $0x38] sm:$0xff]
      %v1477 = vld [vmem:[#allocation3 + $0x40] sm:$0xff]
      %v1478 = vld [vmem:[#allocation3 + $0x48] sm:$0xff]
      %v1479 = vld [vmem:[#allocation3 + $0x50] sm:$0xff]
      %v1480 = vld [vmem:[#allocation3 + $0x58] sm:$0xff]
      %v1481 = vld [vmem:[#allocation3 + $0x60] sm:$0xff]
      %v1482 = vld [vmem:[#allocation3 + $0x68] sm:$0xff]
      %v1483 = vld [vmem:[#allocation3 + $0x70] sm:$0xff]
      %v1484 = vld [vmem:[#allocation3 + $0x78] sm:$0xff]
      %v1485 = vld [vmem:[#allocation3 + $0x80] sm:$0xff]
      %v1486 = vld [vmem:[#allocation3 + $0x88] sm:$0xff]
      %v1487 = vld [vmem:[#allocation3 + $0x90] sm:$0xff]
      %v1488 = vld [vmem:[#allocation3 + $0x98] sm:$0xff]
      %v1489 = vld [vmem:[#allocation3 + $0xa0] sm:$0xff]
      %v1490 = vld [vmem:[#allocation3 + $0xa8] sm:$0xff]
      %v1491 = vld [vmem:[#allocation3 + $0xb0] sm:$0xff]
      %v1492 = vld [vmem:[#allocation3 + $0xb8] sm:$0xff]
      %v1493 = vld [vmem:[#allocation3 + $0xc0] sm:$0xff]
      %v1494 = vld [vmem:[#allocation3 + $0xc8] sm:$0xff]
      %v1495 = vld [vmem:[#allocation3 + $0xd0] sm:$0xff]
      %v1496 = vld [vmem:[#allocation3 + $0xd8] sm:$0xff]
      %v1497 = vld [vmem:[#allocation3 + $0xe0] sm:$0xff]
      %v1498 = vld [vmem:[#allocation3 + $0xe8] sm:$0xff]
      %v1499 = vld [vmem:[#allocation3 + $0xf0] sm:$0xff]
      %v1500 = vld [vmem:[#allocation3 + $0xf8] sm:$0xff]
      %v1501 = vld [vmem:[%s1] sm:$0xff]
      %v1502 = vld [vmem:[%s1 + $0x8] sm:$0xff]
      %v1503 = vld [vmem:[%s1 + $0x10] sm:$0xff]
      %v1504 = vld [vmem:[%s1 + $0x18] sm:$0xff]
      %v1505 = vld [vmem:[%s1 + $0x20] sm:$0xff]
      %v1506 = vld [vmem:[%s1 + $0x28] sm:$0xff]
      %v1507 = vld [vmem:[%s1 + $0x30] sm:$0xff]
      %v1508 = vld [vmem:[%s1 + $0x38] sm:$0xff]
      %v1509 = vld [vmem:[%s1 + $0x40] sm:$0xff]
      %v1510 = vld [vmem:[%s1 + $0x48] sm:$0xff]
      %v1511 = vld [vmem:[%s1 + $0x50] sm:$0xff]
      %v1512 = vld [vmem:[%s1 + $0x58] sm:$0xff]
      %vm1513 = vcmask 785408
      %v1515 = vsel %vm1513, %v1469, 0
      %v1518 = vsel %vm1513, %v1470, 0
      %v1521 = vsel %vm1513, %v1471, 0
      %v1524 = vsel %vm1513, %v1472, 0
      %v1527 = vsel %vm1513, %v1473, 0
      %v1530 = vsel %vm1513, %v1474, 0
      %v1533 = vsel %vm1513, %v1475, 0
      %v1536 = vsel %vm1513, %v1476, 0
      %v1539 = vsel %vm1513, %v1477, 0
      %v1542 = vsel %vm1513, %v1478, 0
      %v1545 = vsel %vm1513, %v1479, 0
      %v1548 = vsel %vm1513, %v1480, 0
      %v1551 = vsel %vm1513, %v1481, 0
      %v1554 = vsel %vm1513, %v1482, 0
      %v1557 = vsel %vm1513, %v1483, 0
      %v1560 = vsel %vm1513, %v1484, 0
      %v1563 = vsel %vm1513, %v1485, 0
      %v1566 = vsel %vm1513, %v1486, 0
      %v1569 = vsel %vm1513, %v1487, 0
      %v1572 = vsel %vm1513, %v1488, 0
      %v1575 = vsel %vm1513, %v1489, 0
      %v1578 = vsel %vm1513, %v1490, 0
      %v1581 = vsel %vm1513, %v1491, 0
      %v1584 = vsel %vm1513, %v1492, 0
      %v1587 = vsel %vm1513, %v1493, 0
      %v1590 = vsel %vm1513, %v1494, 0
      %v1593 = vsel %vm1513, %v1495, 0
      %v1596 = vsel %vm1513, %v1496, 0
      %v1599 = vsel %vm1513, %v1497, 0
      %v1602 = vsel %vm1513, %v1498, 0
      %v1605 = vsel %vm1513, %v1499, 0
      %v1608 = vsel %vm1513, %v1500, 0
      %1610 = vmatprep.subr.mxu0 0.0
      %1611 = vmatpush1.msra.mxu0 %v1501
      %1612 = vmatprep.subr.mxu0 0.0
      %1613 = vmatpush1.msra.mxu0 %v1502
      %1614 = vmatprep.subr.mxu0 0.0
      %1615 = vmatpush1.msra.mxu0 %v1503
      %1616 = vmatprep.subr.mxu0 0.0
      %1617 = vmatpush1.msra.mxu0 %v1504
      %1618 = vmatprep.subr.mxu0 0.0
      %1619 = vmatpush1.msra.mxu0 %v1505
      %1620 = vmatprep.subr.mxu0 0.0
      %1621 = vmatpush1.msra.mxu0 %v1506
      %1622 = vmatprep.subr.mxu0 0.0
      %1623 = vmatpush1.msra.mxu0 %v1507
      %1624 = vmatprep.subr.mxu0 0.0
      %1625 = vmatpush1.msra.mxu0 %v1508
      %1626 = vmatprep.subr.mxu0 0.0
      %1627 = vmatpush1.msra.mxu0 %v1509
      %1628 = vmatprep.subr.mxu0 0.0
      %1629 = vmatpush1.msra.mxu0 %v1510
      %1630 = vmatprep.subr.mxu0 0.0
      %1631 = vmatpush1.msra.mxu0 %v1511
      %1632 = vmatprep.subr.mxu0 0.0
      %1633 = vmatpush1.msra.mxu0 %v1512
      %1634 = vmatprep.subr.mxu0 0.0
      %1635 = vmatpush1.msra.mxu0 0.0
      %1636 = vmatprep.subr.mxu0 0.0
      %1637 = vmatpush1.msra.mxu0 0.0
      %1638 = vmatprep.subr.mxu0 0.0
      %1639 = vmatpush1.msra.mxu0 0.0
      %1640 = vmatprep.subr.mxu0 0.0
      %1641 = vmatpush1.msra.mxu0 0.0
      %1642 = vmatprep.subr.mxu0 0.0
      %1643 = vmatpush1.msra.mxu0 0.0
      %1644 = vmatprep.subr.mxu0 0.0
      %1645 = vmatpush1.msra.mxu0 0.0
      %1646 = vmatprep.subr.mxu0 0.0
      %1647 = vmatpush1.msra.mxu0 0.0
      %1648 = vmatprep.subr.mxu0 0.0
      %1649 = vmatpush1.msra.mxu0 0.0
      %1650 = vmatprep.subr.mxu0 0.0
      %1651 = vmatpush1.msra.mxu0 0.0
      %1652 = vmatprep.subr.mxu0 0.0
      %1653 = vmatpush1.msra.mxu0 0.0
      %1654 = vmatprep.subr.mxu0 0.0
      %1655 = vmatpush1.msra.mxu0 0.0
      %1656 = vmatprep.subr.mxu0 0.0
      %1657 = vmatpush1.msra.mxu0 0.0
      %1658 = vmatprep.subr.mxu0 0.0
      %1659 = vmatpush1.msra.mxu0 0.0
      %1660 = vmatprep.subr.mxu0 0.0
      %1661 = vmatpush1.msra.mxu0 0.0
      %1662 = vmatprep.subr.mxu0 0.0
      %1663 = vmatpush1.msra.mxu0 0.0
      %1664 = vmatprep.subr.mxu0 0.0
      %1665 = vmatpush1.msra.mxu0 0.0
      %1666 = vmatprep.subr.mxu0 0.0
      %1667 = vmatpush1.msra.mxu0 0.0
      %1668 = vmatprep.subr.mxu0 0.0
      %1669 = vmatpush1.msra.mxu0 0.0
      %1670 = vmatprep.subr.mxu0 0.0
      %1671 = vmatpush1.msra.mxu0 0.0
      %1672 = vmatprep.subr.mxu0 0.0
      %1673 = vmatpush1.msra.mxu0 0.0
      %1674 = vmatprep.mubr.f32.mxu0 0.0
      %1675 = vmatmul.mubr.f32.gmra.mrb[0].mxu0 %v1515
      %v1676 = vpop.f32.mrb[0].mxu0
      %v1677 = vadd.f32 0.0, %v1676
      %v1678 = vpop.f32.mrb[0].mxu0
      %1679 = vmatprep.mubr.f32.mxu0 0.0
      %1680 = vmatmul.mubr.f32.gmra.mrb[0].mxu0 %v1518
      %v1681 = vpop.f32.mrb[0].mxu0
      %v1682 = vadd.f32 0.0, %v1681
      %v1683 = vpop.f32.mrb[0].mxu0
      %1684 = vmatprep.mubr.f32.mxu0 0.0
      %1685 = vmatmul.mubr.f32.gmra.mrb[0].mxu0 %v1521
      %v1686 = vpop.f32.mrb[0].mxu0
      %v1687 = vadd.f32 0.0, %v1686
      %v1688 = vpop.f32.mrb[0].mxu0
      %1689 = vmatprep.mubr.f32.mxu0 0.0
      %1690 = vmatmul.mubr.f32.gmra.mrb[0].mxu0 %v1524
      %v1691 = vpop.f32.mrb[0].mxu0
      %v1692 = vadd.f32 0.0, %v1691
      %v1693 = vpop.f32.mrb[0].mxu0
      %1694 = vmatprep.mubr.f32.mxu0 0.0
      %1695 = vmatmul.mubr.f32.gmra.mrb[0].mxu0 %v1527
      %v1696 = vpop.f32.mrb[0].mxu0
      %v1697 = vadd.f32 0.0, %v1696
      %v1698 = vpop.f32.mrb[0].mxu0
      %1699 = vmatprep.mubr.f32.mxu0 0.0
      %1700 = vmatmul.mubr.f32.gmra.mrb[0].mxu0 %v1530
      %v1701 = vpop.f32.mrb[0].mxu0
      %v1702 = vadd.f32 0.0, %v1701
      %v1703 = vpop.f32.mrb[0].mxu0
      %1704 = vmatprep.mubr.f32.mxu0 0.0
      %1705 = vmatmul.mubr.f32.gmra.mrb[0].mxu0 %v1533
      %v1706 = vpop.f32.mrb[0].mxu0
      %v1707 = vadd.f32 0.0, %v1706
      %v1708 = vpop.f32.mrb[0].mxu0
      %1709 = vmatprep.mubr.f32.mxu0 0.0
      %1710 = vmatmul.mubr.f32.gmra.mrb[0].mxu0 %v1536
      %v1711 = vpop.f32.mrb[0].mxu0
      %v1712 = vadd.f32 0.0, %v1711
      %v1713 = vpop.f32.mrb[0].mxu0
      %1714 = vmatprep.mubr.f32.mxu0 0.0
      %1715 = vmatmul.mubr.f32.gmra.mrb[0].mxu0 %v1539
      %v1716 = vpop.f32.mrb[0].mxu0
      %v1717 = vadd.f32 0.0, %v1716
      %v1718 = vpop.f32.mrb[0].mxu0
      %1719 = vmatprep.mubr.f32.mxu0 0.0
      %1720 = vmatmul.mubr.f32.gmra.mrb[0].mxu0 %v1542
      %v1721 = vpop.f32.mrb[0].mxu0
      %v1722 = vadd.f32 0.0, %v1721
      %v1723 = vpop.f32.mrb[0].mxu0
      %1724 = vmatprep.mubr.f32.mxu0 0.0
      %1725 = vmatmul.mubr.f32.gmra.mrb[0].mxu0 %v1545
      %v1726 = vpop.f32.mrb[0].mxu0
      %v1727 = vadd.f32 0.0, %v1726
      %v1728 = vpop.f32.mrb[0].mxu0
      %1729 = vmatprep.mubr.f32.mxu0 0.0
      %1730 = vmatmul.mubr.f32.gmra.mrb[0].mxu0 %v1548
      %v1731 = vpop.f32.mrb[0].mxu0
      %v1732 = vadd.f32 0.0, %v1731
      %v1733 = vpop.f32.mrb[0].mxu0
      %1734 = vmatprep.mubr.f32.mxu0 0.0
      %1735 = vmatmul.mubr.f32.gmra.mrb[0].mxu0 %v1551
      %v1736 = vpop.f32.mrb[0].mxu0
      %v1737 = vadd.f32 0.0, %v1736
      %v1738 = vpop.f32.mrb[0].mxu0
      %1739 = vmatprep.mubr.f32.mxu0 0.0
      %1740 = vmatmul.mubr.f32.gmra.mrb[0].mxu0 %v1554
      %v1741 = vpop.f32.mrb[0].mxu0
      %v1742 = vadd.f32 0.0, %v1741
      %v1743 = vpop.f32.mrb[0].mxu0
      %1744 = vmatprep.mubr.f32.mxu0 0.0
      %1745 = vmatmul.mubr.f32.gmra.mrb[0].mxu0 %v1557
      %v1746 = vpop.f32.mrb[0].mxu0
      %v1747 = vadd.f32 0.0, %v1746
      %v1748 = vpop.f32.mrb[0].mxu0
      %1749 = vmatprep.mubr.f32.mxu0 0.0
      %1750 = vmatmul.mubr.f32.gmra.mrb[0].mxu0 %v1560
      %v1751 = vpop.f32.mrb[0].mxu0
      %v1752 = vadd.f32 0.0, %v1751
      %v1753 = vpop.f32.mrb[0].mxu0
      %1754 = vmatprep.mubr.f32.mxu0 0.0
      %1755 = vmatmul.mubr.f32.gmra.mrb[0].mxu0 %v1563
      %v1756 = vpop.f32.mrb[0].mxu0
      %v1757 = vadd.f32 0.0, %v1756
      %v1758 = vpop.f32.mrb[0].mxu0
      %1759 = vmatprep.mubr.f32.mxu0 0.0
      %1760 = vmatmul.mubr.f32.gmra.mrb[0].mxu0 %v1566
      %v1761 = vpop.f32.mrb[0].mxu0
      %v1762 = vadd.f32 0.0, %v1761
      %v1763 = vpop.f32.mrb[0].mxu0
      %1764 = vmatprep.mubr.f32.mxu0 0.0
      %1765 = vmatmul.mubr.f32.gmra.mrb[0].mxu0 %v1569
      %v1766 = vpop.f32.mrb[0].mxu0
      %v1767 = vadd.f32 0.0, %v1766
      %v1768 = vpop.f32.mrb[0].mxu0
      %1769 = vmatprep.mubr.f32.mxu0 0.0
      %1770 = vmatmul.mubr.f32.gmra.mrb[0].mxu0 %v1572
      %v1771 = vpop.f32.mrb[0].mxu0
      %v1772 = vadd.f32 0.0, %v1771
      %v1773 = vpop.f32.mrb[0].mxu0
      %1774 = vmatprep.mubr.f32.mxu0 0.0
      %1775 = vmatmul.mubr.f32.gmra.mrb[0].mxu0 %v1575
      %v1776 = vpop.f32.mrb[0].mxu0
      %v1777 = vadd.f32 0.0, %v1776
      %v1778 = vpop.f32.mrb[0].mxu0
      %1779 = vmatprep.mubr.f32.mxu0 0.0
      %1780 = vmatmul.mubr.f32.gmra.mrb[0].mxu0 %v1578
      %v1781 = vpop.f32.mrb[0].mxu0
      %v1782 = vadd.f32 0.0, %v1781
      %v1783 = vpop.f32.mrb[0].mxu0
      %1784 = vmatprep.mubr.f32.mxu0 0.0
      %1785 = vmatmul.mubr.f32.gmra.mrb[0].mxu0 %v1581
      %v1786 = vpop.f32.mrb[0].mxu0
      %v1787 = vadd.f32 0.0, %v1786
      %v1788 = vpop.f32.mrb[0].mxu0
      %1789 = vmatprep.mubr.f32.mxu0 0.0
      %1790 = vmatmul.mubr.f32.gmra.mrb[0].mxu0 %v1584
      %v1791 = vpop.f32.mrb[0].mxu0
      %v1792 = vadd.f32 0.0, %v1791
      %v1793 = vpop.f32.mrb[0].mxu0
      %1794 = vmatprep.mubr.f32.mxu0 0.0
      %1795 = vmatmul.mubr.f32.gmra.mrb[0].mxu0 %v1587
      %v1796 = vpop.f32.mrb[0].mxu0
      %v1797 = vadd.f32 0.0, %v1796
      %v1798 = vpop.f32.mrb[0].mxu0
      %1799 = vmatprep.mubr.f32.mxu0 0.0
      %1800 = vmatmul.mubr.f32.gmra.mrb[0].mxu0 %v1590
      %v1801 = vpop.f32.mrb[0].mxu0
      %v1802 = vadd.f32 0.0, %v1801
      %v1803 = vpop.f32.mrb[0].mxu0
      %1804 = vmatprep.mubr.f32.mxu0 0.0
      %1805 = vmatmul.mubr.f32.gmra.mrb[0].mxu0 %v1593
      %v1806 = vpop.f32.mrb[0].mxu0
      %v1807 = vadd.f32 0.0, %v1806
      %v1808 = vpop.f32.mrb[0].mxu0
      %1809 = vmatprep.mubr.f32.mxu0 0.0
      %1810 = vmatmul.mubr.f32.gmra.mrb[0].mxu0 %v1596
      %v1811 = vpop.f32.mrb[0].mxu0
      %v1812 = vadd.f32 0.0, %v1811
      %v1813 = vpop.f32.mrb[0].mxu0
      %1814 = vmatprep.mubr.f32.mxu0 0.0
      %1815 = vmatmul.mubr.f32.gmra.mrb[0].mxu0 %v1599
      %v1816 = vpop.f32.mrb[0].mxu0
      %v1817 = vadd.f32 0.0, %v1816
      %v1818 = vpop.f32.mrb[0].mxu0
      %1819 = vmatprep.mubr.f32.mxu0 0.0
      %1820 = vmatmul.mubr.f32.gmra.mrb[0].mxu0 %v1602
      %v1821 = vpop.f32.mrb[0].mxu0
      %v1822 = vadd.f32 0.0, %v1821
      %v1823 = vpop.f32.mrb[0].mxu0
      %1824 = vmatprep.mubr.f32.mxu0 0.0
      %1825 = vmatmul.mubr.f32.gmra.mrb[0].mxu0 %v1605
      %v1826 = vpop.f32.mrb[0].mxu0
      %v1827 = vadd.f32 0.0, %v1826
      %v1828 = vpop.f32.mrb[0].mxu0
      %1829 = vmatprep.mubr.f32.mxu0 0.0
      %1830 = vmatmul.mubr.f32.gmra.mrb[0].mxu0 %v1608
      %v1831 = vpop.f32.mrb[0].mxu0
      %v1832 = vadd.f32 0.0, %v1831
      %v1833 = vpop.f32.mrb[0].mxu0
      %1834 = vdwg.mxu0
      %vm1835 = vcmask 31744
      %v1836 = vsel %vm1835, %v1677, 0.0
      %v1837 = vsel %vm1835, %v1682, 0.0
      %v1838 = vadd.f32 %v1836, %v1837
      %v1839 = vsel %vm1835, %v1687, 0.0
      %v1840 = vadd.f32 %v1838, %v1839
      %v1841 = vsel %vm1835, %v1692, 0.0
      %v1842 = vadd.f32 %v1840, %v1841
      %v1843 = vsel %vm1835, %v1697, 0.0
      %v1844 = vadd.f32 %v1842, %v1843
      %v1845 = vsel %vm1835, %v1702, 0.0
      %v1846 = vadd.f32 %v1844, %v1845
      %v1847 = vsel %vm1835, %v1707, 0.0
      %v1848 = vadd.f32 %v1846, %v1847
      %v1849 = vsel %vm1835, %v1712, 0.0
      %v1850 = vadd.f32 %v1848, %v1849
      %v1851 = vsel %vm1835, %v1717, 0.0
      %v1852 = vadd.f32 %v1850, %v1851
      %v1853 = vsel %vm1835, %v1722, 0.0
      %v1854 = vadd.f32 %v1852, %v1853
      %v1855 = vsel %vm1835, %v1727, 0.0
      %v1856 = vadd.f32 %v1854, %v1855
      %v1857 = vsel %vm1835, %v1732, 0.0
      %v1858 = vadd.f32 %v1856, %v1857
      %v1859 = vsel %vm1835, %v1737, 0.0
      %v1860 = vadd.f32 %v1858, %v1859
      %v1861 = vsel %vm1835, %v1742, 0.0
      %v1862 = vadd.f32 %v1860, %v1861
      %v1863 = vsel %vm1835, %v1747, 0.0
      %v1864 = vadd.f32 %v1862, %v1863
      %v1865 = vsel %vm1835, %v1752, 0.0
      %v1866 = vadd.f32 %v1864, %v1865
      %v1867 = vsel %vm1835, %v1757, 0.0
      %v1868 = vadd.f32 %v1866, %v1867
      %v1869 = vsel %vm1835, %v1762, 0.0
      %v1870 = vadd.f32 %v1868, %v1869
      %v1871 = vsel %vm1835, %v1767, 0.0
      %v1872 = vadd.f32 %v1870, %v1871
      %v1873 = vsel %vm1835, %v1772, 0.0
      %v1874 = vadd.f32 %v1872, %v1873
      %v1875 = vsel %vm1835, %v1777, 0.0
      %v1876 = vadd.f32 %v1874, %v1875
      %v1877 = vsel %vm1835, %v1782, 0.0
      %v1878 = vadd.f32 %v1876, %v1877
      %v1879 = vsel %vm1835, %v1787, 0.0
      %v1880 = vadd.f32 %v1878, %v1879
      %v1881 = vsel %vm1835, %v1792, 0.0
      %v1882 = vadd.f32 %v1880, %v1881
      %v1883 = vsel %vm1835, %v1797, 0.0
      %v1884 = vadd.f32 %v1882, %v1883
      %v1885 = vsel %vm1835, %v1802, 0.0
      %v1886 = vadd.f32 %v1884, %v1885
      %v1887 = vsel %vm1835, %v1807, 0.0
      %v1888 = vadd.f32 %v1886, %v1887
      %v1889 = vsel %vm1835, %v1812, 0.0
      %v1890 = vadd.f32 %v1888, %v1889
      %v1891 = vsel %vm1835, %v1817, 0.0
      %v1892 = vadd.f32 %v1890, %v1891
      %v1893 = vsel %vm1835, %v1822, 0.0
      %v1894 = vadd.f32 %v1892, %v1893
      %v1895 = vsel %vm1835, %v1827, 0.0
      %v1896 = vadd.f32 %v1894, %v1895
      %v1897 = vsel %vm1835, %v1832, 0.0
      %v1898 = vadd.f32 %v1896, %v1897
      %v1899 = vrot.slane %v1898, 4
      %v1900 = vadd.f32 %v1898, %v1899
      %v1901 = vrot.slane %v1900, 2
      %v1902 = vadd.f32 %v1900, %v1901
      %v1903 = vrot.slane %v1902, 1
      %v1904 = vadd.f32 %v1902, %v1903
      %v1905 = vmul.f32 %v1904, 0.00390625
      %v1906 = vmul.f32 %v1677, %v1677
      %v1907 = vmul.f32 %v1682, %v1682
      %v1908 = vmul.f32 %v1687, %v1687
      %v1909 = vmul.f32 %v1692, %v1692
      %v1910 = vmul.f32 %v1697, %v1697
      %v1911 = vmul.f32 %v1702, %v1702
      %v1912 = vmul.f32 %v1707, %v1707
      %v1913 = vmul.f32 %v1712, %v1712
      %v1914 = vmul.f32 %v1717, %v1717
      %v1915 = vmul.f32 %v1722, %v1722
      %v1916 = vmul.f32 %v1727, %v1727
      %v1917 = vmul.f32 %v1732, %v1732
      %v1918 = vmul.f32 %v1737, %v1737
      %v1919 = vmul.f32 %v1742, %v1742
      %v1920 = vmul.f32 %v1747, %v1747
      %v1921 = vmul.f32 %v1752, %v1752
      %v1922 = vmul.f32 %v1757, %v1757
      %v1923 = vmul.f32 %v1762, %v1762
      %v1924 = vmul.f32 %v1767, %v1767
      %v1925 = vmul.f32 %v1772, %v1772
      %v1926 = vmul.f32 %v1777, %v1777
      %v1927 = vmul.f32 %v1782, %v1782
      %v1928 = vmul.f32 %v1787, %v1787
      %v1929 = vmul.f32 %v1792, %v1792
      %v1930 = vmul.f32 %v1797, %v1797
      %v1931 = vmul.f32 %v1802, %v1802
      %v1932 = vmul.f32 %v1807, %v1807
      %v1933 = vmul.f32 %v1812, %v1812
      %v1934 = vmul.f32 %v1817, %v1817
      %v1935 = vmul.f32 %v1822, %v1822
      %v1936 = vmul.f32 %v1827, %v1827
      %v1937 = vmul.f32 %v1832, %v1832
      %v1938 = vsel %vm1835, %v1906, 0.0
      %v1939 = vsel %vm1835, %v1907, 0.0
      %v1940 = vadd.f32 %v1938, %v1939
      %v1941 = vsel %vm1835, %v1908, 0.0
      %v1942 = vadd.f32 %v1940, %v1941
      %v1943 = vsel %vm1835, %v1909, 0.0
      %v1944 = vadd.f32 %v1942, %v1943
      %v1945 = vsel %vm1835, %v1910, 0.0
      %v1946 = vadd.f32 %v1944, %v1945
      %v1947 = vsel %vm1835, %v1911, 0.0
      %v1948 = vadd.f32 %v1946, %v1947
      %v1949 = vsel %vm1835, %v1912, 0.0
      %v1950 = vadd.f32 %v1948, %v1949
      %v1951 = vsel %vm1835, %v1913, 0.0
      %v1952 = vadd.f32 %v1950, %v1951
      %v1953 = vsel %vm1835, %v1914, 0.0
      %v1954 = vadd.f32 %v1952, %v1953
      %v1955 = vsel %vm1835, %v1915, 0.0
      %v1956 = vadd.f32 %v1954, %v1955
      %v1957 = vsel %vm1835, %v1916, 0.0
      %v1958 = vadd.f32 %v1956, %v1957
      %v1959 = vsel %vm1835, %v1917, 0.0
      %v1960 = vadd.f32 %v1958, %v1959
      %v1961 = vsel %vm1835, %v1918, 0.0
      %v1962 = vadd.f32 %v1960, %v1961
      %v1963 = vsel %vm1835, %v1919, 0.0
      %v1964 = vadd.f32 %v1962, %v1963
      %v1965 = vsel %vm1835, %v1920, 0.0
      %v1966 = vadd.f32 %v1964, %v1965
      %v1967 = vsel %vm1835, %v1921, 0.0
      %v1968 = vadd.f32 %v1966, %v1967
      %v1969 = vsel %vm1835, %v1922, 0.0
      %v1970 = vadd.f32 %v1968, %v1969
      %v1971 = vsel %vm1835, %v1923, 0.0
      %v1972 = vadd.f32 %v1970, %v1971
      %v1973 = vsel %vm1835, %v1924, 0.0
      %v1974 = vadd.f32 %v1972, %v1973
      %v1975 = vsel %vm1835, %v1925, 0.0
      %v1976 = vadd.f32 %v1974, %v1975
      %v1977 = vsel %vm1835, %v1926, 0.0
      %v1978 = vadd.f32 %v1976, %v1977
      %v1979 = vsel %vm1835, %v1927, 0.0
      %v1980 = vadd.f32 %v1978, %v1979
      %v1981 = vsel %vm1835, %v1928, 0.0
      %v1982 = vadd.f32 %v1980, %v1981
      %v1983 = vsel %vm1835, %v1929, 0.0
      %v1984 = vadd.f32 %v1982, %v1983
      %v1985 = vsel %vm1835, %v1930, 0.0
      %v1986 = vadd.f32 %v1984, %v1985
      %v1987 = vsel %vm1835, %v1931, 0.0
      %v1988 = vadd.f32 %v1986, %v1987
      %v1989 = vsel %vm1835, %v1932, 0.0
      %v1990 = vadd.f32 %v1988, %v1989
      %v1991 = vsel %vm1835, %v1933, 0.0
      %v1992 = vadd.f32 %v1990, %v1991
      %v1993 = vsel %vm1835, %v1934, 0.0
      %v1994 = vadd.f32 %v1992, %v1993
      %v1995 = vsel %vm1835, %v1935, 0.0
      %v1996 = vadd.f32 %v1994, %v1995
      %v1997 = vsel %vm1835, %v1936, 0.0
      %v1998 = vadd.f32 %v1996, %v1997
      %v1999 = vsel %vm1835, %v1937, 0.0
      %v2000 = vadd.f32 %v1998, %v1999
      %v2001 = vrot.slane %v2000, 4
      %v2002 = vadd.f32 %v2000, %v2001
      %v2003 = vrot.slane %v2002, 2
      %v2004 = vadd.f32 %v2002, %v2003
      %v2005 = vrot.slane %v2004, 1
      %v2006 = vadd.f32 %v2004, %v2005
      %v2007 = vmul.f32 %v2006, 0.00390625
      %v2008 = vmul.f32 %v1905, %v1905
      %v2009 = vsub.f32 %v2007, %v2008
      %v2010 = vmax.f32 %v2009, 0.0
      %v2011 = vld [vmem:[%s2] sm:$0x7]
      %v2012 = vsub.f32 %v1677, %v1905
      %v2013 = vsub.f32 %v1682, %v1905
      %v2014 = vsub.f32 %v1687, %v1905
      %v2015 = vsub.f32 %v1692, %v1905
      %v2016 = vsub.f32 %v1697, %v1905
      %v2017 = vsub.f32 %v1702, %v1905
      %v2018 = vsub.f32 %v1707, %v1905
      %v2019 = vsub.f32 %v1712, %v1905
      %v2020 = vsub.f32 %v1717, %v1905
      %v2021 = vsub.f32 %v1722, %v1905
      %v2022 = vsub.f32 %v1727, %v1905
      %v2023 = vsub.f32 %v1732, %v1905
      %v2024 = vsub.f32 %v1737, %v1905
      %v2025 = vsub.f32 %v1742, %v1905
      %v2026 = vsub.f32 %v1747, %v1905
      %v2027 = vsub.f32 %v1752, %v1905
      %v2028 = vsub.f32 %v1757, %v1905
      %v2029 = vsub.f32 %v1762, %v1905
      %v2030 = vsub.f32 %v1767, %v1905
      %v2031 = vsub.f32 %v1772, %v1905
      %v2032 = vsub.f32 %v1777, %v1905
      %v2033 = vsub.f32 %v1782, %v1905
      %v2034 = vsub.f32 %v1787, %v1905
      %v2035 = vsub.f32 %v1792, %v1905
      %v2036 = vsub.f32 %v1797, %v1905
      %v2037 = vsub.f32 %v1802, %v1905
      %v2038 = vsub.f32 %v1807, %v1905
      %v2039 = vsub.f32 %v1812, %v1905
      %v2040 = vsub.f32 %v1817, %v1905
      %v2041 = vsub.f32 %v1822, %v1905
      %v2042 = vsub.f32 %v1827, %v1905
      %v2043 = vsub.f32 %v1832, %v1905
      %v2044 = vadd.f32 %v2010, 1e-05
      %v2045 = vrsqrt.pop %v2044
      %v2046 = vmul.f32 %v2012, %v2045
      %v2047 = vmul.f32 %v2013, %v2045
      %v2048 = vmul.f32 %v2014, %v2045
      %v2049 = vmul.f32 %v2015, %v2045
      %v2050 = vmul.f32 %v2016, %v2045
      %v2051 = vmul.f32 %v2017, %v2045
      %v2052 = vmul.f32 %v2018, %v2045
      %v2053 = vmul.f32 %v2019, %v2045
      %v2054 = vmul.f32 %v2020, %v2045
      %v2055 = vmul.f32 %v2021, %v2045
      %v2056 = vmul.f32 %v2022, %v2045
      %v2057 = vmul.f32 %v2023, %v2045
      %v2058 = vmul.f32 %v2024, %v2045
      %v2059 = vmul.f32 %v2025, %v2045
      %v2060 = vmul.f32 %v2026, %v2045
      %v2061 = vmul.f32 %v2027, %v2045
      %v2062 = vmul.f32 %v2028, %v2045
      %v2063 = vmul.f32 %v2029, %v2045
      %v2064 = vmul.f32 %v2030, %v2045
      %v2065 = vmul.f32 %v2031, %v2045
      %v2066 = vmul.f32 %v2032, %v2045
      %v2067 = vmul.f32 %v2033, %v2045
      %v2068 = vmul.f32 %v2034, %v2045
      %v2069 = vmul.f32 %v2035, %v2045
      %v2070 = vmul.f32 %v2036, %v2045
      %v2071 = vmul.f32 %v2037, %v2045
      %v2072 = vmul.f32 %v2038, %v2045
      %v2073 = vmul.f32 %v2039, %v2045
      %v2074 = vmul.f32 %v2040, %v2045
      %v2075 = vmul.f32 %v2041, %v2045
      %v2076 = vmul.f32 %v2042, %v2045
      %v2077 = vmul.f32 %v2043, %v2045
      %v2078 = vlaneseq
      %v2079 = vshrl.u32 %v2078, 7
      %v2080 = vsub.s32 0, %v2079
      %v2081 = vrot.slane %v2011, %v2080
      %v2082 = vmul.f32 %v2046, %v2081
      %v2083 = vmul.f32 %v2047, %v2081
      %v2084 = vmul.f32 %v2048, %v2081
      %v2085 = vmul.f32 %v2049, %v2081
      %v2086 = vmul.f32 %v2050, %v2081
      %v2087 = vmul.f32 %v2051, %v2081
      %v2088 = vmul.f32 %v2052, %v2081
      %v2089 = vmul.f32 %v2053, %v2081
      %v2090 = vmul.f32 %v2054, %v2081
      %v2091 = vmul.f32 %v2055, %v2081
      %v2092 = vmul.f32 %v2056, %v2081
      %v2093 = vmul.f32 %v2057, %v2081
      %v2094 = vmul.f32 %v2058, %v2081
      %v2095 = vmul.f32 %v2059, %v2081
      %v2096 = vmul.f32 %v2060, %v2081
      %v2097 = vmul.f32 %v2061, %v2081
      %v2098 = vmul.f32 %v2062, %v2081
      %v2099 = vmul.f32 %v2063, %v2081
      %v2100 = vmul.f32 %v2064, %v2081
      %v2101 = vmul.f32 %v2065, %v2081
      %v2102 = vmul.f32 %v2066, %v2081
      %v2103 = vmul.f32 %v2067, %v2081
      %v2104 = vmul.f32 %v2068, %v2081
      %v2105 = vmul.f32 %v2069, %v2081
      %v2106 = vmul.f32 %v2070, %v2081
      %v2107 = vmul.f32 %v2071, %v2081
      %v2108 = vmul.f32 %v2072, %v2081
      %v2109 = vmul.f32 %v2073, %v2081
      %v2110 = vmul.f32 %v2074, %v2081
      %v2111 = vmul.f32 %v2075, %v2081
      %v2112 = vmul.f32 %v2076, %v2081
      %v2113 = vmul.f32 %v2077, %v2081
      %v2114 = vlaneseq
      %v2115 = vshrl.u32 %v2114, 7
      %v2116 = vsub.s32 1, %v2115
      %v2117 = vrot.slane %v2011, %v2116
      %v2118 = vadd.f32 %v2082, %v2117
      %v2119 = vadd.f32 %v2083, %v2117
      %v2120 = vadd.f32 %v2084, %v2117
      %v2121 = vadd.f32 %v2085, %v2117
      %v2122 = vadd.f32 %v2086, %v2117
      %v2123 = vadd.f32 %v2087, %v2117
      %v2124 = vadd.f32 %v2088, %v2117
      %v2125 = vadd.f32 %v2089, %v2117
      %v2126 = vadd.f32 %v2090, %v2117
      %v2127 = vadd.f32 %v2091, %v2117
      %v2128 = vadd.f32 %v2092, %v2117
      %v2129 = vadd.f32 %v2093, %v2117
      %v2130 = vadd.f32 %v2094, %v2117
      %v2131 = vadd.f32 %v2095, %v2117
      %v2132 = vadd.f32 %v2096, %v2117
      %v2133 = vadd.f32 %v2097, %v2117
      %v2134 = vadd.f32 %v2098, %v2117
      %v2135 = vadd.f32 %v2099, %v2117
      %v2136 = vadd.f32 %v2100, %v2117
      %v2137 = vadd.f32 %v2101, %v2117
      %v2138 = vadd.f32 %v2102, %v2117
      %v2139 = vadd.f32 %v2103, %v2117
      %v2140 = vadd.f32 %v2104, %v2117
      %v2141 = vadd.f32 %v2105, %v2117
      %v2142 = vadd.f32 %v2106, %v2117
      %v2143 = vadd.f32 %v2107, %v2117
      %v2144 = vadd.f32 %v2108, %v2117
      %v2145 = vadd.f32 %v2109, %v2117
      %v2146 = vadd.f32 %v2110, %v2117
      %v2147 = vadd.f32 %v2111, %v2117
      %v2148 = vadd.f32 %v2112, %v2117
      %v2149 = vadd.f32 %v2113, %v2117
      %vm2150 = vcmp.ge.f32.partialorder %v2118, 0.0
      %vm2151 = vcmp.ge.f32.partialorder %v2119, 0.0
      %vm2152 = vcmp.ge.f32.partialorder %v2120, 0.0
      %vm2153 = vcmp.ge.f32.partialorder %v2121, 0.0
      %vm2154 = vcmp.ge.f32.partialorder %v2122, 0.0
      %vm2155 = vcmp.ge.f32.partialorder %v2123, 0.0
      %vm2156 = vcmp.ge.f32.partialorder %v2124, 0.0
      %vm2157 = vcmp.ge.f32.partialorder %v2125, 0.0
      %vm2158 = vcmp.ge.f32.partialorder %v2126, 0.0
      %vm2159 = vcmp.ge.f32.partialorder %v2127, 0.0
      %vm2160 = vcmp.ge.f32.partialorder %v2128, 0.0
      %vm2161 = vcmp.ge.f32.partialorder %v2129, 0.0
      %vm2162 = vcmp.ge.f32.partialorder %v2130, 0.0
      %vm2163 = vcmp.ge.f32.partialorder %v2131, 0.0
      %vm2164 = vcmp.ge.f32.partialorder %v2132, 0.0
      %vm2165 = vcmp.ge.f32.partialorder %v2133, 0.0
      %vm2166 = vcmp.ge.f32.partialorder %v2134, 0.0
      %vm2167 = vcmp.ge.f32.partialorder %v2135, 0.0
      %vm2168 = vcmp.ge.f32.partialorder %v2136, 0.0
      %vm2169 = vcmp.ge.f32.partialorder %v2137, 0.0
      %vm2170 = vcmp.ge.f32.partialorder %v2138, 0.0
      %vm2171 = vcmp.ge.f32.partialorder %v2139, 0.0
      %vm2172 = vcmp.ge.f32.partialorder %v2140, 0.0
      %vm2173 = vcmp.ge.f32.partialorder %v2141, 0.0
      %vm2174 = vcmp.ge.f32.partialorder %v2142, 0.0
      %vm2175 = vcmp.ge.f32.partialorder %v2143, 0.0
      %vm2176 = vcmp.ge.f32.partialorder %v2144, 0.0
      %vm2177 = vcmp.ge.f32.partialorder %v2145, 0.0
      %vm2178 = vcmp.ge.f32.partialorder %v2146, 0.0
      %vm2179 = vcmp.ge.f32.partialorder %v2147, 0.0
      %vm2180 = vcmp.ge.f32.partialorder %v2148, 0.0
      %vm2181 = vcmp.ge.f32.partialorder %v2149, 0.0
      %v2182 = vlaneseq
      %v2183 = vshrl.u32 %v2182, 7
      %v2184 = vsub.s32 2, %v2183
      %v2185 = vrot.slane %v2011, %v2184
      %v2186 = vmul.f32 %v2185, %v2118
      %v2187 = vmul.f32 %v2185, %v2119
      %v2188 = vmul.f32 %v2185, %v2120
      %v2189 = vmul.f32 %v2185, %v2121
      %v2190 = vmul.f32 %v2185, %v2122
      %v2191 = vmul.f32 %v2185, %v2123
      %v2192 = vmul.f32 %v2185, %v2124
      %v2193 = vmul.f32 %v2185, %v2125
      %v2194 = vmul.f32 %v2185, %v2126
      %v2195 = vmul.f32 %v2185, %v2127
      %v2196 = vmul.f32 %v2185, %v2128
      %v2197 = vmul.f32 %v2185, %v2129
      %v2198 = vmul.f32 %v2185, %v2130
      %v2199 = vmul.f32 %v2185, %v2131
      %v2200 = vmul.f32 %v2185, %v2132
      %v2201 = vmul.f32 %v2185, %v2133
      %v2202 = vmul.f32 %v2185, %v2134
      %v2203 = vmul.f32 %v2185, %v2135
      %v2204 = vmul.f32 %v2185, %v2136
      %v2205 = vmul.f32 %v2185, %v2137
      %v2206 = vmul.f32 %v2185, %v2138
      %v2207 = vmul.f32 %v2185, %v2139
      %v2208 = vmul.f32 %v2185, %v2140
      %v2209 = vmul.f32 %v2185, %v2141
      %v2210 = vmul.f32 %v2185, %v2142
      %v2211 = vmul.f32 %v2185, %v2143
      %v2212 = vmul.f32 %v2185, %v2144
      %v2213 = vmul.f32 %v2185, %v2145
      %v2214 = vmul.f32 %v2185, %v2146
      %v2215 = vmul.f32 %v2185, %v2147
      %v2216 = vmul.f32 %v2185, %v2148
      %v2217 = vmul.f32 %v2185, %v2149
      %v2218 = vsel %vm2150, %v2118, %v2186
      %v2219 = vsel %vm2151, %v2119, %v2187
      %v2220 = vsel %vm2152, %v2120, %v2188
      %v2221 = vsel %vm2153, %v2121, %v2189
      %v2222 = vsel %vm2154, %v2122, %v2190
      %v2223 = vsel %vm2155, %v2123, %v2191
      %v2224 = vsel %vm2156, %v2124, %v2192
      %v2225 = vsel %vm2157, %v2125, %v2193
      %v2226 = vsel %vm2158, %v2126, %v2194
      %v2227 = vsel %vm2159, %v2127, %v2195
      %v2228 = vsel %vm2160, %v2128, %v2196
      %v2229 = vsel %vm2161, %v2129, %v2197
      %v2230 = vsel %vm2162, %v2130, %v2198
      %v2231 = vsel %vm2163, %v2131, %v2199
      %v2232 = vsel %vm2164, %v2132, %v2200
      %v2233 = vsel %vm2165, %v2133, %v2201
      %v2234 = vsel %vm2166, %v2134, %v2202
      %v2235 = vsel %vm2167, %v2135, %v2203
      %v2236 = vsel %vm2168, %v2136, %v2204
      %v2237 = vsel %vm2169, %v2137, %v2205
      %v2238 = vsel %vm2170, %v2138, %v2206
      %v2239 = vsel %vm2171, %v2139, %v2207
      %v2240 = vsel %vm2172, %v2140, %v2208
      %v2241 = vsel %vm2173, %v2141, %v2209
      %v2242 = vsel %vm2174, %v2142, %v2210
      %v2243 = vsel %vm2175, %v2143, %v2211
      %v2244 = vsel %vm2176, %v2144, %v2212
      %v2245 = vsel %vm2177, %v2145, %v2213
      %v2246 = vsel %vm2178, %v2146, %v2214
      %v2247 = vsel %vm2179, %v2147, %v2215
      %v2248 = vsel %vm2180, %v2148, %v2216
      %v2249 = vsel %vm2181, %v2149, %v2217
      %2282 = vrot.lane.b32.xlu0 %v2218, 8
      %v2283 = vpop.permute.xlu0 %2282
      %2284 = vrot.lane.b32.xlu0 %v2219, 8
      %v2285 = vpop.permute.xlu0 %2284
      %2286 = vrot.lane.b32.xlu0 %v2220, 8
      %v2287 = vpop.permute.xlu0 %2286
      %2288 = vrot.lane.b32.xlu0 %v2221, 8
      %v2289 = vpop.permute.xlu0 %2288
      %2290 = vrot.lane.b32.xlu0 %v2222, 8
      %v2291 = vpop.permute.xlu0 %2290
      %2292 = vrot.lane.b32.xlu0 %v2223, 8
      %v2293 = vpop.permute.xlu0 %2292
      %2294 = vrot.lane.b32.xlu0 %v2224, 8
      %v2295 = vpop.permute.xlu0 %2294
      %2296 = vrot.lane.b32.xlu0 %v2225, 8
      %v2297 = vpop.permute.xlu0 %2296
      %2298 = vrot.lane.b32.xlu0 %v2226, 8
      %v2299 = vpop.permute.xlu0 %2298
      %2300 = vrot.lane.b32.xlu0 %v2227, 8
      %v2301 = vpop.permute.xlu0 %2300
      %2302 = vrot.lane.b32.xlu0 %v2228, 8
      %v2303 = vpop.permute.xlu0 %2302
      %2304 = vrot.lane.b32.xlu0 %v2229, 8
      %v2305 = vpop.permute.xlu0 %2304
      %2306 = vrot.lane.b32.xlu0 %v2230, 8
      %v2307 = vpop.permute.xlu0 %2306
      %2308 = vrot.lane.b32.xlu0 %v2231, 8
      %v2309 = vpop.permute.xlu0 %2308
      %2310 = vrot.lane.b32.xlu0 %v2232, 8
      %v2311 = vpop.permute.xlu0 %2310
      %2312 = vrot.lane.b32.xlu0 %v2233, 8
      %v2313 = vpop.permute.xlu0 %2312
      %2314 = vrot.lane.b32.xlu0 %v2234, 8
      %v2315 = vpop.permute.xlu0 %2314
      %2316 = vrot.lane.b32.xlu0 %v2235, 8
      %v2317 = vpop.permute.xlu0 %2316
      %2318 = vrot.lane.b32.xlu0 %v2236, 8
      %v2319 = vpop.permute.xlu0 %2318
      %2320 = vrot.lane.b32.xlu0 %v2237, 8
      %v2321 = vpop.permute.xlu0 %2320
      %2322 = vrot.lane.b32.xlu0 %v2238, 8
      %v2323 = vpop.permute.xlu0 %2322
      %2324 = vrot.lane.b32.xlu0 %v2239, 8
      %v2325 = vpop.permute.xlu0 %2324
      %2326 = vrot.lane.b32.xlu0 %v2240, 8
      %v2327 = vpop.permute.xlu0 %2326
      %2328 = vrot.lane.b32.xlu0 %v2241, 8
      %v2329 = vpop.permute.xlu0 %2328
      %2330 = vrot.lane.b32.xlu0 %v2242, 8
      %v2331 = vpop.permute.xlu0 %2330
      %2332 = vrot.lane.b32.xlu0 %v2243, 8
      %v2333 = vpop.permute.xlu0 %2332
      %2334 = vrot.lane.b32.xlu0 %v2244, 8
      %v2335 = vpop.permute.xlu0 %2334
      %2336 = vrot.lane.b32.xlu0 %v2245, 8
      %v2337 = vpop.permute.xlu0 %2336
      %2338 = vrot.lane.b32.xlu0 %v2246, 8
      %v2339 = vpop.permute.xlu0 %2338
      %2340 = vrot.lane.b32.xlu0 %v2247, 8
      %v2341 = vpop.permute.xlu0 %2340
      %2342 = vrot.lane.b32.xlu0 %v2248, 8
      %v2343 = vpop.permute.xlu0 %2342
      %2344 = vrot.lane.b32.xlu0 %v2249, 8
      %v2345 = vpop.permute.xlu0 %2344
      %vm2378 = vcmask 97344
      %2379 = vst.msk [vmem:[%s405 + $0x1] sm:$0xff] %vm2378, %v2283
      %2380 = vst.msk [vmem:[%s405 + $0x9] sm:$0xff] %vm2378, %v2285
      %2381 = vst.msk [vmem:[%s405 + $0x19] sm:$0xff] %vm2378, %v2287
      %2382 = vst.msk [vmem:[%s405 + $0x21] sm:$0xff] %vm2378, %v2289
      %2383 = vst.msk [vmem:[%s405 + $0x31] sm:$0xff] %vm2378, %v2291
      %2384 = vst.msk [vmem:[%s405 + $0x39] sm:$0xff] %vm2378, %v2293
      %2385 = vst.msk [vmem:[%s405 + $0x49] sm:$0xff] %vm2378, %v2295
      %2386 = vst.msk [vmem:[%s405 + $0x51] sm:$0xff] %vm2378, %v2297
      %2387 = vst.msk [vmem:[%s405 + $0x61] sm:$0xff] %vm2378, %v2299
      %2388 = vst.msk [vmem:[%s405 + $0x69] sm:$0xff] %vm2378, %v2301
      %2389 = vst.msk [vmem:[%s405 + $0x79] sm:$0xff] %vm2378, %v2303
      %2390 = vst.msk [vmem:[%s405 + $0x81] sm:$0xff] %vm2378, %v2305
      %2391 = vst.msk [vmem:[%s405 + $0x91] sm:$0xff] %vm2378, %v2307
      %2392 = vst.msk [vmem:[%s405 + $0x99] sm:$0xff] %vm2378, %v2309
      %2393 = vst.msk [vmem:[%s405 + $0xa9] sm:$0xff] %vm2378, %v2311
      %2394 = vst.msk [vmem:[%s405 + $0xb1] sm:$0xff] %vm2378, %v2313
      %2395 = vst.msk [vmem:[%s405 + $0xc1] sm:$0xff] %vm2378, %v2315
      %2396 = vst.msk [vmem:[%s405 + $0xc9] sm:$0xff] %vm2378, %v2317
      %2397 = vst.msk [vmem:[%s405 + $0xd9] sm:$0xff] %vm2378, %v2319
      %2398 = vst.msk [vmem:[%s405 + $0xe1] sm:$0xff] %vm2378, %v2321
      %2399 = vst.msk [vmem:[%s405 + $0xf1] sm:$0xff] %vm2378, %v2323
      %2400 = vst.msk [vmem:[%s405 + $0xf9] sm:$0xff] %vm2378, %v2325
      %2401 = vst.msk [vmem:[%s405 + $0x109] sm:$0xff] %vm2378, %v2327
      %2402 = vst.msk [vmem:[%s405 + $0x111] sm:$0xff] %vm2378, %v2329
      %2403 = vst.msk [vmem:[%s405 + $0x121] sm:$0xff] %vm2378, %v2331
      %2404 = vst.msk [vmem:[%s405 + $0x129] sm:$0xff] %vm2378, %v2333
      %2405 = vst.msk [vmem:[%s405 + $0x139] sm:$0xff] %vm2378, %v2335
      %2406 = vst.msk [vmem:[%s405 + $0x141] sm:$0xff] %vm2378, %v2337
      %2407 = vst.msk [vmem:[%s405 + $0x151] sm:$0xff] %vm2378, %v2339
      %2408 = vst.msk [vmem:[%s405 + $0x159] sm:$0xff] %vm2378, %v2341
      %2409 = vst.msk [vmem:[%s405 + $0x169] sm:$0xff] %vm2378, %v2343
      %2410 = vst.msk [vmem:[%s405 + $0x171] sm:$0xff] %vm2378, %v2345
      %s2411 = scalar_lea.vmem [#allocation2], 144
      %v2412 = vld [vmem:[%s2411] sm:$0xff]
      %v2413 = vld [vmem:[%s2411 + $0x8] sm:$0xff]
      %v2414 = vld [vmem:[%s2411 + $0x18] sm:$0xff]
      %v2415 = vld [vmem:[%s2411 + $0x20] sm:$0xff]
      %v2416 = vld [vmem:[%s2411 + $0x30] sm:$0xff]
      %v2417 = vld [vmem:[%s2411 + $0x38] sm:$0xff]
      %v2418 = vld [vmem:[%s2411 + $0x48] sm:$0xff]
      %v2419 = vld [vmem:[%s2411 + $0x50] sm:$0xff]
      %v2420 = vld [vmem:[%s2411 + $0x60] sm:$0xff]
      %v2421 = vld [vmem:[%s2411 + $0x68] sm:$0xff]
      %v2422 = vld [vmem:[%s2411 + $0x78] sm:$0xff]
      %v2423 = vld [vmem:[%s2411 + $0x80] sm:$0xff]
      %v2424 = vld [vmem:[%s2411 + $0x90] sm:$0xff]
      %v2425 = vld [vmem:[%s2411 + $0x98] sm:$0xff]
      %v2426 = vld [vmem:[%s2411 + $0xa8] sm:$0xff]
      %v2427 = vld [vmem:[%s2411 + $0xb0] sm:$0xff]
      %v2428 = vld [vmem:[%s2411 + $0xc0] sm:$0xff]
      %v2429 = vld [vmem:[%s2411 + $0xc8] sm:$0xff]
      %v2430 = vld [vmem:[%s2411 + $0xd8] sm:$0xff]
      %v2431 = vld [vmem:[%s2411 + $0xe0] sm:$0xff]
      %v2432 = vld [vmem:[%s2411 + $0xf0] sm:$0xff]
      %v2433 = vld [vmem:[%s2411 + $0xf8] sm:$0xff]
      %v2434 = vld [vmem:[%s2411 + $0x108] sm:$0xff]
      %v2435 = vld [vmem:[%s2411 + $0x110] sm:$0xff]
      %v2436 = vld [vmem:[%s2411 + $0x120] sm:$0xff]
      %v2437 = vld [vmem:[%s2411 + $0x128] sm:$0xff]
      %v2438 = vld [vmem:[%s2411 + $0x138] sm:$0xff]
      %v2439 = vld [vmem:[%s2411 + $0x140] sm:$0xff]
      %v2440 = vld [vmem:[%s2411 + $0x150] sm:$0xff]
      %v2441 = vld [vmem:[%s2411 + $0x158] sm:$0xff]
      %v2442 = vld [vmem:[%s2411 + $0x168] sm:$0xff]
      %v2443 = vld [vmem:[%s2411 + $0x170] sm:$0xff]
      %2444 = vst.msk [vmem:[#allocation3] sm:$0xff] %vm171, %v2412
      %2445 = vst.msk [vmem:[#allocation3 + $0x8] sm:$0xff] %vm171, %v2413
      %2446 = vst.msk [vmem:[#allocation3 + $0x10] sm:$0xff] %vm171, %v2414
      %2447 = vst.msk [vmem:[#allocation3 + $0x18] sm:$0xff] %vm171, %v2415
      %2448 = vst.msk [vmem:[#allocation3 + $0x20] sm:$0xff] %vm171, %v2416
      %2449 = vst.msk [vmem:[#allocation3 + $0x28] sm:$0xff] %vm171, %v2417
      %2450 = vst.msk [vmem:[#allocation3 + $0x30] sm:$0xff] %vm171, %v2418
      %2451 = vst.msk [vmem:[#allocation3 + $0x38] sm:$0xff] %vm171, %v2419
      %2452 = vst.msk [vmem:[#allocation3 + $0x40] sm:$0xff] %vm171, %v2420
      %2453 = vst.msk [vmem:[#allocation3 + $0x48] sm:$0xff] %vm171, %v2421
      %2454 = vst.msk [vmem:[#allocation3 + $0x50] sm:$0xff] %vm171, %v2422
      %2455 = vst.msk [vmem:[#allocation3 + $0x58] sm:$0xff] %vm171, %v2423
      %2456 = vst.msk [vmem:[#allocation3 + $0x60] sm:$0xff] %vm171, %v2424
      %2457 = vst.msk [vmem:[#allocation3 + $0x68] sm:$0xff] %vm171, %v2425
      %2458 = vst.msk [vmem:[#allocation3 + $0x70] sm:$0xff] %vm171, %v2426
      %2459 = vst.msk [vmem:[#allocation3 + $0x78] sm:$0xff] %vm171, %v2427
      %2460 = vst.msk [vmem:[#allocation3 + $0x80] sm:$0xff] %vm171, %v2428
      %2461 = vst.msk [vmem:[#allocation3 + $0x88] sm:$0xff] %vm171, %v2429
      %2462 = vst.msk [vmem:[#allocation3 + $0x90] sm:$0xff] %vm171, %v2430
      %2463 = vst.msk [vmem:[#allocation3 + $0x98] sm:$0xff] %vm171, %v2431
      %2464 = vst.msk [vmem:[#allocation3 + $0xa0] sm:$0xff] %vm171, %v2432
      %2465 = vst.msk [vmem:[#allocation3 + $0xa8] sm:$0xff] %vm171, %v2433
      %2466 = vst.msk [vmem:[#allocation3 + $0xb0] sm:$0xff] %vm171, %v2434
      %2467 = vst.msk [vmem:[#allocation3 + $0xb8] sm:$0xff] %vm171, %v2435
      %2468 = vst.msk [vmem:[#allocation3 + $0xc0] sm:$0xff] %vm171, %v2436
      %2469 = vst.msk [vmem:[#allocation3 + $0xc8] sm:$0xff] %vm171, %v2437
      %2470 = vst.msk [vmem:[#allocation3 + $0xd0] sm:$0xff] %vm171, %v2438
      %2471 = vst.msk [vmem:[#allocation3 + $0xd8] sm:$0xff] %vm171, %v2439
      %2472 = vst.msk [vmem:[#allocation3 + $0xe0] sm:$0xff] %vm171, %v2440
      %2473 = vst.msk [vmem:[#allocation3 + $0xe8] sm:$0xff] %vm171, %v2441
      %2474 = vst.msk [vmem:[#allocation3 + $0xf0] sm:$0xff] %vm171, %v2442
      %2475 = vst.msk [vmem:[#allocation3 + $0xf8] sm:$0xff] %vm171, %v2443
      %v2476 = vld [vmem:[%s2411 + $0x1] sm:$0xff]
      %v2477 = vld [vmem:[%s2411 + $0x9] sm:$0xff]
      %v2478 = vld [vmem:[%s2411 + $0x19] sm:$0xff]
      %v2479 = vld [vmem:[%s2411 + $0x21] sm:$0xff]
      %v2480 = vld [vmem:[%s2411 + $0x31] sm:$0xff]
      %v2481 = vld [vmem:[%s2411 + $0x39] sm:$0xff]
      %v2482 = vld [vmem:[%s2411 + $0x49] sm:$0xff]
      %v2483 = vld [vmem:[%s2411 + $0x51] sm:$0xff]
      %v2484 = vld [vmem:[%s2411 + $0x61] sm:$0xff]
      %v2485 = vld [vmem:[%s2411 + $0x69] sm:$0xff]
      %v2486 = vld [vmem:[%s2411 + $0x79] sm:$0xff]
      %v2487 = vld [vmem:[%s2411 + $0x81] sm:$0xff]
      %v2488 = vld [vmem:[%s2411 + $0x91] sm:$0xff]
      %v2489 = vld [vmem:[%s2411 + $0x99] sm:$0xff]
      %v2490 = vld [vmem:[%s2411 + $0xa9] sm:$0xff]
      %v2491 = vld [vmem:[%s2411 + $0xb1] sm:$0xff]
      %v2492 = vld [vmem:[%s2411 + $0xc1] sm:$0xff]
      %v2493 = vld [vmem:[%s2411 + $0xc9] sm:$0xff]
      %v2494 = vld [vmem:[%s2411 + $0xd9] sm:$0xff]
      %v2495 = vld [vmem:[%s2411 + $0xe1] sm:$0xff]
      %v2496 = vld [vmem:[%s2411 + $0xf1] sm:$0xff]
      %v2497 = vld [vmem:[%s2411 + $0xf9] sm:$0xff]
      %v2498 = vld [vmem:[%s2411 + $0x109] sm:$0xff]
      %v2499 = vld [vmem:[%s2411 + $0x111] sm:$0xff]
      %v2500 = vld [vmem:[%s2411 + $0x121] sm:$0xff]
      %v2501 = vld [vmem:[%s2411 + $0x129] sm:$0xff]
      %v2502 = vld [vmem:[%s2411 + $0x139] sm:$0xff]
      %v2503 = vld [vmem:[%s2411 + $0x141] sm:$0xff]
      %v2504 = vld [vmem:[%s2411 + $0x151] sm:$0xff]
      %v2505 = vld [vmem:[%s2411 + $0x159] sm:$0xff]
      %v2506 = vld [vmem:[%s2411 + $0x169] sm:$0xff]
      %v2507 = vld [vmem:[%s2411 + $0x171] sm:$0xff]
      %2540 = vrot.lane.b32.xlu0 %v2476, 16
      %v2541 = vpop.permute.xlu0 %2540
      %2542 = vrot.lane.b32.xlu0 %v2477, 16
      %v2543 = vpop.permute.xlu0 %2542
      %2544 = vrot.lane.b32.xlu0 %v2478, 16
      %v2545 = vpop.permute.xlu0 %2544
      %2546 = vrot.lane.b32.xlu0 %v2479, 16
      %v2547 = vpop.permute.xlu0 %2546
      %2548 = vrot.lane.b32.xlu0 %v2480, 16
      %v2549 = vpop.permute.xlu0 %2548
      %2550 = vrot.lane.b32.xlu0 %v2481, 16
      %v2551 = vpop.permute.xlu0 %2550
      %2552 = vrot.lane.b32.xlu0 %v2482, 16
      %v2553 = vpop.permute.xlu0 %2552
      %2554 = vrot.lane.b32.xlu0 %v2483, 16
      %v2555 = vpop.permute.xlu0 %2554
      %2556 = vrot.lane.b32.xlu0 %v2484, 16
      %v2557 = vpop.permute.xlu0 %2556
      %2558 = vrot.lane.b32.xlu0 %v2485, 16
      %v2559 = vpop.permute.xlu0 %2558
      %2560 = vrot.lane.b32.xlu0 %v2486, 16
      %v2561 = vpop.permute.xlu0 %2560
      %2562 = vrot.lane.b32.xlu0 %v2487, 16
      %v2563 = vpop.permute.xlu0 %2562
      %2564 = vrot.lane.b32.xlu0 %v2488, 16
      %v2565 = vpop.permute.xlu0 %2564
      %2566 = vrot.lane.b32.xlu0 %v2489, 16
      %v2567 = vpop.permute.xlu0 %2566
      %2568 = vrot.lane.b32.xlu0 %v2490, 16
      %v2569 = vpop.permute.xlu0 %2568
      %2570 = vrot.lane.b32.xlu0 %v2491, 16
      %v2571 = vpop.permute.xlu0 %2570
      %2572 = vrot.lane.b32.xlu0 %v2492, 16
      %v2573 = vpop.permute.xlu0 %2572
      %2574 = vrot.lane.b32.xlu0 %v2493, 16
      %v2575 = vpop.permute.xlu0 %2574
      %2576 = vrot.lane.b32.xlu0 %v2494, 16
      %v2577 = vpop.permute.xlu0 %2576
      %2578 = vrot.lane.b32.xlu0 %v2495, 16
      %v2579 = vpop.permute.xlu0 %2578
      %2580 = vrot.lane.b32.xlu0 %v2496, 16
      %v2581 = vpop.permute.xlu0 %2580
      %2582 = vrot.lane.b32.xlu0 %v2497, 16
      %v2583 = vpop.permute.xlu0 %2582
      %2584 = vrot.lane.b32.xlu0 %v2498, 16
      %v2585 = vpop.permute.xlu0 %2584
      %2586 = vrot.lane.b32.xlu0 %v2499, 16
      %v2587 = vpop.permute.xlu0 %2586
      %2588 = vrot.lane.b32.xlu0 %v2500, 16
      %v2589 = vpop.permute.xlu0 %2588
      %2590 = vrot.lane.b32.xlu0 %v2501, 16
      %v2591 = vpop.permute.xlu0 %2590
      %2592 = vrot.lane.b32.xlu0 %v2502, 16
      %v2593 = vpop.permute.xlu0 %2592
      %2594 = vrot.lane.b32.xlu0 %v2503, 16
      %v2595 = vpop.permute.xlu0 %2594
      %2596 = vrot.lane.b32.xlu0 %v2504, 16
      %v2597 = vpop.permute.xlu0 %2596
      %2598 = vrot.lane.b32.xlu0 %v2505, 16
      %v2599 = vpop.permute.xlu0 %2598
      %2600 = vrot.lane.b32.xlu0 %v2506, 16
      %v2601 = vpop.permute.xlu0 %2600
      %2602 = vrot.lane.b32.xlu0 %v2507, 16
      %v2603 = vpop.permute.xlu0 %2602
      %2636 = vst.msk [vmem:[#allocation3] sm:$0xff] %vm664, %v2541
      %2637 = vst.msk [vmem:[#allocation3 + $0x8] sm:$0xff] %vm664, %v2543
      %2638 = vst.msk [vmem:[#allocation3 + $0x10] sm:$0xff] %vm664, %v2545
      %2639 = vst.msk [vmem:[#allocation3 + $0x18] sm:$0xff] %vm664, %v2547
      %2640 = vst.msk [vmem:[#allocation3 + $0x20] sm:$0xff] %vm664, %v2549
      %2641 = vst.msk [vmem:[#allocation3 + $0x28] sm:$0xff] %vm664, %v2551
      %2642 = vst.msk [vmem:[#allocation3 + $0x30] sm:$0xff] %vm664, %v2553
      %2643 = vst.msk [vmem:[#allocation3 + $0x38] sm:$0xff] %vm664, %v2555
      %2644 = vst.msk [vmem:[#allocation3 + $0x40] sm:$0xff] %vm664, %v2557
      %2645 = vst.msk [vmem:[#allocation3 + $0x48] sm:$0xff] %vm664, %v2559
      %2646 = vst.msk [vmem:[#allocation3 + $0x50] sm:$0xff] %vm664, %v2561
      %2647 = vst.msk [vmem:[#allocation3 + $0x58] sm:$0xff] %vm664, %v2563
      %2648 = vst.msk [vmem:[#allocation3 + $0x60] sm:$0xff] %vm664, %v2565
      %2649 = vst.msk [vmem:[#allocation3 + $0x68] sm:$0xff] %vm664, %v2567
      %2650 = vst.msk [vmem:[#allocation3 + $0x70] sm:$0xff] %vm664, %v2569
      %2651 = vst.msk [vmem:[#allocation3 + $0x78] sm:$0xff] %vm664, %v2571
      %2652 = vst.msk [vmem:[#allocation3 + $0x80] sm:$0xff] %vm664, %v2573
      %2653 = vst.msk [vmem:[#allocation3 + $0x88] sm:$0xff] %vm664, %v2575
      %2654 = vst.msk [vmem:[#allocation3 + $0x90] sm:$0xff] %vm664, %v2577
      %2655 = vst.msk [vmem:[#allocation3 + $0x98] sm:$0xff] %vm664, %v2579
      %2656 = vst.msk [vmem:[#allocation3 + $0xa0] sm:$0xff] %vm664, %v2581
      %2657 = vst.msk [vmem:[#allocation3 + $0xa8] sm:$0xff] %vm664, %v2583
      %2658 = vst.msk [vmem:[#allocation3 + $0xb0] sm:$0xff] %vm664, %v2585
      %2659 = vst.msk [vmem:[#allocation3 + $0xb8] sm:$0xff] %vm664, %v2587
      %2660 = vst.msk [vmem:[#allocation3 + $0xc0] sm:$0xff] %vm664, %v2589
      %2661 = vst.msk [vmem:[#allocation3 + $0xc8] sm:$0xff] %vm664, %v2591
      %2662 = vst.msk [vmem:[#allocation3 + $0xd0] sm:$0xff] %vm664, %v2593
      %2663 = vst.msk [vmem:[#allocation3 + $0xd8] sm:$0xff] %vm664, %v2595
      %2664 = vst.msk [vmem:[#allocation3 + $0xe0] sm:$0xff] %vm664, %v2597
      %2665 = vst.msk [vmem:[#allocation3 + $0xe8] sm:$0xff] %vm664, %v2599
      %2666 = vst.msk [vmem:[#allocation3 + $0xf0] sm:$0xff] %vm664, %v2601
      %2667 = vst.msk [vmem:[#allocation3 + $0xf8] sm:$0xff] %vm664, %v2603
      %v2668 = vld [vmem:[%s2411 + $0x2] sm:$0xff]
      %v2669 = vld [vmem:[%s2411 + $0xa] sm:$0xff]
      %v2670 = vld [vmem:[%s2411 + $0x1a] sm:$0xff]
      %v2671 = vld [vmem:[%s2411 + $0x22] sm:$0xff]
      %v2672 = vld [vmem:[%s2411 + $0x32] sm:$0xff]
      %v2673 = vld [vmem:[%s2411 + $0x3a] sm:$0xff]
      %v2674 = vld [vmem:[%s2411 + $0x4a] sm:$0xff]
      %v2675 = vld [vmem:[%s2411 + $0x52] sm:$0xff]
      %v2676 = vld [vmem:[%s2411 + $0x62] sm:$0xff]
      %v2677 = vld [vmem:[%s2411 + $0x6a] sm:$0xff]
      %v2678 = vld [vmem:[%s2411 + $0x7a] sm:$0xff]
      %v2679 = vld [vmem:[%s2411 + $0x82] sm:$0xff]
      %v2680 = vld [vmem:[%s2411 + $0x92] sm:$0xff]
      %v2681 = vld [vmem:[%s2411 + $0x9a] sm:$0xff]
      %v2682 = vld [vmem:[%s2411 + $0xaa] sm:$0xff]
      %v2683 = vld [vmem:[%s2411 + $0xb2] sm:$0xff]
      %v2684 = vld [vmem:[%s2411 + $0xc2] sm:$0xff]
      %v2685 = vld [vmem:[%s2411 + $0xca] sm:$0xff]
      %v2686 = vld [vmem:[%s2411 + $0xda] sm:$0xff]
      %v2687 = vld [vmem:[%s2411 + $0xe2] sm:$0xff]
      %v2688 = vld [vmem:[%s2411 + $0xf2] sm:$0xff]
      %v2689 = vld [vmem:[%s2411 + $0xfa] sm:$0xff]
      %v2690 = vld [vmem:[%s2411 + $0x10a] sm:$0xff]
      %v2691 = vld [vmem:[%s2411 + $0x112] sm:$0xff]
      %v2692 = vld [vmem:[%s2411 + $0x122] sm:$0xff]
      %v2693 = vld [vmem:[%s2411 + $0x12a] sm:$0xff]
      %v2694 = vld [vmem:[%s2411 + $0x13a] sm:$0xff]
      %v2695 = vld [vmem:[%s2411 + $0x142] sm:$0xff]
      %v2696 = vld [vmem:[%s2411 + $0x152] sm:$0xff]
      %v2697 = vld [vmem:[%s2411 + $0x15a] sm:$0xff]
      %v2698 = vld [vmem:[%s2411 + $0x16a] sm:$0xff]
      %v2699 = vld [vmem:[%s2411 + $0x172] sm:$0xff]
      %2732 = vrot.lane.b32.xlu0 %v2668, 32
      %v2733 = vpop.permute.xlu0 %2732
      %2734 = vrot.lane.b32.xlu0 %v2669, 32
      %v2735 = vpop.permute.xlu0 %2734
      %2736 = vrot.lane.b32.xlu0 %v2670, 32
      %v2737 = vpop.permute.xlu0 %2736
      %2738 = vrot.lane.b32.xlu0 %v2671, 32
      %v2739 = vpop.permute.xlu0 %2738
      %2740 = vrot.lane.b32.xlu0 %v2672, 32
      %v2741 = vpop.permute.xlu0 %2740
      %2742 = vrot.lane.b32.xlu0 %v2673, 32
      %v2743 = vpop.permute.xlu0 %2742
      %2744 = vrot.lane.b32.xlu0 %v2674, 32
      %v2745 = vpop.permute.xlu0 %2744
      %2746 = vrot.lane.b32.xlu0 %v2675, 32
      %v2747 = vpop.permute.xlu0 %2746
      %2748 = vrot.lane.b32.xlu0 %v2676, 32
      %v2749 = vpop.permute.xlu0 %2748
      %2750 = vrot.lane.b32.xlu0 %v2677, 32
      %v2751 = vpop.permute.xlu0 %2750
      %2752 = vrot.lane.b32.xlu0 %v2678, 32
      %v2753 = vpop.permute.xlu0 %2752
      %2754 = vrot.lane.b32.xlu0 %v2679, 32
      %v2755 = vpop.permute.xlu0 %2754
      %2756 = vrot.lane.b32.xlu0 %v2680, 32
      %v2757 = vpop.permute.xlu0 %2756
      %2758 = vrot.lane.b32.xlu0 %v2681, 32
      %v2759 = vpop.permute.xlu0 %2758
      %2760 = vrot.lane.b32.xlu0 %v2682, 32
      %v2761 = vpop.permute.xlu0 %2760
      %2762 = vrot.lane.b32.xlu0 %v2683, 32
      %v2763 = vpop.permute.xlu0 %2762
      %2764 = vrot.lane.b32.xlu0 %v2684, 32
      %v2765 = vpop.permute.xlu0 %2764
      %2766 = vrot.lane.b32.xlu0 %v2685, 32
      %v2767 = vpop.permute.xlu0 %2766
      %2768 = vrot.lane.b32.xlu0 %v2686, 32
      %v2769 = vpop.permute.xlu0 %2768
      %2770 = vrot.lane.b32.xlu0 %v2687, 32
      %v2771 = vpop.permute.xlu0 %2770
      %2772 = vrot.lane.b32.xlu0 %v2688, 32
      %v2773 = vpop.permute.xlu0 %2772
      %2774 = vrot.lane.b32.xlu0 %v2689, 32
      %v2775 = vpop.permute.xlu0 %2774
      %2776 = vrot.lane.b32.xlu0 %v2690, 32
      %v2777 = vpop.permute.xlu0 %2776
      %2778 = vrot.lane.b32.xlu0 %v2691, 32
      %v2779 = vpop.permute.xlu0 %2778
      %2780 = vrot.lane.b32.xlu0 %v2692, 32
      %v2781 = vpop.permute.xlu0 %2780
      %2782 = vrot.lane.b32.xlu0 %v2693, 32
      %v2783 = vpop.permute.xlu0 %2782
      %2784 = vrot.lane.b32.xlu0 %v2694, 32
      %v2785 = vpop.permute.xlu0 %2784
      %2786 = vrot.lane.b32.xlu0 %v2695, 32
      %v2787 = vpop.permute.xlu0 %2786
      %2788 = vrot.lane.b32.xlu0 %v2696, 32
      %v2789 = vpop.permute.xlu0 %2788
      %2790 = vrot.lane.b32.xlu0 %v2697, 32
      %v2791 = vpop.permute.xlu0 %2790
      %2792 = vrot.lane.b32.xlu0 %v2698, 32
      %v2793 = vpop.permute.xlu0 %2792
      %2794 = vrot.lane.b32.xlu0 %v2699, 32
      %v2795 = vpop.permute.xlu0 %2794
      %2828 = vst.msk [vmem:[#allocation3] sm:$0xff] %vm857, %v2733
      %2829 = vst.msk [vmem:[#allocation3 + $0x8] sm:$0xff] %vm857, %v2735
      %2830 = vst.msk [vmem:[#allocation3 + $0x10] sm:$0xff] %vm857, %v2737
      %2831 = vst.msk [vmem:[#allocation3 + $0x18] sm:$0xff] %vm857, %v2739
      %2832 = vst.msk [vmem:[#allocation3 + $0x20] sm:$0xff] %vm857, %v2741
      %2833 = vst.msk [vmem:[#allocation3 + $0x28] sm:$0xff] %vm857, %v2743
      %2834 = vst.msk [vmem:[#allocation3 + $0x30] sm:$0xff] %vm857, %v2745
      %2835 = vst.msk [vmem:[#allocation3 + $0x38] sm:$0xff] %vm857, %v2747
      %2836 = vst.msk [vmem:[#allocation3 + $0x40] sm:$0xff] %vm857, %v2749
      %2837 = vst.msk [vmem:[#allocation3 + $0x48] sm:$0xff] %vm857, %v2751
      %2838 = vst.msk [vmem:[#allocation3 + $0x50] sm:$0xff] %vm857, %v2753
      %2839 = vst.msk [vmem:[#allocation3 + $0x58] sm:$0xff] %vm857, %v2755
      %2840 = vst.msk [vmem:[#allocation3 + $0x60] sm:$0xff] %vm857, %v2757
      %2841 = vst.msk [vmem:[#allocation3 + $0x68] sm:$0xff] %vm857, %v2759
      %2842 = vst.msk [vmem:[#allocation3 + $0x70] sm:$0xff] %vm857, %v2761
      %2843 = vst.msk [vmem:[#allocation3 + $0x78] sm:$0xff] %vm857, %v2763
      %2844 = vst.msk [vmem:[#allocation3 + $0x80] sm:$0xff] %vm857, %v2765
      %2845 = vst.msk [vmem:[#allocation3 + $0x88] sm:$0xff] %vm857, %v2767
      %2846 = vst.msk [vmem:[#allocation3 + $0x90] sm:$0xff] %vm857, %v2769
      %2847 = vst.msk [vmem:[#allocation3 + $0x98] sm:$0xff] %vm857, %v2771
      %2848 = vst.msk [vmem:[#allocation3 + $0xa0] sm:$0xff] %vm857, %v2773
      %2849 = vst.msk [vmem:[#allocation3 + $0xa8] sm:$0xff] %vm857, %v2775
      %2850 = vst.msk [vmem:[#allocation3 + $0xb0] sm:$0xff] %vm857, %v2777
      %2851 = vst.msk [vmem:[#allocation3 + $0xb8] sm:$0xff] %vm857, %v2779
      %2852 = vst.msk [vmem:[#allocation3 + $0xc0] sm:$0xff] %vm857, %v2781
      %2853 = vst.msk [vmem:[#allocation3 + $0xc8] sm:$0xff] %vm857, %v2783
      %2854 = vst.msk [vmem:[#allocation3 + $0xd0] sm:$0xff] %vm857, %v2785
      %2855 = vst.msk [vmem:[#allocation3 + $0xd8] sm:$0xff] %vm857, %v2787
      %2856 = vst.msk [vmem:[#allocation3 + $0xe0] sm:$0xff] %vm857, %v2789
      %2857 = vst.msk [vmem:[#allocation3 + $0xe8] sm:$0xff] %vm857, %v2791
      %2858 = vst.msk [vmem:[#allocation3 + $0xf0] sm:$0xff] %vm857, %v2793
      %2859 = vst.msk [vmem:[#allocation3 + $0xf8] sm:$0xff] %vm857, %v2795
      %v2860 = vld [vmem:[%s405] sm:$0xff]
      %v2861 = vld [vmem:[%s405 + $0x8] sm:$0xff]
      %v2862 = vld [vmem:[%s405 + $0x18] sm:$0xff]
      %v2863 = vld [vmem:[%s405 + $0x20] sm:$0xff]
      %v2864 = vld [vmem:[%s405 + $0x30] sm:$0xff]
      %v2865 = vld [vmem:[%s405 + $0x38] sm:$0xff]
      %v2866 = vld [vmem:[%s405 + $0x48] sm:$0xff]
      %v2867 = vld [vmem:[%s405 + $0x50] sm:$0xff]
      %v2868 = vld [vmem:[%s405 + $0x60] sm:$0xff]
      %v2869 = vld [vmem:[%s405 + $0x68] sm:$0xff]
      %v2870 = vld [vmem:[%s405 + $0x78] sm:$0xff]
      %v2871 = vld [vmem:[%s405 + $0x80] sm:$0xff]
      %v2872 = vld [vmem:[%s405 + $0x90] sm:$0xff]
      %v2873 = vld [vmem:[%s405 + $0x98] sm:$0xff]
      %v2874 = vld [vmem:[%s405 + $0xa8] sm:$0xff]
      %v2875 = vld [vmem:[%s405 + $0xb0] sm:$0xff]
      %v2876 = vld [vmem:[%s405 + $0xc0] sm:$0xff]
      %v2877 = vld [vmem:[%s405 + $0xc8] sm:$0xff]
      %v2878 = vld [vmem:[%s405 + $0xd8] sm:$0xff]
      %v2879 = vld [vmem:[%s405 + $0xe0] sm:$0xff]
      %v2880 = vld [vmem:[%s405 + $0xf0] sm:$0xff]
      %v2881 = vld [vmem:[%s405 + $0xf8] sm:$0xff]
      %v2882 = vld [vmem:[%s405 + $0x108] sm:$0xff]
      %v2883 = vld [vmem:[%s405 + $0x110] sm:$0xff]
      %v2884 = vld [vmem:[%s405 + $0x120] sm:$0xff]
      %v2885 = vld [vmem:[%s405 + $0x128] sm:$0xff]
      %v2886 = vld [vmem:[%s405 + $0x138] sm:$0xff]
      %v2887 = vld [vmem:[%s405 + $0x140] sm:$0xff]
      %v2888 = vld [vmem:[%s405 + $0x150] sm:$0xff]
      %v2889 = vld [vmem:[%s405 + $0x158] sm:$0xff]
      %v2890 = vld [vmem:[%s405 + $0x168] sm:$0xff]
      %v2891 = vld [vmem:[%s405 + $0x170] sm:$0xff]
      %2924 = vrot.lane.b32.xlu0 %v2860, 48
      %v2925 = vpop.permute.xlu0 %2924
      %2926 = vrot.lane.b32.xlu0 %v2861, 48
      %v2927 = vpop.permute.xlu0 %2926
      %2928 = vrot.lane.b32.xlu0 %v2862, 48
      %v2929 = vpop.permute.xlu0 %2928
      %2930 = vrot.lane.b32.xlu0 %v2863, 48
      %v2931 = vpop.permute.xlu0 %2930
      %2932 = vrot.lane.b32.xlu0 %v2864, 48
      %v2933 = vpop.permute.xlu0 %2932
      %2934 = vrot.lane.b32.xlu0 %v2865, 48
      %v2935 = vpop.permute.xlu0 %2934
      %2936 = vrot.lane.b32.xlu0 %v2866, 48
      %v2937 = vpop.permute.xlu0 %2936
      %2938 = vrot.lane.b32.xlu0 %v2867, 48
      %v2939 = vpop.permute.xlu0 %2938
      %2940 = vrot.lane.b32.xlu0 %v2868, 48
      %v2941 = vpop.permute.xlu0 %2940
      %2942 = vrot.lane.b32.xlu0 %v2869, 48
      %v2943 = vpop.permute.xlu0 %2942
      %2944 = vrot.lane.b32.xlu0 %v2870, 48
      %v2945 = vpop.permute.xlu0 %2944
      %2946 = vrot.lane.b32.xlu0 %v2871, 48
      %v2947 = vpop.permute.xlu0 %2946
      %2948 = vrot.lane.b32.xlu0 %v2872, 48
      %v2949 = vpop.permute.xlu0 %2948
      %2950 = vrot.lane.b32.xlu0 %v2873, 48
      %v2951 = vpop.permute.xlu0 %2950
      %2952 = vrot.lane.b32.xlu0 %v2874, 48
      %v2953 = vpop.permute.xlu0 %2952
      %2954 = vrot.lane.b32.xlu0 %v2875, 48
      %v2955 = vpop.permute.xlu0 %2954
      %2956 = vrot.lane.b32.xlu0 %v2876, 48
      %v2957 = vpop.permute.xlu0 %2956
      %2958 = vrot.lane.b32.xlu0 %v2877, 48
      %v2959 = vpop.permute.xlu0 %2958
      %2960 = vrot.lane.b32.xlu0 %v2878, 48
      %v2961 = vpop.permute.xlu0 %2960
      %2962 = vrot.lane.b32.xlu0 %v2879, 48
      %v2963 = vpop.permute.xlu0 %2962
      %2964 = vrot.lane.b32.xlu0 %v2880, 48
      %v2965 = vpop.permute.xlu0 %2964
      %2966 = vrot.lane.b32.xlu0 %v2881, 48
      %v2967 = vpop.permute.xlu0 %2966
      %2968 = vrot.lane.b32.xlu0 %v2882, 48
      %v2969 = vpop.permute.xlu0 %2968
      %2970 = vrot.lane.b32.xlu0 %v2883, 48
      %v2971 = vpop.permute.xlu0 %2970
      %2972 = vrot.lane.b32.xlu0 %v2884, 48
      %v2973 = vpop.permute.xlu0 %2972
      %2974 = vrot.lane.b32.xlu0 %v2885, 48
      %v2975 = vpop.permute.xlu0 %2974
      %2976 = vrot.lane.b32.xlu0 %v2886, 48
      %v2977 = vpop.permute.xlu0 %2976
      %2978 = vrot.lane.b32.xlu0 %v2887, 48
      %v2979 = vpop.permute.xlu0 %2978
      %2980 = vrot.lane.b32.xlu0 %v2888, 48
      %v2981 = vpop.permute.xlu0 %2980
      %2982 = vrot.lane.b32.xlu0 %v2889, 48
      %v2983 = vpop.permute.xlu0 %2982
      %2984 = vrot.lane.b32.xlu0 %v2890, 48
      %v2985 = vpop.permute.xlu0 %2984
      %2986 = vrot.lane.b32.xlu0 %v2891, 48
      %v2987 = vpop.permute.xlu0 %2986
      %3020 = vst.msk [vmem:[#allocation3] sm:$0xff] %vm1050, %v2925
      %3021 = vst.msk [vmem:[#allocation3 + $0x8] sm:$0xff] %vm1050, %v2927
      %3022 = vst.msk [vmem:[#allocation3 + $0x10] sm:$0xff] %vm1050, %v2929
      %3023 = vst.msk [vmem:[#allocation3 + $0x18] sm:$0xff] %vm1050, %v2931
      %3024 = vst.msk [vmem:[#allocation3 + $0x20] sm:$0xff] %vm1050, %v2933
      %3025 = vst.msk [vmem:[#allocation3 + $0x28] sm:$0xff] %vm1050, %v2935
      %3026 = vst.msk [vmem:[#allocation3 + $0x30] sm:$0xff] %vm1050, %v2937
      %3027 = vst.msk [vmem:[#allocation3 + $0x38] sm:$0xff] %vm1050, %v2939
      %3028 = vst.msk [vmem:[#allocation3 + $0x40] sm:$0xff] %vm1050, %v2941
      %3029 = vst.msk [vmem:[#allocation3 + $0x48] sm:$0xff] %vm1050, %v2943
      %3030 = vst.msk [vmem:[#allocation3 + $0x50] sm:$0xff] %vm1050, %v2945
      %3031 = vst.msk [vmem:[#allocation3 + $0x58] sm:$0xff] %vm1050, %v2947
      %3032 = vst.msk [vmem:[#allocation3 + $0x60] sm:$0xff] %vm1050, %v2949
      %3033 = vst.msk [vmem:[#allocation3 + $0x68] sm:$0xff] %vm1050, %v2951
      %3034 = vst.msk [vmem:[#allocation3 + $0x70] sm:$0xff] %vm1050, %v2953
      %3035 = vst.msk [vmem:[#allocation3 + $0x78] sm:$0xff] %vm1050, %v2955
      %3036 = vst.msk [vmem:[#allocation3 + $0x80] sm:$0xff] %vm1050, %v2957
      %3037 = vst.msk [vmem:[#allocation3 + $0x88] sm:$0xff] %vm1050, %v2959
      %3038 = vst.msk [vmem:[#allocation3 + $0x90] sm:$0xff] %vm1050, %v2961
      %3039 = vst.msk [vmem:[#allocation3 + $0x98] sm:$0xff] %vm1050, %v2963
      %3040 = vst.msk [vmem:[#allocation3 + $0xa0] sm:$0xff] %vm1050, %v2965
      %3041 = vst.msk [vmem:[#allocation3 + $0xa8] sm:$0xff] %vm1050, %v2967
      %3042 = vst.msk [vmem:[#allocation3 + $0xb0] sm:$0xff] %vm1050, %v2969
      %3043 = vst.msk [vmem:[#allocation3 + $0xb8] sm:$0xff] %vm1050, %v2971
      %3044 = vst.msk [vmem:[#allocation3 + $0xc0] sm:$0xff] %vm1050, %v2973
      %3045 = vst.msk [vmem:[#allocation3 + $0xc8] sm:$0xff] %vm1050, %v2975
      %3046 = vst.msk [vmem:[#allocation3 + $0xd0] sm:$0xff] %vm1050, %v2977
      %3047 = vst.msk [vmem:[#allocation3 + $0xd8] sm:$0xff] %vm1050, %v2979
      %3048 = vst.msk [vmem:[#allocation3 + $0xe0] sm:$0xff] %vm1050, %v2981
      %3049 = vst.msk [vmem:[#allocation3 + $0xe8] sm:$0xff] %vm1050, %v2983
      %3050 = vst.msk [vmem:[#allocation3 + $0xf0] sm:$0xff] %vm1050, %v2985
      %3051 = vst.msk [vmem:[#allocation3 + $0xf8] sm:$0xff] %vm1050, %v2987
      %v3052 = vld [vmem:[%s405 + $0x1] sm:$0xff]
      %v3053 = vld [vmem:[%s405 + $0x9] sm:$0xff]
      %v3054 = vld [vmem:[%s405 + $0x19] sm:$0xff]
      %v3055 = vld [vmem:[%s405 + $0x21] sm:$0xff]
      %v3056 = vld [vmem:[%s405 + $0x31] sm:$0xff]
      %v3057 = vld [vmem:[%s405 + $0x39] sm:$0xff]
      %v3058 = vld [vmem:[%s405 + $0x49] sm:$0xff]
      %v3059 = vld [vmem:[%s405 + $0x51] sm:$0xff]
      %v3060 = vld [vmem:[%s405 + $0x61] sm:$0xff]
      %v3061 = vld [vmem:[%s405 + $0x69] sm:$0xff]
      %v3062 = vld [vmem:[%s405 + $0x79] sm:$0xff]
      %v3063 = vld [vmem:[%s405 + $0x81] sm:$0xff]
      %v3064 = vld [vmem:[%s405 + $0x91] sm:$0xff]
      %v3065 = vld [vmem:[%s405 + $0x99] sm:$0xff]
      %v3066 = vld [vmem:[%s405 + $0xa9] sm:$0xff]
      %v3067 = vld [vmem:[%s405 + $0xb1] sm:$0xff]
      %v3068 = vld [vmem:[%s405 + $0xc1] sm:$0xff]
      %v3069 = vld [vmem:[%s405 + $0xc9] sm:$0xff]
      %v3070 = vld [vmem:[%s405 + $0xd9] sm:$0xff]
      %v3071 = vld [vmem:[%s405 + $0xe1] sm:$0xff]
      %v3072 = vld [vmem:[%s405 + $0xf1] sm:$0xff]
      %v3073 = vld [vmem:[%s405 + $0xf9] sm:$0xff]
      %v3074 = vld [vmem:[%s405 + $0x109] sm:$0xff]
      %v3075 = vld [vmem:[%s405 + $0x111] sm:$0xff]
      %v3076 = vld [vmem:[%s405 + $0x121] sm:$0xff]
      %v3077 = vld [vmem:[%s405 + $0x129] sm:$0xff]
      %v3078 = vld [vmem:[%s405 + $0x139] sm:$0xff]
      %v3079 = vld [vmem:[%s405 + $0x141] sm:$0xff]
      %v3080 = vld [vmem:[%s405 + $0x151] sm:$0xff]
      %v3081 = vld [vmem:[%s405 + $0x159] sm:$0xff]
      %v3082 = vld [vmem:[%s405 + $0x169] sm:$0xff]
      %v3083 = vld [vmem:[%s405 + $0x171] sm:$0xff]
      %3116 = vrot.lane.b32.xlu0 %v3052, 64
      %v3117 = vpop.permute.xlu0 %3116
      %3118 = vrot.lane.b32.xlu0 %v3053, 64
      %v3119 = vpop.permute.xlu0 %3118
      %3120 = vrot.lane.b32.xlu0 %v3054, 64
      %v3121 = vpop.permute.xlu0 %3120
      %3122 = vrot.lane.b32.xlu0 %v3055, 64
      %v3123 = vpop.permute.xlu0 %3122
      %3124 = vrot.lane.b32.xlu0 %v3056, 64
      %v3125 = vpop.permute.xlu0 %3124
      %3126 = vrot.lane.b32.xlu0 %v3057, 64
      %v3127 = vpop.permute.xlu0 %3126
      %3128 = vrot.lane.b32.xlu0 %v3058, 64
      %v3129 = vpop.permute.xlu0 %3128
      %3130 = vrot.lane.b32.xlu0 %v3059, 64
      %v3131 = vpop.permute.xlu0 %3130
      %3132 = vrot.lane.b32.xlu0 %v3060, 64
      %v3133 = vpop.permute.xlu0 %3132
      %3134 = vrot.lane.b32.xlu0 %v3061, 64
      %v3135 = vpop.permute.xlu0 %3134
      %3136 = vrot.lane.b32.xlu0 %v3062, 64
      %v3137 = vpop.permute.xlu0 %3136
      %3138 = vrot.lane.b32.xlu0 %v3063, 64
      %v3139 = vpop.permute.xlu0 %3138
      %3140 = vrot.lane.b32.xlu0 %v3064, 64
      %v3141 = vpop.permute.xlu0 %3140
      %3142 = vrot.lane.b32.xlu0 %v3065, 64
      %v3143 = vpop.permute.xlu0 %3142
      %3144 = vrot.lane.b32.xlu0 %v3066, 64
      %v3145 = vpop.permute.xlu0 %3144
      %3146 = vrot.lane.b32.xlu0 %v3067, 64
      %v3147 = vpop.permute.xlu0 %3146
      %3148 = vrot.lane.b32.xlu0 %v3068, 64
      %v3149 = vpop.permute.xlu0 %3148
      %3150 = vrot.lane.b32.xlu0 %v3069, 64
      %v3151 = vpop.permute.xlu0 %3150
      %3152 = vrot.lane.b32.xlu0 %v3070, 64
      %v3153 = vpop.permute.xlu0 %3152
      %3154 = vrot.lane.b32.xlu0 %v3071, 64
      %v3155 = vpop.permute.xlu0 %3154
      %3156 = vrot.lane.b32.xlu0 %v3072, 64
      %v3157 = vpop.permute.xlu0 %3156
      %3158 = vrot.lane.b32.xlu0 %v3073, 64
      %v3159 = vpop.permute.xlu0 %3158
      %3160 = vrot.lane.b32.xlu0 %v3074, 64
      %v3161 = vpop.permute.xlu0 %3160
      %3162 = vrot.lane.b32.xlu0 %v3075, 64
      %v3163 = vpop.permute.xlu0 %3162
      %3164 = vrot.lane.b32.xlu0 %v3076, 64
      %v3165 = vpop.permute.xlu0 %3164
      %3166 = vrot.lane.b32.xlu0 %v3077, 64
      %v3167 = vpop.permute.xlu0 %3166
      %3168 = vrot.lane.b32.xlu0 %v3078, 64
      %v3169 = vpop.permute.xlu0 %3168
      %3170 = vrot.lane.b32.xlu0 %v3079, 64
      %v3171 = vpop.permute.xlu0 %3170
      %3172 = vrot.lane.b32.xlu0 %v3080, 64
      %v3173 = vpop.permute.xlu0 %3172
      %3174 = vrot.lane.b32.xlu0 %v3081, 64
      %v3175 = vpop.permute.xlu0 %3174
      %3176 = vrot.lane.b32.xlu0 %v3082, 64
      %v3177 = vpop.permute.xlu0 %3176
      %3178 = vrot.lane.b32.xlu0 %v3083, 64
      %v3179 = vpop.permute.xlu0 %3178
      %3212 = vst.msk [vmem:[#allocation3] sm:$0xff] %vm1243, %v3117
      %3213 = vst.msk [vmem:[#allocation3 + $0x8] sm:$0xff] %vm1243, %v3119
      %3214 = vst.msk [vmem:[#allocation3 + $0x10] sm:$0xff] %vm1243, %v3121
      %3215 = vst.msk [vmem:[#allocation3 + $0x18] sm:$0xff] %vm1243, %v3123
      %3216 = vst.msk [vmem:[#allocation3 + $0x20] sm:$0xff] %vm1243, %v3125
      %3217 = vst.msk [vmem:[#allocation3 + $0x28] sm:$0xff] %vm1243, %v3127
      %3218 = vst.msk [vmem:[#allocation3 + $0x30] sm:$0xff] %vm1243, %v3129
      %3219 = vst.msk [vmem:[#allocation3 + $0x38] sm:$0xff] %vm1243, %v3131
      %3220 = vst.msk [vmem:[#allocation3 + $0x40] sm:$0xff] %vm1243, %v3133
      %3221 = vst.msk [vmem:[#allocation3 + $0x48] sm:$0xff] %vm1243, %v3135
      %3222 = vst.msk [vmem:[#allocation3 + $0x50] sm:$0xff] %vm1243, %v3137
      %3223 = vst.msk [vmem:[#allocation3 + $0x58] sm:$0xff] %vm1243, %v3139
      %3224 = vst.msk [vmem:[#allocation3 + $0x60] sm:$0xff] %vm1243, %v3141
      %3225 = vst.msk [vmem:[#allocation3 + $0x68] sm:$0xff] %vm1243, %v3143
      %3226 = vst.msk [vmem:[#allocation3 + $0x70] sm:$0xff] %vm1243, %v3145
      %3227 = vst.msk [vmem:[#allocation3 + $0x78] sm:$0xff] %vm1243, %v3147
      %3228 = vst.msk [vmem:[#allocation3 + $0x80] sm:$0xff] %vm1243, %v3149
      %3229 = vst.msk [vmem:[#allocation3 + $0x88] sm:$0xff] %vm1243, %v3151
      %3230 = vst.msk [vmem:[#allocation3 + $0x90] sm:$0xff] %vm1243, %v3153
      %3231 = vst.msk [vmem:[#allocation3 + $0x98] sm:$0xff] %vm1243, %v3155
      %3232 = vst.msk [vmem:[#allocation3 + $0xa0] sm:$0xff] %vm1243, %v3157
      %3233 = vst.msk [vmem:[#allocation3 + $0xa8] sm:$0xff] %vm1243, %v3159
      %3234 = vst.msk [vmem:[#allocation3 + $0xb0] sm:$0xff] %vm1243, %v3161
      %3235 = vst.msk [vmem:[#allocation3 + $0xb8] sm:$0xff] %vm1243, %v3163
      %3236 = vst.msk [vmem:[#allocation3 + $0xc0] sm:$0xff] %vm1243, %v3165
      %3237 = vst.msk [vmem:[#allocation3 + $0xc8] sm:$0xff] %vm1243, %v3167
      %3238 = vst.msk [vmem:[#allocation3 + $0xd0] sm:$0xff] %vm1243, %v3169
      %3239 = vst.msk [vmem:[#allocation3 + $0xd8] sm:$0xff] %vm1243, %v3171
      %3240 = vst.msk [vmem:[#allocation3 + $0xe0] sm:$0xff] %vm1243, %v3173
      %3241 = vst.msk [vmem:[#allocation3 + $0xe8] sm:$0xff] %vm1243, %v3175
      %3242 = vst.msk [vmem:[#allocation3 + $0xf0] sm:$0xff] %vm1243, %v3177
      %3243 = vst.msk [vmem:[#allocation3 + $0xf8] sm:$0xff] %vm1243, %v3179
      %v3244 = vld [vmem:[%s405 + $0x2] sm:$0xff]
      %v3245 = vld [vmem:[%s405 + $0xa] sm:$0xff]
      %v3246 = vld [vmem:[%s405 + $0x1a] sm:$0xff]
      %v3247 = vld [vmem:[%s405 + $0x22] sm:$0xff]
      %v3248 = vld [vmem:[%s405 + $0x32] sm:$0xff]
      %v3249 = vld [vmem:[%s405 + $0x3a] sm:$0xff]
      %v3250 = vld [vmem:[%s405 + $0x4a] sm:$0xff]
      %v3251 = vld [vmem:[%s405 + $0x52] sm:$0xff]
      %v3252 = vld [vmem:[%s405 + $0x62] sm:$0xff]
      %v3253 = vld [vmem:[%s405 + $0x6a] sm:$0xff]
      %v3254 = vld [vmem:[%s405 + $0x7a] sm:$0xff]
      %v3255 = vld [vmem:[%s405 + $0x82] sm:$0xff]
      %v3256 = vld [vmem:[%s405 + $0x92] sm:$0xff]
      %v3257 = vld [vmem:[%s405 + $0x9a] sm:$0xff]
      %v3258 = vld [vmem:[%s405 + $0xaa] sm:$0xff]
      %v3259 = vld [vmem:[%s405 + $0xb2] sm:$0xff]
      %v3260 = vld [vmem:[%s405 + $0xc2] sm:$0xff]
      %v3261 = vld [vmem:[%s405 + $0xca] sm:$0xff]
      %v3262 = vld [vmem:[%s405 + $0xda] sm:$0xff]
      %v3263 = vld [vmem:[%s405 + $0xe2] sm:$0xff]
      %v3264 = vld [vmem:[%s405 + $0xf2] sm:$0xff]
      %v3265 = vld [vmem:[%s405 + $0xfa] sm:$0xff]
      %v3266 = vld [vmem:[%s405 + $0x10a] sm:$0xff]
      %v3267 = vld [vmem:[%s405 + $0x112] sm:$0xff]
      %v3268 = vld [vmem:[%s405 + $0x122] sm:$0xff]
      %v3269 = vld [vmem:[%s405 + $0x12a] sm:$0xff]
      %v3270 = vld [vmem:[%s405 + $0x13a] sm:$0xff]
      %v3271 = vld [vmem:[%s405 + $0x142] sm:$0xff]
      %v3272 = vld [vmem:[%s405 + $0x152] sm:$0xff]
      %v3273 = vld [vmem:[%s405 + $0x15a] sm:$0xff]
      %v3274 = vld [vmem:[%s405 + $0x16a] sm:$0xff]
      %v3275 = vld [vmem:[%s405 + $0x172] sm:$0xff]
      %3308 = vrot.lane.b32.xlu0 %v3244, 80
      %v3309 = vpop.permute.xlu0 %3308
      %3310 = vrot.lane.b32.xlu0 %v3245, 80
      %v3311 = vpop.permute.xlu0 %3310
      %3312 = vrot.lane.b32.xlu0 %v3246, 80
      %v3313 = vpop.permute.xlu0 %3312
      %3314 = vrot.lane.b32.xlu0 %v3247, 80
      %v3315 = vpop.permute.xlu0 %3314
      %3316 = vrot.lane.b32.xlu0 %v3248, 80
      %v3317 = vpop.permute.xlu0 %3316
      %3318 = vrot.lane.b32.xlu0 %v3249, 80
      %v3319 = vpop.permute.xlu0 %3318
      %3320 = vrot.lane.b32.xlu0 %v3250, 80
      %v3321 = vpop.permute.xlu0 %3320
      %3322 = vrot.lane.b32.xlu0 %v3251, 80
      %v3323 = vpop.permute.xlu0 %3322
      %3324 = vrot.lane.b32.xlu0 %v3252, 80
      %v3325 = vpop.permute.xlu0 %3324
      %3326 = vrot.lane.b32.xlu0 %v3253, 80
      %v3327 = vpop.permute.xlu0 %3326
      %3328 = vrot.lane.b32.xlu0 %v3254, 80
      %v3329 = vpop.permute.xlu0 %3328
      %3330 = vrot.lane.b32.xlu0 %v3255, 80
      %v3331 = vpop.permute.xlu0 %3330
      %3332 = vrot.lane.b32.xlu0 %v3256, 80
      %v3333 = vpop.permute.xlu0 %3332
      %3334 = vrot.lane.b32.xlu0 %v3257, 80
      %v3335 = vpop.permute.xlu0 %3334
      %3336 = vrot.lane.b32.xlu0 %v3258, 80
      %v3337 = vpop.permute.xlu0 %3336
      %3338 = vrot.lane.b32.xlu0 %v3259, 80
      %v3339 = vpop.permute.xlu0 %3338
      %3340 = vrot.lane.b32.xlu0 %v3260, 80
      %v3341 = vpop.permute.xlu0 %3340
      %3342 = vrot.lane.b32.xlu0 %v3261, 80
      %v3343 = vpop.permute.xlu0 %3342
      %3344 = vrot.lane.b32.xlu0 %v3262, 80
      %v3345 = vpop.permute.xlu0 %3344
      %3346 = vrot.lane.b32.xlu0 %v3263, 80
      %v3347 = vpop.permute.xlu0 %3346
      %3348 = vrot.lane.b32.xlu0 %v3264, 80
      %v3349 = vpop.permute.xlu0 %3348
      %3350 = vrot.lane.b32.xlu0 %v3265, 80
      %v3351 = vpop.permute.xlu0 %3350
      %3352 = vrot.lane.b32.xlu0 %v3266, 80
      %v3353 = vpop.permute.xlu0 %3352
      %3354 = vrot.lane.b32.xlu0 %v3267, 80
      %v3355 = vpop.permute.xlu0 %3354
      %3356 = vrot.lane.b32.xlu0 %v3268, 80
      %v3357 = vpop.permute.xlu0 %3356
      %3358 = vrot.lane.b32.xlu0 %v3269, 80
      %v3359 = vpop.permute.xlu0 %3358
      %3360 = vrot.lane.b32.xlu0 %v3270, 80
      %v3361 = vpop.permute.xlu0 %3360
      %3362 = vrot.lane.b32.xlu0 %v3271, 80
      %v3363 = vpop.permute.xlu0 %3362
      %3364 = vrot.lane.b32.xlu0 %v3272, 80
      %v3365 = vpop.permute.xlu0 %3364
      %3366 = vrot.lane.b32.xlu0 %v3273, 80
      %v3367 = vpop.permute.xlu0 %3366
      %3368 = vrot.lane.b32.xlu0 %v3274, 80
      %v3369 = vpop.permute.xlu0 %3368
      %3370 = vrot.lane.b32.xlu0 %v3275, 80
      %v3371 = vpop.permute.xlu0 %3370
      %3404 = vst.msk [vmem:[#allocation3] sm:$0xff] %vm1436, %v3309
      %3405 = vst.msk [vmem:[#allocation3 + $0x8] sm:$0xff] %vm1436, %v3311
      %3406 = vst.msk [vmem:[#allocation3 + $0x10] sm:$0xff] %vm1436, %v3313
      %3407 = vst.msk [vmem:[#allocation3 + $0x18] sm:$0xff] %vm1436, %v3315
      %3408 = vst.msk [vmem:[#allocation3 + $0x20] sm:$0xff] %vm1436, %v3317
      %3409 = vst.msk [vmem:[#allocation3 + $0x28] sm:$0xff] %vm1436, %v3319
      %3410 = vst.msk [vmem:[#allocation3 + $0x30] sm:$0xff] %vm1436, %v3321
      %3411 = vst.msk [vmem:[#allocation3 + $0x38] sm:$0xff] %vm1436, %v3323
      %3412 = vst.msk [vmem:[#allocation3 + $0x40] sm:$0xff] %vm1436, %v3325
      %3413 = vst.msk [vmem:[#allocation3 + $0x48] sm:$0xff] %vm1436, %v3327
      %3414 = vst.msk [vmem:[#allocation3 + $0x50] sm:$0xff] %vm1436, %v3329
      %3415 = vst.msk [vmem:[#allocation3 + $0x58] sm:$0xff] %vm1436, %v3331
      %3416 = vst.msk [vmem:[#allocation3 + $0x60] sm:$0xff] %vm1436, %v3333
      %3417 = vst.msk [vmem:[#allocation3 + $0x68] sm:$0xff] %vm1436, %v3335
      %3418 = vst.msk [vmem:[#allocation3 + $0x70] sm:$0xff] %vm1436, %v3337
      %3419 = vst.msk [vmem:[#allocation3 + $0x78] sm:$0xff] %vm1436, %v3339
      %3420 = vst.msk [vmem:[#allocation3 + $0x80] sm:$0xff] %vm1436, %v3341
      %3421 = vst.msk [vmem:[#allocation3 + $0x88] sm:$0xff] %vm1436, %v3343
      %3422 = vst.msk [vmem:[#allocation3 + $0x90] sm:$0xff] %vm1436, %v3345
      %3423 = vst.msk [vmem:[#allocation3 + $0x98] sm:$0xff] %vm1436, %v3347
      %3424 = vst.msk [vmem:[#allocation3 + $0xa0] sm:$0xff] %vm1436, %v3349
      %3425 = vst.msk [vmem:[#allocation3 + $0xa8] sm:$0xff] %vm1436, %v3351
      %3426 = vst.msk [vmem:[#allocation3 + $0xb0] sm:$0xff] %vm1436, %v3353
      %3427 = vst.msk [vmem:[#allocation3 + $0xb8] sm:$0xff] %vm1436, %v3355
      %3428 = vst.msk [vmem:[#allocation3 + $0xc0] sm:$0xff] %vm1436, %v3357
      %3429 = vst.msk [vmem:[#allocation3 + $0xc8] sm:$0xff] %vm1436, %v3359
      %3430 = vst.msk [vmem:[#allocation3 + $0xd0] sm:$0xff] %vm1436, %v3361
      %3431 = vst.msk [vmem:[#allocation3 + $0xd8] sm:$0xff] %vm1436, %v3363
      %3432 = vst.msk [vmem:[#allocation3 + $0xe0] sm:$0xff] %vm1436, %v3365
      %3433 = vst.msk [vmem:[#allocation3 + $0xe8] sm:$0xff] %vm1436, %v3367
      %3434 = vst.msk [vmem:[#allocation3 + $0xf0] sm:$0xff] %vm1436, %v3369
      %3435 = vst.msk [vmem:[#allocation3 + $0xf8] sm:$0xff] %vm1436, %v3371
      %v3436 = vld [vmem:[#allocation3] sm:$0xff]
      %v3437 = vld [vmem:[#allocation3 + $0x8] sm:$0xff]
      %v3438 = vld [vmem:[#allocation3 + $0x10] sm:$0xff]
      %v3439 = vld [vmem:[#allocation3 + $0x18] sm:$0xff]
      %v3440 = vld [vmem:[#allocation3 + $0x20] sm:$0xff]
      %v3441 = vld [vmem:[#allocation3 + $0x28] sm:$0xff]
      %v3442 = vld [vmem:[#allocation3 + $0x30] sm:$0xff]
      %v3443 = vld [vmem:[#allocation3 + $0x38] sm:$0xff]
      %v3444 = vld [vmem:[#allocation3 + $0x40] sm:$0xff]
      %v3445 = vld [vmem:[#allocation3 + $0x48] sm:$0xff]
      %v3446 = vld [vmem:[#allocation3 + $0x50] sm:$0xff]
      %v3447 = vld [vmem:[#allocation3 + $0x58] sm:$0xff]
      %v3448 = vld [vmem:[#allocation3 + $0x60] sm:$0xff]
      %v3449 = vld [vmem:[#allocation3 + $0x68] sm:$0xff]
      %v3450 = vld [vmem:[#allocation3 + $0x70] sm:$0xff]
      %v3451 = vld [vmem:[#allocation3 + $0x78] sm:$0xff]
      %v3452 = vld [vmem:[#allocation3 + $0x80] sm:$0xff]
      %v3453 = vld [vmem:[#allocation3 + $0x88] sm:$0xff]
      %v3454 = vld [vmem:[#allocation3 + $0x90] sm:$0xff]
      %v3455 = vld [vmem:[#allocation3 + $0x98] sm:$0xff]
      %v3456 = vld [vmem:[#allocation3 + $0xa0] sm:$0xff]
      %v3457 = vld [vmem:[#allocation3 + $0xa8] sm:$0xff]
      %v3458 = vld [vmem:[#allocation3 + $0xb0] sm:$0xff]
      %v3459 = vld [vmem:[#allocation3 + $0xb8] sm:$0xff]
      %v3460 = vld [vmem:[#allocation3 + $0xc0] sm:$0xff]
      %v3461 = vld [vmem:[#allocation3 + $0xc8] sm:$0xff]
      %v3462 = vld [vmem:[#allocation3 + $0xd0] sm:$0xff]
      %v3463 = vld [vmem:[#allocation3 + $0xd8] sm:$0xff]
      %v3464 = vld [vmem:[#allocation3 + $0xe0] sm:$0xff]
      %v3465 = vld [vmem:[#allocation3 + $0xe8] sm:$0xff]
      %v3466 = vld [vmem:[#allocation3 + $0xf0] sm:$0xff]
      %v3467 = vld [vmem:[#allocation3 + $0xf8] sm:$0xff]
      %s3468 = scalar_lea.vmem %s1, 96
      %v3469 = vld [vmem:[%s3468] sm:$0xff]
      %v3470 = vld [vmem:[%s3468 + $0x8] sm:$0xff]
      %v3471 = vld [vmem:[%s3468 + $0x10] sm:$0xff]
      %v3472 = vld [vmem:[%s3468 + $0x18] sm:$0xff]
      %v3473 = vld [vmem:[%s3468 + $0x20] sm:$0xff]
      %v3474 = vld [vmem:[%s3468 + $0x28] sm:$0xff]
      %v3475 = vld [vmem:[%s3468 + $0x30] sm:$0xff]
      %v3476 = vld [vmem:[%s3468 + $0x38] sm:$0xff]
      %v3477 = vld [vmem:[%s3468 + $0x40] sm:$0xff]
      %v3478 = vld [vmem:[%s3468 + $0x48] sm:$0xff]
      %v3479 = vld [vmem:[%s3468 + $0x50] sm:$0xff]
      %v3480 = vld [vmem:[%s3468 + $0x58] sm:$0xff]
      %v3482 = vsel %vm1513, %v3436, 0
      %v3485 = vsel %vm1513, %v3437, 0
      %v3488 = vsel %vm1513, %v3438, 0
      %v3491 = vsel %vm1513, %v3439, 0
      %v3494 = vsel %vm1513, %v3440, 0
      %v3497 = vsel %vm1513, %v3441, 0
      %v3500 = vsel %vm1513, %v3442, 0
      %v3503 = vsel %vm1513, %v3443, 0
      %v3506 = vsel %vm1513, %v3444, 0
      %v3509 = vsel %vm1513, %v3445, 0
      %v3512 = vsel %vm1513, %v3446, 0
      %v3515 = vsel %vm1513, %v3447, 0
      %v3518 = vsel %vm1513, %v3448, 0
      %v3521 = vsel %vm1513, %v3449, 0
      %v3524 = vsel %vm1513, %v3450, 0
      %v3527 = vsel %vm1513, %v3451, 0
      %v3530 = vsel %vm1513, %v3452, 0
      %v3533 = vsel %vm1513, %v3453, 0
      %v3536 = vsel %vm1513, %v3454, 0
      %v3539 = vsel %vm1513, %v3455, 0
      %v3542 = vsel %vm1513, %v3456, 0
      %v3545 = vsel %vm1513, %v3457, 0
      %v3548 = vsel %vm1513, %v3458, 0
      %v3551 = vsel %vm1513, %v3459, 0
      %v3554 = vsel %vm1513, %v3460, 0
      %v3557 = vsel %vm1513, %v3461, 0
      %v3560 = vsel %vm1513, %v3462, 0
      %v3563 = vsel %vm1513, %v3463, 0
      %v3566 = vsel %vm1513, %v3464, 0
      %v3569 = vsel %vm1513, %v3465, 0
      %v3572 = vsel %vm1513, %v3466, 0
      %v3575 = vsel %vm1513, %v3467, 0
      %3577 = vmatprep.subr.mxu0 0.0
      %3578 = vmatpush1.msra.mxu0 %v3469
      %3579 = vmatprep.subr.mxu0 0.0
      %3580 = vmatpush1.msra.mxu0 %v3470
      %3581 = vmatprep.subr.mxu0 0.0
      %3582 = vmatpush1.msra.mxu0 %v3471
      %3583 = vmatprep.subr.mxu0 0.0
      %3584 = vmatpush1.msra.mxu0 %v3472
      %3585 = vmatprep.subr.mxu0 0.0
      %3586 = vmatpush1.msra.mxu0 %v3473
      %3587 = vmatprep.subr.mxu0 0.0
      %3588 = vmatpush1.msra.mxu0 %v3474
      %3589 = vmatprep.subr.mxu0 0.0
      %3590 = vmatpush1.msra.mxu0 %v3475
      %3591 = vmatprep.subr.mxu0 0.0
      %3592 = vmatpush1.msra.mxu0 %v3476
      %3593 = vmatprep.subr.mxu0 0.0
      %3594 = vmatpush1.msra.mxu0 %v3477
      %3595 = vmatprep.subr.mxu0 0.0
      %3596 = vmatpush1.msra.mxu0 %v3478
      %3597 = vmatprep.subr.mxu0 0.0
      %3598 = vmatpush1.msra.mxu0 %v3479
      %3599 = vmatprep.subr.mxu0 0.0
      %3600 = vmatpush1.msra.mxu0 %v3480
      %3601 = vmatprep.subr.mxu0 0.0
      %3602 = vmatpush1.msra.mxu0 0.0
      %3603 = vmatprep.subr.mxu0 0.0
      %3604 = vmatpush1.msra.mxu0 0.0
      %3605 = vmatprep.subr.mxu0 0.0
      %3606 = vmatpush1.msra.mxu0 0.0
      %3607 = vmatprep.subr.mxu0 0.0
      %3608 = vmatpush1.msra.mxu0 0.0
      %3609 = vmatprep.subr.mxu0 0.0
      %3610 = vmatpush1.msra.mxu0 0.0
      %3611 = vmatprep.subr.mxu0 0.0
      %3612 = vmatpush1.msra.mxu0 0.0
      %3613 = vmatprep.subr.mxu0 0.0
      %3614 = vmatpush1.msra.mxu0 0.0
      %3615 = vmatprep.subr.mxu0 0.0
      %3616 = vmatpush1.msra.mxu0 0.0
      %3617 = vmatprep.subr.mxu0 0.0
      %3618 = vmatpush1.msra.mxu0 0.0
      %3619 = vmatprep.subr.mxu0 0.0
      %3620 = vmatpush1.msra.mxu0 0.0
      %3621 = vmatprep.subr.mxu0 0.0
      %3622 = vmatpush1.msra.mxu0 0.0
      %3623 = vmatprep.subr.mxu0 0.0
      %3624 = vmatpush1.msra.mxu0 0.0
      %3625 = vmatprep.subr.mxu0 0.0
      %3626 = vmatpush1.msra.mxu0 0.0
      %3627 = vmatprep.subr.mxu0 0.0
      %3628 = vmatpush1.msra.mxu0 0.0
      %3629 = vmatprep.subr.mxu0 0.0
      %3630 = vmatpush1.msra.mxu0 0.0
      %3631 = vmatprep.subr.mxu0 0.0
      %3632 = vmatpush1.msra.mxu0 0.0
      %3633 = vmatprep.subr.mxu0 0.0
      %3634 = vmatpush1.msra.mxu0 0.0
      %3635 = vmatprep.subr.mxu0 0.0
      %3636 = vmatpush1.msra.mxu0 0.0
      %3637 = vmatprep.subr.mxu0 0.0
      %3638 = vmatpush1.msra.mxu0 0.0
      %3639 = vmatprep.subr.mxu0 0.0
      %3640 = vmatpush1.msra.mxu0 0.0
      %3641 = vmatprep.mubr.f32.mxu0 0.0
      %3642 = vmatmul.mubr.f32.gmra.mrb[0].mxu0 %v3482
      %v3643 = vpop.f32.mrb[0].mxu0
      %v3644 = vadd.f32 0.0, %v3643
      %v3645 = vpop.f32.mrb[0].mxu0
      %3646 = vmatprep.mubr.f32.mxu0 0.0
      %3647 = vmatmul.mubr.f32.gmra.mrb[0].mxu0 %v3485
      %v3648 = vpop.f32.mrb[0].mxu0
      %v3649 = vadd.f32 0.0, %v3648
      %v3650 = vpop.f32.mrb[0].mxu0
      %3651 = vmatprep.mubr.f32.mxu0 0.0
      %3652 = vmatmul.mubr.f32.gmra.mrb[0].mxu0 %v3488
      %v3653 = vpop.f32.mrb[0].mxu0
      %v3654 = vadd.f32 0.0, %v3653
      %v3655 = vpop.f32.mrb[0].mxu0
      %3656 = vmatprep.mubr.f32.mxu0 0.0
      %3657 = vmatmul.mubr.f32.gmra.mrb[0].mxu0 %v3491
      %v3658 = vpop.f32.mrb[0].mxu0
      %v3659 = vadd.f32 0.0, %v3658
      %v3660 = vpop.f32.mrb[0].mxu0
      %3661 = vmatprep.mubr.f32.mxu0 0.0
      %3662 = vmatmul.mubr.f32.gmra.mrb[0].mxu0 %v3494
      %v3663 = vpop.f32.mrb[0].mxu0
      %v3664 = vadd.f32 0.0, %v3663
      %v3665 = vpop.f32.mrb[0].mxu0
      %3666 = vmatprep.mubr.f32.mxu0 0.0
      %3667 = vmatmul.mubr.f32.gmra.mrb[0].mxu0 %v3497
      %v3668 = vpop.f32.mrb[0].mxu0
      %v3669 = vadd.f32 0.0, %v3668
      %v3670 = vpop.f32.mrb[0].mxu0
      %3671 = vmatprep.mubr.f32.mxu0 0.0
      %3672 = vmatmul.mubr.f32.gmra.mrb[0].mxu0 %v3500
      %v3673 = vpop.f32.mrb[0].mxu0
      %v3674 = vadd.f32 0.0, %v3673
      %v3675 = vpop.f32.mrb[0].mxu0
      %3676 = vmatprep.mubr.f32.mxu0 0.0
      %3677 = vmatmul.mubr.f32.gmra.mrb[0].mxu0 %v3503
      %v3678 = vpop.f32.mrb[0].mxu0
      %v3679 = vadd.f32 0.0, %v3678
      %v3680 = vpop.f32.mrb[0].mxu0
      %3681 = vmatprep.mubr.f32.mxu0 0.0
      %3682 = vmatmul.mubr.f32.gmra.mrb[0].mxu0 %v3506
      %v3683 = vpop.f32.mrb[0].mxu0
      %v3684 = vadd.f32 0.0, %v3683
      %v3685 = vpop.f32.mrb[0].mxu0
      %3686 = vmatprep.mubr.f32.mxu0 0.0
      %3687 = vmatmul.mubr.f32.gmra.mrb[0].mxu0 %v3509
      %v3688 = vpop.f32.mrb[0].mxu0
      %v3689 = vadd.f32 0.0, %v3688
      %v3690 = vpop.f32.mrb[0].mxu0
      %3691 = vmatprep.mubr.f32.mxu0 0.0
      %3692 = vmatmul.mubr.f32.gmra.mrb[0].mxu0 %v3512
      %v3693 = vpop.f32.mrb[0].mxu0
      %v3694 = vadd.f32 0.0, %v3693
      %v3695 = vpop.f32.mrb[0].mxu0
      %3696 = vmatprep.mubr.f32.mxu0 0.0
      %3697 = vmatmul.mubr.f32.gmra.mrb[0].mxu0 %v3515
      %v3698 = vpop.f32.mrb[0].mxu0
      %v3699 = vadd.f32 0.0, %v3698
      %v3700 = vpop.f32.mrb[0].mxu0
      %3701 = vmatprep.mubr.f32.mxu0 0.0
      %3702 = vmatmul.mubr.f32.gmra.mrb[0].mxu0 %v3518
      %v3703 = vpop.f32.mrb[0].mxu0
      %v3704 = vadd.f32 0.0, %v3703
      %v3705 = vpop.f32.mrb[0].mxu0
      %3706 = vmatprep.mubr.f32.mxu0 0.0
      %3707 = vmatmul.mubr.f32.gmra.mrb[0].mxu0 %v3521
      %v3708 = vpop.f32.mrb[0].mxu0
      %v3709 = vadd.f32 0.0, %v3708
      %v3710 = vpop.f32.mrb[0].mxu0
      %3711 = vmatprep.mubr.f32.mxu0 0.0
      %3712 = vmatmul.mubr.f32.gmra.mrb[0].mxu0 %v3524
      %v3713 = vpop.f32.mrb[0].mxu0
      %v3714 = vadd.f32 0.0, %v3713
      %v3715 = vpop.f32.mrb[0].mxu0
      %3716 = vmatprep.mubr.f32.mxu0 0.0
      %3717 = vmatmul.mubr.f32.gmra.mrb[0].mxu0 %v3527
      %v3718 = vpop.f32.mrb[0].mxu0
      %v3719 = vadd.f32 0.0, %v3718
      %v3720 = vpop.f32.mrb[0].mxu0
      %3721 = vmatprep.mubr.f32.mxu0 0.0
      %3722 = vmatmul.mubr.f32.gmra.mrb[0].mxu0 %v3530
      %v3723 = vpop.f32.mrb[0].mxu0
      %v3724 = vadd.f32 0.0, %v3723
      %v3725 = vpop.f32.mrb[0].mxu0
      %3726 = vmatprep.mubr.f32.mxu0 0.0
      %3727 = vmatmul.mubr.f32.gmra.mrb[0].mxu0 %v3533
      %v3728 = vpop.f32.mrb[0].mxu0
      %v3729 = vadd.f32 0.0, %v3728
      %v3730 = vpop.f32.mrb[0].mxu0
      %3731 = vmatprep.mubr.f32.mxu0 0.0
      %3732 = vmatmul.mubr.f32.gmra.mrb[0].mxu0 %v3536
      %v3733 = vpop.f32.mrb[0].mxu0
      %v3734 = vadd.f32 0.0, %v3733
      %v3735 = vpop.f32.mrb[0].mxu0
      %3736 = vmatprep.mubr.f32.mxu0 0.0
      %3737 = vmatmul.mubr.f32.gmra.mrb[0].mxu0 %v3539
      %v3738 = vpop.f32.mrb[0].mxu0
      %v3739 = vadd.f32 0.0, %v3738
      %v3740 = vpop.f32.mrb[0].mxu0
      %3741 = vmatprep.mubr.f32.mxu0 0.0
      %3742 = vmatmul.mubr.f32.gmra.mrb[0].mxu0 %v3542
      %v3743 = vpop.f32.mrb[0].mxu0
      %v3744 = vadd.f32 0.0, %v3743
      %v3745 = vpop.f32.mrb[0].mxu0
      %3746 = vmatprep.mubr.f32.mxu0 0.0
      %3747 = vmatmul.mubr.f32.gmra.mrb[0].mxu0 %v3545
      %v3748 = vpop.f32.mrb[0].mxu0
      %v3749 = vadd.f32 0.0, %v3748
      %v3750 = vpop.f32.mrb[0].mxu0
      %3751 = vmatprep.mubr.f32.mxu0 0.0
      %3752 = vmatmul.mubr.f32.gmra.mrb[0].mxu0 %v3548
      %v3753 = vpop.f32.mrb[0].mxu0
      %v3754 = vadd.f32 0.0, %v3753
      %v3755 = vpop.f32.mrb[0].mxu0
      %3756 = vmatprep.mubr.f32.mxu0 0.0
      %3757 = vmatmul.mubr.f32.gmra.mrb[0].mxu0 %v3551
      %v3758 = vpop.f32.mrb[0].mxu0
      %v3759 = vadd.f32 0.0, %v3758
      %v3760 = vpop.f32.mrb[0].mxu0
      %3761 = vmatprep.mubr.f32.mxu0 0.0
      %3762 = vmatmul.mubr.f32.gmra.mrb[0].mxu0 %v3554
      %v3763 = vpop.f32.mrb[0].mxu0
      %v3764 = vadd.f32 0.0, %v3763
      %v3765 = vpop.f32.mrb[0].mxu0
      %3766 = vmatprep.mubr.f32.mxu0 0.0
      %3767 = vmatmul.mubr.f32.gmra.mrb[0].mxu0 %v3557
      %v3768 = vpop.f32.mrb[0].mxu0
      %v3769 = vadd.f32 0.0, %v3768
      %v3770 = vpop.f32.mrb[0].mxu0
      %3771 = vmatprep.mubr.f32.mxu0 0.0
      %3772 = vmatmul.mubr.f32.gmra.mrb[0].mxu0 %v3560
      %v3773 = vpop.f32.mrb[0].mxu0
      %v3774 = vadd.f32 0.0, %v3773
      %v3775 = vpop.f32.mrb[0].mxu0
      %3776 = vmatprep.mubr.f32.mxu0 0.0
      %3777 = vmatmul.mubr.f32.gmra.mrb[0].mxu0 %v3563
      %v3778 = vpop.f32.mrb[0].mxu0
      %v3779 = vadd.f32 0.0, %v3778
      %v3780 = vpop.f32.mrb[0].mxu0
      %3781 = vmatprep.mubr.f32.mxu0 0.0
      %3782 = vmatmul.mubr.f32.gmra.mrb[0].mxu0 %v3566
      %v3783 = vpop.f32.mrb[0].mxu0
      %v3784 = vadd.f32 0.0, %v3783
      %v3785 = vpop.f32.mrb[0].mxu0
      %3786 = vmatprep.mubr.f32.mxu0 0.0
      %3787 = vmatmul.mubr.f32.gmra.mrb[0].mxu0 %v3569
      %v3788 = vpop.f32.mrb[0].mxu0
      %v3789 = vadd.f32 0.0, %v3788
      %v3790 = vpop.f32.mrb[0].mxu0
      %3791 = vmatprep.mubr.f32.mxu0 0.0
      %3792 = vmatmul.mubr.f32.gmra.mrb[0].mxu0 %v3572
      %v3793 = vpop.f32.mrb[0].mxu0
      %v3794 = vadd.f32 0.0, %v3793
      %v3795 = vpop.f32.mrb[0].mxu0
      %3796 = vmatprep.mubr.f32.mxu0 0.0
      %3797 = vmatmul.mubr.f32.gmra.mrb[0].mxu0 %v3575
      %v3798 = vpop.f32.mrb[0].mxu0
      %v3799 = vadd.f32 0.0, %v3798
      %v3800 = vpop.f32.mrb[0].mxu0
      %3801 = vdwg.mxu0
      %v3802 = vsel %vm1835, %v3644, 0.0
      %v3803 = vsel %vm1835, %v3649, 0.0
      %v3804 = vadd.f32 %v3802, %v3803
      %v3805 = vsel %vm1835, %v3654, 0.0
      %v3806 = vadd.f32 %v3804, %v3805
      %v3807 = vsel %vm1835, %v3659, 0.0
      %v3808 = vadd.f32 %v3806, %v3807
      %v3809 = vsel %vm1835, %v3664, 0.0
      %v3810 = vadd.f32 %v3808, %v3809
      %v3811 = vsel %vm1835, %v3669, 0.0
      %v3812 = vadd.f32 %v3810, %v3811
      %v3813 = vsel %vm1835, %v3674, 0.0
      %v3814 = vadd.f32 %v3812, %v3813
      %v3815 = vsel %vm1835, %v3679, 0.0
      %v3816 = vadd.f32 %v3814, %v3815
      %v3817 = vsel %vm1835, %v3684, 0.0
      %v3818 = vadd.f32 %v3816, %v3817
      %v3819 = vsel %vm1835, %v3689, 0.0
      %v3820 = vadd.f32 %v3818, %v3819
      %v3821 = vsel %vm1835, %v3694, 0.0
      %v3822 = vadd.f32 %v3820, %v3821
      %v3823 = vsel %vm1835, %v3699, 0.0
      %v3824 = vadd.f32 %v3822, %v3823
      %v3825 = vsel %vm1835, %v3704, 0.0
      %v3826 = vadd.f32 %v3824, %v3825
      %v3827 = vsel %vm1835, %v3709, 0.0
      %v3828 = vadd.f32 %v3826, %v3827
      %v3829 = vsel %vm1835, %v3714, 0.0
      %v3830 = vadd.f32 %v3828, %v3829
      %v3831 = vsel %vm1835, %v3719, 0.0
      %v3832 = vadd.f32 %v3830, %v3831
      %v3833 = vsel %vm1835, %v3724, 0.0
      %v3834 = vadd.f32 %v3832, %v3833
      %v3835 = vsel %vm1835, %v3729, 0.0
      %v3836 = vadd.f32 %v3834, %v3835
      %v3837 = vsel %vm1835, %v3734, 0.0
      %v3838 = vadd.f32 %v3836, %v3837
      %v3839 = vsel %vm1835, %v3739, 0.0
      %v3840 = vadd.f32 %v3838, %v3839
      %v3841 = vsel %vm1835, %v3744, 0.0
      %v3842 = vadd.f32 %v3840, %v3841
      %v3843 = vsel %vm1835, %v3749, 0.0
      %v3844 = vadd.f32 %v3842, %v3843
      %v3845 = vsel %vm1835, %v3754, 0.0
      %v3846 = vadd.f32 %v3844, %v3845
      %v3847 = vsel %vm1835, %v3759, 0.0
      %v3848 = vadd.f32 %v3846, %v3847
      %v3849 = vsel %vm1835, %v3764, 0.0
      %v3850 = vadd.f32 %v3848, %v3849
      %v3851 = vsel %vm1835, %v3769, 0.0
      %v3852 = vadd.f32 %v3850, %v3851
      %v3853 = vsel %vm1835, %v3774, 0.0
      %v3854 = vadd.f32 %v3852, %v3853
      %v3855 = vsel %vm1835, %v3779, 0.0
      %v3856 = vadd.f32 %v3854, %v3855
      %v3857 = vsel %vm1835, %v3784, 0.0
      %v3858 = vadd.f32 %v3856, %v3857
      %v3859 = vsel %vm1835, %v3789, 0.0
      %v3860 = vadd.f32 %v3858, %v3859
      %v3861 = vsel %vm1835, %v3794, 0.0
      %v3862 = vadd.f32 %v3860, %v3861
      %v3863 = vsel %vm1835, %v3799, 0.0
      %v3864 = vadd.f32 %v3862, %v3863
      %v3865 = vrot.slane %v3864, 4
      %v3866 = vadd.f32 %v3864, %v3865
      %v3867 = vrot.slane %v3866, 2
      %v3868 = vadd.f32 %v3866, %v3867
      %v3869 = vrot.slane %v3868, 1
      %v3870 = vadd.f32 %v3868, %v3869
      %v3871 = vmul.f32 %v3870, 0.00390625
      %v3872 = vmul.f32 %v3644, %v3644
      %v3873 = vmul.f32 %v3649, %v3649
      %v3874 = vmul.f32 %v3654, %v3654
      %v3875 = vmul.f32 %v3659, %v3659
      %v3876 = vmul.f32 %v3664, %v3664
      %v3877 = vmul.f32 %v3669, %v3669
      %v3878 = vmul.f32 %v3674, %v3674
      %v3879 = vmul.f32 %v3679, %v3679
      %v3880 = vmul.f32 %v3684, %v3684
      %v3881 = vmul.f32 %v3689, %v3689
      %v3882 = vmul.f32 %v3694, %v3694
      %v3883 = vmul.f32 %v3699, %v3699
      %v3884 = vmul.f32 %v3704, %v3704
      %v3885 = vmul.f32 %v3709, %v3709
      %v3886 = vmul.f32 %v3714, %v3714
      %v3887 = vmul.f32 %v3719, %v3719
      %v3888 = vmul.f32 %v3724, %v3724
      %v3889 = vmul.f32 %v3729, %v3729
      %v3890 = vmul.f32 %v3734, %v3734
      %v3891 = vmul.f32 %v3739, %v3739
      %v3892 = vmul.f32 %v3744, %v3744
      %v3893 = vmul.f32 %v3749, %v3749
      %v3894 = vmul.f32 %v3754, %v3754
      %v3895 = vmul.f32 %v3759, %v3759
      %v3896 = vmul.f32 %v3764, %v3764
      %v3897 = vmul.f32 %v3769, %v3769
      %v3898 = vmul.f32 %v3774, %v3774
      %v3899 = vmul.f32 %v3779, %v3779
      %v3900 = vmul.f32 %v3784, %v3784
      %v3901 = vmul.f32 %v3789, %v3789
      %v3902 = vmul.f32 %v3794, %v3794
      %v3903 = vmul.f32 %v3799, %v3799
      %v3904 = vsel %vm1835, %v3872, 0.0
      %v3905 = vsel %vm1835, %v3873, 0.0
      %v3906 = vadd.f32 %v3904, %v3905
      %v3907 = vsel %vm1835, %v3874, 0.0
      %v3908 = vadd.f32 %v3906, %v3907
      %v3909 = vsel %vm1835, %v3875, 0.0
      %v3910 = vadd.f32 %v3908, %v3909
      %v3911 = vsel %vm1835, %v3876, 0.0
      %v3912 = vadd.f32 %v3910, %v3911
      %v3913 = vsel %vm1835, %v3877, 0.0
      %v3914 = vadd.f32 %v3912, %v3913
      %v3915 = vsel %vm1835, %v3878, 0.0
      %v3916 = vadd.f32 %v3914, %v3915
      %v3917 = vsel %vm1835, %v3879, 0.0
      %v3918 = vadd.f32 %v3916, %v3917
      %v3919 = vsel %vm1835, %v3880, 0.0
      %v3920 = vadd.f32 %v3918, %v3919
      %v3921 = vsel %vm1835, %v3881, 0.0
      %v3922 = vadd.f32 %v3920, %v3921
      %v3923 = vsel %vm1835, %v3882, 0.0
      %v3924 = vadd.f32 %v3922, %v3923
      %v3925 = vsel %vm1835, %v3883, 0.0
      %v3926 = vadd.f32 %v3924, %v3925
      %v3927 = vsel %vm1835, %v3884, 0.0
      %v3928 = vadd.f32 %v3926, %v3927
      %v3929 = vsel %vm1835, %v3885, 0.0
      %v3930 = vadd.f32 %v3928, %v3929
      %v3931 = vsel %vm1835, %v3886, 0.0
      %v3932 = vadd.f32 %v3930, %v3931
      %v3933 = vsel %vm1835, %v3887, 0.0
      %v3934 = vadd.f32 %v3932, %v3933
      %v3935 = vsel %vm1835, %v3888, 0.0
      %v3936 = vadd.f32 %v3934, %v3935
      %v3937 = vsel %vm1835, %v3889, 0.0
      %v3938 = vadd.f32 %v3936, %v3937
      %v3939 = vsel %vm1835, %v3890, 0.0
      %v3940 = vadd.f32 %v3938, %v3939
      %v3941 = vsel %vm1835, %v3891, 0.0
      %v3942 = vadd.f32 %v3940, %v3941
      %v3943 = vsel %vm1835, %v3892, 0.0
      %v3944 = vadd.f32 %v3942, %v3943
      %v3945 = vsel %vm1835, %v3893, 0.0
      %v3946 = vadd.f32 %v3944, %v3945
      %v3947 = vsel %vm1835, %v3894, 0.0
      %v3948 = vadd.f32 %v3946, %v3947
      %v3949 = vsel %vm1835, %v3895, 0.0
      %v3950 = vadd.f32 %v3948, %v3949
      %v3951 = vsel %vm1835, %v3896, 0.0
      %v3952 = vadd.f32 %v3950, %v3951
      %v3953 = vsel %vm1835, %v3897, 0.0
      %v3954 = vadd.f32 %v3952, %v3953
      %v3955 = vsel %vm1835, %v3898, 0.0
      %v3956 = vadd.f32 %v3954, %v3955
      %v3957 = vsel %vm1835, %v3899, 0.0
      %v3958 = vadd.f32 %v3956, %v3957
      %v3959 = vsel %vm1835, %v3900, 0.0
      %v3960 = vadd.f32 %v3958, %v3959
      %v3961 = vsel %vm1835, %v3901, 0.0
      %v3962 = vadd.f32 %v3960, %v3961
      %v3963 = vsel %vm1835, %v3902, 0.0
      %v3964 = vadd.f32 %v3962, %v3963
      %v3965 = vsel %vm1835, %v3903, 0.0
      %v3966 = vadd.f32 %v3964, %v3965
      %v3967 = vrot.slane %v3966, 4
      %v3968 = vadd.f32 %v3966, %v3967
      %v3969 = vrot.slane %v3968, 2
      %v3970 = vadd.f32 %v3968, %v3969
      %v3971 = vrot.slane %v3970, 1
      %v3972 = vadd.f32 %v3970, %v3971
      %v3973 = vmul.f32 %v3972, 0.00390625
      %v3974 = vmul.f32 %v3871, %v3871
      %v3975 = vsub.f32 %v3973, %v3974
      %v3976 = vmax.f32 %v3975, 0.0
      %s3977 = scalar_lea.vmem %s2, 4
      %v3978 = vld [vmem:[%s3977] sm:$0x7]
      %v3979 = vsub.f32 %v3644, %v3871
      %v3980 = vsub.f32 %v3649, %v3871
      %v3981 = vsub.f32 %v3654, %v3871
      %v3982 = vsub.f32 %v3659, %v3871
      %v3983 = vsub.f32 %v3664, %v3871
      %v3984 = vsub.f32 %v3669, %v3871
      %v3985 = vsub.f32 %v3674, %v3871
      %v3986 = vsub.f32 %v3679, %v3871
      %v3987 = vsub.f32 %v3684, %v3871
      %v3988 = vsub.f32 %v3689, %v3871
      %v3989 = vsub.f32 %v3694, %v3871
      %v3990 = vsub.f32 %v3699, %v3871
      %v3991 = vsub.f32 %v3704, %v3871
      %v3992 = vsub.f32 %v3709, %v3871
      %v3993 = vsub.f32 %v3714, %v3871
      %v3994 = vsub.f32 %v3719, %v3871
      %v3995 = vsub.f32 %v3724, %v3871
      %v3996 = vsub.f32 %v3729, %v3871
      %v3997 = vsub.f32 %v3734, %v3871
      %v3998 = vsub.f32 %v3739, %v3871
      %v3999 = vsub.f32 %v3744, %v3871
      %v4000 = vsub.f32 %v3749, %v3871
      %v4001 = vsub.f32 %v3754, %v3871
      %v4002 = vsub.f32 %v3759, %v3871
      %v4003 = vsub.f32 %v3764, %v3871
      %v4004 = vsub.f32 %v3769, %v3871
      %v4005 = vsub.f32 %v3774, %v3871
      %v4006 = vsub.f32 %v3779, %v3871
      %v4007 = vsub.f32 %v3784, %v3871
      %v4008 = vsub.f32 %v3789, %v3871
      %v4009 = vsub.f32 %v3794, %v3871
      %v4010 = vsub.f32 %v3799, %v3871
      %v4011 = vadd.f32 %v3976, 1e-05
      %v4012 = vrsqrt.pop %v4011
      %v4013 = vmul.f32 %v3979, %v4012
      %v4014 = vmul.f32 %v3980, %v4012
      %v4015 = vmul.f32 %v3981, %v4012
      %v4016 = vmul.f32 %v3982, %v4012
      %v4017 = vmul.f32 %v3983, %v4012
      %v4018 = vmul.f32 %v3984, %v4012
      %v4019 = vmul.f32 %v3985, %v4012
      %v4020 = vmul.f32 %v3986, %v4012
      %v4021 = vmul.f32 %v3987, %v4012
      %v4022 = vmul.f32 %v3988, %v4012
      %v4023 = vmul.f32 %v3989, %v4012
      %v4024 = vmul.f32 %v3990, %v4012
      %v4025 = vmul.f32 %v3991, %v4012
      %v4026 = vmul.f32 %v3992, %v4012
      %v4027 = vmul.f32 %v3993, %v4012
      %v4028 = vmul.f32 %v3994, %v4012
      %v4029 = vmul.f32 %v3995, %v4012
      %v4030 = vmul.f32 %v3996, %v4012
      %v4031 = vmul.f32 %v3997, %v4012
      %v4032 = vmul.f32 %v3998, %v4012
      %v4033 = vmul.f32 %v3999, %v4012
      %v4034 = vmul.f32 %v4000, %v4012
      %v4035 = vmul.f32 %v4001, %v4012
      %v4036 = vmul.f32 %v4002, %v4012
      %v4037 = vmul.f32 %v4003, %v4012
      %v4038 = vmul.f32 %v4004, %v4012
      %v4039 = vmul.f32 %v4005, %v4012
      %v4040 = vmul.f32 %v4006, %v4012
      %v4041 = vmul.f32 %v4007, %v4012
      %v4042 = vmul.f32 %v4008, %v4012
      %v4043 = vmul.f32 %v4009, %v4012
      %v4044 = vmul.f32 %v4010, %v4012
      %v4045 = vlaneseq
      %v4046 = vshrl.u32 %v4045, 7
      %v4047 = vsub.s32 0, %v4046
      %v4048 = vrot.slane %v3978, %v4047
      %v4049 = vmul.f32 %v4013, %v4048
      %v4050 = vmul.f32 %v4014, %v4048
      %v4051 = vmul.f32 %v4015, %v4048
      %v4052 = vmul.f32 %v4016, %v4048
      %v4053 = vmul.f32 %v4017, %v4048
      %v4054 = vmul.f32 %v4018, %v4048
      %v4055 = vmul.f32 %v4019, %v4048
      %v4056 = vmul.f32 %v4020, %v4048
      %v4057 = vmul.f32 %v4021, %v4048
      %v4058 = vmul.f32 %v4022, %v4048
      %v4059 = vmul.f32 %v4023, %v4048
      %v4060 = vmul.f32 %v4024, %v4048
      %v4061 = vmul.f32 %v4025, %v4048
      %v4062 = vmul.f32 %v4026, %v4048
      %v4063 = vmul.f32 %v4027, %v4048
      %v4064 = vmul.f32 %v4028, %v4048
      %v4065 = vmul.f32 %v4029, %v4048
      %v4066 = vmul.f32 %v4030, %v4048
      %v4067 = vmul.f32 %v4031, %v4048
      %v4068 = vmul.f32 %v4032, %v4048
      %v4069 = vmul.f32 %v4033, %v4048
      %v4070 = vmul.f32 %v4034, %v4048
      %v4071 = vmul.f32 %v4035, %v4048
      %v4072 = vmul.f32 %v4036, %v4048
      %v4073 = vmul.f32 %v4037, %v4048
      %v4074 = vmul.f32 %v4038, %v4048
      %v4075 = vmul.f32 %v4039, %v4048
      %v4076 = vmul.f32 %v4040, %v4048
      %v4077 = vmul.f32 %v4041, %v4048
      %v4078 = vmul.f32 %v4042, %v4048
      %v4079 = vmul.f32 %v4043, %v4048
      %v4080 = vmul.f32 %v4044, %v4048
      %v4081 = vlaneseq
      %v4082 = vshrl.u32 %v4081, 7
      %v4083 = vsub.s32 1, %v4082
      %v4084 = vrot.slane %v3978, %v4083
      %v4085 = vadd.f32 %v4049, %v4084
      %v4086 = vadd.f32 %v4050, %v4084
      %v4087 = vadd.f32 %v4051, %v4084
      %v4088 = vadd.f32 %v4052, %v4084
      %v4089 = vadd.f32 %v4053, %v4084
      %v4090 = vadd.f32 %v4054, %v4084
      %v4091 = vadd.f32 %v4055, %v4084
      %v4092 = vadd.f32 %v4056, %v4084
      %v4093 = vadd.f32 %v4057, %v4084
      %v4094 = vadd.f32 %v4058, %v4084
      %v4095 = vadd.f32 %v4059, %v4084
      %v4096 = vadd.f32 %v4060, %v4084
      %v4097 = vadd.f32 %v4061, %v4084
      %v4098 = vadd.f32 %v4062, %v4084
      %v4099 = vadd.f32 %v4063, %v4084
      %v4100 = vadd.f32 %v4064, %v4084
      %v4101 = vadd.f32 %v4065, %v4084
      %v4102 = vadd.f32 %v4066, %v4084
      %v4103 = vadd.f32 %v4067, %v4084
      %v4104 = vadd.f32 %v4068, %v4084
      %v4105 = vadd.f32 %v4069, %v4084
      %v4106 = vadd.f32 %v4070, %v4084
      %v4107 = vadd.f32 %v4071, %v4084
      %v4108 = vadd.f32 %v4072, %v4084
      %v4109 = vadd.f32 %v4073, %v4084
      %v4110 = vadd.f32 %v4074, %v4084
      %v4111 = vadd.f32 %v4075, %v4084
      %v4112 = vadd.f32 %v4076, %v4084
      %v4113 = vadd.f32 %v4077, %v4084
      %v4114 = vadd.f32 %v4078, %v4084
      %v4115 = vadd.f32 %v4079, %v4084
      %v4116 = vadd.f32 %v4080, %v4084
      %vm4117 = vcmp.ge.f32.partialorder %v4085, 0.0
      %vm4118 = vcmp.ge.f32.partialorder %v4086, 0.0
      %vm4119 = vcmp.ge.f32.partialorder %v4087, 0.0
      %vm4120 = vcmp.ge.f32.partialorder %v4088, 0.0
      %vm4121 = vcmp.ge.f32.partialorder %v4089, 0.0
      %vm4122 = vcmp.ge.f32.partialorder %v4090, 0.0
      %vm4123 = vcmp.ge.f32.partialorder %v4091, 0.0
      %vm4124 = vcmp.ge.f32.partialorder %v4092, 0.0
      %vm4125 = vcmp.ge.f32.partialorder %v4093, 0.0
      %vm4126 = vcmp.ge.f32.partialorder %v4094, 0.0
      %vm4127 = vcmp.ge.f32.partialorder %v4095, 0.0
      %vm4128 = vcmp.ge.f32.partialorder %v4096, 0.0
      %vm4129 = vcmp.ge.f32.partialorder %v4097, 0.0
      %vm4130 = vcmp.ge.f32.partialorder %v4098, 0.0
      %vm4131 = vcmp.ge.f32.partialorder %v4099, 0.0
      %vm4132 = vcmp.ge.f32.partialorder %v4100, 0.0
      %vm4133 = vcmp.ge.f32.partialorder %v4101, 0.0
      %vm4134 = vcmp.ge.f32.partialorder %v4102, 0.0
      %vm4135 = vcmp.ge.f32.partialorder %v4103, 0.0
      %vm4136 = vcmp.ge.f32.partialorder %v4104, 0.0
      %vm4137 = vcmp.ge.f32.partialorder %v4105, 0.0
      %vm4138 = vcmp.ge.f32.partialorder %v4106, 0.0
      %vm4139 = vcmp.ge.f32.partialorder %v4107, 0.0
      %vm4140 = vcmp.ge.f32.partialorder %v4108, 0.0
      %vm4141 = vcmp.ge.f32.partialorder %v4109, 0.0
      %vm4142 = vcmp.ge.f32.partialorder %v4110, 0.0
      %vm4143 = vcmp.ge.f32.partialorder %v4111, 0.0
      %vm4144 = vcmp.ge.f32.partialorder %v4112, 0.0
      %vm4145 = vcmp.ge.f32.partialorder %v4113, 0.0
      %vm4146 = vcmp.ge.f32.partialorder %v4114, 0.0
      %vm4147 = vcmp.ge.f32.partialorder %v4115, 0.0
      %vm4148 = vcmp.ge.f32.partialorder %v4116, 0.0
      %v4149 = vlaneseq
      %v4150 = vshrl.u32 %v4149, 7
      %v4151 = vsub.s32 2, %v4150
      %v4152 = vrot.slane %v3978, %v4151
      %v4153 = vmul.f32 %v4152, %v4085
      %v4154 = vmul.f32 %v4152, %v4086
      %v4155 = vmul.f32 %v4152, %v4087
      %v4156 = vmul.f32 %v4152, %v4088
      %v4157 = vmul.f32 %v4152, %v4089
      %v4158 = vmul.f32 %v4152, %v4090
      %v4159 = vmul.f32 %v4152, %v4091
      %v4160 = vmul.f32 %v4152, %v4092
      %v4161 = vmul.f32 %v4152, %v4093
      %v4162 = vmul.f32 %v4152, %v4094
      %v4163 = vmul.f32 %v4152, %v4095
      %v4164 = vmul.f32 %v4152, %v4096
      %v4165 = vmul.f32 %v4152, %v4097
      %v4166 = vmul.f32 %v4152, %v4098
      %v4167 = vmul.f32 %v4152, %v4099
      %v4168 = vmul.f32 %v4152, %v4100
      %v4169 = vmul.f32 %v4152, %v4101
      %v4170 = vmul.f32 %v4152, %v4102
      %v4171 = vmul.f32 %v4152, %v4103
      %v4172 = vmul.f32 %v4152, %v4104
      %v4173 = vmul.f32 %v4152, %v4105
      %v4174 = vmul.f32 %v4152, %v4106
      %v4175 = vmul.f32 %v4152, %v4107
      %v4176 = vmul.f32 %v4152, %v4108
      %v4177 = vmul.f32 %v4152, %v4109
      %v4178 = vmul.f32 %v4152, %v4110
      %v4179 = vmul.f32 %v4152, %v4111
      %v4180 = vmul.f32 %v4152, %v4112
      %v4181 = vmul.f32 %v4152, %v4113
      %v4182 = vmul.f32 %v4152, %v4114
      %v4183 = vmul.f32 %v4152, %v4115
      %v4184 = vmul.f32 %v4152, %v4116
      %v4185 = vsel %vm4117, %v4085, %v4153
      %v4186 = vsel %vm4118, %v4086, %v4154
      %v4187 = vsel %vm4119, %v4087, %v4155
      %v4188 = vsel %vm4120, %v4088, %v4156
      %v4189 = vsel %vm4121, %v4089, %v4157
      %v4190 = vsel %vm4122, %v4090, %v4158
      %v4191 = vsel %vm4123, %v4091, %v4159
      %v4192 = vsel %vm4124, %v4092, %v4160
      %v4193 = vsel %vm4125, %v4093, %v4161
      %v4194 = vsel %vm4126, %v4094, %v4162
      %v4195 = vsel %vm4127, %v4095, %v4163
      %v4196 = vsel %vm4128, %v4096, %v4164
      %v4197 = vsel %vm4129, %v4097, %v4165
      %v4198 = vsel %vm4130, %v4098, %v4166
      %v4199 = vsel %vm4131, %v4099, %v4167
      %v4200 = vsel %vm4132, %v4100, %v4168
      %v4201 = vsel %vm4133, %v4101, %v4169
      %v4202 = vsel %vm4134, %v4102, %v4170
      %v4203 = vsel %vm4135, %v4103, %v4171
      %v4204 = vsel %vm4136, %v4104, %v4172
      %v4205 = vsel %vm4137, %v4105, %v4173
      %v4206 = vsel %vm4138, %v4106, %v4174
      %v4207 = vsel %vm4139, %v4107, %v4175
      %v4208 = vsel %vm4140, %v4108, %v4176
      %v4209 = vsel %vm4141, %v4109, %v4177
      %v4210 = vsel %vm4142, %v4110, %v4178
      %v4211 = vsel %vm4143, %v4111, %v4179
      %v4212 = vsel %vm4144, %v4112, %v4180
      %v4213 = vsel %vm4145, %v4113, %v4181
      %v4214 = vsel %vm4146, %v4114, %v4182
      %v4215 = vsel %vm4147, %v4115, %v4183
      %v4216 = vsel %vm4148, %v4116, %v4184
      %4249 = vrot.lane.b32.xlu0 %v4185, 4
      %v4250 = vpop.permute.xlu0 %4249
      %4251 = vrot.lane.b32.xlu0 %v4186, 4
      %v4252 = vpop.permute.xlu0 %4251
      %4253 = vrot.lane.b32.xlu0 %v4187, 4
      %v4254 = vpop.permute.xlu0 %4253
      %4255 = vrot.lane.b32.xlu0 %v4188, 4
      %v4256 = vpop.permute.xlu0 %4255
      %4257 = vrot.lane.b32.xlu0 %v4189, 4
      %v4258 = vpop.permute.xlu0 %4257
      %4259 = vrot.lane.b32.xlu0 %v4190, 4
      %v4260 = vpop.permute.xlu0 %4259
      %4261 = vrot.lane.b32.xlu0 %v4191, 4
      %v4262 = vpop.permute.xlu0 %4261
      %4263 = vrot.lane.b32.xlu0 %v4192, 4
      %v4264 = vpop.permute.xlu0 %4263
      %4265 = vrot.lane.b32.xlu0 %v4193, 4
      %v4266 = vpop.permute.xlu0 %4265
      %4267 = vrot.lane.b32.xlu0 %v4194, 4
      %v4268 = vpop.permute.xlu0 %4267
      %4269 = vrot.lane.b32.xlu0 %v4195, 4
      %v4270 = vpop.permute.xlu0 %4269
      %4271 = vrot.lane.b32.xlu0 %v4196, 4
      %v4272 = vpop.permute.xlu0 %4271
      %4273 = vrot.lane.b32.xlu0 %v4197, 4
      %v4274 = vpop.permute.xlu0 %4273
      %4275 = vrot.lane.b32.xlu0 %v4198, 4
      %v4276 = vpop.permute.xlu0 %4275
      %4277 = vrot.lane.b32.xlu0 %v4199, 4
      %v4278 = vpop.permute.xlu0 %4277
      %4279 = vrot.lane.b32.xlu0 %v4200, 4
      %v4280 = vpop.permute.xlu0 %4279
      %4281 = vrot.lane.b32.xlu0 %v4201, 4
      %v4282 = vpop.permute.xlu0 %4281
      %4283 = vrot.lane.b32.xlu0 %v4202, 4
      %v4284 = vpop.permute.xlu0 %4283
      %4285 = vrot.lane.b32.xlu0 %v4203, 4
      %v4286 = vpop.permute.xlu0 %4285
      %4287 = vrot.lane.b32.xlu0 %v4204, 4
      %v4288 = vpop.permute.xlu0 %4287
      %4289 = vrot.lane.b32.xlu0 %v4205, 4
      %v4290 = vpop.permute.xlu0 %4289
      %4291 = vrot.lane.b32.xlu0 %v4206, 4
      %v4292 = vpop.permute.xlu0 %4291
      %4293 = vrot.lane.b32.xlu0 %v4207, 4
      %v4294 = vpop.permute.xlu0 %4293
      %4295 = vrot.lane.b32.xlu0 %v4208, 4
      %v4296 = vpop.permute.xlu0 %4295
      %4297 = vrot.lane.b32.xlu0 %v4209, 4
      %v4298 = vpop.permute.xlu0 %4297
      %4299 = vrot.lane.b32.xlu0 %v4210, 4
      %v4300 = vpop.permute.xlu0 %4299
      %4301 = vrot.lane.b32.xlu0 %v4211, 4
      %v4302 = vpop.permute.xlu0 %4301
      %4303 = vrot.lane.b32.xlu0 %v4212, 4
      %v4304 = vpop.permute.xlu0 %4303
      %4305 = vrot.lane.b32.xlu0 %v4213, 4
      %v4306 = vpop.permute.xlu0 %4305
      %4307 = vrot.lane.b32.xlu0 %v4214, 4
      %v4308 = vpop.permute.xlu0 %4307
      %4309 = vrot.lane.b32.xlu0 %v4215, 4
      %v4310 = vpop.permute.xlu0 %4309
      %4311 = vrot.lane.b32.xlu0 %v4216, 4
      %v4312 = vpop.permute.xlu0 %4311
      %vm4345 = vcmask 64544
      %4346 = vst.msk [vmem:[%s405 + $0x1] sm:$0xff] %vm4345, %v4250
      %4347 = vst.msk [vmem:[%s405 + $0x9] sm:$0xff] %vm4345, %v4252
      %4348 = vst.msk [vmem:[%s405 + $0x19] sm:$0xff] %vm4345, %v4254
      %4349 = vst.msk [vmem:[%s405 + $0x21] sm:$0xff] %vm4345, %v4256
      %4350 = vst.msk [vmem:[%s405 + $0x31] sm:$0xff] %vm4345, %v4258
      %4351 = vst.msk [vmem:[%s405 + $0x39] sm:$0xff] %vm4345, %v4260
      %4352 = vst.msk [vmem:[%s405 + $0x49] sm:$0xff] %vm4345, %v4262
      %4353 = vst.msk [vmem:[%s405 + $0x51] sm:$0xff] %vm4345, %v4264
      %4354 = vst.msk [vmem:[%s405 + $0x61] sm:$0xff] %vm4345, %v4266
      %4355 = vst.msk [vmem:[%s405 + $0x69] sm:$0xff] %vm4345, %v4268
      %4356 = vst.msk [vmem:[%s405 + $0x79] sm:$0xff] %vm4345, %v4270
      %4357 = vst.msk [vmem:[%s405 + $0x81] sm:$0xff] %vm4345, %v4272
      %4358 = vst.msk [vmem:[%s405 + $0x91] sm:$0xff] %vm4345, %v4274
      %4359 = vst.msk [vmem:[%s405 + $0x99] sm:$0xff] %vm4345, %v4276
      %4360 = vst.msk [vmem:[%s405 + $0xa9] sm:$0xff] %vm4345, %v4278
      %4361 = vst.msk [vmem:[%s405 + $0xb1] sm:$0xff] %vm4345, %v4280
      %4362 = vst.msk [vmem:[%s405 + $0xc1] sm:$0xff] %vm4345, %v4282
      %4363 = vst.msk [vmem:[%s405 + $0xc9] sm:$0xff] %vm4345, %v4284
      %4364 = vst.msk [vmem:[%s405 + $0xd9] sm:$0xff] %vm4345, %v4286
      %4365 = vst.msk [vmem:[%s405 + $0xe1] sm:$0xff] %vm4345, %v4288
      %4366 = vst.msk [vmem:[%s405 + $0xf1] sm:$0xff] %vm4345, %v4290
      %4367 = vst.msk [vmem:[%s405 + $0xf9] sm:$0xff] %vm4345, %v4292
      %4368 = vst.msk [vmem:[%s405 + $0x109] sm:$0xff] %vm4345, %v4294
      %4369 = vst.msk [vmem:[%s405 + $0x111] sm:$0xff] %vm4345, %v4296
      %4370 = vst.msk [vmem:[%s405 + $0x121] sm:$0xff] %vm4345, %v4298
      %4371 = vst.msk [vmem:[%s405 + $0x129] sm:$0xff] %vm4345, %v4300
      %4372 = vst.msk [vmem:[%s405 + $0x139] sm:$0xff] %vm4345, %v4302
      %4373 = vst.msk [vmem:[%s405 + $0x141] sm:$0xff] %vm4345, %v4304
      %4374 = vst.msk [vmem:[%s405 + $0x151] sm:$0xff] %vm4345, %v4306
      %4375 = vst.msk [vmem:[%s405 + $0x159] sm:$0xff] %vm4345, %v4308
      %4376 = vst.msk [vmem:[%s405 + $0x169] sm:$0xff] %vm4345, %v4310
      %4377 = vst.msk [vmem:[%s405 + $0x171] sm:$0xff] %vm4345, %v4312
      %s4378 = scalar_lea.vmem [#allocation2], 96
      %v4379 = vld [vmem:[%s4378] sm:$0xff]
      %v4380 = vld [vmem:[%s4378 + $0x8] sm:$0xff]
      %v4381 = vld [vmem:[%s4378 + $0x18] sm:$0xff]
      %v4382 = vld [vmem:[%s4378 + $0x20] sm:$0xff]
      %v4383 = vld [vmem:[%s4378 + $0x30] sm:$0xff]
      %v4384 = vld [vmem:[%s4378 + $0x38] sm:$0xff]
      %v4385 = vld [vmem:[%s4378 + $0x48] sm:$0xff]
      %v4386 = vld [vmem:[%s4378 + $0x50] sm:$0xff]
      %v4387 = vld [vmem:[%s4378 + $0x60] sm:$0xff]
      %v4388 = vld [vmem:[%s4378 + $0x68] sm:$0xff]
      %v4389 = vld [vmem:[%s4378 + $0x78] sm:$0xff]
      %v4390 = vld [vmem:[%s4378 + $0x80] sm:$0xff]
      %v4391 = vld [vmem:[%s4378 + $0x90] sm:$0xff]
      %v4392 = vld [vmem:[%s4378 + $0x98] sm:$0xff]
      %v4393 = vld [vmem:[%s4378 + $0xa8] sm:$0xff]
      %v4394 = vld [vmem:[%s4378 + $0xb0] sm:$0xff]
      %v4395 = vld [vmem:[%s4378 + $0xc0] sm:$0xff]
      %v4396 = vld [vmem:[%s4378 + $0xc8] sm:$0xff]
      %v4397 = vld [vmem:[%s4378 + $0xd8] sm:$0xff]
      %v4398 = vld [vmem:[%s4378 + $0xe0] sm:$0xff]
      %v4399 = vld [vmem:[%s4378 + $0xf0] sm:$0xff]
      %v4400 = vld [vmem:[%s4378 + $0xf8] sm:$0xff]
      %v4401 = vld [vmem:[%s4378 + $0x108] sm:$0xff]
      %v4402 = vld [vmem:[%s4378 + $0x110] sm:$0xff]
      %v4403 = vld [vmem:[%s4378 + $0x120] sm:$0xff]
      %v4404 = vld [vmem:[%s4378 + $0x128] sm:$0xff]
      %v4405 = vld [vmem:[%s4378 + $0x138] sm:$0xff]
      %v4406 = vld [vmem:[%s4378 + $0x140] sm:$0xff]
      %v4407 = vld [vmem:[%s4378 + $0x150] sm:$0xff]
      %v4408 = vld [vmem:[%s4378 + $0x158] sm:$0xff]
      %v4409 = vld [vmem:[%s4378 + $0x168] sm:$0xff]
      %v4410 = vld [vmem:[%s4378 + $0x170] sm:$0xff]
      %4411 = vst.msk [vmem:[#allocation3] sm:$0xff] %vm171, %v4379
      %4412 = vst.msk [vmem:[#allocation3 + $0x8] sm:$0xff] %vm171, %v4380
      %4413 = vst.msk [vmem:[#allocation3 + $0x10] sm:$0xff] %vm171, %v4381
      %4414 = vst.msk [vmem:[#allocation3 + $0x18] sm:$0xff] %vm171, %v4382
      %4415 = vst.msk [vmem:[#allocation3 + $0x20] sm:$0xff] %vm171, %v4383
      %4416 = vst.msk [vmem:[#allocation3 + $0x28] sm:$0xff] %vm171, %v4384
      %4417 = vst.msk [vmem:[#allocation3 + $0x30] sm:$0xff] %vm171, %v4385
      %4418 = vst.msk [vmem:[#allocation3 + $0x38] sm:$0xff] %vm171, %v4386
      %4419 = vst.msk [vmem:[#allocation3 + $0x40] sm:$0xff] %vm171, %v4387
      %4420 = vst.msk [vmem:[#allocation3 + $0x48] sm:$0xff] %vm171, %v4388
      %4421 = vst.msk [vmem:[#allocation3 + $0x50] sm:$0xff] %vm171, %v4389
      %4422 = vst.msk [vmem:[#allocation3 + $0x58] sm:$0xff] %vm171, %v4390
      %4423 = vst.msk [vmem:[#allocation3 + $0x60] sm:$0xff] %vm171, %v4391
      %4424 = vst.msk [vmem:[#allocation3 + $0x68] sm:$0xff] %vm171, %v4392
      %4425 = vst.msk [vmem:[#allocation3 + $0x70] sm:$0xff] %vm171, %v4393
      %4426 = vst.msk [vmem:[#allocation3 + $0x78] sm:$0xff] %vm171, %v4394
      %4427 = vst.msk [vmem:[#allocation3 + $0x80] sm:$0xff] %vm171, %v4395
      %4428 = vst.msk [vmem:[#allocation3 + $0x88] sm:$0xff] %vm171, %v4396
      %4429 = vst.msk [vmem:[#allocation3 + $0x90] sm:$0xff] %vm171, %v4397
      %4430 = vst.msk [vmem:[#allocation3 + $0x98] sm:$0xff] %vm171, %v4398
      %4431 = vst.msk [vmem:[#allocation3 + $0xa0] sm:$0xff] %vm171, %v4399
      %4432 = vst.msk [vmem:[#allocation3 + $0xa8] sm:$0xff] %vm171, %v4400
      %4433 = vst.msk [vmem:[#allocation3 + $0xb0] sm:$0xff] %vm171, %v4401
      %4434 = vst.msk [vmem:[#allocation3 + $0xb8] sm:$0xff] %vm171, %v4402
      %4435 = vst.msk [vmem:[#allocation3 + $0xc0] sm:$0xff] %vm171, %v4403
      %4436 = vst.msk [vmem:[#allocation3 + $0xc8] sm:$0xff] %vm171, %v4404
      %4437 = vst.msk [vmem:[#allocation3 + $0xd0] sm:$0xff] %vm171, %v4405
      %4438 = vst.msk [vmem:[#allocation3 + $0xd8] sm:$0xff] %vm171, %v4406
      %4439 = vst.msk [vmem:[#allocation3 + $0xe0] sm:$0xff] %vm171, %v4407
      %4440 = vst.msk [vmem:[#allocation3 + $0xe8] sm:$0xff] %vm171, %v4408
      %4441 = vst.msk [vmem:[#allocation3 + $0xf0] sm:$0xff] %vm171, %v4409
      %4442 = vst.msk [vmem:[#allocation3 + $0xf8] sm:$0xff] %vm171, %v4410
      %v4443 = vld [vmem:[%s4378 + $0x1] sm:$0xff]
      %v4444 = vld [vmem:[%s4378 + $0x9] sm:$0xff]
      %v4445 = vld [vmem:[%s4378 + $0x19] sm:$0xff]
      %v4446 = vld [vmem:[%s4378 + $0x21] sm:$0xff]
      %v4447 = vld [vmem:[%s4378 + $0x31] sm:$0xff]
      %v4448 = vld [vmem:[%s4378 + $0x39] sm:$0xff]
      %v4449 = vld [vmem:[%s4378 + $0x49] sm:$0xff]
      %v4450 = vld [vmem:[%s4378 + $0x51] sm:$0xff]
      %v4451 = vld [vmem:[%s4378 + $0x61] sm:$0xff]
      %v4452 = vld [vmem:[%s4378 + $0x69] sm:$0xff]
      %v4453 = vld [vmem:[%s4378 + $0x79] sm:$0xff]
      %v4454 = vld [vmem:[%s4378 + $0x81] sm:$0xff]
      %v4455 = vld [vmem:[%s4378 + $0x91] sm:$0xff]
      %v4456 = vld [vmem:[%s4378 + $0x99] sm:$0xff]
      %v4457 = vld [vmem:[%s4378 + $0xa9] sm:$0xff]
      %v4458 = vld [vmem:[%s4378 + $0xb1] sm:$0xff]
      %v4459 = vld [vmem:[%s4378 + $0xc1] sm:$0xff]
      %v4460 = vld [vmem:[%s4378 + $0xc9] sm:$0xff]
      %v4461 = vld [vmem:[%s4378 + $0xd9] sm:$0xff]
      %v4462 = vld [vmem:[%s4378 + $0xe1] sm:$0xff]
      %v4463 = vld [vmem:[%s4378 + $0xf1] sm:$0xff]
      %v4464 = vld [vmem:[%s4378 + $0xf9] sm:$0xff]
      %v4465 = vld [vmem:[%s4378 + $0x109] sm:$0xff]
      %v4466 = vld [vmem:[%s4378 + $0x111] sm:$0xff]
      %v4467 = vld [vmem:[%s4378 + $0x121] sm:$0xff]
      %v4468 = vld [vmem:[%s4378 + $0x129] sm:$0xff]
      %v4469 = vld [vmem:[%s4378 + $0x139] sm:$0xff]
      %v4470 = vld [vmem:[%s4378 + $0x141] sm:$0xff]
      %v4471 = vld [vmem:[%s4378 + $0x151] sm:$0xff]
      %v4472 = vld [vmem:[%s4378 + $0x159] sm:$0xff]
      %v4473 = vld [vmem:[%s4378 + $0x169] sm:$0xff]
      %v4474 = vld [vmem:[%s4378 + $0x171] sm:$0xff]
      %4507 = vrot.lane.b32.xlu0 %v4443, 16
      %v4508 = vpop.permute.xlu0 %4507
      %4509 = vrot.lane.b32.xlu0 %v4444, 16
      %v4510 = vpop.permute.xlu0 %4509
      %4511 = vrot.lane.b32.xlu0 %v4445, 16
      %v4512 = vpop.permute.xlu0 %4511
      %4513 = vrot.lane.b32.xlu0 %v4446, 16
      %v4514 = vpop.permute.xlu0 %4513
      %4515 = vrot.lane.b32.xlu0 %v4447, 16
      %v4516 = vpop.permute.xlu0 %4515
      %4517 = vrot.lane.b32.xlu0 %v4448, 16
      %v4518 = vpop.permute.xlu0 %4517
      %4519 = vrot.lane.b32.xlu0 %v4449, 16
      %v4520 = vpop.permute.xlu0 %4519
      %4521 = vrot.lane.b32.xlu0 %v4450, 16
      %v4522 = vpop.permute.xlu0 %4521
      %4523 = vrot.lane.b32.xlu0 %v4451, 16
      %v4524 = vpop.permute.xlu0 %4523
      %4525 = vrot.lane.b32.xlu0 %v4452, 16
      %v4526 = vpop.permute.xlu0 %4525
      %4527 = vrot.lane.b32.xlu0 %v4453, 16
      %v4528 = vpop.permute.xlu0 %4527
      %4529 = vrot.lane.b32.xlu0 %v4454, 16
      %v4530 = vpop.permute.xlu0 %4529
      %4531 = vrot.lane.b32.xlu0 %v4455, 16
      %v4532 = vpop.permute.xlu0 %4531
      %4533 = vrot.lane.b32.xlu0 %v4456, 16
      %v4534 = vpop.permute.xlu0 %4533
      %4535 = vrot.lane.b32.xlu0 %v4457, 16
      %v4536 = vpop.permute.xlu0 %4535
      %4537 = vrot.lane.b32.xlu0 %v4458, 16
      %v4538 = vpop.permute.xlu0 %4537
      %4539 = vrot.lane.b32.xlu0 %v4459, 16
      %v4540 = vpop.permute.xlu0 %4539
      %4541 = vrot.lane.b32.xlu0 %v4460, 16
      %v4542 = vpop.permute.xlu0 %4541
      %4543 = vrot.lane.b32.xlu0 %v4461, 16
      %v4544 = vpop.permute.xlu0 %4543
      %4545 = vrot.lane.b32.xlu0 %v4462, 16
      %v4546 = vpop.permute.xlu0 %4545
      %4547 = vrot.lane.b32.xlu0 %v4463, 16
      %v4548 = vpop.permute.xlu0 %4547
      %4549 = vrot.lane.b32.xlu0 %v4464, 16
      %v4550 = vpop.permute.xlu0 %4549
      %4551 = vrot.lane.b32.xlu0 %v4465, 16
      %v4552 = vpop.permute.xlu0 %4551
      %4553 = vrot.lane.b32.xlu0 %v4466, 16
      %v4554 = vpop.permute.xlu0 %4553
      %4555 = vrot.lane.b32.xlu0 %v4467, 16
      %v4556 = vpop.permute.xlu0 %4555
      %4557 = vrot.lane.b32.xlu0 %v4468, 16
      %v4558 = vpop.permute.xlu0 %4557
      %4559 = vrot.lane.b32.xlu0 %v4469, 16
      %v4560 = vpop.permute.xlu0 %4559
      %4561 = vrot.lane.b32.xlu0 %v4470, 16
      %v4562 = vpop.permute.xlu0 %4561
      %4563 = vrot.lane.b32.xlu0 %v4471, 16
      %v4564 = vpop.permute.xlu0 %4563
      %4565 = vrot.lane.b32.xlu0 %v4472, 16
      %v4566 = vpop.permute.xlu0 %4565
      %4567 = vrot.lane.b32.xlu0 %v4473, 16
      %v4568 = vpop.permute.xlu0 %4567
      %4569 = vrot.lane.b32.xlu0 %v4474, 16
      %v4570 = vpop.permute.xlu0 %4569
      %4603 = vst.msk [vmem:[#allocation3] sm:$0xff] %vm664, %v4508
      %4604 = vst.msk [vmem:[#allocation3 + $0x8] sm:$0xff] %vm664, %v4510
      %4605 = vst.msk [vmem:[#allocation3 + $0x10] sm:$0xff] %vm664, %v4512
      %4606 = vst.msk [vmem:[#allocation3 + $0x18] sm:$0xff] %vm664, %v4514
      %4607 = vst.msk [vmem:[#allocation3 + $0x20] sm:$0xff] %vm664, %v4516
      %4608 = vst.msk [vmem:[#allocation3 + $0x28] sm:$0xff] %vm664, %v4518
      %4609 = vst.msk [vmem:[#allocation3 + $0x30] sm:$0xff] %vm664, %v4520
      %4610 = vst.msk [vmem:[#allocation3 + $0x38] sm:$0xff] %vm664, %v4522
      %4611 = vst.msk [vmem:[#allocation3 + $0x40] sm:$0xff] %vm664, %v4524
      %4612 = vst.msk [vmem:[#allocation3 + $0x48] sm:$0xff] %vm664, %v4526
      %4613 = vst.msk [vmem:[#allocation3 + $0x50] sm:$0xff] %vm664, %v4528
      %4614 = vst.msk [vmem:[#allocation3 + $0x58] sm:$0xff] %vm664, %v4530
      %4615 = vst.msk [vmem:[#allocation3 + $0x60] sm:$0xff] %vm664, %v4532
      %4616 = vst.msk [vmem:[#allocation3 + $0x68] sm:$0xff] %vm664, %v4534
      %4617 = vst.msk [vmem:[#allocation3 + $0x70] sm:$0xff] %vm664, %v4536
      %4618 = vst.msk [vmem:[#allocation3 + $0x78] sm:$0xff] %vm664, %v4538
      %4619 = vst.msk [vmem:[#allocation3 + $0x80] sm:$0xff] %vm664, %v4540
      %4620 = vst.msk [vmem:[#allocation3 + $0x88] sm:$0xff] %vm664, %v4542
      %4621 = vst.msk [vmem:[#allocation3 + $0x90] sm:$0xff] %vm664, %v4544
      %4622 = vst.msk [vmem:[#allocation3 + $0x98] sm:$0xff] %vm664, %v4546
      %4623 = vst.msk [vmem:[#allocation3 + $0xa0] sm:$0xff] %vm664, %v4548
      %4624 = vst.msk [vmem:[#allocation3 + $0xa8] sm:$0xff] %vm664, %v4550
      %4625 = vst.msk [vmem:[#allocation3 + $0xb0] sm:$0xff] %vm664, %v4552
      %4626 = vst.msk [vmem:[#allocation3 + $0xb8] sm:$0xff] %vm664, %v4554
      %4627 = vst.msk [vmem:[#allocation3 + $0xc0] sm:$0xff] %vm664, %v4556
      %4628 = vst.msk [vmem:[#allocation3 + $0xc8] sm:$0xff] %vm664, %v4558
      %4629 = vst.msk [vmem:[#allocation3 + $0xd0] sm:$0xff] %vm664, %v4560
      %4630 = vst.msk [vmem:[#allocation3 + $0xd8] sm:$0xff] %vm664, %v4562
      %4631 = vst.msk [vmem:[#allocation3 + $0xe0] sm:$0xff] %vm664, %v4564
      %4632 = vst.msk [vmem:[#allocation3 + $0xe8] sm:$0xff] %vm664, %v4566
      %4633 = vst.msk [vmem:[#allocation3 + $0xf0] sm:$0xff] %vm664, %v4568
      %4634 = vst.msk [vmem:[#allocation3 + $0xf8] sm:$0xff] %vm664, %v4570
      %v4635 = vld [vmem:[%s4378 + $0x2] sm:$0xff]
      %v4636 = vld [vmem:[%s4378 + $0xa] sm:$0xff]
      %v4637 = vld [vmem:[%s4378 + $0x1a] sm:$0xff]
      %v4638 = vld [vmem:[%s4378 + $0x22] sm:$0xff]
      %v4639 = vld [vmem:[%s4378 + $0x32] sm:$0xff]
      %v4640 = vld [vmem:[%s4378 + $0x3a] sm:$0xff]
      %v4641 = vld [vmem:[%s4378 + $0x4a] sm:$0xff]
      %v4642 = vld [vmem:[%s4378 + $0x52] sm:$0xff]
      %v4643 = vld [vmem:[%s4378 + $0x62] sm:$0xff]
      %v4644 = vld [vmem:[%s4378 + $0x6a] sm:$0xff]
      %v4645 = vld [vmem:[%s4378 + $0x7a] sm:$0xff]
      %v4646 = vld [vmem:[%s4378 + $0x82] sm:$0xff]
      %v4647 = vld [vmem:[%s4378 + $0x92] sm:$0xff]
      %v4648 = vld [vmem:[%s4378 + $0x9a] sm:$0xff]
      %v4649 = vld [vmem:[%s4378 + $0xaa] sm:$0xff]
      %v4650 = vld [vmem:[%s4378 + $0xb2] sm:$0xff]
      %v4651 = vld [vmem:[%s4378 + $0xc2] sm:$0xff]
      %v4652 = vld [vmem:[%s4378 + $0xca] sm:$0xff]
      %v4653 = vld [vmem:[%s4378 + $0xda] sm:$0xff]
      %v4654 = vld [vmem:[%s4378 + $0xe2] sm:$0xff]
      %v4655 = vld [vmem:[%s4378 + $0xf2] sm:$0xff]
      %v4656 = vld [vmem:[%s4378 + $0xfa] sm:$0xff]
      %v4657 = vld [vmem:[%s4378 + $0x10a] sm:$0xff]
      %v4658 = vld [vmem:[%s4378 + $0x112] sm:$0xff]
      %v4659 = vld [vmem:[%s4378 + $0x122] sm:$0xff]
      %v4660 = vld [vmem:[%s4378 + $0x12a] sm:$0xff]
      %v4661 = vld [vmem:[%s4378 + $0x13a] sm:$0xff]
      %v4662 = vld [vmem:[%s4378 + $0x142] sm:$0xff]
      %v4663 = vld [vmem:[%s4378 + $0x152] sm:$0xff]
      %v4664 = vld [vmem:[%s4378 + $0x15a] sm:$0xff]
      %v4665 = vld [vmem:[%s4378 + $0x16a] sm:$0xff]
      %v4666 = vld [vmem:[%s4378 + $0x172] sm:$0xff]
      %4699 = vrot.lane.b32.xlu0 %v4635, 32
      %v4700 = vpop.permute.xlu0 %4699
      %4701 = vrot.lane.b32.xlu0 %v4636, 32
      %v4702 = vpop.permute.xlu0 %4701
      %4703 = vrot.lane.b32.xlu0 %v4637, 32
      %v4704 = vpop.permute.xlu0 %4703
      %4705 = vrot.lane.b32.xlu0 %v4638, 32
      %v4706 = vpop.permute.xlu0 %4705
      %4707 = vrot.lane.b32.xlu0 %v4639, 32
      %v4708 = vpop.permute.xlu0 %4707
      %4709 = vrot.lane.b32.xlu0 %v4640, 32
      %v4710 = vpop.permute.xlu0 %4709
      %4711 = vrot.lane.b32.xlu0 %v4641, 32
      %v4712 = vpop.permute.xlu0 %4711
      %4713 = vrot.lane.b32.xlu0 %v4642, 32
      %v4714 = vpop.permute.xlu0 %4713
      %4715 = vrot.lane.b32.xlu0 %v4643, 32
      %v4716 = vpop.permute.xlu0 %4715
      %4717 = vrot.lane.b32.xlu0 %v4644, 32
      %v4718 = vpop.permute.xlu0 %4717
      %4719 = vrot.lane.b32.xlu0 %v4645, 32
      %v4720 = vpop.permute.xlu0 %4719
      %4721 = vrot.lane.b32.xlu0 %v4646, 32
      %v4722 = vpop.permute.xlu0 %4721
      %4723 = vrot.lane.b32.xlu0 %v4647, 32
      %v4724 = vpop.permute.xlu0 %4723
      %4725 = vrot.lane.b32.xlu0 %v4648, 32
      %v4726 = vpop.permute.xlu0 %4725
      %4727 = vrot.lane.b32.xlu0 %v4649, 32
      %v4728 = vpop.permute.xlu0 %4727
      %4729 = vrot.lane.b32.xlu0 %v4650, 32
      %v4730 = vpop.permute.xlu0 %4729
      %4731 = vrot.lane.b32.xlu0 %v4651, 32
      %v4732 = vpop.permute.xlu0 %4731
      %4733 = vrot.lane.b32.xlu0 %v4652, 32
      %v4734 = vpop.permute.xlu0 %4733
      %4735 = vrot.lane.b32.xlu0 %v4653, 32
      %v4736 = vpop.permute.xlu0 %4735
      %4737 = vrot.lane.b32.xlu0 %v4654, 32
      %v4738 = vpop.permute.xlu0 %4737
      %4739 = vrot.lane.b32.xlu0 %v4655, 32
      %v4740 = vpop.permute.xlu0 %4739
      %4741 = vrot.lane.b32.xlu0 %v4656, 32
      %v4742 = vpop.permute.xlu0 %4741
      %4743 = vrot.lane.b32.xlu0 %v4657, 32
      %v4744 = vpop.permute.xlu0 %4743
      %4745 = vrot.lane.b32.xlu0 %v4658, 32
      %v4746 = vpop.permute.xlu0 %4745
      %4747 = vrot.lane.b32.xlu0 %v4659, 32
      %v4748 = vpop.permute.xlu0 %4747
      %4749 = vrot.lane.b32.xlu0 %v4660, 32
      %v4750 = vpop.permute.xlu0 %4749
      %4751 = vrot.lane.b32.xlu0 %v4661, 32
      %v4752 = vpop.permute.xlu0 %4751
      %4753 = vrot.lane.b32.xlu0 %v4662, 32
      %v4754 = vpop.permute.xlu0 %4753
      %4755 = vrot.lane.b32.xlu0 %v4663, 32
      %v4756 = vpop.permute.xlu0 %4755
      %4757 = vrot.lane.b32.xlu0 %v4664, 32
      %v4758 = vpop.permute.xlu0 %4757
      %4759 = vrot.lane.b32.xlu0 %v4665, 32
      %v4760 = vpop.permute.xlu0 %4759
      %4761 = vrot.lane.b32.xlu0 %v4666, 32
      %v4762 = vpop.permute.xlu0 %4761
      %4795 = vst.msk [vmem:[#allocation3] sm:$0xff] %vm857, %v4700
      %4796 = vst.msk [vmem:[#allocation3 + $0x8] sm:$0xff] %vm857, %v4702
      %4797 = vst.msk [vmem:[#allocation3 + $0x10] sm:$0xff] %vm857, %v4704
      %4798 = vst.msk [vmem:[#allocation3 + $0x18] sm:$0xff] %vm857, %v4706
      %4799 = vst.msk [vmem:[#allocation3 + $0x20] sm:$0xff] %vm857, %v4708
      %4800 = vst.msk [vmem:[#allocation3 + $0x28] sm:$0xff] %vm857, %v4710
      %4801 = vst.msk [vmem:[#allocation3 + $0x30] sm:$0xff] %vm857, %v4712
      %4802 = vst.msk [vmem:[#allocation3 + $0x38] sm:$0xff] %vm857, %v4714
      %4803 = vst.msk [vmem:[#allocation3 + $0x40] sm:$0xff] %vm857, %v4716
      %4804 = vst.msk [vmem:[#allocation3 + $0x48] sm:$0xff] %vm857, %v4718
      %4805 = vst.msk [vmem:[#allocation3 + $0x50] sm:$0xff] %vm857, %v4720
      %4806 = vst.msk [vmem:[#allocation3 + $0x58] sm:$0xff] %vm857, %v4722
      %4807 = vst.msk [vmem:[#allocation3 + $0x60] sm:$0xff] %vm857, %v4724
      %4808 = vst.msk [vmem:[#allocation3 + $0x68] sm:$0xff] %vm857, %v4726
      %4809 = vst.msk [vmem:[#allocation3 + $0x70] sm:$0xff] %vm857, %v4728
      %4810 = vst.msk [vmem:[#allocation3 + $0x78] sm:$0xff] %vm857, %v4730
      %4811 = vst.msk [vmem:[#allocation3 + $0x80] sm:$0xff] %vm857, %v4732
      %4812 = vst.msk [vmem:[#allocation3 + $0x88] sm:$0xff] %vm857, %v4734
      %4813 = vst.msk [vmem:[#allocation3 + $0x90] sm:$0xff] %vm857, %v4736
      %4814 = vst.msk [vmem:[#allocation3 + $0x98] sm:$0xff] %vm857, %v4738
      %4815 = vst.msk [vmem:[#allocation3 + $0xa0] sm:$0xff] %vm857, %v4740
      %4816 = vst.msk [vmem:[#allocation3 + $0xa8] sm:$0xff] %vm857, %v4742
      %4817 = vst.msk [vmem:[#allocation3 + $0xb0] sm:$0xff] %vm857, %v4744
      %4818 = vst.msk [vmem:[#allocation3 + $0xb8] sm:$0xff] %vm857, %v4746
      %4819 = vst.msk [vmem:[#allocation3 + $0xc0] sm:$0xff] %vm857, %v4748
      %4820 = vst.msk [vmem:[#allocation3 + $0xc8] sm:$0xff] %vm857, %v4750
      %4821 = vst.msk [vmem:[#allocation3 + $0xd0] sm:$0xff] %vm857, %v4752
      %4822 = vst.msk [vmem:[#allocation3 + $0xd8] sm:$0xff] %vm857, %v4754
      %4823 = vst.msk [vmem:[#allocation3 + $0xe0] sm:$0xff] %vm857, %v4756
      %4824 = vst.msk [vmem:[#allocation3 + $0xe8] sm:$0xff] %vm857, %v4758
      %4825 = vst.msk [vmem:[#allocation3 + $0xf0] sm:$0xff] %vm857, %v4760
      %4826 = vst.msk [vmem:[#allocation3 + $0xf8] sm:$0xff] %vm857, %v4762
      %v4827 = vld [vmem:[%s405] sm:$0xff]
      %v4828 = vld [vmem:[%s405 + $0x8] sm:$0xff]
      %v4829 = vld [vmem:[%s405 + $0x18] sm:$0xff]
      %v4830 = vld [vmem:[%s405 + $0x20] sm:$0xff]
      %v4831 = vld [vmem:[%s405 + $0x30] sm:$0xff]
      %v4832 = vld [vmem:[%s405 + $0x38] sm:$0xff]
      %v4833 = vld [vmem:[%s405 + $0x48] sm:$0xff]
      %v4834 = vld [vmem:[%s405 + $0x50] sm:$0xff]
      %v4835 = vld [vmem:[%s405 + $0x60] sm:$0xff]
      %v4836 = vld [vmem:[%s405 + $0x68] sm:$0xff]
      %v4837 = vld [vmem:[%s405 + $0x78] sm:$0xff]
      %v4838 = vld [vmem:[%s405 + $0x80] sm:$0xff]
      %v4839 = vld [vmem:[%s405 + $0x90] sm:$0xff]
      %v4840 = vld [vmem:[%s405 + $0x98] sm:$0xff]
      %v4841 = vld [vmem:[%s405 + $0xa8] sm:$0xff]
      %v4842 = vld [vmem:[%s405 + $0xb0] sm:$0xff]
      %v4843 = vld [vmem:[%s405 + $0xc0] sm:$0xff]
      %v4844 = vld [vmem:[%s405 + $0xc8] sm:$0xff]
      %v4845 = vld [vmem:[%s405 + $0xd8] sm:$0xff]
      %v4846 = vld [vmem:[%s405 + $0xe0] sm:$0xff]
      %v4847 = vld [vmem:[%s405 + $0xf0] sm:$0xff]
      %v4848 = vld [vmem:[%s405 + $0xf8] sm:$0xff]
      %v4849 = vld [vmem:[%s405 + $0x108] sm:$0xff]
      %v4850 = vld [vmem:[%s405 + $0x110] sm:$0xff]
      %v4851 = vld [vmem:[%s405 + $0x120] sm:$0xff]
      %v4852 = vld [vmem:[%s405 + $0x128] sm:$0xff]
      %v4853 = vld [vmem:[%s405 + $0x138] sm:$0xff]
      %v4854 = vld [vmem:[%s405 + $0x140] sm:$0xff]
      %v4855 = vld [vmem:[%s405 + $0x150] sm:$0xff]
      %v4856 = vld [vmem:[%s405 + $0x158] sm:$0xff]
      %v4857 = vld [vmem:[%s405 + $0x168] sm:$0xff]
      %v4858 = vld [vmem:[%s405 + $0x170] sm:$0xff]
      %4891 = vrot.lane.b32.xlu0 %v4827, 48
      %v4892 = vpop.permute.xlu0 %4891
      %4893 = vrot.lane.b32.xlu0 %v4828, 48
      %v4894 = vpop.permute.xlu0 %4893
      %4895 = vrot.lane.b32.xlu0 %v4829, 48
      %v4896 = vpop.permute.xlu0 %4895
      %4897 = vrot.lane.b32.xlu0 %v4830, 48
      %v4898 = vpop.permute.xlu0 %4897
      %4899 = vrot.lane.b32.xlu0 %v4831, 48
      %v4900 = vpop.permute.xlu0 %4899
      %4901 = vrot.lane.b32.xlu0 %v4832, 48
      %v4902 = vpop.permute.xlu0 %4901
      %4903 = vrot.lane.b32.xlu0 %v4833, 48
      %v4904 = vpop.permute.xlu0 %4903
      %4905 = vrot.lane.b32.xlu0 %v4834, 48
      %v4906 = vpop.permute.xlu0 %4905
      %4907 = vrot.lane.b32.xlu0 %v4835, 48
      %v4908 = vpop.permute.xlu0 %4907
      %4909 = vrot.lane.b32.xlu0 %v4836, 48
      %v4910 = vpop.permute.xlu0 %4909
      %4911 = vrot.lane.b32.xlu0 %v4837, 48
      %v4912 = vpop.permute.xlu0 %4911
      %4913 = vrot.lane.b32.xlu0 %v4838, 48
      %v4914 = vpop.permute.xlu0 %4913
      %4915 = vrot.lane.b32.xlu0 %v4839, 48
      %v4916 = vpop.permute.xlu0 %4915
      %4917 = vrot.lane.b32.xlu0 %v4840, 48
      %v4918 = vpop.permute.xlu0 %4917
      %4919 = vrot.lane.b32.xlu0 %v4841, 48
      %v4920 = vpop.permute.xlu0 %4919
      %4921 = vrot.lane.b32.xlu0 %v4842, 48
      %v4922 = vpop.permute.xlu0 %4921
      %4923 = vrot.lane.b32.xlu0 %v4843, 48
      %v4924 = vpop.permute.xlu0 %4923
      %4925 = vrot.lane.b32.xlu0 %v4844, 48
      %v4926 = vpop.permute.xlu0 %4925
      %4927 = vrot.lane.b32.xlu0 %v4845, 48
      %v4928 = vpop.permute.xlu0 %4927
      %4929 = vrot.lane.b32.xlu0 %v4846, 48
      %v4930 = vpop.permute.xlu0 %4929
      %4931 = vrot.lane.b32.xlu0 %v4847, 48
      %v4932 = vpop.permute.xlu0 %4931
      %4933 = vrot.lane.b32.xlu0 %v4848, 48
      %v4934 = vpop.permute.xlu0 %4933
      %4935 = vrot.lane.b32.xlu0 %v4849, 48
      %v4936 = vpop.permute.xlu0 %4935
      %4937 = vrot.lane.b32.xlu0 %v4850, 48
      %v4938 = vpop.permute.xlu0 %4937
      %4939 = vrot.lane.b32.xlu0 %v4851, 48
      %v4940 = vpop.permute.xlu0 %4939
      %4941 = vrot.lane.b32.xlu0 %v4852, 48
      %v4942 = vpop.permute.xlu0 %4941
      %4943 = vrot.lane.b32.xlu0 %v4853, 48
      %v4944 = vpop.permute.xlu0 %4943
      %4945 = vrot.lane.b32.xlu0 %v4854, 48
      %v4946 = vpop.permute.xlu0 %4945
      %4947 = vrot.lane.b32.xlu0 %v4855, 48
      %v4948 = vpop.permute.xlu0 %4947
      %4949 = vrot.lane.b32.xlu0 %v4856, 48
      %v4950 = vpop.permute.xlu0 %4949
      %4951 = vrot.lane.b32.xlu0 %v4857, 48
      %v4952 = vpop.permute.xlu0 %4951
      %4953 = vrot.lane.b32.xlu0 %v4858, 48
      %v4954 = vpop.permute.xlu0 %4953
      %4987 = vst.msk [vmem:[#allocation3] sm:$0xff] %vm1050, %v4892
      %4988 = vst.msk [vmem:[#allocation3 + $0x8] sm:$0xff] %vm1050, %v4894
      %4989 = vst.msk [vmem:[#allocation3 + $0x10] sm:$0xff] %vm1050, %v4896
      %4990 = vst.msk [vmem:[#allocation3 + $0x18] sm:$0xff] %vm1050, %v4898
      %4991 = vst.msk [vmem:[#allocation3 + $0x20] sm:$0xff] %vm1050, %v4900
      %4992 = vst.msk [vmem:[#allocation3 + $0x28] sm:$0xff] %vm1050, %v4902
      %4993 = vst.msk [vmem:[#allocation3 + $0x30] sm:$0xff] %vm1050, %v4904
      %4994 = vst.msk [vmem:[#allocation3 + $0x38] sm:$0xff] %vm1050, %v4906
      %4995 = vst.msk [vmem:[#allocation3 + $0x40] sm:$0xff] %vm1050, %v4908
      %4996 = vst.msk [vmem:[#allocation3 + $0x48] sm:$0xff] %vm1050, %v4910
      %4997 = vst.msk [vmem:[#allocation3 + $0x50] sm:$0xff] %vm1050, %v4912
      %4998 = vst.msk [vmem:[#allocation3 + $0x58] sm:$0xff] %vm1050, %v4914
      %4999 = vst.msk [vmem:[#allocation3 + $0x60] sm:$0xff] %vm1050, %v4916
      %5000 = vst.msk [vmem:[#allocation3 + $0x68] sm:$0xff] %vm1050, %v4918
      %5001 = vst.msk [vmem:[#allocation3 + $0x70] sm:$0xff] %vm1050, %v4920
      %5002 = vst.msk [vmem:[#allocation3 + $0x78] sm:$0xff] %vm1050, %v4922
      %5003 = vst.msk [vmem:[#allocation3 + $0x80] sm:$0xff] %vm1050, %v4924
      %5004 = vst.msk [vmem:[#allocation3 + $0x88] sm:$0xff] %vm1050, %v4926
      %5005 = vst.msk [vmem:[#allocation3 + $0x90] sm:$0xff] %vm1050, %v4928
      %5006 = vst.msk [vmem:[#allocation3 + $0x98] sm:$0xff] %vm1050, %v4930
      %5007 = vst.msk [vmem:[#allocation3 + $0xa0] sm:$0xff] %vm1050, %v4932
      %5008 = vst.msk [vmem:[#allocation3 + $0xa8] sm:$0xff] %vm1050, %v4934
      %5009 = vst.msk [vmem:[#allocation3 + $0xb0] sm:$0xff] %vm1050, %v4936
      %5010 = vst.msk [vmem:[#allocation3 + $0xb8] sm:$0xff] %vm1050, %v4938
      %5011 = vst.msk [vmem:[#allocation3 + $0xc0] sm:$0xff] %vm1050, %v4940
      %5012 = vst.msk [vmem:[#allocation3 + $0xc8] sm:$0xff] %vm1050, %v4942
      %5013 = vst.msk [vmem:[#allocation3 + $0xd0] sm:$0xff] %vm1050, %v4944
      %5014 = vst.msk [vmem:[#allocation3 + $0xd8] sm:$0xff] %vm1050, %v4946
      %5015 = vst.msk [vmem:[#allocation3 + $0xe0] sm:$0xff] %vm1050, %v4948
      %5016 = vst.msk [vmem:[#allocation3 + $0xe8] sm:$0xff] %vm1050, %v4950
      %5017 = vst.msk [vmem:[#allocation3 + $0xf0] sm:$0xff] %vm1050, %v4952
      %5018 = vst.msk [vmem:[#allocation3 + $0xf8] sm:$0xff] %vm1050, %v4954
      %v5019 = vld [vmem:[%s405 + $0x1] sm:$0xff]
      %v5020 = vld [vmem:[%s405 + $0x9] sm:$0xff]
      %v5021 = vld [vmem:[%s405 + $0x19] sm:$0xff]
      %v5022 = vld [vmem:[%s405 + $0x21] sm:$0xff]
      %v5023 = vld [vmem:[%s405 + $0x31] sm:$0xff]
      %v5024 = vld [vmem:[%s405 + $0x39] sm:$0xff]
      %v5025 = vld [vmem:[%s405 + $0x49] sm:$0xff]
      %v5026 = vld [vmem:[%s405 + $0x51] sm:$0xff]
      %v5027 = vld [vmem:[%s405 + $0x61] sm:$0xff]
      %v5028 = vld [vmem:[%s405 + $0x69] sm:$0xff]
      %v5029 = vld [vmem:[%s405 + $0x79] sm:$0xff]
      %v5030 = vld [vmem:[%s405 + $0x81] sm:$0xff]
      %v5031 = vld [vmem:[%s405 + $0x91] sm:$0xff]
      %v5032 = vld [vmem:[%s405 + $0x99] sm:$0xff]
      %v5033 = vld [vmem:[%s405 + $0xa9] sm:$0xff]
      %v5034 = vld [vmem:[%s405 + $0xb1] sm:$0xff]
      %v5035 = vld [vmem:[%s405 + $0xc1] sm:$0xff]
      %v5036 = vld [vmem:[%s405 + $0xc9] sm:$0xff]
      %v5037 = vld [vmem:[%s405 + $0xd9] sm:$0xff]
      %v5038 = vld [vmem:[%s405 + $0xe1] sm:$0xff]
      %v5039 = vld [vmem:[%s405 + $0xf1] sm:$0xff]
      %v5040 = vld [vmem:[%s405 + $0xf9] sm:$0xff]
      %v5041 = vld [vmem:[%s405 + $0x109] sm:$0xff]
      %v5042 = vld [vmem:[%s405 + $0x111] sm:$0xff]
      %v5043 = vld [vmem:[%s405 + $0x121] sm:$0xff]
      %v5044 = vld [vmem:[%s405 + $0x129] sm:$0xff]
      %v5045 = vld [vmem:[%s405 + $0x139] sm:$0xff]
      %v5046 = vld [vmem:[%s405 + $0x141] sm:$0xff]
      %v5047 = vld [vmem:[%s405 + $0x151] sm:$0xff]
      %v5048 = vld [vmem:[%s405 + $0x159] sm:$0xff]
      %v5049 = vld [vmem:[%s405 + $0x169] sm:$0xff]
      %v5050 = vld [vmem:[%s405 + $0x171] sm:$0xff]
      %5083 = vrot.lane.b32.xlu0 %v5019, 64
      %v5084 = vpop.permute.xlu0 %5083
      %5085 = vrot.lane.b32.xlu0 %v5020, 64
      %v5086 = vpop.permute.xlu0 %5085
      %5087 = vrot.lane.b32.xlu0 %v5021, 64
      %v5088 = vpop.permute.xlu0 %5087
      %5089 = vrot.lane.b32.xlu0 %v5022, 64
      %v5090 = vpop.permute.xlu0 %5089
      %5091 = vrot.lane.b32.xlu0 %v5023, 64
      %v5092 = vpop.permute.xlu0 %5091
      %5093 = vrot.lane.b32.xlu0 %v5024, 64
      %v5094 = vpop.permute.xlu0 %5093
      %5095 = vrot.lane.b32.xlu0 %v5025, 64
      %v5096 = vpop.permute.xlu0 %5095
      %5097 = vrot.lane.b32.xlu0 %v5026, 64
      %v5098 = vpop.permute.xlu0 %5097
      %5099 = vrot.lane.b32.xlu0 %v5027, 64
      %v5100 = vpop.permute.xlu0 %5099
      %5101 = vrot.lane.b32.xlu0 %v5028, 64
      %v5102 = vpop.permute.xlu0 %5101
      %5103 = vrot.lane.b32.xlu0 %v5029, 64
      %v5104 = vpop.permute.xlu0 %5103
      %5105 = vrot.lane.b32.xlu0 %v5030, 64
      %v5106 = vpop.permute.xlu0 %5105
      %5107 = vrot.lane.b32.xlu0 %v5031, 64
      %v5108 = vpop.permute.xlu0 %5107
      %5109 = vrot.lane.b32.xlu0 %v5032, 64
      %v5110 = vpop.permute.xlu0 %5109
      %5111 = vrot.lane.b32.xlu0 %v5033, 64
      %v5112 = vpop.permute.xlu0 %5111
      %5113 = vrot.lane.b32.xlu0 %v5034, 64
      %v5114 = vpop.permute.xlu0 %5113
      %5115 = vrot.lane.b32.xlu0 %v5035, 64
      %v5116 = vpop.permute.xlu0 %5115
      %5117 = vrot.lane.b32.xlu0 %v5036, 64
      %v5118 = vpop.permute.xlu0 %5117
      %5119 = vrot.lane.b32.xlu0 %v5037, 64
      %v5120 = vpop.permute.xlu0 %5119
      %5121 = vrot.lane.b32.xlu0 %v5038, 64
      %v5122 = vpop.permute.xlu0 %5121
      %5123 = vrot.lane.b32.xlu0 %v5039, 64
      %v5124 = vpop.permute.xlu0 %5123
      %5125 = vrot.lane.b32.xlu0 %v5040, 64
      %v5126 = vpop.permute.xlu0 %5125
      %5127 = vrot.lane.b32.xlu0 %v5041, 64
      %v5128 = vpop.permute.xlu0 %5127
      %5129 = vrot.lane.b32.xlu0 %v5042, 64
      %v5130 = vpop.permute.xlu0 %5129
      %5131 = vrot.lane.b32.xlu0 %v5043, 64
      %v5132 = vpop.permute.xlu0 %5131
      %5133 = vrot.lane.b32.xlu0 %v5044, 64
      %v5134 = vpop.permute.xlu0 %5133
      %5135 = vrot.lane.b32.xlu0 %v5045, 64
      %v5136 = vpop.permute.xlu0 %5135
      %5137 = vrot.lane.b32.xlu0 %v5046, 64
      %v5138 = vpop.permute.xlu0 %5137
      %5139 = vrot.lane.b32.xlu0 %v5047, 64
      %v5140 = vpop.permute.xlu0 %5139
      %5141 = vrot.lane.b32.xlu0 %v5048, 64
      %v5142 = vpop.permute.xlu0 %5141
      %5143 = vrot.lane.b32.xlu0 %v5049, 64
      %v5144 = vpop.permute.xlu0 %5143
      %5145 = vrot.lane.b32.xlu0 %v5050, 64
      %v5146 = vpop.permute.xlu0 %5145
      %5179 = vst.msk [vmem:[#allocation3] sm:$0xff] %vm1243, %v5084
      %5180 = vst.msk [vmem:[#allocation3 + $0x8] sm:$0xff] %vm1243, %v5086
      %5181 = vst.msk [vmem:[#allocation3 + $0x10] sm:$0xff] %vm1243, %v5088
      %5182 = vst.msk [vmem:[#allocation3 + $0x18] sm:$0xff] %vm1243, %v5090
      %5183 = vst.msk [vmem:[#allocation3 + $0x20] sm:$0xff] %vm1243, %v5092
      %5184 = vst.msk [vmem:[#allocation3 + $0x28] sm:$0xff] %vm1243, %v5094
      %5185 = vst.msk [vmem:[#allocation3 + $0x30] sm:$0xff] %vm1243, %v5096
      %5186 = vst.msk [vmem:[#allocation3 + $0x38] sm:$0xff] %vm1243, %v5098
      %5187 = vst.msk [vmem:[#allocation3 + $0x40] sm:$0xff] %vm1243, %v5100
      %5188 = vst.msk [vmem:[#allocation3 + $0x48] sm:$0xff] %vm1243, %v5102
      %5189 = vst.msk [vmem:[#allocation3 + $0x50] sm:$0xff] %vm1243, %v5104
      %5190 = vst.msk [vmem:[#allocation3 + $0x58] sm:$0xff] %vm1243, %v5106
      %5191 = vst.msk [vmem:[#allocation3 + $0x60] sm:$0xff] %vm1243, %v5108
      %5192 = vst.msk [vmem:[#allocation3 + $0x68] sm:$0xff] %vm1243, %v5110
      %5193 = vst.msk [vmem:[#allocation3 + $0x70] sm:$0xff] %vm1243, %v5112
      %5194 = vst.msk [vmem:[#allocation3 + $0x78] sm:$0xff] %vm1243, %v5114
      %5195 = vst.msk [vmem:[#allocation3 + $0x80] sm:$0xff] %vm1243, %v5116
      %5196 = vst.msk [vmem:[#allocation3 + $0x88] sm:$0xff] %vm1243, %v5118
      %5197 = vst.msk [vmem:[#allocation3 + $0x90] sm:$0xff] %vm1243, %v5120
      %5198 = vst.msk [vmem:[#allocation3 + $0x98] sm:$0xff] %vm1243, %v5122
      %5199 = vst.msk [vmem:[#allocation3 + $0xa0] sm:$0xff] %vm1243, %v5124
      %5200 = vst.msk [vmem:[#allocation3 + $0xa8] sm:$0xff] %vm1243, %v5126
      %5201 = vst.msk [vmem:[#allocation3 + $0xb0] sm:$0xff] %vm1243, %v5128
      %5202 = vst.msk [vmem:[#allocation3 + $0xb8] sm:$0xff] %vm1243, %v5130
      %5203 = vst.msk [vmem:[#allocation3 + $0xc0] sm:$0xff] %vm1243, %v5132
      %5204 = vst.msk [vmem:[#allocation3 + $0xc8] sm:$0xff] %vm1243, %v5134
      %5205 = vst.msk [vmem:[#allocation3 + $0xd0] sm:$0xff] %vm1243, %v5136
      %5206 = vst.msk [vmem:[#allocation3 + $0xd8] sm:$0xff] %vm1243, %v5138
      %5207 = vst.msk [vmem:[#allocation3 + $0xe0] sm:$0xff] %vm1243, %v5140
      %5208 = vst.msk [vmem:[#allocation3 + $0xe8] sm:$0xff] %vm1243, %v5142
      %5209 = vst.msk [vmem:[#allocation3 + $0xf0] sm:$0xff] %vm1243, %v5144
      %5210 = vst.msk [vmem:[#allocation3 + $0xf8] sm:$0xff] %vm1243, %v5146
      %v5211 = vld [vmem:[%s405 + $0x2] sm:$0xff]
      %v5212 = vld [vmem:[%s405 + $0xa] sm:$0xff]
      %v5213 = vld [vmem:[%s405 + $0x1a] sm:$0xff]
      %v5214 = vld [vmem:[%s405 + $0x22] sm:$0xff]
      %v5215 = vld [vmem:[%s405 + $0x32] sm:$0xff]
      %v5216 = vld [vmem:[%s405 + $0x3a] sm:$0xff]
      %v5217 = vld [vmem:[%s405 + $0x4a] sm:$0xff]
      %v5218 = vld [vmem:[%s405 + $0x52] sm:$0xff]
      %v5219 = vld [vmem:[%s405 + $0x62] sm:$0xff]
      %v5220 = vld [vmem:[%s405 + $0x6a] sm:$0xff]
      %v5221 = vld [vmem:[%s405 + $0x7a] sm:$0xff]
      %v5222 = vld [vmem:[%s405 + $0x82] sm:$0xff]
      %v5223 = vld [vmem:[%s405 + $0x92] sm:$0xff]
      %v5224 = vld [vmem:[%s405 + $0x9a] sm:$0xff]
      %v5225 = vld [vmem:[%s405 + $0xaa] sm:$0xff]
      %v5226 = vld [vmem:[%s405 + $0xb2] sm:$0xff]
      %v5227 = vld [vmem:[%s405 + $0xc2] sm:$0xff]
      %v5228 = vld [vmem:[%s405 + $0xca] sm:$0xff]
      %v5229 = vld [vmem:[%s405 + $0xda] sm:$0xff]
      %v5230 = vld [vmem:[%s405 + $0xe2] sm:$0xff]
      %v5231 = vld [vmem:[%s405 + $0xf2] sm:$0xff]
      %v5232 = vld [vmem:[%s405 + $0xfa] sm:$0xff]
      %v5233 = vld [vmem:[%s405 + $0x10a] sm:$0xff]
      %v5234 = vld [vmem:[%s405 + $0x112] sm:$0xff]
      %v5235 = vld [vmem:[%s405 + $0x122] sm:$0xff]
      %v5236 = vld [vmem:[%s405 + $0x12a] sm:$0xff]
      %v5237 = vld [vmem:[%s405 + $0x13a] sm:$0xff]
      %v5238 = vld [vmem:[%s405 + $0x142] sm:$0xff]
      %v5239 = vld [vmem:[%s405 + $0x152] sm:$0xff]
      %v5240 = vld [vmem:[%s405 + $0x15a] sm:$0xff]
      %v5241 = vld [vmem:[%s405 + $0x16a] sm:$0xff]
      %v5242 = vld [vmem:[%s405 + $0x172] sm:$0xff]
      %5275 = vrot.lane.b32.xlu0 %v5211, 80
      %v5276 = vpop.permute.xlu0 %5275
      %5277 = vrot.lane.b32.xlu0 %v5212, 80
      %v5278 = vpop.permute.xlu0 %5277
      %5279 = vrot.lane.b32.xlu0 %v5213, 80
      %v5280 = vpop.permute.xlu0 %5279
      %5281 = vrot.lane.b32.xlu0 %v5214, 80
      %v5282 = vpop.permute.xlu0 %5281
      %5283 = vrot.lane.b32.xlu0 %v5215, 80
      %v5284 = vpop.permute.xlu0 %5283
      %5285 = vrot.lane.b32.xlu0 %v5216, 80
      %v5286 = vpop.permute.xlu0 %5285
      %5287 = vrot.lane.b32.xlu0 %v5217, 80
      %v5288 = vpop.permute.xlu0 %5287
      %5289 = vrot.lane.b32.xlu0 %v5218, 80
      %v5290 = vpop.permute.xlu0 %5289
      %5291 = vrot.lane.b32.xlu0 %v5219, 80
      %v5292 = vpop.permute.xlu0 %5291
      %5293 = vrot.lane.b32.xlu0 %v5220, 80
      %v5294 = vpop.permute.xlu0 %5293
      %5295 = vrot.lane.b32.xlu0 %v5221, 80
      %v5296 = vpop.permute.xlu0 %5295
      %5297 = vrot.lane.b32.xlu0 %v5222, 80
      %v5298 = vpop.permute.xlu0 %5297
      %5299 = vrot.lane.b32.xlu0 %v5223, 80
      %v5300 = vpop.permute.xlu0 %5299
      %5301 = vrot.lane.b32.xlu0 %v5224, 80
      %v5302 = vpop.permute.xlu0 %5301
      %5303 = vrot.lane.b32.xlu0 %v5225, 80
      %v5304 = vpop.permute.xlu0 %5303
      %5305 = vrot.lane.b32.xlu0 %v5226, 80
      %v5306 = vpop.permute.xlu0 %5305
      %5307 = vrot.lane.b32.xlu0 %v5227, 80
      %v5308 = vpop.permute.xlu0 %5307
      %5309 = vrot.lane.b32.xlu0 %v5228, 80
      %v5310 = vpop.permute.xlu0 %5309
      %5311 = vrot.lane.b32.xlu0 %v5229, 80
      %v5312 = vpop.permute.xlu0 %5311
      %5313 = vrot.lane.b32.xlu0 %v5230, 80
      %v5314 = vpop.permute.xlu0 %5313
      %5315 = vrot.lane.b32.xlu0 %v5231, 80
      %v5316 = vpop.permute.xlu0 %5315
      %5317 = vrot.lane.b32.xlu0 %v5232, 80
      %v5318 = vpop.permute.xlu0 %5317
      %5319 = vrot.lane.b32.xlu0 %v5233, 80
      %v5320 = vpop.permute.xlu0 %5319
      %5321 = vrot.lane.b32.xlu0 %v5234, 80
      %v5322 = vpop.permute.xlu0 %5321
      %5323 = vrot.lane.b32.xlu0 %v5235, 80
      %v5324 = vpop.permute.xlu0 %5323
      %5325 = vrot.lane.b32.xlu0 %v5236, 80
      %v5326 = vpop.permute.xlu0 %5325
      %5327 = vrot.lane.b32.xlu0 %v5237, 80
      %v5328 = vpop.permute.xlu0 %5327
      %5329 = vrot.lane.b32.xlu0 %v5238, 80
      %v5330 = vpop.permute.xlu0 %5329
      %5331 = vrot.lane.b32.xlu0 %v5239, 80
      %v5332 = vpop.permute.xlu0 %5331
      %5333 = vrot.lane.b32.xlu0 %v5240, 80
      %v5334 = vpop.permute.xlu0 %5333
      %5335 = vrot.lane.b32.xlu0 %v5241, 80
      %v5336 = vpop.permute.xlu0 %5335
      %5337 = vrot.lane.b32.xlu0 %v5242, 80
      %v5338 = vpop.permute.xlu0 %5337
      %5371 = vst.msk [vmem:[#allocation3] sm:$0xff] %vm1436, %v5276
      %5372 = vst.msk [vmem:[#allocation3 + $0x8] sm:$0xff] %vm1436, %v5278
      %5373 = vst.msk [vmem:[#allocation3 + $0x10] sm:$0xff] %vm1436, %v5280
      %5374 = vst.msk [vmem:[#allocation3 + $0x18] sm:$0xff] %vm1436, %v5282
      %5375 = vst.msk [vmem:[#allocation3 + $0x20] sm:$0xff] %vm1436, %v5284
      %5376 = vst.msk [vmem:[#allocation3 + $0x28] sm:$0xff] %vm1436, %v5286
      %5377 = vst.msk [vmem:[#allocation3 + $0x30] sm:$0xff] %vm1436, %v5288
      %5378 = vst.msk [vmem:[#allocation3 + $0x38] sm:$0xff] %vm1436, %v5290
      %5379 = vst.msk [vmem:[#allocation3 + $0x40] sm:$0xff] %vm1436, %v5292
      %5380 = vst.msk [vmem:[#allocation3 + $0x48] sm:$0xff] %vm1436, %v5294
      %5381 = vst.msk [vmem:[#allocation3 + $0x50] sm:$0xff] %vm1436, %v5296
      %5382 = vst.msk [vmem:[#allocation3 + $0x58] sm:$0xff] %vm1436, %v5298
      %5383 = vst.msk [vmem:[#allocation3 + $0x60] sm:$0xff] %vm1436, %v5300
      %5384 = vst.msk [vmem:[#allocation3 + $0x68] sm:$0xff] %vm1436, %v5302
      %5385 = vst.msk [vmem:[#allocation3 + $0x70] sm:$0xff] %vm1436, %v5304
      %5386 = vst.msk [vmem:[#allocation3 + $0x78] sm:$0xff] %vm1436, %v5306
      %5387 = vst.msk [vmem:[#allocation3 + $0x80] sm:$0xff] %vm1436, %v5308
      %5388 = vst.msk [vmem:[#allocation3 + $0x88] sm:$0xff] %vm1436, %v5310
      %5389 = vst.msk [vmem:[#allocation3 + $0x90] sm:$0xff] %vm1436, %v5312
      %5390 = vst.msk [vmem:[#allocation3 + $0x98] sm:$0xff] %vm1436, %v5314
      %5391 = vst.msk [vmem:[#allocation3 + $0xa0] sm:$0xff] %vm1436, %v5316
      %5392 = vst.msk [vmem:[#allocation3 + $0xa8] sm:$0xff] %vm1436, %v5318
      %5393 = vst.msk [vmem:[#allocation3 + $0xb0] sm:$0xff] %vm1436, %v5320
      %5394 = vst.msk [vmem:[#allocation3 + $0xb8] sm:$0xff] %vm1436, %v5322
      %5395 = vst.msk [vmem:[#allocation3 + $0xc0] sm:$0xff] %vm1436, %v5324
      %5396 = vst.msk [vmem:[#allocation3 + $0xc8] sm:$0xff] %vm1436, %v5326
      %5397 = vst.msk [vmem:[#allocation3 + $0xd0] sm:$0xff] %vm1436, %v5328
      %5398 = vst.msk [vmem:[#allocation3 + $0xd8] sm:$0xff] %vm1436, %v5330
      %5399 = vst.msk [vmem:[#allocation3 + $0xe0] sm:$0xff] %vm1436, %v5332
      %5400 = vst.msk [vmem:[#allocation3 + $0xe8] sm:$0xff] %vm1436, %v5334
      %5401 = vst.msk [vmem:[#allocation3 + $0xf0] sm:$0xff] %vm1436, %v5336
      %5402 = vst.msk [vmem:[#allocation3 + $0xf8] sm:$0xff] %vm1436, %v5338
      %v5403 = vld [vmem:[#allocation3] sm:$0xff]
      %v5404 = vld [vmem:[#allocation3 + $0x8] sm:$0xff]
      %v5405 = vld [vmem:[#allocation3 + $0x10] sm:$0xff]
      %v5406 = vld [vmem:[#allocation3 + $0x18] sm:$0xff]
      %v5407 = vld [vmem:[#allocation3 + $0x20] sm:$0xff]
      %v5408 = vld [vmem:[#allocation3 + $0x28] sm:$0xff]
      %v5409 = vld [vmem:[#allocation3 + $0x30] sm:$0xff]
      %v5410 = vld [vmem:[#allocation3 + $0x38] sm:$0xff]
      %v5411 = vld [vmem:[#allocation3 + $0x40] sm:$0xff]
      %v5412 = vld [vmem:[#allocation3 + $0x48] sm:$0xff]
      %v5413 = vld [vmem:[#allocation3 + $0x50] sm:$0xff]
      %v5414 = vld [vmem:[#allocation3 + $0x58] sm:$0xff]
      %v5415 = vld [vmem:[#allocation3 + $0x60] sm:$0xff]
      %v5416 = vld [vmem:[#allocation3 + $0x68] sm:$0xff]
      %v5417 = vld [vmem:[#allocation3 + $0x70] sm:$0xff]
      %v5418 = vld [vmem:[#allocation3 + $0x78] sm:$0xff]
      %v5419 = vld [vmem:[#allocation3 + $0x80] sm:$0xff]
      %v5420 = vld [vmem:[#allocation3 + $0x88] sm:$0xff]
      %v5421 = vld [vmem:[#allocation3 + $0x90] sm:$0xff]
      %v5422 = vld [vmem:[#allocation3 + $0x98] sm:$0xff]
      %v5423 = vld [vmem:[#allocation3 + $0xa0] sm:$0xff]
      %v5424 = vld [vmem:[#allocation3 + $0xa8] sm:$0xff]
      %v5425 = vld [vmem:[#allocation3 + $0xb0] sm:$0xff]
      %v5426 = vld [vmem:[#allocation3 + $0xb8] sm:$0xff]
      %v5427 = vld [vmem:[#allocation3 + $0xc0] sm:$0xff]
      %v5428 = vld [vmem:[#allocation3 + $0xc8] sm:$0xff]
      %v5429 = vld [vmem:[#allocation3 + $0xd0] sm:$0xff]
      %v5430 = vld [vmem:[#allocation3 + $0xd8] sm:$0xff]
      %v5431 = vld [vmem:[#allocation3 + $0xe0] sm:$0xff]
      %v5432 = vld [vmem:[#allocation3 + $0xe8] sm:$0xff]
      %v5433 = vld [vmem:[#allocation3 + $0xf0] sm:$0xff]
      %v5434 = vld [vmem:[#allocation3 + $0xf8] sm:$0xff]
      %s5435 = scalar_lea.vmem %s1, 192
      %v5436 = vld [vmem:[%s5435] sm:$0xff]
      %v5437 = vld [vmem:[%s5435 + $0x8] sm:$0xff]
      %v5438 = vld [vmem:[%s5435 + $0x10] sm:$0xff]
      %v5439 = vld [vmem:[%s5435 + $0x18] sm:$0xff]
      %v5440 = vld [vmem:[%s5435 + $0x20] sm:$0xff]
      %v5441 = vld [vmem:[%s5435 + $0x28] sm:$0xff]
      %v5442 = vld [vmem:[%s5435 + $0x30] sm:$0xff]
      %v5443 = vld [vmem:[%s5435 + $0x38] sm:$0xff]
      %v5444 = vld [vmem:[%s5435 + $0x40] sm:$0xff]
      %v5445 = vld [vmem:[%s5435 + $0x48] sm:$0xff]
      %v5446 = vld [vmem:[%s5435 + $0x50] sm:$0xff]
      %v5447 = vld [vmem:[%s5435 + $0x58] sm:$0xff]
      %v5449 = vsel %vm1513, %v5403, 0
      %v5452 = vsel %vm1513, %v5404, 0
      %v5455 = vsel %vm1513, %v5405, 0
      %v5458 = vsel %vm1513, %v5406, 0
      %v5461 = vsel %vm1513, %v5407, 0
      %v5464 = vsel %vm1513, %v5408, 0
      %v5467 = vsel %vm1513, %v5409, 0
      %v5470 = vsel %vm1513, %v5410, 0
      %v5473 = vsel %vm1513, %v5411, 0
      %v5476 = vsel %vm1513, %v5412, 0
      %v5479 = vsel %vm1513, %v5413, 0
      %v5482 = vsel %vm1513, %v5414, 0
      %v5485 = vsel %vm1513, %v5415, 0
      %v5488 = vsel %vm1513, %v5416, 0
      %v5491 = vsel %vm1513, %v5417, 0
      %v5494 = vsel %vm1513, %v5418, 0
      %v5497 = vsel %vm1513, %v5419, 0
      %v5500 = vsel %vm1513, %v5420, 0
      %v5503 = vsel %vm1513, %v5421, 0
      %v5506 = vsel %vm1513, %v5422, 0
      %v5509 = vsel %vm1513, %v5423, 0
      %v5512 = vsel %vm1513, %v5424, 0
      %v5515 = vsel %vm1513, %v5425, 0
      %v5518 = vsel %vm1513, %v5426, 0
      %v5521 = vsel %vm1513, %v5427, 0
      %v5524 = vsel %vm1513, %v5428, 0
      %v5527 = vsel %vm1513, %v5429, 0
      %v5530 = vsel %vm1513, %v5430, 0
      %v5533 = vsel %vm1513, %v5431, 0
      %v5536 = vsel %vm1513, %v5432, 0
      %v5539 = vsel %vm1513, %v5433, 0
      %v5542 = vsel %vm1513, %v5434, 0
      %5544 = vmatprep.subr.mxu0 0.0
      %5545 = vmatpush1.msra.mxu0 %v5436
      %5546 = vmatprep.subr.mxu0 0.0
      %5547 = vmatpush1.msra.mxu0 %v5437
      %5548 = vmatprep.subr.mxu0 0.0
      %5549 = vmatpush1.msra.mxu0 %v5438
      %5550 = vmatprep.subr.mxu0 0.0
      %5551 = vmatpush1.msra.mxu0 %v5439
      %5552 = vmatprep.subr.mxu0 0.0
      %5553 = vmatpush1.msra.mxu0 %v5440
      %5554 = vmatprep.subr.mxu0 0.0
      %5555 = vmatpush1.msra.mxu0 %v5441
      %5556 = vmatprep.subr.mxu0 0.0
      %5557 = vmatpush1.msra.mxu0 %v5442
      %5558 = vmatprep.subr.mxu0 0.0
      %5559 = vmatpush1.msra.mxu0 %v5443
      %5560 = vmatprep.subr.mxu0 0.0
      %5561 = vmatpush1.msra.mxu0 %v5444
      %5562 = vmatprep.subr.mxu0 0.0
      %5563 = vmatpush1.msra.mxu0 %v5445
      %5564 = vmatprep.subr.mxu0 0.0
      %5565 = vmatpush1.msra.mxu0 %v5446
      %5566 = vmatprep.subr.mxu0 0.0
      %5567 = vmatpush1.msra.mxu0 %v5447
      %5568 = vmatprep.subr.mxu0 0.0
      %5569 = vmatpush1.msra.mxu0 0.0
      %5570 = vmatprep.subr.mxu0 0.0
      %5571 = vmatpush1.msra.mxu0 0.0
      %5572 = vmatprep.subr.mxu0 0.0
      %5573 = vmatpush1.msra.mxu0 0.0
      %5574 = vmatprep.subr.mxu0 0.0
      %5575 = vmatpush1.msra.mxu0 0.0
      %5576 = vmatprep.subr.mxu0 0.0
      %5577 = vmatpush1.msra.mxu0 0.0
      %5578 = vmatprep.subr.mxu0 0.0
      %5579 = vmatpush1.msra.mxu0 0.0
      %5580 = vmatprep.subr.mxu0 0.0
      %5581 = vmatpush1.msra.mxu0 0.0
      %5582 = vmatprep.subr.mxu0 0.0
      %5583 = vmatpush1.msra.mxu0 0.0
      %5584 = vmatprep.subr.mxu0 0.0
      %5585 = vmatpush1.msra.mxu0 0.0
      %5586 = vmatprep.subr.mxu0 0.0
      %5587 = vmatpush1.msra.mxu0 0.0
      %5588 = vmatprep.subr.mxu0 0.0
      %5589 = vmatpush1.msra.mxu0 0.0
      %5590 = vmatprep.subr.mxu0 0.0
      %5591 = vmatpush1.msra.mxu0 0.0
      %5592 = vmatprep.subr.mxu0 0.0
      %5593 = vmatpush1.msra.mxu0 0.0
      %5594 = vmatprep.subr.mxu0 0.0
      %5595 = vmatpush1.msra.mxu0 0.0
      %5596 = vmatprep.subr.mxu0 0.0
      %5597 = vmatpush1.msra.mxu0 0.0
      %5598 = vmatprep.subr.mxu0 0.0
      %5599 = vmatpush1.msra.mxu0 0.0
      %5600 = vmatprep.subr.mxu0 0.0
      %5601 = vmatpush1.msra.mxu0 0.0
      %5602 = vmatprep.subr.mxu0 0.0
      %5603 = vmatpush1.msra.mxu0 0.0
      %5604 = vmatprep.subr.mxu0 0.0
      %5605 = vmatpush1.msra.mxu0 0.0
      %5606 = vmatprep.subr.mxu0 0.0
      %5607 = vmatpush1.msra.mxu0 0.0
      %5608 = vmatprep.mubr.f32.mxu0 0.0
      %5609 = vmatmul.mubr.f32.gmra.mrb[0].mxu0 %v5449
      %v5610 = vpop.f32.mrb[0].mxu0
      %v5611 = vadd.f32 0.0, %v5610
      %v5612 = vpop.f32.mrb[0].mxu0
      %5613 = vmatprep.mubr.f32.mxu0 0.0
      %5614 = vmatmul.mubr.f32.gmra.mrb[0].mxu0 %v5452
      %v5615 = vpop.f32.mrb[0].mxu0
      %v5616 = vadd.f32 0.0, %v5615
      %v5617 = vpop.f32.mrb[0].mxu0
      %5618 = vmatprep.mubr.f32.mxu0 0.0
      %5619 = vmatmul.mubr.f32.gmra.mrb[0].mxu0 %v5455
      %v5620 = vpop.f32.mrb[0].mxu0
      %v5621 = vadd.f32 0.0, %v5620
      %v5622 = vpop.f32.mrb[0].mxu0
      %5623 = vmatprep.mubr.f32.mxu0 0.0
      %5624 = vmatmul.mubr.f32.gmra.mrb[0].mxu0 %v5458
      %v5625 = vpop.f32.mrb[0].mxu0
      %v5626 = vadd.f32 0.0, %v5625
      %v5627 = vpop.f32.mrb[0].mxu0
      %5628 = vmatprep.mubr.f32.mxu0 0.0
      %5629 = vmatmul.mubr.f32.gmra.mrb[0].mxu0 %v5461
      %v5630 = vpop.f32.mrb[0].mxu0
      %v5631 = vadd.f32 0.0, %v5630
      %v5632 = vpop.f32.mrb[0].mxu0
      %5633 = vmatprep.mubr.f32.mxu0 0.0
      %5634 = vmatmul.mubr.f32.gmra.mrb[0].mxu0 %v5464
      %v5635 = vpop.f32.mrb[0].mxu0
      %v5636 = vadd.f32 0.0, %v5635
      %v5637 = vpop.f32.mrb[0].mxu0
      %5638 = vmatprep.mubr.f32.mxu0 0.0
      %5639 = vmatmul.mubr.f32.gmra.mrb[0].mxu0 %v5467
      %v5640 = vpop.f32.mrb[0].mxu0
      %v5641 = vadd.f32 0.0, %v5640
      %v5642 = vpop.f32.mrb[0].mxu0
      %5643 = vmatprep.mubr.f32.mxu0 0.0
      %5644 = vmatmul.mubr.f32.gmra.mrb[0].mxu0 %v5470
      %v5645 = vpop.f32.mrb[0].mxu0
      %v5646 = vadd.f32 0.0, %v5645
      %v5647 = vpop.f32.mrb[0].mxu0
      %5648 = vmatprep.mubr.f32.mxu0 0.0
      %5649 = vmatmul.mubr.f32.gmra.mrb[0].mxu0 %v5473
      %v5650 = vpop.f32.mrb[0].mxu0
      %v5651 = vadd.f32 0.0, %v5650
      %v5652 = vpop.f32.mrb[0].mxu0
      %5653 = vmatprep.mubr.f32.mxu0 0.0
      %5654 = vmatmul.mubr.f32.gmra.mrb[0].mxu0 %v5476
      %v5655 = vpop.f32.mrb[0].mxu0
      %v5656 = vadd.f32 0.0, %v5655
      %v5657 = vpop.f32.mrb[0].mxu0
      %5658 = vmatprep.mubr.f32.mxu0 0.0
      %5659 = vmatmul.mubr.f32.gmra.mrb[0].mxu0 %v5479
      %v5660 = vpop.f32.mrb[0].mxu0
      %v5661 = vadd.f32 0.0, %v5660
      %v5662 = vpop.f32.mrb[0].mxu0
      %5663 = vmatprep.mubr.f32.mxu0 0.0
      %5664 = vmatmul.mubr.f32.gmra.mrb[0].mxu0 %v5482
      %v5665 = vpop.f32.mrb[0].mxu0
      %v5666 = vadd.f32 0.0, %v5665
      %v5667 = vpop.f32.mrb[0].mxu0
      %5668 = vmatprep.mubr.f32.mxu0 0.0
      %5669 = vmatmul.mubr.f32.gmra.mrb[0].mxu0 %v5485
      %v5670 = vpop.f32.mrb[0].mxu0
      %v5671 = vadd.f32 0.0, %v5670
      %v5672 = vpop.f32.mrb[0].mxu0
      %5673 = vmatprep.mubr.f32.mxu0 0.0
      %5674 = vmatmul.mubr.f32.gmra.mrb[0].mxu0 %v5488
      %v5675 = vpop.f32.mrb[0].mxu0
      %v5676 = vadd.f32 0.0, %v5675
      %v5677 = vpop.f32.mrb[0].mxu0
      %5678 = vmatprep.mubr.f32.mxu0 0.0
      %5679 = vmatmul.mubr.f32.gmra.mrb[0].mxu0 %v5491
      %v5680 = vpop.f32.mrb[0].mxu0
      %v5681 = vadd.f32 0.0, %v5680
      %v5682 = vpop.f32.mrb[0].mxu0
      %5683 = vmatprep.mubr.f32.mxu0 0.0
      %5684 = vmatmul.mubr.f32.gmra.mrb[0].mxu0 %v5494
      %v5685 = vpop.f32.mrb[0].mxu0
      %v5686 = vadd.f32 0.0, %v5685
      %v5687 = vpop.f32.mrb[0].mxu0
      %5688 = vmatprep.mubr.f32.mxu0 0.0
      %5689 = vmatmul.mubr.f32.gmra.mrb[0].mxu0 %v5497
      %v5690 = vpop.f32.mrb[0].mxu0
      %v5691 = vadd.f32 0.0, %v5690
      %v5692 = vpop.f32.mrb[0].mxu0
      %5693 = vmatprep.mubr.f32.mxu0 0.0
      %5694 = vmatmul.mubr.f32.gmra.mrb[0].mxu0 %v5500
      %v5695 = vpop.f32.mrb[0].mxu0
      %v5696 = vadd.f32 0.0, %v5695
      %v5697 = vpop.f32.mrb[0].mxu0
      %5698 = vmatprep.mubr.f32.mxu0 0.0
      %5699 = vmatmul.mubr.f32.gmra.mrb[0].mxu0 %v5503
      %v5700 = vpop.f32.mrb[0].mxu0
      %v5701 = vadd.f32 0.0, %v5700
      %v5702 = vpop.f32.mrb[0].mxu0
      %5703 = vmatprep.mubr.f32.mxu0 0.0
      %5704 = vmatmul.mubr.f32.gmra.mrb[0].mxu0 %v5506
      %v5705 = vpop.f32.mrb[0].mxu0
      %v5706 = vadd.f32 0.0, %v5705
      %v5707 = vpop.f32.mrb[0].mxu0
      %5708 = vmatprep.mubr.f32.mxu0 0.0
      %5709 = vmatmul.mubr.f32.gmra.mrb[0].mxu0 %v5509
      %v5710 = vpop.f32.mrb[0].mxu0
      %v5711 = vadd.f32 0.0, %v5710
      %v5712 = vpop.f32.mrb[0].mxu0
      %5713 = vmatprep.mubr.f32.mxu0 0.0
      %5714 = vmatmul.mubr.f32.gmra.mrb[0].mxu0 %v5512
      %v5715 = vpop.f32.mrb[0].mxu0
      %v5716 = vadd.f32 0.0, %v5715
      %v5717 = vpop.f32.mrb[0].mxu0
      %5718 = vmatprep.mubr.f32.mxu0 0.0
      %5719 = vmatmul.mubr.f32.gmra.mrb[0].mxu0 %v5515
      %v5720 = vpop.f32.mrb[0].mxu0
      %v5721 = vadd.f32 0.0, %v5720
      %v5722 = vpop.f32.mrb[0].mxu0
      %5723 = vmatprep.mubr.f32.mxu0 0.0
      %5724 = vmatmul.mubr.f32.gmra.mrb[0].mxu0 %v5518
      %v5725 = vpop.f32.mrb[0].mxu0
      %v5726 = vadd.f32 0.0, %v5725
      %v5727 = vpop.f32.mrb[0].mxu0
      %5728 = vmatprep.mubr.f32.mxu0 0.0
      %5729 = vmatmul.mubr.f32.gmra.mrb[0].mxu0 %v5521
      %v5730 = vpop.f32.mrb[0].mxu0
      %v5731 = vadd.f32 0.0, %v5730
      %v5732 = vpop.f32.mrb[0].mxu0
      %5733 = vmatprep.mubr.f32.mxu0 0.0
      %5734 = vmatmul.mubr.f32.gmra.mrb[0].mxu0 %v5524
      %v5735 = vpop.f32.mrb[0].mxu0
      %v5736 = vadd.f32 0.0, %v5735
      %v5737 = vpop.f32.mrb[0].mxu0
      %5738 = vmatprep.mubr.f32.mxu0 0.0
      %5739 = vmatmul.mubr.f32.gmra.mrb[0].mxu0 %v5527
      %v5740 = vpop.f32.mrb[0].mxu0
      %v5741 = vadd.f32 0.0, %v5740
      %v5742 = vpop.f32.mrb[0].mxu0
      %5743 = vmatprep.mubr.f32.mxu0 0.0
      %5744 = vmatmul.mubr.f32.gmra.mrb[0].mxu0 %v5530
      %v5745 = vpop.f32.mrb[0].mxu0
      %v5746 = vadd.f32 0.0, %v5745
      %v5747 = vpop.f32.mrb[0].mxu0
      %5748 = vmatprep.mubr.f32.mxu0 0.0
      %5749 = vmatmul.mubr.f32.gmra.mrb[0].mxu0 %v5533
      %v5750 = vpop.f32.mrb[0].mxu0
      %v5751 = vadd.f32 0.0, %v5750
      %v5752 = vpop.f32.mrb[0].mxu0
      %5753 = vmatprep.mubr.f32.mxu0 0.0
      %5754 = vmatmul.mubr.f32.gmra.mrb[0].mxu0 %v5536
      %v5755 = vpop.f32.mrb[0].mxu0
      %v5756 = vadd.f32 0.0, %v5755
      %v5757 = vpop.f32.mrb[0].mxu0
      %5758 = vmatprep.mubr.f32.mxu0 0.0
      %5759 = vmatmul.mubr.f32.gmra.mrb[0].mxu0 %v5539
      %v5760 = vpop.f32.mrb[0].mxu0
      %v5761 = vadd.f32 0.0, %v5760
      %v5762 = vpop.f32.mrb[0].mxu0
      %5763 = vmatprep.mubr.f32.mxu0 0.0
      %5764 = vmatmul.mubr.f32.gmra.mrb[0].mxu0 %v5542
      %v5765 = vpop.f32.mrb[0].mxu0
      %v5766 = vadd.f32 0.0, %v5765
      %v5767 = vpop.f32.mrb[0].mxu0
      %5768 = vdwg.mxu0
      %v5769 = vsel %vm1835, %v5611, 0.0
      %v5770 = vsel %vm1835, %v5616, 0.0
      %v5771 = vadd.f32 %v5769, %v5770
      %v5772 = vsel %vm1835, %v5621, 0.0
      %v5773 = vadd.f32 %v5771, %v5772
      %v5774 = vsel %vm1835, %v5626, 0.0
      %v5775 = vadd.f32 %v5773, %v5774
      %v5776 = vsel %vm1835, %v5631, 0.0
      %v5777 = vadd.f32 %v5775, %v5776
      %v5778 = vsel %vm1835, %v5636, 0.0
      %v5779 = vadd.f32 %v5777, %v5778
      %v5780 = vsel %vm1835, %v5641, 0.0
      %v5781 = vadd.f32 %v5779, %v5780
      %v5782 = vsel %vm1835, %v5646, 0.0
      %v5783 = vadd.f32 %v5781, %v5782
      %v5784 = vsel %vm1835, %v5651, 0.0
      %v5785 = vadd.f32 %v5783, %v5784
      %v5786 = vsel %vm1835, %v5656, 0.0
      %v5787 = vadd.f32 %v5785, %v5786
      %v5788 = vsel %vm1835, %v5661, 0.0
      %v5789 = vadd.f32 %v5787, %v5788
      %v5790 = vsel %vm1835, %v5666, 0.0
      %v5791 = vadd.f32 %v5789, %v5790
      %v5792 = vsel %vm1835, %v5671, 0.0
      %v5793 = vadd.f32 %v5791, %v5792
      %v5794 = vsel %vm1835, %v5676, 0.0
      %v5795 = vadd.f32 %v5793, %v5794
      %v5796 = vsel %vm1835, %v5681, 0.0
      %v5797 = vadd.f32 %v5795, %v5796
      %v5798 = vsel %vm1835, %v5686, 0.0
      %v5799 = vadd.f32 %v5797, %v5798
      %v5800 = vsel %vm1835, %v5691, 0.0
      %v5801 = vadd.f32 %v5799, %v5800
      %v5802 = vsel %vm1835, %v5696, 0.0
      %v5803 = vadd.f32 %v5801, %v5802
      %v5804 = vsel %vm1835, %v5701, 0.0
      %v5805 = vadd.f32 %v5803, %v5804
      %v5806 = vsel %vm1835, %v5706, 0.0
      %v5807 = vadd.f32 %v5805, %v5806
      %v5808 = vsel %vm1835, %v5711, 0.0
      %v5809 = vadd.f32 %v5807, %v5808
      %v5810 = vsel %vm1835, %v5716, 0.0
      %v5811 = vadd.f32 %v5809, %v5810
      %v5812 = vsel %vm1835, %v5721, 0.0
      %v5813 = vadd.f32 %v5811, %v5812
      %v5814 = vsel %vm1835, %v5726, 0.0
      %v5815 = vadd.f32 %v5813, %v5814
      %v5816 = vsel %vm1835, %v5731, 0.0
      %v5817 = vadd.f32 %v5815, %v5816
      %v5818 = vsel %vm1835, %v5736, 0.0
      %v5819 = vadd.f32 %v5817, %v5818
      %v5820 = vsel %vm1835, %v5741, 0.0
      %v5821 = vadd.f32 %v5819, %v5820
      %v5822 = vsel %vm1835, %v5746, 0.0
      %v5823 = vadd.f32 %v5821, %v5822
      %v5824 = vsel %vm1835, %v5751, 0.0
      %v5825 = vadd.f32 %v5823, %v5824
      %v5826 = vsel %vm1835, %v5756, 0.0
      %v5827 = vadd.f32 %v5825, %v5826
      %v5828 = vsel %vm1835, %v5761, 0.0
      %v5829 = vadd.f32 %v5827, %v5828
      %v5830 = vsel %vm1835, %v5766, 0.0
      %v5831 = vadd.f32 %v5829, %v5830
      %v5832 = vrot.slane %v5831, 4
      %v5833 = vadd.f32 %v5831, %v5832
      %v5834 = vrot.slane %v5833, 2
      %v5835 = vadd.f32 %v5833, %v5834
      %v5836 = vrot.slane %v5835, 1
      %v5837 = vadd.f32 %v5835, %v5836
      %v5838 = vmul.f32 %v5837, 0.00390625
      %v5839 = vmul.f32 %v5611, %v5611
      %v5840 = vmul.f32 %v5616, %v5616
      %v5841 = vmul.f32 %v5621, %v5621
      %v5842 = vmul.f32 %v5626, %v5626
      %v5843 = vmul.f32 %v5631, %v5631
      %v5844 = vmul.f32 %v5636, %v5636
      %v5845 = vmul.f32 %v5641, %v5641
      %v5846 = vmul.f32 %v5646, %v5646
      %v5847 = vmul.f32 %v5651, %v5651
      %v5848 = vmul.f32 %v5656, %v5656
      %v5849 = vmul.f32 %v5661, %v5661
      %v5850 = vmul.f32 %v5666, %v5666
      %v5851 = vmul.f32 %v5671, %v5671
      %v5852 = vmul.f32 %v5676, %v5676
      %v5853 = vmul.f32 %v5681, %v5681
      %v5854 = vmul.f32 %v5686, %v5686
      %v5855 = vmul.f32 %v5691, %v5691
      %v5856 = vmul.f32 %v5696, %v5696
      %v5857 = vmul.f32 %v5701, %v5701
      %v5858 = vmul.f32 %v5706, %v5706
      %v5859 = vmul.f32 %v5711, %v5711
      %v5860 = vmul.f32 %v5716, %v5716
      %v5861 = vmul.f32 %v5721, %v5721
      %v5862 = vmul.f32 %v5726, %v5726
      %v5863 = vmul.f32 %v5731, %v5731
      %v5864 = vmul.f32 %v5736, %v5736
      %v5865 = vmul.f32 %v5741, %v5741
      %v5866 = vmul.f32 %v5746, %v5746
      %v5867 = vmul.f32 %v5751, %v5751
      %v5868 = vmul.f32 %v5756, %v5756
      %v5869 = vmul.f32 %v5761, %v5761
      %v5870 = vmul.f32 %v5766, %v5766
      %v5871 = vsel %vm1835, %v5839, 0.0
      %v5872 = vsel %vm1835, %v5840, 0.0
      %v5873 = vadd.f32 %v5871, %v5872
      %v5874 = vsel %vm1835, %v5841, 0.0
      %v5875 = vadd.f32 %v5873, %v5874
      %v5876 = vsel %vm1835, %v5842, 0.0
      %v5877 = vadd.f32 %v5875, %v5876
      %v5878 = vsel %vm1835, %v5843, 0.0
      %v5879 = vadd.f32 %v5877, %v5878
      %v5880 = vsel %vm1835, %v5844, 0.0
      %v5881 = vadd.f32 %v5879, %v5880
      %v5882 = vsel %vm1835, %v5845, 0.0
      %v5883 = vadd.f32 %v5881, %v5882
      %v5884 = vsel %vm1835, %v5846, 0.0
      %v5885 = vadd.f32 %v5883, %v5884
      %v5886 = vsel %vm1835, %v5847, 0.0
      %v5887 = vadd.f32 %v5885, %v5886
      %v5888 = vsel %vm1835, %v5848, 0.0
      %v5889 = vadd.f32 %v5887, %v5888
      %v5890 = vsel %vm1835, %v5849, 0.0
      %v5891 = vadd.f32 %v5889, %v5890
      %v5892 = vsel %vm1835, %v5850, 0.0
      %v5893 = vadd.f32 %v5891, %v5892
      %v5894 = vsel %vm1835, %v5851, 0.0
      %v5895 = vadd.f32 %v5893, %v5894
      %v5896 = vsel %vm1835, %v5852, 0.0
      %v5897 = vadd.f32 %v5895, %v5896
      %v5898 = vsel %vm1835, %v5853, 0.0
      %v5899 = vadd.f32 %v5897, %v5898
      %v5900 = vsel %vm1835, %v5854, 0.0
      %v5901 = vadd.f32 %v5899, %v5900
      %v5902 = vsel %vm1835, %v5855, 0.0
      %v5903 = vadd.f32 %v5901, %v5902
      %v5904 = vsel %vm1835, %v5856, 0.0
      %v5905 = vadd.f32 %v5903, %v5904
      %v5906 = vsel %vm1835, %v5857, 0.0
      %v5907 = vadd.f32 %v5905, %v5906
      %v5908 = vsel %vm1835, %v5858, 0.0
      %v5909 = vadd.f32 %v5907, %v5908
      %v5910 = vsel %vm1835, %v5859, 0.0
      %v5911 = vadd.f32 %v5909, %v5910
      %v5912 = vsel %vm1835, %v5860, 0.0
      %v5913 = vadd.f32 %v5911, %v5912
      %v5914 = vsel %vm1835, %v5861, 0.0
      %v5915 = vadd.f32 %v5913, %v5914
      %v5916 = vsel %vm1835, %v5862, 0.0
      %v5917 = vadd.f32 %v5915, %v5916
      %v5918 = vsel %vm1835, %v5863, 0.0
      %v5919 = vadd.f32 %v5917, %v5918
      %v5920 = vsel %vm1835, %v5864, 0.0
      %v5921 = vadd.f32 %v5919, %v5920
      %v5922 = vsel %vm1835, %v5865, 0.0
      %v5923 = vadd.f32 %v5921, %v5922
      %v5924 = vsel %vm1835, %v5866, 0.0
      %v5925 = vadd.f32 %v5923, %v5924
      %v5926 = vsel %vm1835, %v5867, 0.0
      %v5927 = vadd.f32 %v5925, %v5926
      %v5928 = vsel %vm1835, %v5868, 0.0
      %v5929 = vadd.f32 %v5927, %v5928
      %v5930 = vsel %vm1835, %v5869, 0.0
      %v5931 = vadd.f32 %v5929, %v5930
      %v5932 = vsel %vm1835, %v5870, 0.0
      %v5933 = vadd.f32 %v5931, %v5932
      %v5934 = vrot.slane %v5933, 4
      %v5935 = vadd.f32 %v5933, %v5934
      %v5936 = vrot.slane %v5935, 2
      %v5937 = vadd.f32 %v5935, %v5936
      %v5938 = vrot.slane %v5937, 1
      %v5939 = vadd.f32 %v5937, %v5938
      %v5940 = vmul.f32 %v5939, 0.00390625
      %v5941 = vmul.f32 %v5838, %v5838
      %v5942 = vsub.f32 %v5940, %v5941
      %v5943 = vmax.f32 %v5942, 0.0
      %s5944 = scalar_lea.vmem %s2, 8
      %v5945 = vld [vmem:[%s5944] sm:$0x7]
      %v5946 = vsub.f32 %v5611, %v5838
      %v5947 = vsub.f32 %v5616, %v5838
      %v5948 = vsub.f32 %v5621, %v5838
      %v5949 = vsub.f32 %v5626, %v5838
      %v5950 = vsub.f32 %v5631, %v5838
      %v5951 = vsub.f32 %v5636, %v5838
      %v5952 = vsub.f32 %v5641, %v5838
      %v5953 = vsub.f32 %v5646, %v5838
      %v5954 = vsub.f32 %v5651, %v5838
      %v5955 = vsub.f32 %v5656, %v5838
      %v5956 = vsub.f32 %v5661, %v5838
      %v5957 = vsub.f32 %v5666, %v5838
      %v5958 = vsub.f32 %v5671, %v5838
      %v5959 = vsub.f32 %v5676, %v5838
      %v5960 = vsub.f32 %v5681, %v5838
      %v5961 = vsub.f32 %v5686, %v5838
      %v5962 = vsub.f32 %v5691, %v5838
      %v5963 = vsub.f32 %v5696, %v5838
      %v5964 = vsub.f32 %v5701, %v5838
      %v5965 = vsub.f32 %v5706, %v5838
      %v5966 = vsub.f32 %v5711, %v5838
      %v5967 = vsub.f32 %v5716, %v5838
      %v5968 = vsub.f32 %v5721, %v5838
      %v5969 = vsub.f32 %v5726, %v5838
      %v5970 = vsub.f32 %v5731, %v5838
      %v5971 = vsub.f32 %v5736, %v5838
      %v5972 = vsub.f32 %v5741, %v5838
      %v5973 = vsub.f32 %v5746, %v5838
      %v5974 = vsub.f32 %v5751, %v5838
      %v5975 = vsub.f32 %v5756, %v5838
      %v5976 = vsub.f32 %v5761, %v5838
      %v5977 = vsub.f32 %v5766, %v5838
      %v5978 = vadd.f32 %v5943, 1e-05
      %v5979 = vrsqrt.pop %v5978
      %v5980 = vmul.f32 %v5946, %v5979
      %v5981 = vmul.f32 %v5947, %v5979
      %v5982 = vmul.f32 %v5948, %v5979
      %v5983 = vmul.f32 %v5949, %v5979
      %v5984 = vmul.f32 %v5950, %v5979
      %v5985 = vmul.f32 %v5951, %v5979
      %v5986 = vmul.f32 %v5952, %v5979
      %v5987 = vmul.f32 %v5953, %v5979
      %v5988 = vmul.f32 %v5954, %v5979
      %v5989 = vmul.f32 %v5955, %v5979
      %v5990 = vmul.f32 %v5956, %v5979
      %v5991 = vmul.f32 %v5957, %v5979
      %v5992 = vmul.f32 %v5958, %v5979
      %v5993 = vmul.f32 %v5959, %v5979
      %v5994 = vmul.f32 %v5960, %v5979
      %v5995 = vmul.f32 %v5961, %v5979
      %v5996 = vmul.f32 %v5962, %v5979
      %v5997 = vmul.f32 %v5963, %v5979
      %v5998 = vmul.f32 %v5964, %v5979
      %v5999 = vmul.f32 %v5965, %v5979
      %v6000 = vmul.f32 %v5966, %v5979
      %v6001 = vmul.f32 %v5967, %v5979
      %v6002 = vmul.f32 %v5968, %v5979
      %v6003 = vmul.f32 %v5969, %v5979
      %v6004 = vmul.f32 %v5970, %v5979
      %v6005 = vmul.f32 %v5971, %v5979
      %v6006 = vmul.f32 %v5972, %v5979
      %v6007 = vmul.f32 %v5973, %v5979
      %v6008 = vmul.f32 %v5974, %v5979
      %v6009 = vmul.f32 %v5975, %v5979
      %v6010 = vmul.f32 %v5976, %v5979
      %v6011 = vmul.f32 %v5977, %v5979
      %v6012 = vlaneseq
      %v6013 = vshrl.u32 %v6012, 7
      %v6014 = vsub.s32 0, %v6013
      %v6015 = vrot.slane %v5945, %v6014
      %v6016 = vmul.f32 %v5980, %v6015
      %v6017 = vmul.f32 %v5981, %v6015
      %v6018 = vmul.f32 %v5982, %v6015
      %v6019 = vmul.f32 %v5983, %v6015
      %v6020 = vmul.f32 %v5984, %v6015
      %v6021 = vmul.f32 %v5985, %v6015
      %v6022 = vmul.f32 %v5986, %v6015
      %v6023 = vmul.f32 %v5987, %v6015
      %v6024 = vmul.f32 %v5988, %v6015
      %v6025 = vmul.f32 %v5989, %v6015
      %v6026 = vmul.f32 %v5990, %v6015
      %v6027 = vmul.f32 %v5991, %v6015
      %v6028 = vmul.f32 %v5992, %v6015
      %v6029 = vmul.f32 %v5993, %v6015
      %v6030 = vmul.f32 %v5994, %v6015
      %v6031 = vmul.f32 %v5995, %v6015
      %v6032 = vmul.f32 %v5996, %v6015
      %v6033 = vmul.f32 %v5997, %v6015
      %v6034 = vmul.f32 %v5998, %v6015
      %v6035 = vmul.f32 %v5999, %v6015
      %v6036 = vmul.f32 %v6000, %v6015
      %v6037 = vmul.f32 %v6001, %v6015
      %v6038 = vmul.f32 %v6002, %v6015
      %v6039 = vmul.f32 %v6003, %v6015
      %v6040 = vmul.f32 %v6004, %v6015
      %v6041 = vmul.f32 %v6005, %v6015
      %v6042 = vmul.f32 %v6006, %v6015
      %v6043 = vmul.f32 %v6007, %v6015
      %v6044 = vmul.f32 %v6008, %v6015
      %v6045 = vmul.f32 %v6009, %v6015
      %v6046 = vmul.f32 %v6010, %v6015
      %v6047 = vmul.f32 %v6011, %v6015
      %v6048 = vlaneseq
      %v6049 = vshrl.u32 %v6048, 7
      %v6050 = vsub.s32 1, %v6049
      %v6051 = vrot.slane %v5945, %v6050
      %v6052 = vadd.f32 %v6016, %v6051
      %v6053 = vadd.f32 %v6017, %v6051
      %v6054 = vadd.f32 %v6018, %v6051
      %v6055 = vadd.f32 %v6019, %v6051
      %v6056 = vadd.f32 %v6020, %v6051
      %v6057 = vadd.f32 %v6021, %v6051
      %v6058 = vadd.f32 %v6022, %v6051
      %v6059 = vadd.f32 %v6023, %v6051
      %v6060 = vadd.f32 %v6024, %v6051
      %v6061 = vadd.f32 %v6025, %v6051
      %v6062 = vadd.f32 %v6026, %v6051
      %v6063 = vadd.f32 %v6027, %v6051
      %v6064 = vadd.f32 %v6028, %v6051
      %v6065 = vadd.f32 %v6029, %v6051
      %v6066 = vadd.f32 %v6030, %v6051
      %v6067 = vadd.f32 %v6031, %v6051
      %v6068 = vadd.f32 %v6032, %v6051
      %v6069 = vadd.f32 %v6033, %v6051
      %v6070 = vadd.f32 %v6034, %v6051
      %v6071 = vadd.f32 %v6035, %v6051
      %v6072 = vadd.f32 %v6036, %v6051
      %v6073 = vadd.f32 %v6037, %v6051
      %v6074 = vadd.f32 %v6038, %v6051
      %v6075 = vadd.f32 %v6039, %v6051
      %v6076 = vadd.f32 %v6040, %v6051
      %v6077 = vadd.f32 %v6041, %v6051
      %v6078 = vadd.f32 %v6042, %v6051
      %v6079 = vadd.f32 %v6043, %v6051
      %v6080 = vadd.f32 %v6044, %v6051
      %v6081 = vadd.f32 %v6045, %v6051
      %v6082 = vadd.f32 %v6046, %v6051
      %v6083 = vadd.f32 %v6047, %v6051
      %vm6084 = vcmp.ge.f32.partialorder %v6052, 0.0
      %vm6085 = vcmp.ge.f32.partialorder %v6053, 0.0
      %vm6086 = vcmp.ge.f32.partialorder %v6054, 0.0
      %vm6087 = vcmp.ge.f32.partialorder %v6055, 0.0
      %vm6088 = vcmp.ge.f32.partialorder %v6056, 0.0
      %vm6089 = vcmp.ge.f32.partialorder %v6057, 0.0
      %vm6090 = vcmp.ge.f32.partialorder %v6058, 0.0
      %vm6091 = vcmp.ge.f32.partialorder %v6059, 0.0
      %vm6092 = vcmp.ge.f32.partialorder %v6060, 0.0
      %vm6093 = vcmp.ge.f32.partialorder %v6061, 0.0
      %vm6094 = vcmp.ge.f32.partialorder %v6062, 0.0
      %vm6095 = vcmp.ge.f32.partialorder %v6063, 0.0
      %vm6096 = vcmp.ge.f32.partialorder %v6064, 0.0
      %vm6097 = vcmp.ge.f32.partialorder %v6065, 0.0
      %vm6098 = vcmp.ge.f32.partialorder %v6066, 0.0
      %vm6099 = vcmp.ge.f32.partialorder %v6067, 0.0
      %vm6100 = vcmp.ge.f32.partialorder %v6068, 0.0
      %vm6101 = vcmp.ge.f32.partialorder %v6069, 0.0
      %vm6102 = vcmp.ge.f32.partialorder %v6070, 0.0
      %vm6103 = vcmp.ge.f32.partialorder %v6071, 0.0
      %vm6104 = vcmp.ge.f32.partialorder %v6072, 0.0
      %vm6105 = vcmp.ge.f32.partialorder %v6073, 0.0
      %vm6106 = vcmp.ge.f32.partialorder %v6074, 0.0
      %vm6107 = vcmp.ge.f32.partialorder %v6075, 0.0
      %vm6108 = vcmp.ge.f32.partialorder %v6076, 0.0
      %vm6109 = vcmp.ge.f32.partialorder %v6077, 0.0
      %vm6110 = vcmp.ge.f32.partialorder %v6078, 0.0
      %vm6111 = vcmp.ge.f32.partialorder %v6079, 0.0
      %vm6112 = vcmp.ge.f32.partialorder %v6080, 0.0
      %vm6113 = vcmp.ge.f32.partialorder %v6081, 0.0
      %vm6114 = vcmp.ge.f32.partialorder %v6082, 0.0
      %vm6115 = vcmp.ge.f32.partialorder %v6083, 0.0
      %v6116 = vlaneseq
      %v6117 = vshrl.u32 %v6116, 7
      %v6118 = vsub.s32 2, %v6117
      %v6119 = vrot.slane %v5945, %v6118
      %v6120 = vmul.f32 %v6119, %v6052
      %v6121 = vmul.f32 %v6119, %v6053
      %v6122 = vmul.f32 %v6119, %v6054
      %v6123 = vmul.f32 %v6119, %v6055
      %v6124 = vmul.f32 %v6119, %v6056
      %v6125 = vmul.f32 %v6119, %v6057
      %v6126 = vmul.f32 %v6119, %v6058
      %v6127 = vmul.f32 %v6119, %v6059
      %v6128 = vmul.f32 %v6119, %v6060
      %v6129 = vmul.f32 %v6119, %v6061
      %v6130 = vmul.f32 %v6119, %v6062
      %v6131 = vmul.f32 %v6119, %v6063
      %v6132 = vmul.f32 %v6119, %v6064
      %v6133 = vmul.f32 %v6119, %v6065
      %v6134 = vmul.f32 %v6119, %v6066
      %v6135 = vmul.f32 %v6119, %v6067
      %v6136 = vmul.f32 %v6119, %v6068
      %v6137 = vmul.f32 %v6119, %v6069
      %v6138 = vmul.f32 %v6119, %v6070
      %v6139 = vmul.f32 %v6119, %v6071
      %v6140 = vmul.f32 %v6119, %v6072
      %v6141 = vmul.f32 %v6119, %v6073
      %v6142 = vmul.f32 %v6119, %v6074
      %v6143 = vmul.f32 %v6119, %v6075
      %v6144 = vmul.f32 %v6119, %v6076
      %v6145 = vmul.f32 %v6119, %v6077
      %v6146 = vmul.f32 %v6119, %v6078
      %v6147 = vmul.f32 %v6119, %v6079
      %v6148 = vmul.f32 %v6119, %v6080
      %v6149 = vmul.f32 %v6119, %v6081
      %v6150 = vmul.f32 %v6119, %v6082
      %v6151 = vmul.f32 %v6119, %v6083
      %v6152 = vsel %vm6084, %v6052, %v6120
      %v6153 = vsel %vm6085, %v6053, %v6121
      %v6154 = vsel %vm6086, %v6054, %v6122
      %v6155 = vsel %vm6087, %v6055, %v6123
      %v6156 = vsel %vm6088, %v6056, %v6124
      %v6157 = vsel %vm6089, %v6057, %v6125
      %v6158 = vsel %vm6090, %v6058, %v6126
      %v6159 = vsel %vm6091, %v6059, %v6127
      %v6160 = vsel %vm6092, %v6060, %v6128
      %v6161 = vsel %vm6093, %v6061, %v6129
      %v6162 = vsel %vm6094, %v6062, %v6130
      %v6163 = vsel %vm6095, %v6063, %v6131
      %v6164 = vsel %vm6096, %v6064, %v6132
      %v6165 = vsel %vm6097, %v6065, %v6133
      %v6166 = vsel %vm6098, %v6066, %v6134
      %v6167 = vsel %vm6099, %v6067, %v6135
      %v6168 = vsel %vm6100, %v6068, %v6136
      %v6169 = vsel %vm6101, %v6069, %v6137
      %v6170 = vsel %vm6102, %v6070, %v6138
      %v6171 = vsel %vm6103, %v6071, %v6139
      %v6172 = vsel %vm6104, %v6072, %v6140
      %v6173 = vsel %vm6105, %v6073, %v6141
      %v6174 = vsel %vm6106, %v6074, %v6142
      %v6175 = vsel %vm6107, %v6075, %v6143
      %v6176 = vsel %vm6108, %v6076, %v6144
      %v6177 = vsel %vm6109, %v6077, %v6145
      %v6178 = vsel %vm6110, %v6078, %v6146
      %v6179 = vsel %vm6111, %v6079, %v6147
      %v6180 = vsel %vm6112, %v6080, %v6148
      %v6181 = vsel %vm6113, %v6081, %v6149
      %v6182 = vsel %vm6114, %v6082, %v6150
      %v6183 = vsel %vm6115, %v6083, %v6151
      %6184 = vst.msk [vmem:[%s405 + $0x1] sm:$0xff] %vm1835, %v6152
      %6185 = vst.msk [vmem:[%s405 + $0x9] sm:$0xff] %vm1835, %v6153
      %6186 = vst.msk [vmem:[%s405 + $0x19] sm:$0xff] %vm1835, %v6154
      %6187 = vst.msk [vmem:[%s405 + $0x21] sm:$0xff] %vm1835, %v6155
      %6188 = vst.msk [vmem:[%s405 + $0x31] sm:$0xff] %vm1835, %v6156
      %6189 = vst.msk [vmem:[%s405 + $0x39] sm:$0xff] %vm1835, %v6157
      %6190 = vst.msk [vmem:[%s405 + $0x49] sm:$0xff] %vm1835, %v6158
      %6191 = vst.msk [vmem:[%s405 + $0x51] sm:$0xff] %vm1835, %v6159
      %6192 = vst.msk [vmem:[%s405 + $0x61] sm:$0xff] %vm1835, %v6160
      %6193 = vst.msk [vmem:[%s405 + $0x69] sm:$0xff] %vm1835, %v6161
      %6194 = vst.msk [vmem:[%s405 + $0x79] sm:$0xff] %vm1835, %v6162
      %6195 = vst.msk [vmem:[%s405 + $0x81] sm:$0xff] %vm1835, %v6163
      %6196 = vst.msk [vmem:[%s405 + $0x91] sm:$0xff] %vm1835, %v6164
      %6197 = vst.msk [vmem:[%s405 + $0x99] sm:$0xff] %vm1835, %v6165
      %6198 = vst.msk [vmem:[%s405 + $0xa9] sm:$0xff] %vm1835, %v6166
      %6199 = vst.msk [vmem:[%s405 + $0xb1] sm:$0xff] %vm1835, %v6167
      %6200 = vst.msk [vmem:[%s405 + $0xc1] sm:$0xff] %vm1835, %v6168
      %6201 = vst.msk [vmem:[%s405 + $0xc9] sm:$0xff] %vm1835, %v6169
      %6202 = vst.msk [vmem:[%s405 + $0xd9] sm:$0xff] %vm1835, %v6170
      %6203 = vst.msk [vmem:[%s405 + $0xe1] sm:$0xff] %vm1835, %v6171
      %6204 = vst.msk [vmem:[%s405 + $0xf1] sm:$0xff] %vm1835, %v6172
      %6205 = vst.msk [vmem:[%s405 + $0xf9] sm:$0xff] %vm1835, %v6173
      %6206 = vst.msk [vmem:[%s405 + $0x109] sm:$0xff] %vm1835, %v6174
      %6207 = vst.msk [vmem:[%s405 + $0x111] sm:$0xff] %vm1835, %v6175
      %6208 = vst.msk [vmem:[%s405 + $0x121] sm:$0xff] %vm1835, %v6176
      %6209 = vst.msk [vmem:[%s405 + $0x129] sm:$0xff] %vm1835, %v6177
      %6210 = vst.msk [vmem:[%s405 + $0x139] sm:$0xff] %vm1835, %v6178
      %6211 = vst.msk [vmem:[%s405 + $0x141] sm:$0xff] %vm1835, %v6179
      %6212 = vst.msk [vmem:[%s405 + $0x151] sm:$0xff] %vm1835, %v6180
      %6213 = vst.msk [vmem:[%s405 + $0x159] sm:$0xff] %vm1835, %v6181
      %6214 = vst.msk [vmem:[%s405 + $0x169] sm:$0xff] %vm1835, %v6182
      %6215 = vst.msk [vmem:[%s405 + $0x171] sm:$0xff] %vm1835, %v6183
      %v6216 = vld [vmem:[#allocation2] sm:$0xff]
      %v6217 = vld [vmem:[#allocation2 + $0x8] sm:$0xff]
      %v6218 = vld [vmem:[#allocation2 + $0x18] sm:$0xff]
      %v6219 = vld [vmem:[#allocation2 + $0x20] sm:$0xff]
      %v6220 = vld [vmem:[#allocation2 + $0x30] sm:$0xff]
      %v6221 = vld [vmem:[#allocation2 + $0x38] sm:$0xff]
      %v6222 = vld [vmem:[#allocation2 + $0x48] sm:$0xff]
      %v6223 = vld [vmem:[#allocation2 + $0x50] sm:$0xff]
      %v6224 = vld [vmem:[#allocation2 + $0x60] sm:$0xff]
      %v6225 = vld [vmem:[#allocation2 + $0x68] sm:$0xff]
      %v6226 = vld [vmem:[#allocation2 + $0x78] sm:$0xff]
      %v6227 = vld [vmem:[#allocation2 + $0x80] sm:$0xff]
      %v6228 = vld [vmem:[#allocation2 + $0x90] sm:$0xff]
      %v6229 = vld [vmem:[#allocation2 + $0x98] sm:$0xff]
      %v6230 = vld [vmem:[#allocation2 + $0xa8] sm:$0xff]
      %v6231 = vld [vmem:[#allocation2 + $0xb0] sm:$0xff]
      %v6232 = vld [vmem:[#allocation2 + $0xc0] sm:$0xff]
      %v6233 = vld [vmem:[#allocation2 + $0xc8] sm:$0xff]
      %v6234 = vld [vmem:[#allocation2 + $0xd8] sm:$0xff]
      %v6235 = vld [vmem:[#allocation2 + $0xe0] sm:$0xff]
      %v6236 = vld [vmem:[#allocation2 + $0xf0] sm:$0xff]
      %v6237 = vld [vmem:[#allocation2 + $0xf8] sm:$0xff]
      %v6238 = vld [vmem:[#allocation2 + $0x108] sm:$0xff]
      %v6239 = vld [vmem:[#allocation2 + $0x110] sm:$0xff]
      %v6240 = vld [vmem:[#allocation2 + $0x120] sm:$0xff]
      %v6241 = vld [vmem:[#allocation2 + $0x128] sm:$0xff]
      %v6242 = vld [vmem:[#allocation2 + $0x138] sm:$0xff]
      %v6243 = vld [vmem:[#allocation2 + $0x140] sm:$0xff]
      %v6244 = vld [vmem:[#allocation2 + $0x150] sm:$0xff]
      %v6245 = vld [vmem:[#allocation2 + $0x158] sm:$0xff]
      %v6246 = vld [vmem:[#allocation2 + $0x168] sm:$0xff]
      %v6247 = vld [vmem:[#allocation2 + $0x170] sm:$0xff]
      %6248 = vst.msk [vmem:[#allocation3] sm:$0xff] %vm171, %v6216
      %6249 = vst.msk [vmem:[#allocation3 + $0x8] sm:$0xff] %vm171, %v6217
      %6250 = vst.msk [vmem:[#allocation3 + $0x10] sm:$0xff] %vm171, %v6218
      %6251 = vst.msk [vmem:[#allocation3 + $0x18] sm:$0xff] %vm171, %v6219
      %6252 = vst.msk [vmem:[#allocation3 + $0x20] sm:$0xff] %vm171, %v6220
      %6253 = vst.msk [vmem:[#allocation3 + $0x28] sm:$0xff] %vm171, %v6221
      %6254 = vst.msk [vmem:[#allocation3 + $0x30] sm:$0xff] %vm171, %v6222
      %6255 = vst.msk [vmem:[#allocation3 + $0x38] sm:$0xff] %vm171, %v6223
      %6256 = vst.msk [vmem:[#allocation3 + $0x40] sm:$0xff] %vm171, %v6224
      %6257 = vst.msk [vmem:[#allocation3 + $0x48] sm:$0xff] %vm171, %v6225
      %6258 = vst.msk [vmem:[#allocation3 + $0x50] sm:$0xff] %vm171, %v6226
      %6259 = vst.msk [vmem:[#allocation3 + $0x58] sm:$0xff] %vm171, %v6227
      %6260 = vst.msk [vmem:[#allocation3 + $0x60] sm:$0xff] %vm171, %v6228
      %6261 = vst.msk [vmem:[#allocation3 + $0x68] sm:$0xff] %vm171, %v6229
      %6262 = vst.msk [vmem:[#allocation3 + $0x70] sm:$0xff] %vm171, %v6230
      %6263 = vst.msk [vmem:[#allocation3 + $0x78] sm:$0xff] %vm171, %v6231
      %6264 = vst.msk [vmem:[#allocation3 + $0x80] sm:$0xff] %vm171, %v6232
      %6265 = vst.msk [vmem:[#allocation3 + $0x88] sm:$0xff] %vm171, %v6233
      %6266 = vst.msk [vmem:[#allocation3 + $0x90] sm:$0xff] %vm171, %v6234
      %6267 = vst.msk [vmem:[#allocation3 + $0x98] sm:$0xff] %vm171, %v6235
      %6268 = vst.msk [vmem:[#allocation3 + $0xa0] sm:$0xff] %vm171, %v6236
      %6269 = vst.msk [vmem:[#allocation3 + $0xa8] sm:$0xff] %vm171, %v6237
      %6270 = vst.msk [vmem:[#allocation3 + $0xb0] sm:$0xff] %vm171, %v6238
      %6271 = vst.msk [vmem:[#allocation3 + $0xb8] sm:$0xff] %vm171, %v6239
      %6272 = vst.msk [vmem:[#allocation3 + $0xc0] sm:$0xff] %vm171, %v6240
      %6273 = vst.msk [vmem:[#allocation3 + $0xc8] sm:$0xff] %vm171, %v6241
      %6274 = vst.msk [vmem:[#allocation3 + $0xd0] sm:$0xff] %vm171, %v6242
      %6275 = vst.msk [vmem:[#allocation3 + $0xd8] sm:$0xff] %vm171, %v6243
      %6276 = vst.msk [vmem:[#allocation3 + $0xe0] sm:$0xff] %vm171, %v6244
      %6277 = vst.msk [vmem:[#allocation3 + $0xe8] sm:$0xff] %vm171, %v6245
      %6278 = vst.msk [vmem:[#allocation3 + $0xf0] sm:$0xff] %vm171, %v6246
      %6279 = vst.msk [vmem:[#allocation3 + $0xf8] sm:$0xff] %vm171, %v6247
      %v6280 = vld [vmem:[#allocation2 + $0x1] sm:$0xff]
      %v6281 = vld [vmem:[#allocation2 + $0x9] sm:$0xff]
      %v6282 = vld [vmem:[#allocation2 + $0x19] sm:$0xff]
      %v6283 = vld [vmem:[#allocation2 + $0x21] sm:$0xff]
      %v6284 = vld [vmem:[#allocation2 + $0x31] sm:$0xff]
      %v6285 = vld [vmem:[#allocation2 + $0x39] sm:$0xff]
      %v6286 = vld [vmem:[#allocation2 + $0x49] sm:$0xff]
      %v6287 = vld [vmem:[#allocation2 + $0x51] sm:$0xff]
      %v6288 = vld [vmem:[#allocation2 + $0x61] sm:$0xff]
      %v6289 = vld [vmem:[#allocation2 + $0x69] sm:$0xff]
      %v6290 = vld [vmem:[#allocation2 + $0x79] sm:$0xff]
      %v6291 = vld [vmem:[#allocation2 + $0x81] sm:$0xff]
      %v6292 = vld [vmem:[#allocation2 + $0x91] sm:$0xff]
      %v6293 = vld [vmem:[#allocation2 + $0x99] sm:$0xff]
      %v6294 = vld [vmem:[#allocation2 + $0xa9] sm:$0xff]
      %v6295 = vld [vmem:[#allocation2 + $0xb1] sm:$0xff]
      %v6296 = vld [vmem:[#allocation2 + $0xc1] sm:$0xff]
      %v6297 = vld [vmem:[#allocation2 + $0xc9] sm:$0xff]
      %v6298 = vld [vmem:[#allocation2 + $0xd9] sm:$0xff]
      %v6299 = vld [vmem:[#allocation2 + $0xe1] sm:$0xff]
      %v6300 = vld [vmem:[#allocation2 + $0xf1] sm:$0xff]
      %v6301 = vld [vmem:[#allocation2 + $0xf9] sm:$0xff]
      %v6302 = vld [vmem:[#allocation2 + $0x109] sm:$0xff]
      %v6303 = vld [vmem:[#allocation2 + $0x111] sm:$0xff]
      %v6304 = vld [vmem:[#allocation2 + $0x121] sm:$0xff]
      %v6305 = vld [vmem:[#allocation2 + $0x129] sm:$0xff]
      %v6306 = vld [vmem:[#allocation2 + $0x139] sm:$0xff]
      %v6307 = vld [vmem:[#allocation2 + $0x141] sm:$0xff]
      %v6308 = vld [vmem:[#allocation2 + $0x151] sm:$0xff]
      %v6309 = vld [vmem:[#allocation2 + $0x159] sm:$0xff]
      %v6310 = vld [vmem:[#allocation2 + $0x169] sm:$0xff]
      %v6311 = vld [vmem:[#allocation2 + $0x171] sm:$0xff]
      %6344 = vrot.lane.b32.xlu0 %v6280, 16
      %v6345 = vpop.permute.xlu0 %6344
      %6346 = vrot.lane.b32.xlu0 %v6281, 16
      %v6347 = vpop.permute.xlu0 %6346
      %6348 = vrot.lane.b32.xlu0 %v6282, 16
      %v6349 = vpop.permute.xlu0 %6348
      %6350 = vrot.lane.b32.xlu0 %v6283, 16
      %v6351 = vpop.permute.xlu0 %6350
      %6352 = vrot.lane.b32.xlu0 %v6284, 16
      %v6353 = vpop.permute.xlu0 %6352
      %6354 = vrot.lane.b32.xlu0 %v6285, 16
      %v6355 = vpop.permute.xlu0 %6354
      %6356 = vrot.lane.b32.xlu0 %v6286, 16
      %v6357 = vpop.permute.xlu0 %6356
      %6358 = vrot.lane.b32.xlu0 %v6287, 16
      %v6359 = vpop.permute.xlu0 %6358
      %6360 = vrot.lane.b32.xlu0 %v6288, 16
      %v6361 = vpop.permute.xlu0 %6360
      %6362 = vrot.lane.b32.xlu0 %v6289, 16
      %v6363 = vpop.permute.xlu0 %6362
      %6364 = vrot.lane.b32.xlu0 %v6290, 16
      %v6365 = vpop.permute.xlu0 %6364
      %6366 = vrot.lane.b32.xlu0 %v6291, 16
      %v6367 = vpop.permute.xlu0 %6366
      %6368 = vrot.lane.b32.xlu0 %v6292, 16
      %v6369 = vpop.permute.xlu0 %6368
      %6370 = vrot.lane.b32.xlu0 %v6293, 16
      %v6371 = vpop.permute.xlu0 %6370
      %6372 = vrot.lane.b32.xlu0 %v6294, 16
      %v6373 = vpop.permute.xlu0 %6372
      %6374 = vrot.lane.b32.xlu0 %v6295, 16
      %v6375 = vpop.permute.xlu0 %6374
      %6376 = vrot.lane.b32.xlu0 %v6296, 16
      %v6377 = vpop.permute.xlu0 %6376
      %6378 = vrot.lane.b32.xlu0 %v6297, 16
      %v6379 = vpop.permute.xlu0 %6378
      %6380 = vrot.lane.b32.xlu0 %v6298, 16
      %v6381 = vpop.permute.xlu0 %6380
      %6382 = vrot.lane.b32.xlu0 %v6299, 16
      %v6383 = vpop.permute.xlu0 %6382
      %6384 = vrot.lane.b32.xlu0 %v6300, 16
      %v6385 = vpop.permute.xlu0 %6384
      %6386 = vrot.lane.b32.xlu0 %v6301, 16
      %v6387 = vpop.permute.xlu0 %6386
      %6388 = vrot.lane.b32.xlu0 %v6302, 16
      %v6389 = vpop.permute.xlu0 %6388
      %6390 = vrot.lane.b32.xlu0 %v6303, 16
      %v6391 = vpop.permute.xlu0 %6390
      %6392 = vrot.lane.b32.xlu0 %v6304, 16
      %v6393 = vpop.permute.xlu0 %6392
      %6394 = vrot.lane.b32.xlu0 %v6305, 16
      %v6395 = vpop.permute.xlu0 %6394
      %6396 = vrot.lane.b32.xlu0 %v6306, 16
      %v6397 = vpop.permute.xlu0 %6396
      %6398 = vrot.lane.b32.xlu0 %v6307, 16
      %v6399 = vpop.permute.xlu0 %6398
      %6400 = vrot.lane.b32.xlu0 %v6308, 16
      %v6401 = vpop.permute.xlu0 %6400
      %6402 = vrot.lane.b32.xlu0 %v6309, 16
      %v6403 = vpop.permute.xlu0 %6402
      %6404 = vrot.lane.b32.xlu0 %v6310, 16
      %v6405 = vpop.permute.xlu0 %6404
      %6406 = vrot.lane.b32.xlu0 %v6311, 16
      %v6407 = vpop.permute.xlu0 %6406
      %6440 = vst.msk [vmem:[#allocation3] sm:$0xff] %vm664, %v6345
      %6441 = vst.msk [vmem:[#allocation3 + $0x8] sm:$0xff] %vm664, %v6347
      %6442 = vst.msk [vmem:[#allocation3 + $0x10] sm:$0xff] %vm664, %v6349
      %6443 = vst.msk [vmem:[#allocation3 + $0x18] sm:$0xff] %vm664, %v6351
      %6444 = vst.msk [vmem:[#allocation3 + $0x20] sm:$0xff] %vm664, %v6353
      %6445 = vst.msk [vmem:[#allocation3 + $0x28] sm:$0xff] %vm664, %v6355
      %6446 = vst.msk [vmem:[#allocation3 + $0x30] sm:$0xff] %vm664, %v6357
      %6447 = vst.msk [vmem:[#allocation3 + $0x38] sm:$0xff] %vm664, %v6359
      %6448 = vst.msk [vmem:[#allocation3 + $0x40] sm:$0xff] %vm664, %v6361
      %6449 = vst.msk [vmem:[#allocation3 + $0x48] sm:$0xff] %vm664, %v6363
      %6450 = vst.msk [vmem:[#allocation3 + $0x50] sm:$0xff] %vm664, %v6365
      %6451 = vst.msk [vmem:[#allocation3 + $0x58] sm:$0xff] %vm664, %v6367
      %6452 = vst.msk [vmem:[#allocation3 + $0x60] sm:$0xff] %vm664, %v6369
      %6453 = vst.msk [vmem:[#allocation3 + $0x68] sm:$0xff] %vm664, %v6371
      %6454 = vst.msk [vmem:[#allocation3 + $0x70] sm:$0xff] %vm664, %v6373
      %6455 = vst.msk [vmem:[#allocation3 + $0x78] sm:$0xff] %vm664, %v6375
      %6456 = vst.msk [vmem:[#allocation3 + $0x80] sm:$0xff] %vm664, %v6377
      %6457 = vst.msk [vmem:[#allocation3 + $0x88] sm:$0xff] %vm664, %v6379
      %6458 = vst.msk [vmem:[#allocation3 + $0x90] sm:$0xff] %vm664, %v6381
      %6459 = vst.msk [vmem:[#allocation3 + $0x98] sm:$0xff] %vm664, %v6383
      %6460 = vst.msk [vmem:[#allocation3 + $0xa0] sm:$0xff] %vm664, %v6385
      %6461 = vst.msk [vmem:[#allocation3 + $0xa8] sm:$0xff] %vm664, %v6387
      %6462 = vst.msk [vmem:[#allocation3 + $0xb0] sm:$0xff] %vm664, %v6389
      %6463 = vst.msk [vmem:[#allocation3 + $0xb8] sm:$0xff] %vm664, %v6391
      %6464 = vst.msk [vmem:[#allocation3 + $0xc0] sm:$0xff] %vm664, %v6393
      %6465 = vst.msk [vmem:[#allocation3 + $0xc8] sm:$0xff] %vm664, %v6395
      %6466 = vst.msk [vmem:[#allocation3 + $0xd0] sm:$0xff] %vm664, %v6397
      %6467 = vst.msk [vmem:[#allocation3 + $0xd8] sm:$0xff] %vm664, %v6399
      %6468 = vst.msk [vmem:[#allocation3 + $0xe0] sm:$0xff] %vm664, %v6401
      %6469 = vst.msk [vmem:[#allocation3 + $0xe8] sm:$0xff] %vm664, %v6403
      %6470 = vst.msk [vmem:[#allocation3 + $0xf0] sm:$0xff] %vm664, %v6405
      %6471 = vst.msk [vmem:[#allocation3 + $0xf8] sm:$0xff] %vm664, %v6407
      %v6472 = vld [vmem:[#allocation2 + $0x2] sm:$0xff]
      %v6473 = vld [vmem:[#allocation2 + $0xa] sm:$0xff]
      %v6474 = vld [vmem:[#allocation2 + $0x1a] sm:$0xff]
      %v6475 = vld [vmem:[#allocation2 + $0x22] sm:$0xff]
      %v6476 = vld [vmem:[#allocation2 + $0x32] sm:$0xff]
      %v6477 = vld [vmem:[#allocation2 + $0x3a] sm:$0xff]
      %v6478 = vld [vmem:[#allocation2 + $0x4a] sm:$0xff]
      %v6479 = vld [vmem:[#allocation2 + $0x52] sm:$0xff]
      %v6480 = vld [vmem:[#allocation2 + $0x62] sm:$0xff]
      %v6481 = vld [vmem:[#allocation2 + $0x6a] sm:$0xff]
      %v6482 = vld [vmem:[#allocation2 + $0x7a] sm:$0xff]
      %v6483 = vld [vmem:[#allocation2 + $0x82] sm:$0xff]
      %v6484 = vld [vmem:[#allocation2 + $0x92] sm:$0xff]
      %v6485 = vld [vmem:[#allocation2 + $0x9a] sm:$0xff]
      %v6486 = vld [vmem:[#allocation2 + $0xaa] sm:$0xff]
      %v6487 = vld [vmem:[#allocation2 + $0xb2] sm:$0xff]
      %v6488 = vld [vmem:[#allocation2 + $0xc2] sm:$0xff]
      %v6489 = vld [vmem:[#allocation2 + $0xca] sm:$0xff]
      %v6490 = vld [vmem:[#allocation2 + $0xda] sm:$0xff]
      %v6491 = vld [vmem:[#allocation2 + $0xe2] sm:$0xff]
      %v6492 = vld [vmem:[#allocation2 + $0xf2] sm:$0xff]
      %v6493 = vld [vmem:[#allocation2 + $0xfa] sm:$0xff]
      %v6494 = vld [vmem:[#allocation2 + $0x10a] sm:$0xff]
      %v6495 = vld [vmem:[#allocation2 + $0x112] sm:$0xff]
      %v6496 = vld [vmem:[#allocation2 + $0x122] sm:$0xff]
      %v6497 = vld [vmem:[#allocation2 + $0x12a] sm:$0xff]
      %v6498 = vld [vmem:[#allocation2 + $0x13a] sm:$0xff]
      %v6499 = vld [vmem:[#allocation2 + $0x142] sm:$0xff]
      %v6500 = vld [vmem:[#allocation2 + $0x152] sm:$0xff]
      %v6501 = vld [vmem:[#allocation2 + $0x15a] sm:$0xff]
      %v6502 = vld [vmem:[#allocation2 + $0x16a] sm:$0xff]
      %v6503 = vld [vmem:[#allocation2 + $0x172] sm:$0xff]
      %6536 = vrot.lane.b32.xlu0 %v6472, 32
      %v6537 = vpop.permute.xlu0 %6536
      %6538 = vrot.lane.b32.xlu0 %v6473, 32
      %v6539 = vpop.permute.xlu0 %6538
      %6540 = vrot.lane.b32.xlu0 %v6474, 32
      %v6541 = vpop.permute.xlu0 %6540
      %6542 = vrot.lane.b32.xlu0 %v6475, 32
      %v6543 = vpop.permute.xlu0 %6542
      %6544 = vrot.lane.b32.xlu0 %v6476, 32
      %v6545 = vpop.permute.xlu0 %6544
      %6546 = vrot.lane.b32.xlu0 %v6477, 32
      %v6547 = vpop.permute.xlu0 %6546
      %6548 = vrot.lane.b32.xlu0 %v6478, 32
      %v6549 = vpop.permute.xlu0 %6548
      %6550 = vrot.lane.b32.xlu0 %v6479, 32
      %v6551 = vpop.permute.xlu0 %6550
      %6552 = vrot.lane.b32.xlu0 %v6480, 32
      %v6553 = vpop.permute.xlu0 %6552
      %6554 = vrot.lane.b32.xlu0 %v6481, 32
      %v6555 = vpop.permute.xlu0 %6554
      %6556 = vrot.lane.b32.xlu0 %v6482, 32
      %v6557 = vpop.permute.xlu0 %6556
      %6558 = vrot.lane.b32.xlu0 %v6483, 32
      %v6559 = vpop.permute.xlu0 %6558
      %6560 = vrot.lane.b32.xlu0 %v6484, 32
      %v6561 = vpop.permute.xlu0 %6560
      %6562 = vrot.lane.b32.xlu0 %v6485, 32
      %v6563 = vpop.permute.xlu0 %6562
      %6564 = vrot.lane.b32.xlu0 %v6486, 32
      %v6565 = vpop.permute.xlu0 %6564
      %6566 = vrot.lane.b32.xlu0 %v6487, 32
      %v6567 = vpop.permute.xlu0 %6566
      %6568 = vrot.lane.b32.xlu0 %v6488, 32
      %v6569 = vpop.permute.xlu0 %6568
      %6570 = vrot.lane.b32.xlu0 %v6489, 32
      %v6571 = vpop.permute.xlu0 %6570
      %6572 = vrot.lane.b32.xlu0 %v6490, 32
      %v6573 = vpop.permute.xlu0 %6572
      %6574 = vrot.lane.b32.xlu0 %v6491, 32
      %v6575 = vpop.permute.xlu0 %6574
      %6576 = vrot.lane.b32.xlu0 %v6492, 32
      %v6577 = vpop.permute.xlu0 %6576
      %6578 = vrot.lane.b32.xlu0 %v6493, 32
      %v6579 = vpop.permute.xlu0 %6578
      %6580 = vrot.lane.b32.xlu0 %v6494, 32
      %v6581 = vpop.permute.xlu0 %6580
      %6582 = vrot.lane.b32.xlu0 %v6495, 32
      %v6583 = vpop.permute.xlu0 %6582
      %6584 = vrot.lane.b32.xlu0 %v6496, 32
      %v6585 = vpop.permute.xlu0 %6584
      %6586 = vrot.lane.b32.xlu0 %v6497, 32
      %v6587 = vpop.permute.xlu0 %6586
      %6588 = vrot.lane.b32.xlu0 %v6498, 32
      %v6589 = vpop.permute.xlu0 %6588
      %6590 = vrot.lane.b32.xlu0 %v6499, 32
      %v6591 = vpop.permute.xlu0 %6590
      %6592 = vrot.lane.b32.xlu0 %v6500, 32
      %v6593 = vpop.permute.xlu0 %6592
      %6594 = vrot.lane.b32.xlu0 %v6501, 32
      %v6595 = vpop.permute.xlu0 %6594
      %6596 = vrot.lane.b32.xlu0 %v6502, 32
      %v6597 = vpop.permute.xlu0 %6596
      %6598 = vrot.lane.b32.xlu0 %v6503, 32
      %v6599 = vpop.permute.xlu0 %6598
      %6632 = vst.msk [vmem:[#allocation3] sm:$0xff] %vm857, %v6537
      %6633 = vst.msk [vmem:[#allocation3 + $0x8] sm:$0xff] %vm857, %v6539
      %6634 = vst.msk [vmem:[#allocation3 + $0x10] sm:$0xff] %vm857, %v6541
      %6635 = vst.msk [vmem:[#allocation3 + $0x18] sm:$0xff] %vm857, %v6543
      %6636 = vst.msk [vmem:[#allocation3 + $0x20] sm:$0xff] %vm857, %v6545
      %6637 = vst.msk [vmem:[#allocation3 + $0x28] sm:$0xff] %vm857, %v6547
      %6638 = vst.msk [vmem:[#allocation3 + $0x30] sm:$0xff] %vm857, %v6549
      %6639 = vst.msk [vmem:[#allocation3 + $0x38] sm:$0xff] %vm857, %v6551
      %6640 = vst.msk [vmem:[#allocation3 + $0x40] sm:$0xff] %vm857, %v6553
      %6641 = vst.msk [vmem:[#allocation3 + $0x48] sm:$0xff] %vm857, %v6555
      %6642 = vst.msk [vmem:[#allocation3 + $0x50] sm:$0xff] %vm857, %v6557
      %6643 = vst.msk [vmem:[#allocation3 + $0x58] sm:$0xff] %vm857, %v6559
      %6644 = vst.msk [vmem:[#allocation3 + $0x60] sm:$0xff] %vm857, %v6561
      %6645 = vst.msk [vmem:[#allocation3 + $0x68] sm:$0xff] %vm857, %v6563
      %6646 = vst.msk [vmem:[#allocation3 + $0x70] sm:$0xff] %vm857, %v6565
      %6647 = vst.msk [vmem:[#allocation3 + $0x78] sm:$0xff] %vm857, %v6567
      %6648 = vst.msk [vmem:[#allocation3 + $0x80] sm:$0xff] %vm857, %v6569
      %6649 = vst.msk [vmem:[#allocation3 + $0x88] sm:$0xff] %vm857, %v6571
      %6650 = vst.msk [vmem:[#allocation3 + $0x90] sm:$0xff] %vm857, %v6573
      %6651 = vst.msk [vmem:[#allocation3 + $0x98] sm:$0xff] %vm857, %v6575
      %6652 = vst.msk [vmem:[#allocation3 + $0xa0] sm:$0xff] %vm857, %v6577
      %6653 = vst.msk [vmem:[#allocation3 + $0xa8] sm:$0xff] %vm857, %v6579
      %6654 = vst.msk [vmem:[#allocation3 + $0xb0] sm:$0xff] %vm857, %v6581
      %6655 = vst.msk [vmem:[#allocation3 + $0xb8] sm:$0xff] %vm857, %v6583
      %6656 = vst.msk [vmem:[#allocation3 + $0xc0] sm:$0xff] %vm857, %v6585
      %6657 = vst.msk [vmem:[#allocation3 + $0xc8] sm:$0xff] %vm857, %v6587
      %6658 = vst.msk [vmem:[#allocation3 + $0xd0] sm:$0xff] %vm857, %v6589
      %6659 = vst.msk [vmem:[#allocation3 + $0xd8] sm:$0xff] %vm857, %v6591
      %6660 = vst.msk [vmem:[#allocation3 + $0xe0] sm:$0xff] %vm857, %v6593
      %6661 = vst.msk [vmem:[#allocation3 + $0xe8] sm:$0xff] %vm857, %v6595
      %6662 = vst.msk [vmem:[#allocation3 + $0xf0] sm:$0xff] %vm857, %v6597
      %6663 = vst.msk [vmem:[#allocation3 + $0xf8] sm:$0xff] %vm857, %v6599
      %v6664 = vld [vmem:[%s405] sm:$0xff]
      %v6665 = vld [vmem:[%s405 + $0x8] sm:$0xff]
      %v6666 = vld [vmem:[%s405 + $0x18] sm:$0xff]
      %v6667 = vld [vmem:[%s405 + $0x20] sm:$0xff]
      %v6668 = vld [vmem:[%s405 + $0x30] sm:$0xff]
      %v6669 = vld [vmem:[%s405 + $0x38] sm:$0xff]
      %v6670 = vld [vmem:[%s405 + $0x48] sm:$0xff]
      %v6671 = vld [vmem:[%s405 + $0x50] sm:$0xff]
      %v6672 = vld [vmem:[%s405 + $0x60] sm:$0xff]
      %v6673 = vld [vmem:[%s405 + $0x68] sm:$0xff]
      %v6674 = vld [vmem:[%s405 + $0x78] sm:$0xff]
      %v6675 = vld [vmem:[%s405 + $0x80] sm:$0xff]
      %v6676 = vld [vmem:[%s405 + $0x90] sm:$0xff]
      %v6677 = vld [vmem:[%s405 + $0x98] sm:$0xff]
      %v6678 = vld [vmem:[%s405 + $0xa8] sm:$0xff]
      %v6679 = vld [vmem:[%s405 + $0xb0] sm:$0xff]
      %v6680 = vld [vmem:[%s405 + $0xc0] sm:$0xff]
      %v6681 = vld [vmem:[%s405 + $0xc8] sm:$0xff]
      %v6682 = vld [vmem:[%s405 + $0xd8] sm:$0xff]
      %v6683 = vld [vmem:[%s405 + $0xe0] sm:$0xff]
      %v6684 = vld [vmem:[%s405 + $0xf0] sm:$0xff]
      %v6685 = vld [vmem:[%s405 + $0xf8] sm:$0xff]
      %v6686 = vld [vmem:[%s405 + $0x108] sm:$0xff]
      %v6687 = vld [vmem:[%s405 + $0x110] sm:$0xff]
      %v6688 = vld [vmem:[%s405 + $0x120] sm:$0xff]
      %v6689 = vld [vmem:[%s405 + $0x128] sm:$0xff]
      %v6690 = vld [vmem:[%s405 + $0x138] sm:$0xff]
      %v6691 = vld [vmem:[%s405 + $0x140] sm:$0xff]
      %v6692 = vld [vmem:[%s405 + $0x150] sm:$0xff]
      %v6693 = vld [vmem:[%s405 + $0x158] sm:$0xff]
      %v6694 = vld [vmem:[%s405 + $0x168] sm:$0xff]
      %v6695 = vld [vmem:[%s405 + $0x170] sm:$0xff]
      %6728 = vrot.lane.b32.xlu0 %v6664, 48
      %v6729 = vpop.permute.xlu0 %6728
      %6730 = vrot.lane.b32.xlu0 %v6665, 48
      %v6731 = vpop.permute.xlu0 %6730
      %6732 = vrot.lane.b32.xlu0 %v6666, 48
      %v6733 = vpop.permute.xlu0 %6732
      %6734 = vrot.lane.b32.xlu0 %v6667, 48
      %v6735 = vpop.permute.xlu0 %6734
      %6736 = vrot.lane.b32.xlu0 %v6668, 48
      %v6737 = vpop.permute.xlu0 %6736
      %6738 = vrot.lane.b32.xlu0 %v6669, 48
      %v6739 = vpop.permute.xlu0 %6738
      %6740 = vrot.lane.b32.xlu0 %v6670, 48
      %v6741 = vpop.permute.xlu0 %6740
      %6742 = vrot.lane.b32.xlu0 %v6671, 48
      %v6743 = vpop.permute.xlu0 %6742
      %6744 = vrot.lane.b32.xlu0 %v6672, 48
      %v6745 = vpop.permute.xlu0 %6744
      %6746 = vrot.lane.b32.xlu0 %v6673, 48
      %v6747 = vpop.permute.xlu0 %6746
      %6748 = vrot.lane.b32.xlu0 %v6674, 48
      %v6749 = vpop.permute.xlu0 %6748
      %6750 = vrot.lane.b32.xlu0 %v6675, 48
      %v6751 = vpop.permute.xlu0 %6750
      %6752 = vrot.lane.b32.xlu0 %v6676, 48
      %v6753 = vpop.permute.xlu0 %6752
      %6754 = vrot.lane.b32.xlu0 %v6677, 48
      %v6755 = vpop.permute.xlu0 %6754
      %6756 = vrot.lane.b32.xlu0 %v6678, 48
      %v6757 = vpop.permute.xlu0 %6756
      %6758 = vrot.lane.b32.xlu0 %v6679, 48
      %v6759 = vpop.permute.xlu0 %6758
      %6760 = vrot.lane.b32.xlu0 %v6680, 48
      %v6761 = vpop.permute.xlu0 %6760
      %6762 = vrot.lane.b32.xlu0 %v6681, 48
      %v6763 = vpop.permute.xlu0 %6762
      %6764 = vrot.lane.b32.xlu0 %v6682, 48
      %v6765 = vpop.permute.xlu0 %6764
      %6766 = vrot.lane.b32.xlu0 %v6683, 48
      %v6767 = vpop.permute.xlu0 %6766
      %6768 = vrot.lane.b32.xlu0 %v6684, 48
      %v6769 = vpop.permute.xlu0 %6768
      %6770 = vrot.lane.b32.xlu0 %v6685, 48
      %v6771 = vpop.permute.xlu0 %6770
      %6772 = vrot.lane.b32.xlu0 %v6686, 48
      %v6773 = vpop.permute.xlu0 %6772
      %6774 = vrot.lane.b32.xlu0 %v6687, 48
      %v6775 = vpop.permute.xlu0 %6774
      %6776 = vrot.lane.b32.xlu0 %v6688, 48
      %v6777 = vpop.permute.xlu0 %6776
      %6778 = vrot.lane.b32.xlu0 %v6689, 48
      %v6779 = vpop.permute.xlu0 %6778
      %6780 = vrot.lane.b32.xlu0 %v6690, 48
      %v6781 = vpop.permute.xlu0 %6780
      %6782 = vrot.lane.b32.xlu0 %v6691, 48
      %v6783 = vpop.permute.xlu0 %6782
      %6784 = vrot.lane.b32.xlu0 %v6692, 48
      %v6785 = vpop.permute.xlu0 %6784
      %6786 = vrot.lane.b32.xlu0 %v6693, 48
      %v6787 = vpop.permute.xlu0 %6786
      %6788 = vrot.lane.b32.xlu0 %v6694, 48
      %v6789 = vpop.permute.xlu0 %6788
      %6790 = vrot.lane.b32.xlu0 %v6695, 48
      %v6791 = vpop.permute.xlu0 %6790
      %6824 = vst.msk [vmem:[#allocation3] sm:$0xff] %vm1050, %v6729
      %6825 = vst.msk [vmem:[#allocation3 + $0x8] sm:$0xff] %vm1050, %v6731
      %6826 = vst.msk [vmem:[#allocation3 + $0x10] sm:$0xff] %vm1050, %v6733
      %6827 = vst.msk [vmem:[#allocation3 + $0x18] sm:$0xff] %vm1050, %v6735
      %6828 = vst.msk [vmem:[#allocation3 + $0x20] sm:$0xff] %vm1050, %v6737
      %6829 = vst.msk [vmem:[#allocation3 + $0x28] sm:$0xff] %vm1050, %v6739
      %6830 = vst.msk [vmem:[#allocation3 + $0x30] sm:$0xff] %vm1050, %v6741
      %6831 = vst.msk [vmem:[#allocation3 + $0x38] sm:$0xff] %vm1050, %v6743
      %6832 = vst.msk [vmem:[#allocation3 + $0x40] sm:$0xff] %vm1050, %v6745
      %6833 = vst.msk [vmem:[#allocation3 + $0x48] sm:$0xff] %vm1050, %v6747
      %6834 = vst.msk [vmem:[#allocation3 + $0x50] sm:$0xff] %vm1050, %v6749
      %6835 = vst.msk [vmem:[#allocation3 + $0x58] sm:$0xff] %vm1050, %v6751
      %6836 = vst.msk [vmem:[#allocation3 + $0x60] sm:$0xff] %vm1050, %v6753
      %6837 = vst.msk [vmem:[#allocation3 + $0x68] sm:$0xff] %vm1050, %v6755
      %6838 = vst.msk [vmem:[#allocation3 + $0x70] sm:$0xff] %vm1050, %v6757
      %6839 = vst.msk [vmem:[#allocation3 + $0x78] sm:$0xff] %vm1050, %v6759
      %6840 = vst.msk [vmem:[#allocation3 + $0x80] sm:$0xff] %vm1050, %v6761
      %6841 = vst.msk [vmem:[#allocation3 + $0x88] sm:$0xff] %vm1050, %v6763
      %6842 = vst.msk [vmem:[#allocation3 + $0x90] sm:$0xff] %vm1050, %v6765
      %6843 = vst.msk [vmem:[#allocation3 + $0x98] sm:$0xff] %vm1050, %v6767
      %6844 = vst.msk [vmem:[#allocation3 + $0xa0] sm:$0xff] %vm1050, %v6769
      %6845 = vst.msk [vmem:[#allocation3 + $0xa8] sm:$0xff] %vm1050, %v6771
      %6846 = vst.msk [vmem:[#allocation3 + $0xb0] sm:$0xff] %vm1050, %v6773
      %6847 = vst.msk [vmem:[#allocation3 + $0xb8] sm:$0xff] %vm1050, %v6775
      %6848 = vst.msk [vmem:[#allocation3 + $0xc0] sm:$0xff] %vm1050, %v6777
      %6849 = vst.msk [vmem:[#allocation3 + $0xc8] sm:$0xff] %vm1050, %v6779
      %6850 = vst.msk [vmem:[#allocation3 + $0xd0] sm:$0xff] %vm1050, %v6781
      %6851 = vst.msk [vmem:[#allocation3 + $0xd8] sm:$0xff] %vm1050, %v6783
      %6852 = vst.msk [vmem:[#allocation3 + $0xe0] sm:$0xff] %vm1050, %v6785
      %6853 = vst.msk [vmem:[#allocation3 + $0xe8] sm:$0xff] %vm1050, %v6787
      %6854 = vst.msk [vmem:[#allocation3 + $0xf0] sm:$0xff] %vm1050, %v6789
      %6855 = vst.msk [vmem:[#allocation3 + $0xf8] sm:$0xff] %vm1050, %v6791
      %v6856 = vld [vmem:[%s405 + $0x1] sm:$0xff]
      %v6857 = vld [vmem:[%s405 + $0x9] sm:$0xff]
      %v6858 = vld [vmem:[%s405 + $0x19] sm:$0xff]
      %v6859 = vld [vmem:[%s405 + $0x21] sm:$0xff]
      %v6860 = vld [vmem:[%s405 + $0x31] sm:$0xff]
      %v6861 = vld [vmem:[%s405 + $0x39] sm:$0xff]
      %v6862 = vld [vmem:[%s405 + $0x49] sm:$0xff]
      %v6863 = vld [vmem:[%s405 + $0x51] sm:$0xff]
      %v6864 = vld [vmem:[%s405 + $0x61] sm:$0xff]
      %v6865 = vld [vmem:[%s405 + $0x69] sm:$0xff]
      %v6866 = vld [vmem:[%s405 + $0x79] sm:$0xff]
      %v6867 = vld [vmem:[%s405 + $0x81] sm:$0xff]
      %v6868 = vld [vmem:[%s405 + $0x91] sm:$0xff]
      %v6869 = vld [vmem:[%s405 + $0x99] sm:$0xff]
      %v6870 = vld [vmem:[%s405 + $0xa9] sm:$0xff]
      %v6871 = vld [vmem:[%s405 + $0xb1] sm:$0xff]
      %v6872 = vld [vmem:[%s405 + $0xc1] sm:$0xff]
      %v6873 = vld [vmem:[%s405 + $0xc9] sm:$0xff]
      %v6874 = vld [vmem:[%s405 + $0xd9] sm:$0xff]
      %v6875 = vld [vmem:[%s405 + $0xe1] sm:$0xff]
      %v6876 = vld [vmem:[%s405 + $0xf1] sm:$0xff]
      %v6877 = vld [vmem:[%s405 + $0xf9] sm:$0xff]
      %v6878 = vld [vmem:[%s405 + $0x109] sm:$0xff]
      %v6879 = vld [vmem:[%s405 + $0x111] sm:$0xff]
      %v6880 = vld [vmem:[%s405 + $0x121] sm:$0xff]
      %v6881 = vld [vmem:[%s405 + $0x129] sm:$0xff]
      %v6882 = vld [vmem:[%s405 + $0x139] sm:$0xff]
      %v6883 = vld [vmem:[%s405 + $0x141] sm:$0xff]
      %v6884 = vld [vmem:[%s405 + $0x151] sm:$0xff]
      %v6885 = vld [vmem:[%s405 + $0x159] sm:$0xff]
      %v6886 = vld [vmem:[%s405 + $0x169] sm:$0xff]
      %v6887 = vld [vmem:[%s405 + $0x171] sm:$0xff]
      %6920 = vrot.lane.b32.xlu0 %v6856, 64
      %v6921 = vpop.permute.xlu0 %6920
      %6922 = vrot.lane.b32.xlu0 %v6857, 64
      %v6923 = vpop.permute.xlu0 %6922
      %6924 = vrot.lane.b32.xlu0 %v6858, 64
      %v6925 = vpop.permute.xlu0 %6924
      %6926 = vrot.lane.b32.xlu0 %v6859, 64
      %v6927 = vpop.permute.xlu0 %6926
      %6928 = vrot.lane.b32.xlu0 %v6860, 64
      %v6929 = vpop.permute.xlu0 %6928
      %6930 = vrot.lane.b32.xlu0 %v6861, 64
      %v6931 = vpop.permute.xlu0 %6930
      %6932 = vrot.lane.b32.xlu0 %v6862, 64
      %v6933 = vpop.permute.xlu0 %6932
      %6934 = vrot.lane.b32.xlu0 %v6863, 64
      %v6935 = vpop.permute.xlu0 %6934
      %6936 = vrot.lane.b32.xlu0 %v6864, 64
      %v6937 = vpop.permute.xlu0 %6936
      %6938 = vrot.lane.b32.xlu0 %v6865, 64
      %v6939 = vpop.permute.xlu0 %6938
      %6940 = vrot.lane.b32.xlu0 %v6866, 64
      %v6941 = vpop.permute.xlu0 %6940
      %6942 = vrot.lane.b32.xlu0 %v6867, 64
      %v6943 = vpop.permute.xlu0 %6942
      %6944 = vrot.lane.b32.xlu0 %v6868, 64
      %v6945 = vpop.permute.xlu0 %6944
      %6946 = vrot.lane.b32.xlu0 %v6869, 64
      %v6947 = vpop.permute.xlu0 %6946
      %6948 = vrot.lane.b32.xlu0 %v6870, 64
      %v6949 = vpop.permute.xlu0 %6948
      %6950 = vrot.lane.b32.xlu0 %v6871, 64
      %v6951 = vpop.permute.xlu0 %6950
      %6952 = vrot.lane.b32.xlu0 %v6872, 64
      %v6953 = vpop.permute.xlu0 %6952
      %6954 = vrot.lane.b32.xlu0 %v6873, 64
      %v6955 = vpop.permute.xlu0 %6954
      %6956 = vrot.lane.b32.xlu0 %v6874, 64
      %v6957 = vpop.permute.xlu0 %6956
      %6958 = vrot.lane.b32.xlu0 %v6875, 64
      %v6959 = vpop.permute.xlu0 %6958
      %6960 = vrot.lane.b32.xlu0 %v6876, 64
      %v6961 = vpop.permute.xlu0 %6960
      %6962 = vrot.lane.b32.xlu0 %v6877, 64
      %v6963 = vpop.permute.xlu0 %6962
      %6964 = vrot.lane.b32.xlu0 %v6878, 64
      %v6965 = vpop.permute.xlu0 %6964
      %6966 = vrot.lane.b32.xlu0 %v6879, 64
      %v6967 = vpop.permute.xlu0 %6966
      %6968 = vrot.lane.b32.xlu0 %v6880, 64
      %v6969 = vpop.permute.xlu0 %6968
      %6970 = vrot.lane.b32.xlu0 %v6881, 64
      %v6971 = vpop.permute.xlu0 %6970
      %6972 = vrot.lane.b32.xlu0 %v6882, 64
      %v6973 = vpop.permute.xlu0 %6972
      %6974 = vrot.lane.b32.xlu0 %v6883, 64
      %v6975 = vpop.permute.xlu0 %6974
      %6976 = vrot.lane.b32.xlu0 %v6884, 64
      %v6977 = vpop.permute.xlu0 %6976
      %6978 = vrot.lane.b32.xlu0 %v6885, 64
      %v6979 = vpop.permute.xlu0 %6978
      %6980 = vrot.lane.b32.xlu0 %v6886, 64
      %v6981 = vpop.permute.xlu0 %6980
      %6982 = vrot.lane.b32.xlu0 %v6887, 64
      %v6983 = vpop.permute.xlu0 %6982
      %7016 = vst.msk [vmem:[#allocation3] sm:$0xff] %vm1243, %v6921
      %7017 = vst.msk [vmem:[#allocation3 + $0x8] sm:$0xff] %vm1243, %v6923
      %7018 = vst.msk [vmem:[#allocation3 + $0x10] sm:$0xff] %vm1243, %v6925
      %7019 = vst.msk [vmem:[#allocation3 + $0x18] sm:$0xff] %vm1243, %v6927
      %7020 = vst.msk [vmem:[#allocation3 + $0x20] sm:$0xff] %vm1243, %v6929
      %7021 = vst.msk [vmem:[#allocation3 + $0x28] sm:$0xff] %vm1243, %v6931
      %7022 = vst.msk [vmem:[#allocation3 + $0x30] sm:$0xff] %vm1243, %v6933
      %7023 = vst.msk [vmem:[#allocation3 + $0x38] sm:$0xff] %vm1243, %v6935
      %7024 = vst.msk [vmem:[#allocation3 + $0x40] sm:$0xff] %vm1243, %v6937
      %7025 = vst.msk [vmem:[#allocation3 + $0x48] sm:$0xff] %vm1243, %v6939
      %7026 = vst.msk [vmem:[#allocation3 + $0x50] sm:$0xff] %vm1243, %v6941
      %7027 = vst.msk [vmem:[#allocation3 + $0x58] sm:$0xff] %vm1243, %v6943
      %7028 = vst.msk [vmem:[#allocation3 + $0x60] sm:$0xff] %vm1243, %v6945
      %7029 = vst.msk [vmem:[#allocation3 + $0x68] sm:$0xff] %vm1243, %v6947
      %7030 = vst.msk [vmem:[#allocation3 + $0x70] sm:$0xff] %vm1243, %v6949
      %7031 = vst.msk [vmem:[#allocation3 + $0x78] sm:$0xff] %vm1243, %v6951
      %7032 = vst.msk [vmem:[#allocation3 + $0x80] sm:$0xff] %vm1243, %v6953
      %7033 = vst.msk [vmem:[#allocation3 + $0x88] sm:$0xff] %vm1243, %v6955
      %7034 = vst.msk [vmem:[#allocation3 + $0x90] sm:$0xff] %vm1243, %v6957
      %7035 = vst.msk [vmem:[#allocation3 + $0x98] sm:$0xff] %vm1243, %v6959
      %7036 = vst.msk [vmem:[#allocation3 + $0xa0] sm:$0xff] %vm1243, %v6961
      %7037 = vst.msk [vmem:[#allocation3 + $0xa8] sm:$0xff] %vm1243, %v6963
      %7038 = vst.msk [vmem:[#allocation3 + $0xb0] sm:$0xff] %vm1243, %v6965
      %7039 = vst.msk [vmem:[#allocation3 + $0xb8] sm:$0xff] %vm1243, %v6967
      %7040 = vst.msk [vmem:[#allocation3 + $0xc0] sm:$0xff] %vm1243, %v6969
      %7041 = vst.msk [vmem:[#allocation3 + $0xc8] sm:$0xff] %vm1243, %v6971
      %7042 = vst.msk [vmem:[#allocation3 + $0xd0] sm:$0xff] %vm1243, %v6973
      %7043 = vst.msk [vmem:[#allocation3 + $0xd8] sm:$0xff] %vm1243, %v6975
      %7044 = vst.msk [vmem:[#allocation3 + $0xe0] sm:$0xff] %vm1243, %v6977
      %7045 = vst.msk [vmem:[#allocation3 + $0xe8] sm:$0xff] %vm1243, %v6979
      %7046 = vst.msk [vmem:[#allocation3 + $0xf0] sm:$0xff] %vm1243, %v6981
      %7047 = vst.msk [vmem:[#allocation3 + $0xf8] sm:$0xff] %vm1243, %v6983
      %v7048 = vld [vmem:[%s405 + $0x2] sm:$0xff]
      %v7049 = vld [vmem:[%s405 + $0xa] sm:$0xff]
      %v7050 = vld [vmem:[%s405 + $0x1a] sm:$0xff]
      %v7051 = vld [vmem:[%s405 + $0x22] sm:$0xff]
      %v7052 = vld [vmem:[%s405 + $0x32] sm:$0xff]
      %v7053 = vld [vmem:[%s405 + $0x3a] sm:$0xff]
      %v7054 = vld [vmem:[%s405 + $0x4a] sm:$0xff]
      %v7055 = vld [vmem:[%s405 + $0x52] sm:$0xff]
      %v7056 = vld [vmem:[%s405 + $0x62] sm:$0xff]
      %v7057 = vld [vmem:[%s405 + $0x6a] sm:$0xff]
      %v7058 = vld [vmem:[%s405 + $0x7a] sm:$0xff]
      %v7059 = vld [vmem:[%s405 + $0x82] sm:$0xff]
      %v7060 = vld [vmem:[%s405 + $0x92] sm:$0xff]
      %v7061 = vld [vmem:[%s405 + $0x9a] sm:$0xff]
      %v7062 = vld [vmem:[%s405 + $0xaa] sm:$0xff]
      %v7063 = vld [vmem:[%s405 + $0xb2] sm:$0xff]
      %v7064 = vld [vmem:[%s405 + $0xc2] sm:$0xff]
      %v7065 = vld [vmem:[%s405 + $0xca] sm:$0xff]
      %v7066 = vld [vmem:[%s405 + $0xda] sm:$0xff]
      %v7067 = vld [vmem:[%s405 + $0xe2] sm:$0xff]
      %v7068 = vld [vmem:[%s405 + $0xf2] sm:$0xff]
      %v7069 = vld [vmem:[%s405 + $0xfa] sm:$0xff]
      %v7070 = vld [vmem:[%s405 + $0x10a] sm:$0xff]
      %v7071 = vld [vmem:[%s405 + $0x112] sm:$0xff]
      %v7072 = vld [vmem:[%s405 + $0x122] sm:$0xff]
      %v7073 = vld [vmem:[%s405 + $0x12a] sm:$0xff]
      %v7074 = vld [vmem:[%s405 + $0x13a] sm:$0xff]
      %v7075 = vld [vmem:[%s405 + $0x142] sm:$0xff]
      %v7076 = vld [vmem:[%s405 + $0x152] sm:$0xff]
      %v7077 = vld [vmem:[%s405 + $0x15a] sm:$0xff]
      %v7078 = vld [vmem:[%s405 + $0x16a] sm:$0xff]
      %v7079 = vld [vmem:[%s405 + $0x172] sm:$0xff]
      %7112 = vrot.lane.b32.xlu0 %v7048, 80
      %v7113 = vpop.permute.xlu0 %7112
      %7114 = vrot.lane.b32.xlu0 %v7049, 80
      %v7115 = vpop.permute.xlu0 %7114
      %7116 = vrot.lane.b32.xlu0 %v7050, 80
      %v7117 = vpop.permute.xlu0 %7116
      %7118 = vrot.lane.b32.xlu0 %v7051, 80
      %v7119 = vpop.permute.xlu0 %7118
      %7120 = vrot.lane.b32.xlu0 %v7052, 80
      %v7121 = vpop.permute.xlu0 %7120
      %7122 = vrot.lane.b32.xlu0 %v7053, 80
      %v7123 = vpop.permute.xlu0 %7122
      %7124 = vrot.lane.b32.xlu0 %v7054, 80
      %v7125 = vpop.permute.xlu0 %7124
      %7126 = vrot.lane.b32.xlu0 %v7055, 80
      %v7127 = vpop.permute.xlu0 %7126
      %7128 = vrot.lane.b32.xlu0 %v7056, 80
      %v7129 = vpop.permute.xlu0 %7128
      %7130 = vrot.lane.b32.xlu0 %v7057, 80
      %v7131 = vpop.permute.xlu0 %7130
      %7132 = vrot.lane.b32.xlu0 %v7058, 80
      %v7133 = vpop.permute.xlu0 %7132
      %7134 = vrot.lane.b32.xlu0 %v7059, 80
      %v7135 = vpop.permute.xlu0 %7134
      %7136 = vrot.lane.b32.xlu0 %v7060, 80
      %v7137 = vpop.permute.xlu0 %7136
      %7138 = vrot.lane.b32.xlu0 %v7061, 80
      %v7139 = vpop.permute.xlu0 %7138
      %7140 = vrot.lane.b32.xlu0 %v7062, 80
      %v7141 = vpop.permute.xlu0 %7140
      %7142 = vrot.lane.b32.xlu0 %v7063, 80
      %v7143 = vpop.permute.xlu0 %7142
      %7144 = vrot.lane.b32.xlu0 %v7064, 80
      %v7145 = vpop.permute.xlu0 %7144
      %7146 = vrot.lane.b32.xlu0 %v7065, 80
      %v7147 = vpop.permute.xlu0 %7146
      %7148 = vrot.lane.b32.xlu0 %v7066, 80
      %v7149 = vpop.permute.xlu0 %7148
      %7150 = vrot.lane.b32.xlu0 %v7067, 80
      %v7151 = vpop.permute.xlu0 %7150
      %7152 = vrot.lane.b32.xlu0 %v7068, 80
      %v7153 = vpop.permute.xlu0 %7152
      %7154 = vrot.lane.b32.xlu0 %v7069, 80
      %v7155 = vpop.permute.xlu0 %7154
      %7156 = vrot.lane.b32.xlu0 %v7070, 80
      %v7157 = vpop.permute.xlu0 %7156
      %7158 = vrot.lane.b32.xlu0 %v7071, 80
      %v7159 = vpop.permute.xlu0 %7158
      %7160 = vrot.lane.b32.xlu0 %v7072, 80
      %v7161 = vpop.permute.xlu0 %7160
      %7162 = vrot.lane.b32.xlu0 %v7073, 80
      %v7163 = vpop.permute.xlu0 %7162
      %7164 = vrot.lane.b32.xlu0 %v7074, 80
      %v7165 = vpop.permute.xlu0 %7164
      %7166 = vrot.lane.b32.xlu0 %v7075, 80
      %v7167 = vpop.permute.xlu0 %7166
      %7168 = vrot.lane.b32.xlu0 %v7076, 80
      %v7169 = vpop.permute.xlu0 %7168
      %7170 = vrot.lane.b32.xlu0 %v7077, 80
      %v7171 = vpop.permute.xlu0 %7170
      %7172 = vrot.lane.b32.xlu0 %v7078, 80
      %v7173 = vpop.permute.xlu0 %7172
      %7174 = vrot.lane.b32.xlu0 %v7079, 80
      %v7175 = vpop.permute.xlu0 %7174
      %7208 = vst.msk [vmem:[#allocation3] sm:$0xff] %vm1436, %v7113
      %7209 = vst.msk [vmem:[#allocation3 + $0x8] sm:$0xff] %vm1436, %v7115
      %7210 = vst.msk [vmem:[#allocation3 + $0x10] sm:$0xff] %vm1436, %v7117
      %7211 = vst.msk [vmem:[#allocation3 + $0x18] sm:$0xff] %vm1436, %v7119
      %7212 = vst.msk [vmem:[#allocation3 + $0x20] sm:$0xff] %vm1436, %v7121
      %7213 = vst.msk [vmem:[#allocation3 + $0x28] sm:$0xff] %vm1436, %v7123
      %7214 = vst.msk [vmem:[#allocation3 + $0x30] sm:$0xff] %vm1436, %v7125
      %7215 = vst.msk [vmem:[#allocation3 + $0x38] sm:$0xff] %vm1436, %v7127
      %7216 = vst.msk [vmem:[#allocation3 + $0x40] sm:$0xff] %vm1436, %v7129
      %7217 = vst.msk [vmem:[#allocation3 + $0x48] sm:$0xff] %vm1436, %v7131
      %7218 = vst.msk [vmem:[#allocation3 + $0x50] sm:$0xff] %vm1436, %v7133
      %7219 = vst.msk [vmem:[#allocation3 + $0x58] sm:$0xff] %vm1436, %v7135
      %7220 = vst.msk [vmem:[#allocation3 + $0x60] sm:$0xff] %vm1436, %v7137
      %7221 = vst.msk [vmem:[#allocation3 + $0x68] sm:$0xff] %vm1436, %v7139
      %7222 = vst.msk [vmem:[#allocation3 + $0x70] sm:$0xff] %vm1436, %v7141
      %7223 = vst.msk [vmem:[#allocation3 + $0x78] sm:$0xff] %vm1436, %v7143
      %7224 = vst.msk [vmem:[#allocation3 + $0x80] sm:$0xff] %vm1436, %v7145
      %7225 = vst.msk [vmem:[#allocation3 + $0x88] sm:$0xff] %vm1436, %v7147
      %7226 = vst.msk [vmem:[#allocation3 + $0x90] sm:$0xff] %vm1436, %v7149
      %7227 = vst.msk [vmem:[#allocation3 + $0x98] sm:$0xff] %vm1436, %v7151
      %7228 = vst.msk [vmem:[#allocation3 + $0xa0] sm:$0xff] %vm1436, %v7153
      %7229 = vst.msk [vmem:[#allocation3 + $0xa8] sm:$0xff] %vm1436, %v7155
      %7230 = vst.msk [vmem:[#allocation3 + $0xb0] sm:$0xff] %vm1436, %v7157
      %7231 = vst.msk [vmem:[#allocation3 + $0xb8] sm:$0xff] %vm1436, %v7159
      %7232 = vst.msk [vmem:[#allocation3 + $0xc0] sm:$0xff] %vm1436, %v7161
      %7233 = vst.msk [vmem:[#allocation3 + $0xc8] sm:$0xff] %vm1436, %v7163
      %7234 = vst.msk [vmem:[#allocation3 + $0xd0] sm:$0xff] %vm1436, %v7165
      %7235 = vst.msk [vmem:[#allocation3 + $0xd8] sm:$0xff] %vm1436, %v7167
      %7236 = vst.msk [vmem:[#allocation3 + $0xe0] sm:$0xff] %vm1436, %v7169
      %7237 = vst.msk [vmem:[#allocation3 + $0xe8] sm:$0xff] %vm1436, %v7171
      %7238 = vst.msk [vmem:[#allocation3 + $0xf0] sm:$0xff] %vm1436, %v7173
      %7239 = vst.msk [vmem:[#allocation3 + $0xf8] sm:$0xff] %vm1436, %v7175
      %v7240 = vld [vmem:[#allocation3] sm:$0xff]
      %v7241 = vld [vmem:[#allocation3 + $0x8] sm:$0xff]
      %v7242 = vld [vmem:[#allocation3 + $0x10] sm:$0xff]
      %v7243 = vld [vmem:[#allocation3 + $0x18] sm:$0xff]
      %v7244 = vld [vmem:[#allocation3 + $0x20] sm:$0xff]
      %v7245 = vld [vmem:[#allocation3 + $0x28] sm:$0xff]
      %v7246 = vld [vmem:[#allocation3 + $0x30] sm:$0xff]
      %v7247 = vld [vmem:[#allocation3 + $0x38] sm:$0xff]
      %v7248 = vld [vmem:[#allocation3 + $0x40] sm:$0xff]
      %v7249 = vld [vmem:[#allocation3 + $0x48] sm:$0xff]
      %v7250 = vld [vmem:[#allocation3 + $0x50] sm:$0xff]
      %v7251 = vld [vmem:[#allocation3 + $0x58] sm:$0xff]
      %v7252 = vld [vmem:[#allocation3 + $0x60] sm:$0xff]
      %v7253 = vld [vmem:[#allocation3 + $0x68] sm:$0xff]
      %v7254 = vld [vmem:[#allocation3 + $0x70] sm:$0xff]
      %v7255 = vld [vmem:[#allocation3 + $0x78] sm:$0xff]
      %v7256 = vld [vmem:[#allocation3 + $0x80] sm:$0xff]
      %v7257 = vld [vmem:[#allocation3 + $0x88] sm:$0xff]
      %v7258 = vld [vmem:[#allocation3 + $0x90] sm:$0xff]
      %v7259 = vld [vmem:[#allocation3 + $0x98] sm:$0xff]
      %v7260 = vld [vmem:[#allocation3 + $0xa0] sm:$0xff]
      %v7261 = vld [vmem:[#allocation3 + $0xa8] sm:$0xff]
      %v7262 = vld [vmem:[#allocation3 + $0xb0] sm:$0xff]
      %v7263 = vld [vmem:[#allocation3 + $0xb8] sm:$0xff]
      %v7264 = vld [vmem:[#allocation3 + $0xc0] sm:$0xff]
      %v7265 = vld [vmem:[#allocation3 + $0xc8] sm:$0xff]
      %v7266 = vld [vmem:[#allocation3 + $0xd0] sm:$0xff]
      %v7267 = vld [vmem:[#allocation3 + $0xd8] sm:$0xff]
      %v7268 = vld [vmem:[#allocation3 + $0xe0] sm:$0xff]
      %v7269 = vld [vmem:[#allocation3 + $0xe8] sm:$0xff]
      %v7270 = vld [vmem:[#allocation3 + $0xf0] sm:$0xff]
      %v7271 = vld [vmem:[#allocation3 + $0xf8] sm:$0xff]
      %s7272 = scalar_lea.vmem %s1, 288
      %v7273 = vld [vmem:[%s7272] sm:$0xff]
      %v7274 = vld [vmem:[%s7272 + $0x8] sm:$0xff]
      %v7275 = vld [vmem:[%s7272 + $0x10] sm:$0xff]
      %v7276 = vld [vmem:[%s7272 + $0x18] sm:$0xff]
      %v7277 = vld [vmem:[%s7272 + $0x20] sm:$0xff]
      %v7278 = vld [vmem:[%s7272 + $0x28] sm:$0xff]
      %v7279 = vld [vmem:[%s7272 + $0x30] sm:$0xff]
      %v7280 = vld [vmem:[%s7272 + $0x38] sm:$0xff]
      %v7281 = vld [vmem:[%s7272 + $0x40] sm:$0xff]
      %v7282 = vld [vmem:[%s7272 + $0x48] sm:$0xff]
      %v7283 = vld [vmem:[%s7272 + $0x50] sm:$0xff]
      %v7284 = vld [vmem:[%s7272 + $0x58] sm:$0xff]
      %v7286 = vsel %vm1513, %v7240, 0
      %v7289 = vsel %vm1513, %v7241, 0
      %v7292 = vsel %vm1513, %v7242, 0
      %v7295 = vsel %vm1513, %v7243, 0
      %v7298 = vsel %vm1513, %v7244, 0
      %v7301 = vsel %vm1513, %v7245, 0
      %v7304 = vsel %vm1513, %v7246, 0
      %v7307 = vsel %vm1513, %v7247, 0
      %v7310 = vsel %vm1513, %v7248, 0
      %v7313 = vsel %vm1513, %v7249, 0
      %v7316 = vsel %vm1513, %v7250, 0
      %v7319 = vsel %vm1513, %v7251, 0
      %v7322 = vsel %vm1513, %v7252, 0
      %v7325 = vsel %vm1513, %v7253, 0
      %v7328 = vsel %vm1513, %v7254, 0
      %v7331 = vsel %vm1513, %v7255, 0
      %v7334 = vsel %vm1513, %v7256, 0
      %v7337 = vsel %vm1513, %v7257, 0
      %v7340 = vsel %vm1513, %v7258, 0
      %v7343 = vsel %vm1513, %v7259, 0
      %v7346 = vsel %vm1513, %v7260, 0
      %v7349 = vsel %vm1513, %v7261, 0
      %v7352 = vsel %vm1513, %v7262, 0
      %v7355 = vsel %vm1513, %v7263, 0
      %v7358 = vsel %vm1513, %v7264, 0
      %v7361 = vsel %vm1513, %v7265, 0
      %v7364 = vsel %vm1513, %v7266, 0
      %v7367 = vsel %vm1513, %v7267, 0
      %v7370 = vsel %vm1513, %v7268, 0
      %v7373 = vsel %vm1513, %v7269, 0
      %v7376 = vsel %vm1513, %v7270, 0
      %v7379 = vsel %vm1513, %v7271, 0
      %7381 = vmatprep.subr.mxu0 0.0
      %7382 = vmatpush1.msra.mxu0 %v7273
      %7383 = vmatprep.subr.mxu0 0.0
      %7384 = vmatpush1.msra.mxu0 %v7274
      %7385 = vmatprep.subr.mxu0 0.0
      %7386 = vmatpush1.msra.mxu0 %v7275
      %7387 = vmatprep.subr.mxu0 0.0
      %7388 = vmatpush1.msra.mxu0 %v7276
      %7389 = vmatprep.subr.mxu0 0.0
      %7390 = vmatpush1.msra.mxu0 %v7277
      %7391 = vmatprep.subr.mxu0 0.0
      %7392 = vmatpush1.msra.mxu0 %v7278
      %7393 = vmatprep.subr.mxu0 0.0
      %7394 = vmatpush1.msra.mxu0 %v7279
      %7395 = vmatprep.subr.mxu0 0.0
      %7396 = vmatpush1.msra.mxu0 %v7280
      %7397 = vmatprep.subr.mxu0 0.0
      %7398 = vmatpush1.msra.mxu0 %v7281
      %7399 = vmatprep.subr.mxu0 0.0
      %7400 = vmatpush1.msra.mxu0 %v7282
      %7401 = vmatprep.subr.mxu0 0.0
      %7402 = vmatpush1.msra.mxu0 %v7283
      %7403 = vmatprep.subr.mxu0 0.0
      %7404 = vmatpush1.msra.mxu0 %v7284
      %7405 = vmatprep.subr.mxu0 0.0
      %7406 = vmatpush1.msra.mxu0 0.0
      %7407 = vmatprep.subr.mxu0 0.0
      %7408 = vmatpush1.msra.mxu0 0.0
      %7409 = vmatprep.subr.mxu0 0.0
      %7410 = vmatpush1.msra.mxu0 0.0
      %7411 = vmatprep.subr.mxu0 0.0
      %7412 = vmatpush1.msra.mxu0 0.0
      %7413 = vmatprep.subr.mxu0 0.0
      %7414 = vmatpush1.msra.mxu0 0.0
      %7415 = vmatprep.subr.mxu0 0.0
      %7416 = vmatpush1.msra.mxu0 0.0
      %7417 = vmatprep.subr.mxu0 0.0
      %7418 = vmatpush1.msra.mxu0 0.0
      %7419 = vmatprep.subr.mxu0 0.0
      %7420 = vmatpush1.msra.mxu0 0.0
      %7421 = vmatprep.subr.mxu0 0.0
      %7422 = vmatpush1.msra.mxu0 0.0
      %7423 = vmatprep.subr.mxu0 0.0
      %7424 = vmatpush1.msra.mxu0 0.0
      %7425 = vmatprep.subr.mxu0 0.0
      %7426 = vmatpush1.msra.mxu0 0.0
      %7427 = vmatprep.subr.mxu0 0.0
      %7428 = vmatpush1.msra.mxu0 0.0
      %7429 = vmatprep.subr.mxu0 0.0
      %7430 = vmatpush1.msra.mxu0 0.0
      %7431 = vmatprep.subr.mxu0 0.0
      %7432 = vmatpush1.msra.mxu0 0.0
      %7433 = vmatprep.subr.mxu0 0.0
      %7434 = vmatpush1.msra.mxu0 0.0
      %7435 = vmatprep.subr.mxu0 0.0
      %7436 = vmatpush1.msra.mxu0 0.0
      %7437 = vmatprep.subr.mxu0 0.0
      %7438 = vmatpush1.msra.mxu0 0.0
      %7439 = vmatprep.subr.mxu0 0.0
      %7440 = vmatpush1.msra.mxu0 0.0
      %7441 = vmatprep.subr.mxu0 0.0
      %7442 = vmatpush1.msra.mxu0 0.0
      %7443 = vmatprep.subr.mxu0 0.0
      %7444 = vmatpush1.msra.mxu0 0.0
      %7445 = vmatprep.mubr.f32.mxu0 0.0
      %7446 = vmatmul.mubr.f32.gmra.mrb[0].mxu0 %v7286
      %v7447 = vpop.f32.mrb[0].mxu0
      %v7448 = vadd.f32 0.0, %v7447
      %v7449 = vpop.f32.mrb[0].mxu0
      %7450 = vmatprep.mubr.f32.mxu0 0.0
      %7451 = vmatmul.mubr.f32.gmra.mrb[0].mxu0 %v7289
      %v7452 = vpop.f32.mrb[0].mxu0
      %v7453 = vadd.f32 0.0, %v7452
      %v7454 = vpop.f32.mrb[0].mxu0
      %7455 = vmatprep.mubr.f32.mxu0 0.0
      %7456 = vmatmul.mubr.f32.gmra.mrb[0].mxu0 %v7292
      %v7457 = vpop.f32.mrb[0].mxu0
      %v7458 = vadd.f32 0.0, %v7457
      %v7459 = vpop.f32.mrb[0].mxu0
      %7460 = vmatprep.mubr.f32.mxu0 0.0
      %7461 = vmatmul.mubr.f32.gmra.mrb[0].mxu0 %v7295
      %v7462 = vpop.f32.mrb[0].mxu0
      %v7463 = vadd.f32 0.0, %v7462
      %v7464 = vpop.f32.mrb[0].mxu0
      %7465 = vmatprep.mubr.f32.mxu0 0.0
      %7466 = vmatmul.mubr.f32.gmra.mrb[0].mxu0 %v7298
      %v7467 = vpop.f32.mrb[0].mxu0
      %v7468 = vadd.f32 0.0, %v7467
      %v7469 = vpop.f32.mrb[0].mxu0
      %7470 = vmatprep.mubr.f32.mxu0 0.0
      %7471 = vmatmul.mubr.f32.gmra.mrb[0].mxu0 %v7301
      %v7472 = vpop.f32.mrb[0].mxu0
      %v7473 = vadd.f32 0.0, %v7472
      %v7474 = vpop.f32.mrb[0].mxu0
      %7475 = vmatprep.mubr.f32.mxu0 0.0
      %7476 = vmatmul.mubr.f32.gmra.mrb[0].mxu0 %v7304
      %v7477 = vpop.f32.mrb[0].mxu0
      %v7478 = vadd.f32 0.0, %v7477
      %v7479 = vpop.f32.mrb[0].mxu0
      %7480 = vmatprep.mubr.f32.mxu0 0.0
      %7481 = vmatmul.mubr.f32.gmra.mrb[0].mxu0 %v7307
      %v7482 = vpop.f32.mrb[0].mxu0
      %v7483 = vadd.f32 0.0, %v7482
      %v7484 = vpop.f32.mrb[0].mxu0
      %7485 = vmatprep.mubr.f32.mxu0 0.0
      %7486 = vmatmul.mubr.f32.gmra.mrb[0].mxu0 %v7310
      %v7487 = vpop.f32.mrb[0].mxu0
      %v7488 = vadd.f32 0.0, %v7487
      %v7489 = vpop.f32.mrb[0].mxu0
      %7490 = vmatprep.mubr.f32.mxu0 0.0
      %7491 = vmatmul.mubr.f32.gmra.mrb[0].mxu0 %v7313
      %v7492 = vpop.f32.mrb[0].mxu0
      %v7493 = vadd.f32 0.0, %v7492
      %v7494 = vpop.f32.mrb[0].mxu0
      %7495 = vmatprep.mubr.f32.mxu0 0.0
      %7496 = vmatmul.mubr.f32.gmra.mrb[0].mxu0 %v7316
      %v7497 = vpop.f32.mrb[0].mxu0
      %v7498 = vadd.f32 0.0, %v7497
      %v7499 = vpop.f32.mrb[0].mxu0
      %7500 = vmatprep.mubr.f32.mxu0 0.0
      %7501 = vmatmul.mubr.f32.gmra.mrb[0].mxu0 %v7319
      %v7502 = vpop.f32.mrb[0].mxu0
      %v7503 = vadd.f32 0.0, %v7502
      %v7504 = vpop.f32.mrb[0].mxu0
      %7505 = vmatprep.mubr.f32.mxu0 0.0
      %7506 = vmatmul.mubr.f32.gmra.mrb[0].mxu0 %v7322
      %v7507 = vpop.f32.mrb[0].mxu0
      %v7508 = vadd.f32 0.0, %v7507
      %v7509 = vpop.f32.mrb[0].mxu0
      %7510 = vmatprep.mubr.f32.mxu0 0.0
      %7511 = vmatmul.mubr.f32.gmra.mrb[0].mxu0 %v7325
      %v7512 = vpop.f32.mrb[0].mxu0
      %v7513 = vadd.f32 0.0, %v7512
      %v7514 = vpop.f32.mrb[0].mxu0
      %7515 = vmatprep.mubr.f32.mxu0 0.0
      %7516 = vmatmul.mubr.f32.gmra.mrb[0].mxu0 %v7328
      %v7517 = vpop.f32.mrb[0].mxu0
      %v7518 = vadd.f32 0.0, %v7517
      %v7519 = vpop.f32.mrb[0].mxu0
      %7520 = vmatprep.mubr.f32.mxu0 0.0
      %7521 = vmatmul.mubr.f32.gmra.mrb[0].mxu0 %v7331
      %v7522 = vpop.f32.mrb[0].mxu0
      %v7523 = vadd.f32 0.0, %v7522
      %v7524 = vpop.f32.mrb[0].mxu0
      %7525 = vmatprep.mubr.f32.mxu0 0.0
      %7526 = vmatmul.mubr.f32.gmra.mrb[0].mxu0 %v7334
      %v7527 = vpop.f32.mrb[0].mxu0
      %v7528 = vadd.f32 0.0, %v7527
      %v7529 = vpop.f32.mrb[0].mxu0
      %7530 = vmatprep.mubr.f32.mxu0 0.0
      %7531 = vmatmul.mubr.f32.gmra.mrb[0].mxu0 %v7337
      %v7532 = vpop.f32.mrb[0].mxu0
      %v7533 = vadd.f32 0.0, %v7532
      %v7534 = vpop.f32.mrb[0].mxu0
      %7535 = vmatprep.mubr.f32.mxu0 0.0
      %7536 = vmatmul.mubr.f32.gmra.mrb[0].mxu0 %v7340
      %v7537 = vpop.f32.mrb[0].mxu0
      %v7538 = vadd.f32 0.0, %v7537
      %v7539 = vpop.f32.mrb[0].mxu0
      %7540 = vmatprep.mubr.f32.mxu0 0.0
      %7541 = vmatmul.mubr.f32.gmra.mrb[0].mxu0 %v7343
      %v7542 = vpop.f32.mrb[0].mxu0
      %v7543 = vadd.f32 0.0, %v7542
      %v7544 = vpop.f32.mrb[0].mxu0
      %7545 = vmatprep.mubr.f32.mxu0 0.0
      %7546 = vmatmul.mubr.f32.gmra.mrb[0].mxu0 %v7346
      %v7547 = vpop.f32.mrb[0].mxu0
      %v7548 = vadd.f32 0.0, %v7547
      %v7549 = vpop.f32.mrb[0].mxu0
      %7550 = vmatprep.mubr.f32.mxu0 0.0
      %7551 = vmatmul.mubr.f32.gmra.mrb[0].mxu0 %v7349
      %v7552 = vpop.f32.mrb[0].mxu0
      %v7553 = vadd.f32 0.0, %v7552
      %v7554 = vpop.f32.mrb[0].mxu0
      %7555 = vmatprep.mubr.f32.mxu0 0.0
      %7556 = vmatmul.mubr.f32.gmra.mrb[0].mxu0 %v7352
      %v7557 = vpop.f32.mrb[0].mxu0
      %v7558 = vadd.f32 0.0, %v7557
      %v7559 = vpop.f32.mrb[0].mxu0
      %7560 = vmatprep.mubr.f32.mxu0 0.0
      %7561 = vmatmul.mubr.f32.gmra.mrb[0].mxu0 %v7355
      %v7562 = vpop.f32.mrb[0].mxu0
      %v7563 = vadd.f32 0.0, %v7562
      %v7564 = vpop.f32.mrb[0].mxu0
      %7565 = vmatprep.mubr.f32.mxu0 0.0
      %7566 = vmatmul.mubr.f32.gmra.mrb[0].mxu0 %v7358
      %v7567 = vpop.f32.mrb[0].mxu0
      %v7568 = vadd.f32 0.0, %v7567
      %v7569 = vpop.f32.mrb[0].mxu0
      %7570 = vmatprep.mubr.f32.mxu0 0.0
      %7571 = vmatmul.mubr.f32.gmra.mrb[0].mxu0 %v7361
      %v7572 = vpop.f32.mrb[0].mxu0
      %v7573 = vadd.f32 0.0, %v7572
      %v7574 = vpop.f32.mrb[0].mxu0
      %7575 = vmatprep.mubr.f32.mxu0 0.0
      %7576 = vmatmul.mubr.f32.gmra.mrb[0].mxu0 %v7364
      %v7577 = vpop.f32.mrb[0].mxu0
      %v7578 = vadd.f32 0.0, %v7577
      %v7579 = vpop.f32.mrb[0].mxu0
      %7580 = vmatprep.mubr.f32.mxu0 0.0
      %7581 = vmatmul.mubr.f32.gmra.mrb[0].mxu0 %v7367
      %v7582 = vpop.f32.mrb[0].mxu0
      %v7583 = vadd.f32 0.0, %v7582
      %v7584 = vpop.f32.mrb[0].mxu0
      %7585 = vmatprep.mubr.f32.mxu0 0.0
      %7586 = vmatmul.mubr.f32.gmra.mrb[0].mxu0 %v7370
      %v7587 = vpop.f32.mrb[0].mxu0
      %v7588 = vadd.f32 0.0, %v7587
      %v7589 = vpop.f32.mrb[0].mxu0
      %7590 = vmatprep.mubr.f32.mxu0 0.0
      %7591 = vmatmul.mubr.f32.gmra.mrb[0].mxu0 %v7373
      %v7592 = vpop.f32.mrb[0].mxu0
      %v7593 = vadd.f32 0.0, %v7592
      %v7594 = vpop.f32.mrb[0].mxu0
      %7595 = vmatprep.mubr.f32.mxu0 0.0
      %7596 = vmatmul.mubr.f32.gmra.mrb[0].mxu0 %v7376
      %v7597 = vpop.f32.mrb[0].mxu0
      %v7598 = vadd.f32 0.0, %v7597
      %v7599 = vpop.f32.mrb[0].mxu0
      %7600 = vmatprep.mubr.f32.mxu0 0.0
      %7601 = vmatmul.mubr.f32.gmra.mrb[0].mxu0 %v7379
      %v7602 = vpop.f32.mrb[0].mxu0
      %v7603 = vadd.f32 0.0, %v7602
      %v7604 = vpop.f32.mrb[0].mxu0
      %7605 = vdwg.mxu0
      %v7606 = vsel %vm1835, %v7448, 0.0
      %v7607 = vsel %vm1835, %v7453, 0.0
      %v7608 = vadd.f32 %v7606, %v7607
      %v7609 = vsel %vm1835, %v7458, 0.0
      %v7610 = vadd.f32 %v7608, %v7609
      %v7611 = vsel %vm1835, %v7463, 0.0
      %v7612 = vadd.f32 %v7610, %v7611
      %v7613 = vsel %vm1835, %v7468, 0.0
      %v7614 = vadd.f32 %v7612, %v7613
      %v7615 = vsel %vm1835, %v7473, 0.0
      %v7616 = vadd.f32 %v7614, %v7615
      %v7617 = vsel %vm1835, %v7478, 0.0
      %v7618 = vadd.f32 %v7616, %v7617
      %v7619 = vsel %vm1835, %v7483, 0.0
      %v7620 = vadd.f32 %v7618, %v7619
      %v7621 = vsel %vm1835, %v7488, 0.0
      %v7622 = vadd.f32 %v7620, %v7621
      %v7623 = vsel %vm1835, %v7493, 0.0
      %v7624 = vadd.f32 %v7622, %v7623
      %v7625 = vsel %vm1835, %v7498, 0.0
      %v7626 = vadd.f32 %v7624, %v7625
      %v7627 = vsel %vm1835, %v7503, 0.0
      %v7628 = vadd.f32 %v7626, %v7627
      %v7629 = vsel %vm1835, %v7508, 0.0
      %v7630 = vadd.f32 %v7628, %v7629
      %v7631 = vsel %vm1835, %v7513, 0.0
      %v7632 = vadd.f32 %v7630, %v7631
      %v7633 = vsel %vm1835, %v7518, 0.0
      %v7634 = vadd.f32 %v7632, %v7633
      %v7635 = vsel %vm1835, %v7523, 0.0
      %v7636 = vadd.f32 %v7634, %v7635
      %v7637 = vsel %vm1835, %v7528, 0.0
      %v7638 = vadd.f32 %v7636, %v7637
      %v7639 = vsel %vm1835, %v7533, 0.0
      %v7640 = vadd.f32 %v7638, %v7639
      %v7641 = vsel %vm1835, %v7538, 0.0
      %v7642 = vadd.f32 %v7640, %v7641
      %v7643 = vsel %vm1835, %v7543, 0.0
      %v7644 = vadd.f32 %v7642, %v7643
      %v7645 = vsel %vm1835, %v7548, 0.0
      %v7646 = vadd.f32 %v7644, %v7645
      %v7647 = vsel %vm1835, %v7553, 0.0
      %v7648 = vadd.f32 %v7646, %v7647
      %v7649 = vsel %vm1835, %v7558, 0.0
      %v7650 = vadd.f32 %v7648, %v7649
      %v7651 = vsel %vm1835, %v7563, 0.0
      %v7652 = vadd.f32 %v7650, %v7651
      %v7653 = vsel %vm1835, %v7568, 0.0
      %v7654 = vadd.f32 %v7652, %v7653
      %v7655 = vsel %vm1835, %v7573, 0.0
      %v7656 = vadd.f32 %v7654, %v7655
      %v7657 = vsel %vm1835, %v7578, 0.0
      %v7658 = vadd.f32 %v7656, %v7657
      %v7659 = vsel %vm1835, %v7583, 0.0
      %v7660 = vadd.f32 %v7658, %v7659
      %v7661 = vsel %vm1835, %v7588, 0.0
      %v7662 = vadd.f32 %v7660, %v7661
      %v7663 = vsel %vm1835, %v7593, 0.0
      %v7664 = vadd.f32 %v7662, %v7663
      %v7665 = vsel %vm1835, %v7598, 0.0
      %v7666 = vadd.f32 %v7664, %v7665
      %v7667 = vsel %vm1835, %v7603, 0.0
      %v7668 = vadd.f32 %v7666, %v7667
      %v7669 = vrot.slane %v7668, 4
      %v7670 = vadd.f32 %v7668, %v7669
      %v7671 = vrot.slane %v7670, 2
      %v7672 = vadd.f32 %v7670, %v7671
      %v7673 = vrot.slane %v7672, 1
      %v7674 = vadd.f32 %v7672, %v7673
      %v7675 = vmul.f32 %v7674, 0.00390625
      %v7676 = vmul.f32 %v7448, %v7448
      %v7677 = vmul.f32 %v7453, %v7453
      %v7678 = vmul.f32 %v7458, %v7458
      %v7679 = vmul.f32 %v7463, %v7463
      %v7680 = vmul.f32 %v7468, %v7468
      %v7681 = vmul.f32 %v7473, %v7473
      %v7682 = vmul.f32 %v7478, %v7478
      %v7683 = vmul.f32 %v7483, %v7483
      %v7684 = vmul.f32 %v7488, %v7488
      %v7685 = vmul.f32 %v7493, %v7493
      %v7686 = vmul.f32 %v7498, %v7498
      %v7687 = vmul.f32 %v7503, %v7503
      %v7688 = vmul.f32 %v7508, %v7508
      %v7689 = vmul.f32 %v7513, %v7513
      %v7690 = vmul.f32 %v7518, %v7518
      %v7691 = vmul.f32 %v7523, %v7523
      %v7692 = vmul.f32 %v7528, %v7528
      %v7693 = vmul.f32 %v7533, %v7533
      %v7694 = vmul.f32 %v7538, %v7538
      %v7695 = vmul.f32 %v7543, %v7543
      %v7696 = vmul.f32 %v7548, %v7548
      %v7697 = vmul.f32 %v7553, %v7553
      %v7698 = vmul.f32 %v7558, %v7558
      %v7699 = vmul.f32 %v7563, %v7563
      %v7700 = vmul.f32 %v7568, %v7568
      %v7701 = vmul.f32 %v7573, %v7573
      %v7702 = vmul.f32 %v7578, %v7578
      %v7703 = vmul.f32 %v7583, %v7583
      %v7704 = vmul.f32 %v7588, %v7588
      %v7705 = vmul.f32 %v7593, %v7593
      %v7706 = vmul.f32 %v7598, %v7598
      %v7707 = vmul.f32 %v7603, %v7603
      %v7708 = vsel %vm1835, %v7676, 0.0
      %v7709 = vsel %vm1835, %v7677, 0.0
      %v7710 = vadd.f32 %v7708, %v7709
      %v7711 = vsel %vm1835, %v7678, 0.0
      %v7712 = vadd.f32 %v7710, %v7711
      %v7713 = vsel %vm1835, %v7679, 0.0
      %v7714 = vadd.f32 %v7712, %v7713
      %v7715 = vsel %vm1835, %v7680, 0.0
      %v7716 = vadd.f32 %v7714, %v7715
      %v7717 = vsel %vm1835, %v7681, 0.0
      %v7718 = vadd.f32 %v7716, %v7717
      %v7719 = vsel %vm1835, %v7682, 0.0
      %v7720 = vadd.f32 %v7718, %v7719
      %v7721 = vsel %vm1835, %v7683, 0.0
      %v7722 = vadd.f32 %v7720, %v7721
      %v7723 = vsel %vm1835, %v7684, 0.0
      %v7724 = vadd.f32 %v7722, %v7723
      %v7725 = vsel %vm1835, %v7685, 0.0
      %v7726 = vadd.f32 %v7724, %v7725
      %v7727 = vsel %vm1835, %v7686, 0.0
      %v7728 = vadd.f32 %v7726, %v7727
      %v7729 = vsel %vm1835, %v7687, 0.0
      %v7730 = vadd.f32 %v7728, %v7729
      %v7731 = vsel %vm1835, %v7688, 0.0
      %v7732 = vadd.f32 %v7730, %v7731
      %v7733 = vsel %vm1835, %v7689, 0.0
      %v7734 = vadd.f32 %v7732, %v7733
      %v7735 = vsel %vm1835, %v7690, 0.0
      %v7736 = vadd.f32 %v7734, %v7735
      %v7737 = vsel %vm1835, %v7691, 0.0
      %v7738 = vadd.f32 %v7736, %v7737
      %v7739 = vsel %vm1835, %v7692, 0.0
      %v7740 = vadd.f32 %v7738, %v7739
      %v7741 = vsel %vm1835, %v7693, 0.0
      %v7742 = vadd.f32 %v7740, %v7741
      %v7743 = vsel %vm1835, %v7694, 0.0
      %v7744 = vadd.f32 %v7742, %v7743
      %v7745 = vsel %vm1835, %v7695, 0.0
      %v7746 = vadd.f32 %v7744, %v7745
      %v7747 = vsel %vm1835, %v7696, 0.0
      %v7748 = vadd.f32 %v7746, %v7747
      %v7749 = vsel %vm1835, %v7697, 0.0
      %v7750 = vadd.f32 %v7748, %v7749
      %v7751 = vsel %vm1835, %v7698, 0.0
      %v7752 = vadd.f32 %v7750, %v7751
      %v7753 = vsel %vm1835, %v7699, 0.0
      %v7754 = vadd.f32 %v7752, %v7753
      %v7755 = vsel %vm1835, %v7700, 0.0
      %v7756 = vadd.f32 %v7754, %v7755
      %v7757 = vsel %vm1835, %v7701, 0.0
      %v7758 = vadd.f32 %v7756, %v7757
      %v7759 = vsel %vm1835, %v7702, 0.0
      %v7760 = vadd.f32 %v7758, %v7759
      %v7761 = vsel %vm1835, %v7703, 0.0
      %v7762 = vadd.f32 %v7760, %v7761
      %v7763 = vsel %vm1835, %v7704, 0.0
      %v7764 = vadd.f32 %v7762, %v7763
      %v7765 = vsel %vm1835, %v7705, 0.0
      %v7766 = vadd.f32 %v7764, %v7765
      %v7767 = vsel %vm1835, %v7706, 0.0
      %v7768 = vadd.f32 %v7766, %v7767
      %v7769 = vsel %vm1835, %v7707, 0.0
      %v7770 = vadd.f32 %v7768, %v7769
      %v7771 = vrot.slane %v7770, 4
      %v7772 = vadd.f32 %v7770, %v7771
      %v7773 = vrot.slane %v7772, 2
      %v7774 = vadd.f32 %v7772, %v7773
      %v7775 = vrot.slane %v7774, 1
      %v7776 = vadd.f32 %v7774, %v7775
      %v7777 = vmul.f32 %v7776, 0.00390625
      %v7778 = vmul.f32 %v7675, %v7675
      %v7779 = vsub.f32 %v7777, %v7778
      %v7780 = vmax.f32 %v7779, 0.0
      %s7781 = scalar_lea.vmem %s2, 12
      %v7782 = vld [vmem:[%s7781] sm:$0x7]
      %v7783 = vsub.f32 %v7448, %v7675
      %v7784 = vsub.f32 %v7453, %v7675
      %v7785 = vsub.f32 %v7458, %v7675
      %v7786 = vsub.f32 %v7463, %v7675
      %v7787 = vsub.f32 %v7468, %v7675
      %v7788 = vsub.f32 %v7473, %v7675
      %v7789 = vsub.f32 %v7478, %v7675
      %v7790 = vsub.f32 %v7483, %v7675
      %v7791 = vsub.f32 %v7488, %v7675
      %v7792 = vsub.f32 %v7493, %v7675
      %v7793 = vsub.f32 %v7498, %v7675
      %v7794 = vsub.f32 %v7503, %v7675
      %v7795 = vsub.f32 %v7508, %v7675
      %v7796 = vsub.f32 %v7513, %v7675
      %v7797 = vsub.f32 %v7518, %v7675
      %v7798 = vsub.f32 %v7523, %v7675
      %v7799 = vsub.f32 %v7528, %v7675
      %v7800 = vsub.f32 %v7533, %v7675
      %v7801 = vsub.f32 %v7538, %v7675
      %v7802 = vsub.f32 %v7543, %v7675
      %v7803 = vsub.f32 %v7548, %v7675
      %v7804 = vsub.f32 %v7553, %v7675
      %v7805 = vsub.f32 %v7558, %v7675
      %v7806 = vsub.f32 %v7563, %v7675
      %v7807 = vsub.f32 %v7568, %v7675
      %v7808 = vsub.f32 %v7573, %v7675
      %v7809 = vsub.f32 %v7578, %v7675
      %v7810 = vsub.f32 %v7583, %v7675
      %v7811 = vsub.f32 %v7588, %v7675
      %v7812 = vsub.f32 %v7593, %v7675
      %v7813 = vsub.f32 %v7598, %v7675
      %v7814 = vsub.f32 %v7603, %v7675
      %v7815 = vadd.f32 %v7780, 1e-05
      %v7816 = vrsqrt.pop %v7815
      %v7817 = vmul.f32 %v7783, %v7816
      %v7818 = vmul.f32 %v7784, %v7816
      %v7819 = vmul.f32 %v7785, %v7816
      %v7820 = vmul.f32 %v7786, %v7816
      %v7821 = vmul.f32 %v7787, %v7816
      %v7822 = vmul.f32 %v7788, %v7816
      %v7823 = vmul.f32 %v7789, %v7816
      %v7824 = vmul.f32 %v7790, %v7816
      %v7825 = vmul.f32 %v7791, %v7816
      %v7826 = vmul.f32 %v7792, %v7816
      %v7827 = vmul.f32 %v7793, %v7816
      %v7828 = vmul.f32 %v7794, %v7816
      %v7829 = vmul.f32 %v7795, %v7816
      %v7830 = vmul.f32 %v7796, %v7816
      %v7831 = vmul.f32 %v7797, %v7816
      %v7832 = vmul.f32 %v7798, %v7816
      %v7833 = vmul.f32 %v7799, %v7816
      %v7834 = vmul.f32 %v7800, %v7816
      %v7835 = vmul.f32 %v7801, %v7816
      %v7836 = vmul.f32 %v7802, %v7816
      %v7837 = vmul.f32 %v7803, %v7816
      %v7838 = vmul.f32 %v7804, %v7816
      %v7839 = vmul.f32 %v7805, %v7816
      %v7840 = vmul.f32 %v7806, %v7816
      %v7841 = vmul.f32 %v7807, %v7816
      %v7842 = vmul.f32 %v7808, %v7816
      %v7843 = vmul.f32 %v7809, %v7816
      %v7844 = vmul.f32 %v7810, %v7816
      %v7845 = vmul.f32 %v7811, %v7816
      %v7846 = vmul.f32 %v7812, %v7816
      %v7847 = vmul.f32 %v7813, %v7816
      %v7848 = vmul.f32 %v7814, %v7816
      %v7849 = vlaneseq
      %v7850 = vshrl.u32 %v7849, 7
      %v7851 = vsub.s32 0, %v7850
      %v7852 = vrot.slane %v7782, %v7851
      %v7853 = vmul.f32 %v7817, %v7852
      %v7854 = vmul.f32 %v7818, %v7852
      %v7855 = vmul.f32 %v7819, %v7852
      %v7856 = vmul.f32 %v7820, %v7852
      %v7857 = vmul.f32 %v7821, %v7852
      %v7858 = vmul.f32 %v7822, %v7852
      %v7859 = vmul.f32 %v7823, %v7852
      %v7860 = vmul.f32 %v7824, %v7852
      %v7861 = vmul.f32 %v7825, %v7852
      %v7862 = vmul.f32 %v7826, %v7852
      %v7863 = vmul.f32 %v7827, %v7852
      %v7864 = vmul.f32 %v7828, %v7852
      %v7865 = vmul.f32 %v7829, %v7852
      %v7866 = vmul.f32 %v7830, %v7852
      %v7867 = vmul.f32 %v7831, %v7852
      %v7868 = vmul.f32 %v7832, %v7852
      %v7869 = vmul.f32 %v7833, %v7852
      %v7870 = vmul.f32 %v7834, %v7852
      %v7871 = vmul.f32 %v7835, %v7852
      %v7872 = vmul.f32 %v7836, %v7852
      %v7873 = vmul.f32 %v7837, %v7852
      %v7874 = vmul.f32 %v7838, %v7852
      %v7875 = vmul.f32 %v7839, %v7852
      %v7876 = vmul.f32 %v7840, %v7852
      %v7877 = vmul.f32 %v7841, %v7852
      %v7878 = vmul.f32 %v7842, %v7852
      %v7879 = vmul.f32 %v7843, %v7852
      %v7880 = vmul.f32 %v7844, %v7852
      %v7881 = vmul.f32 %v7845, %v7852
      %v7882 = vmul.f32 %v7846, %v7852
      %v7883 = vmul.f32 %v7847, %v7852
      %v7884 = vmul.f32 %v7848, %v7852
      %v7885 = vlaneseq
      %v7886 = vshrl.u32 %v7885, 7
      %v7887 = vsub.s32 1, %v7886
      %v7888 = vrot.slane %v7782, %v7887
      %v7889 = vadd.f32 %v7853, %v7888
      %v7890 = vadd.f32 %v7854, %v7888
      %v7891 = vadd.f32 %v7855, %v7888
      %v7892 = vadd.f32 %v7856, %v7888
      %v7893 = vadd.f32 %v7857, %v7888
      %v7894 = vadd.f32 %v7858, %v7888
      %v7895 = vadd.f32 %v7859, %v7888
      %v7896 = vadd.f32 %v7860, %v7888
      %v7897 = vadd.f32 %v7861, %v7888
      %v7898 = vadd.f32 %v7862, %v7888
      %v7899 = vadd.f32 %v7863, %v7888
      %v7900 = vadd.f32 %v7864, %v7888
      %v7901 = vadd.f32 %v7865, %v7888
      %v7902 = vadd.f32 %v7866, %v7888
      %v7903 = vadd.f32 %v7867, %v7888
      %v7904 = vadd.f32 %v7868, %v7888
      %v7905 = vadd.f32 %v7869, %v7888
      %v7906 = vadd.f32 %v7870, %v7888
      %v7907 = vadd.f32 %v7871, %v7888
      %v7908 = vadd.f32 %v7872, %v7888
      %v7909 = vadd.f32 %v7873, %v7888
      %v7910 = vadd.f32 %v7874, %v7888
      %v7911 = vadd.f32 %v7875, %v7888
      %v7912 = vadd.f32 %v7876, %v7888
      %v7913 = vadd.f32 %v7877, %v7888
      %v7914 = vadd.f32 %v7878, %v7888
      %v7915 = vadd.f32 %v7879, %v7888
      %v7916 = vadd.f32 %v7880, %v7888
      %v7917 = vadd.f32 %v7881, %v7888
      %v7918 = vadd.f32 %v7882, %v7888
      %v7919 = vadd.f32 %v7883, %v7888
      %v7920 = vadd.f32 %v7884, %v7888
      %vm7921 = vcmp.ge.f32.partialorder %v7889, 0.0
      %vm7922 = vcmp.ge.f32.partialorder %v7890, 0.0
      %vm7923 = vcmp.ge.f32.partialorder %v7891, 0.0
      %vm7924 = vcmp.ge.f32.partialorder %v7892, 0.0
      %vm7925 = vcmp.ge.f32.partialorder %v7893, 0.0
      %vm7926 = vcmp.ge.f32.partialorder %v7894, 0.0
      %vm7927 = vcmp.ge.f32.partialorder %v7895, 0.0
      %vm7928 = vcmp.ge.f32.partialorder %v7896, 0.0
      %vm7929 = vcmp.ge.f32.partialorder %v7897, 0.0
      %vm7930 = vcmp.ge.f32.partialorder %v7898, 0.0
      %vm7931 = vcmp.ge.f32.partialorder %v7899, 0.0
      %vm7932 = vcmp.ge.f32.partialorder %v7900, 0.0
      %vm7933 = vcmp.ge.f32.partialorder %v7901, 0.0
      %vm7934 = vcmp.ge.f32.partialorder %v7902, 0.0
      %vm7935 = vcmp.ge.f32.partialorder %v7903, 0.0
      %vm7936 = vcmp.ge.f32.partialorder %v7904, 0.0
      %vm7937 = vcmp.ge.f32.partialorder %v7905, 0.0
      %vm7938 = vcmp.ge.f32.partialorder %v7906, 0.0
      %vm7939 = vcmp.ge.f32.partialorder %v7907, 0.0
      %vm7940 = vcmp.ge.f32.partialorder %v7908, 0.0
      %vm7941 = vcmp.ge.f32.partialorder %v7909, 0.0
      %vm7942 = vcmp.ge.f32.partialorder %v7910, 0.0
      %vm7943 = vcmp.ge.f32.partialorder %v7911, 0.0
      %vm7944 = vcmp.ge.f32.partialorder %v7912, 0.0
      %vm7945 = vcmp.ge.f32.partialorder %v7913, 0.0
      %vm7946 = vcmp.ge.f32.partialorder %v7914, 0.0
      %vm7947 = vcmp.ge.f32.partialorder %v7915, 0.0
      %vm7948 = vcmp.ge.f32.partialorder %v7916, 0.0
      %vm7949 = vcmp.ge.f32.partialorder %v7917, 0.0
      %vm7950 = vcmp.ge.f32.partialorder %v7918, 0.0
      %vm7951 = vcmp.ge.f32.partialorder %v7919, 0.0
      %vm7952 = vcmp.ge.f32.partialorder %v7920, 0.0
      %v7953 = vlaneseq
      %v7954 = vshrl.u32 %v7953, 7
      %v7955 = vsub.s32 2, %v7954
      %v7956 = vrot.slane %v7782, %v7955
      %v7957 = vmul.f32 %v7956, %v7889
      %v7958 = vmul.f32 %v7956, %v7890
      %v7959 = vmul.f32 %v7956, %v7891
      %v7960 = vmul.f32 %v7956, %v7892
      %v7961 = vmul.f32 %v7956, %v7893
      %v7962 = vmul.f32 %v7956, %v7894
      %v7963 = vmul.f32 %v7956, %v7895
      %v7964 = vmul.f32 %v7956, %v7896
      %v7965 = vmul.f32 %v7956, %v7897
      %v7966 = vmul.f32 %v7956, %v7898
      %v7967 = vmul.f32 %v7956, %v7899
      %v7968 = vmul.f32 %v7956, %v7900
      %v7969 = vmul.f32 %v7956, %v7901
      %v7970 = vmul.f32 %v7956, %v7902
      %v7971 = vmul.f32 %v7956, %v7903
      %v7972 = vmul.f32 %v7956, %v7904
      %v7973 = vmul.f32 %v7956, %v7905
      %v7974 = vmul.f32 %v7956, %v7906
      %v7975 = vmul.f32 %v7956, %v7907
      %v7976 = vmul.f32 %v7956, %v7908
      %v7977 = vmul.f32 %v7956, %v7909
      %v7978 = vmul.f32 %v7956, %v7910
      %v7979 = vmul.f32 %v7956, %v7911
      %v7980 = vmul.f32 %v7956, %v7912
      %v7981 = vmul.f32 %v7956, %v7913
      %v7982 = vmul.f32 %v7956, %v7914
      %v7983 = vmul.f32 %v7956, %v7915
      %v7984 = vmul.f32 %v7956, %v7916
      %v7985 = vmul.f32 %v7956, %v7917
      %v7986 = vmul.f32 %v7956, %v7918
      %v7987 = vmul.f32 %v7956, %v7919
      %v7988 = vmul.f32 %v7956, %v7920
      %v7989 = vsel %vm7921, %v7889, %v7957
      %v7990 = vsel %vm7922, %v7890, %v7958
      %v7991 = vsel %vm7923, %v7891, %v7959
      %v7992 = vsel %vm7924, %v7892, %v7960
      %v7993 = vsel %vm7925, %v7893, %v7961
      %v7994 = vsel %vm7926, %v7894, %v7962
      %v7995 = vsel %vm7927, %v7895, %v7963
      %v7996 = vsel %vm7928, %v7896, %v7964
      %v7997 = vsel %vm7929, %v7897, %v7965
      %v7998 = vsel %vm7930, %v7898, %v7966
      %v7999 = vsel %vm7931, %v7899, %v7967
      %v8000 = vsel %vm7932, %v7900, %v7968
      %v8001 = vsel %vm7933, %v7901, %v7969
      %v8002 = vsel %vm7934, %v7902, %v7970
      %v8003 = vsel %vm7935, %v7903, %v7971
      %v8004 = vsel %vm7936, %v7904, %v7972
      %v8005 = vsel %vm7937, %v7905, %v7973
      %v8006 = vsel %vm7938, %v7906, %v7974
      %v8007 = vsel %vm7939, %v7907, %v7975
      %v8008 = vsel %vm7940, %v7908, %v7976
      %v8009 = vsel %vm7941, %v7909, %v7977
      %v8010 = vsel %vm7942, %v7910, %v7978
      %v8011 = vsel %vm7943, %v7911, %v7979
      %v8012 = vsel %vm7944, %v7912, %v7980
      %v8013 = vsel %vm7945, %v7913, %v7981
      %v8014 = vsel %vm7946, %v7914, %v7982
      %v8015 = vsel %vm7947, %v7915, %v7983
      %v8016 = vsel %vm7948, %v7916, %v7984
      %v8017 = vsel %vm7949, %v7917, %v7985
      %v8018 = vsel %vm7950, %v7918, %v7986
      %v8019 = vsel %vm7951, %v7919, %v7987
      %v8020 = vsel %vm7952, %v7920, %v7988
      %8021 = vst.msk [vmem:[%s170] sm:$0xff] %vm1835, %v7989
      %8022 = vst.msk [vmem:[%s170 + $0x8] sm:$0xff] %vm1835, %v7990
      %8023 = vst.msk [vmem:[%s170 + $0x10] sm:$0xff] %vm1835, %v7991
      %8024 = vst.msk [vmem:[%s170 + $0x18] sm:$0xff] %vm1835, %v7992
      %8025 = vst.msk [vmem:[%s170 + $0x20] sm:$0xff] %vm1835, %v7993
      %8026 = vst.msk [vmem:[%s170 + $0x28] sm:$0xff] %vm1835, %v7994
      %8027 = vst.msk [vmem:[%s170 + $0x30] sm:$0xff] %vm1835, %v7995
      %8028 = vst.msk [vmem:[%s170 + $0x38] sm:$0xff] %vm1835, %v7996
      %8029 = vst.msk [vmem:[%s170 + $0x40] sm:$0xff] %vm1835, %v7997
      %8030 = vst.msk [vmem:[%s170 + $0x48] sm:$0xff] %vm1835, %v7998
      %8031 = vst.msk [vmem:[%s170 + $0x50] sm:$0xff] %vm1835, %v7999
      %8032 = vst.msk [vmem:[%s170 + $0x58] sm:$0xff] %vm1835, %v8000
      %8033 = vst.msk [vmem:[%s170 + $0x60] sm:$0xff] %vm1835, %v8001
      %8034 = vst.msk [vmem:[%s170 + $0x68] sm:$0xff] %vm1835, %v8002
      %8035 = vst.msk [vmem:[%s170 + $0x70] sm:$0xff] %vm1835, %v8003
      %8036 = vst.msk [vmem:[%s170 + $0x78] sm:$0xff] %vm1835, %v8004
      %8037 = vst.msk [vmem:[%s170 + $0x80] sm:$0xff] %vm1835, %v8005
      %8038 = vst.msk [vmem:[%s170 + $0x88] sm:$0xff] %vm1835, %v8006
      %8039 = vst.msk [vmem:[%s170 + $0x90] sm:$0xff] %vm1835, %v8007
      %8040 = vst.msk [vmem:[%s170 + $0x98] sm:$0xff] %vm1835, %v8008
      %8041 = vst.msk [vmem:[%s170 + $0xa0] sm:$0xff] %vm1835, %v8009
      %8042 = vst.msk [vmem:[%s170 + $0xa8] sm:$0xff] %vm1835, %v8010
      %8043 = vst.msk [vmem:[%s170 + $0xb0] sm:$0xff] %vm1835, %v8011
      %8044 = vst.msk [vmem:[%s170 + $0xb8] sm:$0xff] %vm1835, %v8012
      %8045 = vst.msk [vmem:[%s170 + $0xc0] sm:$0xff] %vm1835, %v8013
      %8046 = vst.msk [vmem:[%s170 + $0xc8] sm:$0xff] %vm1835, %v8014
      %8047 = vst.msk [vmem:[%s170 + $0xd0] sm:$0xff] %vm1835, %v8015
      %8048 = vst.msk [vmem:[%s170 + $0xd8] sm:$0xff] %vm1835, %v8016
      %8049 = vst.msk [vmem:[%s170 + $0xe0] sm:$0xff] %vm1835, %v8017
      %8050 = vst.msk [vmem:[%s170 + $0xe8] sm:$0xff] %vm1835, %v8018
      %8051 = vst.msk [vmem:[%s170 + $0xf0] sm:$0xff] %vm1835, %v8019
      %8052 = vst.msk [vmem:[%s170 + $0xf8] sm:$0xff] %vm1835, %v8020
      %p8053 = scmp.lt.s32.totalorder %s14, 1
      %s8054 = scalar_select %p8053, %s14, 1
      %s8055 = smul.addr %s8054, 32
      %s8056 = smul.addr %s8055, 8
      %s8057 = scalar_lea.vmem %s3, %s8056
      // Predicated region
      $region33: #{tpu_custom_call.1} parent=31 // pred_check
        %p8058 = pneg %p100
      $region34: #{tpu_custom_call.1} parent=31 // pred_check_branch
        %8060 = sbr.rel (%p8058) target = $region36
      $region35: #{tpu_custom_call.1} parent=31 // pred_region
        _
      $region36: #{tpu_custom_call.1} parent=31 // pred_fallthru
        _
    $region32: #{tpu_custom_call.1} parent=5 // pred_fallthru
      _
    %p8061 = scmp.le.s32.totalorder 2, %s9
    // Predicated region
    $region37: #{tpu_custom_call.1} parent=5 // pred_check
      %p8062 = pneg %p8061
    $region38: #{tpu_custom_call.1} parent=5 // pred_check_branch
      %8064 = sbr.rel (%p8062) target = $region40
    $region39: #{tpu_custom_call.1} parent=5 // pred_region
      %s8065 = ssub.s32 %s9, 2
      // Predicated region
      $region41: #{tpu_custom_call.1} parent=39 // pred_check
        %p8066 = pneg %p106
      $region42: #{tpu_custom_call.1} parent=39 // pred_check_branch
        %8068 = sbr.rel (%p8066) target = $region44
      $region43: #{tpu_custom_call.1} parent=39 // pred_region
        %p8069 = scmp.lt.s32.totalorder %s15, 1
        %s8070 = scalar_select %p8069, %s15, 1
        %s8071 = smul.addr %s8070, 32
        %s8072 = smul.addr %s8071, 8
        %s8073 = scalar_lea.vmem %s3, %s8072
      $region44: #{tpu_custom_call.1} parent=39 // pred_fallthru
        _
    $region40: #{tpu_custom_call.1} parent=5 // pred_fallthru
      _
  $region6: #{tpu_custom_call.1} parent=0 // loop_footer
    %s13 = sadd.s32 1, %s9
  $region7: #{tpu_custom_call.1} parent=0 // loop_footer_branch
    %8 = sbr.rel target = $region3
  $region8: #{tpu_custom_call.1} parent=0 // loop_exit
    _

</llo_original>
